<compile_context>
chip_gen: v7x
topology: tpu7x:2x2x1
jax: 0.10.0
libtpu: 0.0.40
codegen_flags: <defaults>
</compile_context>

<pallas_src>
import math
from functools import partial

import jax
import jax.numpy as jnp
from jax.experimental import pallas as pl
from jax.experimental.pallas import tpu as pltpu


T_QUERIES = 6   # EmotionDecoder uses 6 learned emotion queries
T_PAD = 8       # padded to a sublane multiple; extra rows masked + sliced off

LAYER_KEYS = ["w_qkv_s", "b_qkv_s", "wo_s", "bo_s",
              "wq_c", "bq_c", "w_kv_c", "b_kv_c", "wo_c", "bo_c",
              "w1", "b1", "w2", "b2",
              "n1w", "n1b", "n2w", "n2b", "n3w", "n3b"]
HEAD_KEYS = ["hn_w", "hn_b", "c1w", "c1b", "c2w", "c2b"]
BF16_KEYS = {"w_qkv_s", "wo_s", "wq_c", "w_kv_c", "wo_c", "w1", "w2", "c1w", "c2w"}


# ---------------------------------------------------------------------------
# Shared math helpers
# ---------------------------------------------------------------------------
def _layernorm(x, w, b, eps=1e-5):
    mu = jnp.mean(x, axis=-1, keepdims=True)
    xc = x - mu
    var = jnp.mean(xc * xc, axis=-1, keepdims=True)
    return xc * jax.lax.rsqrt(var + eps) * w + b


# ---------------------------------------------------------------------------
# Fused kernel: one decoder layer per grid step; final norm + head on last step
# ---------------------------------------------------------------------------
def decoder_layer_kernel(q_ref, mem_ref, mask_ref,
                         w_qkv_s, b_qkv_s, wo_s, bo_s,
                         wq_c, bq_c, w_kv_c, b_kv_c, wo_c, bo_c,
                         w1, b1, w2, b2,
                         n1w, n1b, n2w, n2b, n3w, n3b,
                         hn_w, hn_b, c1w, c1b, c2w, c2b,
                         out_ref,
                         x_scr, sqkv_scr, cq_scr, ckv_scr,
                         *, H, T_real):
    Bblk, S, D = mem_ref.shape
    TP = q_ref.shape[0]
    hd = D // H
    BT = Bblk * TP
    BS = Bblk * S
    scale = 1.0 / math.sqrt(hd)
    bf16 = jnp.bfloat16
    l = pl.program_id(1)

    # (Re)initialize the carried target activations at the first layer of each block.
    @pl.when(l == 0)
    def _():
        x_scr[...] = jnp.broadcast_to(q_ref[...][None, :, :],
                                      (Bblk, TP, D)).reshape(BT, D)

    x = x_scr[...]                                         # (BT, D)  f32
    mem = mem_ref[...].reshape(BS, D)                      # (BS, D)  bf16

    # Additive key biases (scores accumulate in f32).
    kp_bias = mask_ref[...] * (-1e30)                      # (Bblk, 1, S); 1.0 = padded
    tgt_bias = jnp.where(                                  # mask the 2 dummy query rows
        jax.lax.broadcasted_iota(jnp.int32, (1, 1, TP), 2) < T_real, 0.0, -1e30)

    def mha(q_scr, q_off, kv_scr, k_off, v_off, Sk, wo_l, bo_l, bias):
        """Per-head attention with head outputs folded into the out-projection."""
        attn = jnp.zeros((BT, D), jnp.float32)
        for h in range(H):
            qh = q_scr[:, q_off + h * hd: q_off + (h + 1) * hd].reshape(Bblk, TP, hd)
            kh = kv_scr[:, k_off + h * hd: k_off + (h + 1) * hd].reshape(Bblk, Sk, hd)
            vh = kv_scr[:, v_off + h * hd: v_off + (h + 1) * hd].reshape(Bblk, Sk, hd)
            s = jnp.einsum('bqd,bkd->bqk', qh, kh,
                           preferred_element_type=jnp.float32) * scale + bias
            s = s - jnp.max(s, axis=-1, keepdims=True)
            e = jnp.exp(s)
            p = e * pl.reciprocal(jnp.sum(e, axis=-1, keepdims=True), approx=True)
            oh = jnp.einsum('bqk,bkd->bqd', p.astype(bf16), vh,
                            preferred_element_type=jnp.float32)       # (Bblk, TP, hd)
            attn = attn + jnp.dot(oh.reshape(BT, hd).astype(bf16),
                                  wo_l[h * hd:(h + 1) * hd, :],
                                  preferred_element_type=jnp.float32)
        return attn + bo_l

    # ---------------- one post-norm TransformerDecoderLayer --------------------------
    # self-attention: fused QKV projection
    sqkv_scr[...] = (jnp.dot(x.astype(bf16), w_qkv_s[0],
                             preferred_element_type=jnp.float32)
                     + b_qkv_s[0]).astype(bf16)
    sa = mha(sqkv_scr, 0, sqkv_scr, D, 2 * D, TP, wo_s[0], bo_s[0], tgt_bias)
    x = _layernorm(x + sa, n1w[0], n1b[0])

    # cross-attention: Q from target, fused K/V from memory, key-padding bias
    cq_scr[...] = (jnp.dot(x.astype(bf16), wq_c[0],
                           preferred_element_type=jnp.float32) + bq_c[0]).astype(bf16)
    ckv_scr[...] = (jnp.dot(mem, w_kv_c[0],
                            preferred_element_type=jnp.float32) + b_kv_c[0]).astype(bf16)
    ca = mha(cq_scr, 0, ckv_scr, 0, D, S, wo_c[0], bo_c[0], kp_bias)
    x = _layernorm(x + ca, n2w[0], n2b[0])

    # feed-forward (ReLU); dropout = identity (eval mode)
    hff = jnp.maximum(jnp.dot(x.astype(bf16), w1[0],
                              preferred_element_type=jnp.float32) + b1[0], 0.0)
    ff = jnp.dot(hff.astype(bf16), w2[0],
                 preferred_element_type=jnp.float32) + b2[0]
    x = _layernorm(x + ff, n3w[0], n3b[0])

    x_scr[...] = x

    # ---------------- final norm + classifier head (last layer only) -----------------
    @pl.when(l == pl.num_programs(1) - 1)
    def _():
        xf = _layernorm(x, hn_w[...], hn_b[...])
        h1 = jnp.dot(xf.astype(bf16), c1w[...],
                     preferred_element_type=jnp.float32) + c1b[...]     # Linear(D, D)
        h1 = jnp.where(h1 >= 0.0, h1, 0.1 * h1)                         # LeakyReLU(0.1)
        z = jnp.sum(h1.reshape(Bblk, TP, D) * c2w[...].astype(jnp.float32),
                    axis=-1) + c2b[...]                                  # Linear(D, 1)
        out_ref[...] = pl.reciprocal(1.0 + jnp.exp(-z),                  # Sigmoid
                                     approx=True).reshape(Bblk, 1, TP)


# ---------------------------------------------------------------------------
# Wrapper
# ---------------------------------------------------------------------------
def _layer_spec(p):
    # Stream the l-th slice of an (L, ..., ...) stacked parameter per grid step.
    return pl.BlockSpec((1,) + p.shape[1:], lambda b, l: (l, 0, 0))


def _const_spec(p):
    nd = p.ndim
    return pl.BlockSpec(p.shape, lambda b, l, nd=nd: (0,) * nd)


def _choose_block_b(B, cap=32):
    # Largest divisor of B that is <= cap (BT = Bblk*8 up to 256 rows for the MXU).
    best = 1
    for d in range(1, min(B, cap) + 1):
        if B % d == 0:
            best = d
    return best


def emotion_decoder_forward(memory, memory_padding_mask, params, nhead, block_b=None):
    """memory: (B, S, D) float, memory_padding_mask: (B, S) bool (True = padded).
    Returns (B, 6) sigmoid logits, matching the PyTorch module's output layout."""
    B, S, D = memory.shape
    T = params["queries"].shape[0]           # 6
    L = params["w_qkv_s"].shape[0]
    assert D % nhead == 0

    Bblk = block_b if block_b is not None else _choose_block_b(B)
    assert B % Bblk == 0
    nblk = B // Bblk
    BT, BS = Bblk * T_PAD, Bblk * S

    # 6 learned queries padded to 8 sublane-aligned rows; dummy rows masked in-kernel.
    q_pad = jnp.zeros((T_PAD, D), jnp.float32).at[:T].set(
        params["queries"].astype(jnp.float32))
    mem = memory.astype(jnp.bfloat16)                                   # halve mem DMA
    mask_f = memory_padding_mask.astype(jnp.float32).reshape(B, 1, S)   # 1.0 = padded

    def prep(k):
        p = params[k]
        return p.astype(jnp.bfloat16) if k in BF16_KEYS else p.astype(jnp.float32)

    layer_params = [prep(k) for k in LAYER_KEYS]
    head_params = [prep(k) for k in HEAD_KEYS]

    in_specs = ([pl.BlockSpec((T_PAD, D), lambda b, l: (0, 0)),          # queries (once)
                 pl.BlockSpec((Bblk, S, D), lambda b, l: (b, 0, 0)),     # memory
                 pl.BlockSpec((Bblk, 1, S), lambda b, l: (b, 0, 0))]     # padding mask
                + [_layer_spec(p) for p in layer_params]                 # per-layer stream
                + [_const_spec(p) for p in head_params])                 # head params

    out = pl.pallas_call(
        partial(decoder_layer_kernel, H=nhead, T_real=T),
        out_shape=jax.ShapeDtypeStruct((B, 1, T_PAD), jnp.float32),
        grid=(nblk, L),
        in_specs=in_specs,
        out_specs=pl.BlockSpec((Bblk, 1, T_PAD), lambda b, l: (b, 0, 0)),
        scratch_shapes=[
            pltpu.VMEM((BT, D), jnp.float32),        # carried target activations
            pltpu.VMEM((BT, 3 * D), jnp.bfloat16),   # fused self-attn QKV
            pltpu.VMEM((BT, D), jnp.bfloat16),       # cross-attn Q
            pltpu.VMEM((BS, 2 * D), jnp.bfloat16),   # fused cross-attn K/V
        ],
        compiler_params=pltpu.CompilerParams(
            dimension_semantics=("parallel", "arbitrary"),
            # Headroom below v7x's 64 MiB per-TC VMEM; ~2 layers of bf16 weights resident.
            vmem_limit_bytes=48 * 1024 * 1024,
        ),
    )(q_pad, mem, mask_f, *layer_params, *head_params)
    return out[:, 0, :T]   # (B, 6)


# ---------------------------------------------------------------------------
# Deterministic parameter init (layer weights stacked along a leading L axis;
# Linear weights stored transposed to (in, out) for x @ W; QKV / KV fused)
# ---------------------------------------------------------------------------
def init_params(key, num_layers, d_model, nhead, dim_feedforward):
    D, F, L = d_model, dim_feedforward, num_layers
    keys = iter(jax.random.split(key, 64))

    def w(shape, scale=0.05):
        return (scale * jax.random.normal(next(keys), shape)).astype(jnp.float32)

    zeros = lambda s: jnp.zeros(s, jnp.float32)
    ones = lambda s: jnp.ones(s, jnp.float32)

    params = {
        "queries": w((T_QUERIES, D)),                                # nn.Embedding(6, D)
        # self-attn: fused QKV in-proj + out-proj
        "w_qkv_s": w((L, D, 3 * D)), "b_qkv_s": w((L, 1, 3 * D)),
        "wo_s": w((L, D, D)), "bo_s": w((L, 1, D)),
        # cross-attn: Q in-proj, fused K/V in-proj, out-proj
        "wq_c": w((L, D, D)), "bq_c": w((L, 1, D)),
        "w_kv_c": w((L, D, 2 * D)), "b_kv_c": w((L, 1, 2 * D)),
        "wo_c": w((L, D, D)), "bo_c": w((L, 1, D)),
        # FFN
        "w1": w((L, D, F)), "b1": w((L, 1, F)),
        "w2": w((L, F, D)), "b2": w((L, 1, D)),
        # layer norms
        "n1w": ones((L, 1, D)), "n1b": zeros((L, 1, D)),
        "n2w": ones((L, 1, D)), "n2b": zeros((L, 1, D)),
        "n3w": ones((L, 1, D)), "n3b": zeros((L, 1, D)),
        # final norm + classifier head
        "hn_w": ones((1, D)), "hn_b": zeros((1, D)),
        "c1w": w((D, D)), "c1b": w((1, D)),
        "c2w": w((1, D)), "c2b": zeros((1, 1)),
    }
    return params


# ---------------------------------------------------------------------------
# Pure-JAX f32 reference (same math, no Pallas, no padding, no bf16)
# ---------------------------------------------------------------------------
def ref_forward(memory, memory_padding_mask, params, nhead):
    B, S, D = memory.shape
    T = params["queries"].shape[0]
    H, hd = nhead, D // nhead
    L = params["w_qkv_s"].shape[0]
    bias = jnp.where(memory_padding_mask, -1e30, 0.0)[:, None, None, :]  # (B,1,1,S)

    x = jnp.broadcast_to(params["queries"][None].astype(jnp.float32), (B, T, D))
    mem = memory.astype(jnp.float32)

    def mha(q_in, kv_in, wq, bq, wk, bk, wv, bv, wo, bo, kp_bias=None):
        q = q_in @ wq + bq
        k = kv_in @ wk + bk
        v = kv_in @ wv + bv
        q = q.reshape(B, -1, H, hd).transpose(0, 2, 1, 3)
        k = k.reshape(B, -1, H, hd).transpose(0, 2, 1, 3)
        v = v.reshape(B, -1, H, hd).transpose(0, 2, 1, 3)
        s = jnp.einsum('bhtd,bhsd->bhts', q, k) / math.sqrt(hd)
        if kp_bias is not None:
            s = s + kp_bias
        s = s - jnp.max(s, axis=-1, keepdims=True)
        e = jnp.exp(s)
        p = e / jnp.sum(e, axis=-1, keepdims=True)
        o = jnp.einsum('bhts,bhsd->bhtd', p, v).transpose(0, 2, 1, 3).reshape(B, -1, D)
        return o @ wo + bo

    for l in range(L):
        Wqkv, bqkv = params["w_qkv_s"][l], params["b_qkv_s"][l]
        sa = mha(x, x,
                 Wqkv[:, :D], bqkv[:, :D], Wqkv[:, D:2 * D], bqkv[:, D:2 * D],
                 Wqkv[:, 2 * D:], bqkv[:, 2 * D:], params["wo_s"][l], params["bo_s"][l])
        x = _layernorm(x + sa, params["n1w"][l], params["n1b"][l])
        Wkv, bkv = params["w_kv_c"][l], params["b_kv_c"][l]
        ca = mha(x, mem,
                 params["wq_c"][l], params["bq_c"][l],
                 Wkv[:, :D], bkv[:, :D], Wkv[:, D:], bkv[:, D:],
                 params["wo_c"][l], params["bo_c"][l], kp_bias=bias)
        x = _layernorm(x + ca, params["n2w"][l], params["n2b"][l])
        h = jnp.maximum(x @ params["w1"][l] + params["b1"][l], 0.0)
        x = _layernorm(x + h @ params["w2"][l] + params["b2"][l],
                       params["n3w"][l], params["n3b"][l])

    x = _layernorm(x, params["hn_w"], params["hn_b"])
    h = x @ params["c1w"] + params["c1b"]
    h = jnp.where(h >= 0.0, h, 0.1 * h)
    z = jnp.sum(h * params["c2w"], axis=-1) + params["c2b"][0, 0]
    return 1.0 / (1.0 + jnp.exp(-z))


if __name__ == "__main__":
    num_layers, d_model, nhead, dim_ff = 2, 32, 4, 64
    B, S = 4, 8

    key = jax.random.PRNGKey(0)
    kp, km = jax.random.split(key)
    params = init_params(kp, num_layers, d_model, nhead, dim_ff)

    memory = jax.random.normal(km, (B, S, d_model), dtype=jnp.float32)
    lengths = jnp.array([S, 5, S, 3])
    memory_padding_mask = jnp.arange(S)[None, :] >= lengths[:, None]   # True = padded

    logits = emotion_decoder_forward(memory, memory_padding_mask, params, nhead)
    logits = jax.block_until_ready(logits)

    ref = ref_forward(memory, memory_padding_mask, params, nhead)
    assert logits.shape == (B, 6), logits.shape
    assert bool(jnp.all(jnp.isfinite(logits)))
    # Kernel runs bf16 MXU matmuls + approx reciprocal; compare to f32 reference loosely.
    assert bool(jnp.allclose(logits, ref, atol=2e-2, rtol=2e-2)), (logits, ref)
    print("KERNEL_OK")
</pallas_src>

<mosaic_0001>
module attributes {stable_mosaic.version = 11 : i64} {
  func.func @decoder_layer_kernel(%arg0: i32, %arg1: i32, %arg2: memref<8x32xf32, #tpu.memory_space<vmem>>, %arg3: memref<4x8x32xbf16, #tpu.memory_space<vmem>>, %arg4: memref<4x1x8xf32, #tpu.memory_space<vmem>>, %arg5: memref<1x32x96xbf16, #tpu.memory_space<vmem>>, %arg6: memref<1x1x96xf32, #tpu.memory_space<vmem>>, %arg7: memref<1x32x32xbf16, #tpu.memory_space<vmem>>, %arg8: memref<1x1x32xf32, #tpu.memory_space<vmem>>, %arg9: memref<1x32x32xbf16, #tpu.memory_space<vmem>>, %arg10: memref<1x1x32xf32, #tpu.memory_space<vmem>>, %arg11: memref<1x32x64xbf16, #tpu.memory_space<vmem>>, %arg12: memref<1x1x64xf32, #tpu.memory_space<vmem>>, %arg13: memref<1x32x32xbf16, #tpu.memory_space<vmem>>, %arg14: memref<1x1x32xf32, #tpu.memory_space<vmem>>, %arg15: memref<1x32x64xbf16, #tpu.memory_space<vmem>>, %arg16: memref<1x1x64xf32, #tpu.memory_space<vmem>>, %arg17: memref<1x64x32xbf16, #tpu.memory_space<vmem>>, %arg18: memref<1x1x32xf32, #tpu.memory_space<vmem>>, %arg19: memref<1x1x32xf32, #tpu.memory_space<vmem>>, %arg20: memref<1x1x32xf32, #tpu.memory_space<vmem>>, %arg21: memref<1x1x32xf32, #tpu.memory_space<vmem>>, %arg22: memref<1x1x32xf32, #tpu.memory_space<vmem>>, %arg23: memref<1x1x32xf32, #tpu.memory_space<vmem>>, %arg24: memref<1x1x32xf32, #tpu.memory_space<vmem>>, %arg25: memref<1x32xf32, #tpu.memory_space<vmem>>, %arg26: memref<1x32xf32, #tpu.memory_space<vmem>>, %arg27: memref<32x32xbf16, #tpu.memory_space<vmem>>, %arg28: memref<1x32xf32, #tpu.memory_space<vmem>>, %arg29: memref<1x32xbf16, #tpu.memory_space<vmem>>, %arg30: memref<1x1xf32, #tpu.memory_space<vmem>>, %arg31: memref<4x1x8xf32, #tpu.memory_space<vmem>>, %arg32: memref<32x32xf32, #tpu.memory_space<vmem>>, %arg33: memref<32x96xbf16, #tpu.memory_space<vmem>>, %arg34: memref<32x32xbf16, #tpu.memory_space<vmem>>, %arg35: memref<32x64xbf16, #tpu.memory_space<vmem>>) attributes {dimension_semantics = [#tpu.dimension_semantics<parallel>, #tpu.dimension_semantics<arbitrary>], iteration_bounds = array<i64: 1, 2>, scalar_prefetch = 0 : i64, scratch_operands = 4 : i64, tpu.core_type = #tpu.core_type<tc>, window_params = [{pipeline_mode = #tpu.pipeline_mode<synchronous>, transform_indices = @transform_0, window_bounds = array<i64: 8, 32>}, {transform_indices = @transform_1, window_bounds = array<i64: 4, 8, 32>}, {transform_indices = @transform_2, window_bounds = array<i64: 4, 1, 8>}, {transform_indices = @transform_3, window_bounds = array<i64: 1, 32, 96>}, {transform_indices = @transform_4, window_bounds = array<i64: 1, 1, 96>}, {transform_indices = @transform_5, window_bounds = array<i64: 1, 32, 32>}, {transform_indices = @transform_6, window_bounds = array<i64: 1, 1, 32>}, {transform_indices = @transform_7, window_bounds = array<i64: 1, 32, 32>}, {transform_indices = @transform_8, window_bounds = array<i64: 1, 1, 32>}, {transform_indices = @transform_9, window_bounds = array<i64: 1, 32, 64>}, {transform_indices = @transform_10, window_bounds = array<i64: 1, 1, 64>}, {transform_indices = @transform_11, window_bounds = array<i64: 1, 32, 32>}, {transform_indices = @transform_12, window_bounds = array<i64: 1, 1, 32>}, {transform_indices = @transform_13, window_bounds = array<i64: 1, 32, 64>}, {transform_indices = @transform_14, window_bounds = array<i64: 1, 1, 64>}, {transform_indices = @transform_15, window_bounds = array<i64: 1, 64, 32>}, {transform_indices = @transform_16, window_bounds = array<i64: 1, 1, 32>}, {transform_indices = @transform_17, window_bounds = array<i64: 1, 1, 32>}, {transform_indices = @transform_18, window_bounds = array<i64: 1, 1, 32>}, {transform_indices = @transform_19, window_bounds = array<i64: 1, 1, 32>}, {transform_indices = @transform_20, window_bounds = array<i64: 1, 1, 32>}, {transform_indices = @transform_21, window_bounds = array<i64: 1, 1, 32>}, {transform_indices = @transform_22, window_bounds = array<i64: 1, 1, 32>}, {pipeline_mode = #tpu.pipeline_mode<synchronous>, transform_indices = @transform_23, window_bounds = array<i64: 1, 32>}, {pipeline_mode = #tpu.pipeline_mode<synchronous>, transform_indices = @transform_24, window_bounds = array<i64: 1, 32>}, {pipeline_mode = #tpu.pipeline_mode<synchronous>, transform_indices = @transform_25, window_bounds = array<i64: 32, 32>}, {pipeline_mode = #tpu.pipeline_mode<synchronous>, transform_indices = @transform_26, window_bounds = array<i64: 1, 32>}, {pipeline_mode = #tpu.pipeline_mode<synchronous>, transform_indices = @transform_27, window_bounds = array<i64: 1, 32>}, {pipeline_mode = #tpu.pipeline_mode<synchronous>, transform_indices = @transform_28, window_bounds = array<i64: 1, 1>}, {transform_indices = @transform_29, window_bounds = array<i64: 4, 1, 8>}]} {
    %c0_i32 = arith.constant 0 : i32
    %0 = arith.cmpi eq, %arg1, %c0_i32 : i32
    %1 = arith.extui %0 : i1 to i32
    %c0_i32_0 = arith.constant 0 : i32
    %2 = arith.cmpi ne, %1, %c0_i32_0 : i32
    scf.if %2 {
      %c0_187 = arith.constant 0 : index
      %c0_188 = arith.constant 0 : index
      %379 = vector.load %arg2[%c0_187, %c0_188] : memref<8x32xf32, #tpu.memory_space<vmem>>, vector<8x32xf32>
      %380 = vector.shape_cast %379 : vector<8x32xf32> to vector<1x8x32xf32>
      %381 = vector.shape_cast %380 : vector<1x8x32xf32> to vector<1x8x32xf32>
      %382 = vector.broadcast %381 : vector<1x8x32xf32> to vector<4x8x32xf32>
      %383 = vector.shape_cast %382 : vector<4x8x32xf32> to vector<32x32xf32>
      %c0_189 = arith.constant 0 : index
      %c0_190 = arith.constant 0 : index
      %384 = vector.load %arg32[%c0_189, %c0_190] : memref<32x32xf32, #tpu.memory_space<vmem>>, vector<32x32xf32>
      tpu.vector_store %arg32[%c0_189, %c0_190], %383 {strides = array<i32>} : memref<32x32xf32, #tpu.memory_space<vmem>>, vector<32x32xf32>,
    } else {
    }
    %c0 = arith.constant 0 : index
    %c0_1 = arith.constant 0 : index
    %3 = vector.load %arg32[%c0, %c0_1] : memref<32x32xf32, #tpu.memory_space<vmem>>, vector<32x32xf32>
    %c0_2 = arith.constant 0 : index
    %c0_3 = arith.constant 0 : index
    %c0_4 = arith.constant 0 : index
    %4 = vector.load %arg3[%c0_2, %c0_3, %c0_4] : memref<4x8x32xbf16, #tpu.memory_space<vmem>>, vector<4x8x32xbf16>
    %5 = vector.shape_cast %4 : vector<4x8x32xbf16> to vector<32x32xbf16>
    %c0_5 = arith.constant 0 : index
    %c0_6 = arith.constant 0 : index
    %c0_7 = arith.constant 0 : index
    %6 = vector.load %arg4[%c0_5, %c0_6, %c0_7] : memref<4x1x8xf32, #tpu.memory_space<vmem>>, vector<4x1x8xf32>
    %cst = arith.constant -1.000000e+30 : f32
    %7 = vector.broadcast %cst : f32 to vector<4x1x8xf32>
    %8 = arith.mulf %6, %7 : vector<4x1x8xf32>
    %9 = tpu.iota {dimensions = array<i32: 2>} : vector<1x1x8xi32>
    %c6_i32 = arith.constant 6 : i32
    %10 = vector.broadcast %c6_i32 : i32 to vector<1x1x8xi32>
    %11 = arith.cmpi slt, %9, %10 : vector<1x1x8xi32>
    %cst_8 = arith.constant 0.000000e+00 : f32
    %cst_9 = arith.constant -1.000000e+30 : f32
    %12 = vector.broadcast %cst_8 : f32 to vector<1x1x8xf32>
    %13 = vector.broadcast %cst_9 : f32 to vector<1x1x8xf32>
    %14 = arith.select %11, %12, %13 : vector<1x1x8xi1>, vector<1x1x8xf32>
    %15 = arith.truncf %3 : vector<32x32xf32> to vector<32x32xbf16>
    %c0_10 = arith.constant 0 : index
    %c0_11 = arith.constant 0 : index
    %c0_12 = arith.constant 0 : index
    %16 = vector.load %arg5[%c0_10, %c0_11, %c0_12] : memref<1x32x96xbf16, #tpu.memory_space<vmem>>, vector<1x32x96xbf16>
    %17 = vector.shape_cast %16 : vector<1x32x96xbf16> to vector<32x96xbf16>
    %cst_13 = arith.constant dense<0.000000e+00> : vector<32x96xf32>
    %18 = tpu.matmul %15, %17, %cst_13 {dimension_numbers = #tpu.dot_dimension_numbers<[1], [0], [0], [1], [0, 0, 1, 1], [], []>} : vector<32x32xbf16>, vector<32x96xbf16>, vector<32x96xf32> -> vector<32x96xf32>
    %c0_14 = arith.constant 0 : index
    %c0_15 = arith.constant 0 : index
    %c0_16 = arith.constant 0 : index
    %19 = vector.load %arg6[%c0_14, %c0_15, %c0_16] : memref<1x1x96xf32, #tpu.memory_space<vmem>>, vector<1x1x96xf32>
    %20 = vector.shape_cast %19 : vector<1x1x96xf32> to vector<1x96xf32>
    %21 = vector.broadcast %20 : vector<1x96xf32> to vector<32x96xf32>
    %22 = arith.addf %18, %21 : vector<32x96xf32>
    %23 = arith.truncf %22 : vector<32x96xf32> to vector<32x96xbf16>
    %c0_17 = arith.constant 0 : index
    %c0_18 = arith.constant 0 : index
    %24 = vector.load %arg33[%c0_17, %c0_18] : memref<32x96xbf16, #tpu.memory_space<vmem>>, vector<32x96xbf16>
    tpu.vector_store %arg33[%c0_17, %c0_18], %23 {strides = array<i32>} : memref<32x96xbf16, #tpu.memory_space<vmem>>, vector<32x96xbf16>,
    %c0_19 = arith.constant 0 : index
    %c0_20 = arith.constant 0 : index
    %c0_21 = arith.constant 0 : index
    %25 = vector.load %arg7[%c0_19, %c0_20, %c0_21] : memref<1x32x32xbf16, #tpu.memory_space<vmem>>, vector<1x32x32xbf16>
    %26 = vector.shape_cast %25 : vector<1x32x32xbf16> to vector<32x32xbf16>
    %c0_22 = arith.constant 0 : index
    %c0_23 = arith.constant 0 : index
    %c0_24 = arith.constant 0 : index
    %27 = vector.load %arg8[%c0_22, %c0_23, %c0_24] : memref<1x1x32xf32, #tpu.memory_space<vmem>>, vector<1x1x32xf32>
    %28 = vector.shape_cast %27 : vector<1x1x32xf32> to vector<1x32xf32>
    %cst_25 = arith.constant 0.000000e+00 : f32
    %29 = vector.broadcast %cst_25 : f32 to vector<32x32xf32>
    %c0_26 = arith.constant 0 : index
    %c0_27 = arith.constant 0 : index
    %30 = vector.load %arg33[%c0_26, %c0_27] : memref<32x96xbf16, #tpu.memory_space<vmem>>, vector<32x8xbf16>
    %31 = vector.shape_cast %30 : vector<32x8xbf16> to vector<4x8x8xbf16>
    %c0_28 = arith.constant 0 : index
    %c32 = arith.constant 32 : index
    %32 = vector.load %arg33[%c0_28, %c32] : memref<32x96xbf16, #tpu.memory_space<vmem>>, vector<32x8xbf16>
    %33 = vector.shape_cast %32 : vector<32x8xbf16> to vector<4x8x8xbf16>
    %c0_29 = arith.constant 0 : index
    %c64 = arith.constant 64 : index
    %34 = vector.load %arg33[%c0_29, %c64] : memref<32x96xbf16, #tpu.memory_space<vmem>>, vector<32x8xbf16>
    %35 = vector.shape_cast %34 : vector<32x8xbf16> to vector<4x8x8xbf16>
    "tpu.trace_start"() <{level = 10 : i32, message = "bqd,bkd->bqk"}> : () -> ()
    %cst_30 = arith.constant dense<0.000000e+00> : vector<4x8x8xf32>
    %36 = tpu.matmul %31, %33, %cst_30 {dimension_numbers = #tpu.dot_dimension_numbers<[2], [2], [1], [1], [0, 0, 0, 1, 1, 1], [0], [0]>} : vector<4x8x8xbf16>, vector<4x8x8xbf16>, vector<4x8x8xf32> -> vector<4x8x8xf32>
    "tpu.trace_stop"() : () -> ()
    %cst_31 = arith.constant 0.353553385 : f32
    %37 = vector.broadcast %cst_31 : f32 to vector<4x8x8xf32>
    %38 = arith.mulf %36, %37 : vector<4x8x8xf32>
    %39 = vector.broadcast %14 : vector<1x1x8xf32> to vector<4x8x8xf32>
    %40 = arith.addf %38, %39 : vector<4x8x8xf32>
    %cst_32 = arith.constant dense<0xFF800000> : vector<4x8xf32>
    %41 = vector.multi_reduction <maximumf>, %40, %cst_32 [2] : vector<4x8x8xf32> to vector<4x8xf32>
    %42 = vector.shape_cast %41 : vector<4x8xf32> to vector<4x8x1xf32>
    %43 = vector.broadcast %42 : vector<4x8x1xf32> to vector<4x8x8xf32>
    %44 = arith.subf %40, %43 : vector<4x8x8xf32>
    %45 = math.exp %44 : vector<4x8x8xf32>
    %cst_33 = arith.constant dense<0.000000e+00> : vector<4x8xf32>
    %46 = vector.multi_reduction <add>, %45, %cst_33 [2] : vector<4x8x8xf32> to vector<4x8xf32>
    %47 = vector.shape_cast %46 : vector<4x8xf32> to vector<4x8x1xf32>
    %48 = tpu.reciprocal %47 {approx = true} : vector<4x8x1xf32> -> vector<4x8x1xf32>
    %49 = vector.broadcast %48 : vector<4x8x1xf32> to vector<4x8x8xf32>
    %50 = arith.mulf %45, %49 : vector<4x8x8xf32>
    %51 = arith.truncf %50 : vector<4x8x8xf32> to vector<4x8x8xbf16>
    "tpu.trace_start"() <{level = 10 : i32, message = "bqk,bkd->bqd"}> : () -> ()
    %cst_34 = arith.constant dense<0.000000e+00> : vector<4x8x8xf32>
    %52 = tpu.matmul %51, %35, %cst_34 {dimension_numbers = #tpu.dot_dimension_numbers<[2], [1], [1], [2], [0, 0, 0, 1, 1, 2], [0], [0]>} : vector<4x8x8xbf16>, vector<4x8x8xbf16>, vector<4x8x8xf32> -> vector<4x8x8xf32>
    "tpu.trace_stop"() : () -> ()
    %53 = vector.shape_cast %52 : vector<4x8x8xf32> to vector<32x8xf32>
    %54 = arith.truncf %53 : vector<32x8xf32> to vector<32x8xbf16>
    %55 = vector.extract_strided_slice %26 {offsets = [0, 0], sizes = [8, 32], strides = [1, 1]} : vector<32x32xbf16> to vector<8x32xbf16>
    %cst_35 = arith.constant dense<0.000000e+00> : vector<32x32xf32>
    %56 = tpu.matmul %54, %55, %cst_35 {dimension_numbers = #tpu.dot_dimension_numbers<[1], [0], [0], [1], [0, 0, 1, 1], [], []>} : vector<32x8xbf16>, vector<8x32xbf16>, vector<32x32xf32> -> vector<32x32xf32>
    %57 = arith.addf %29, %56 : vector<32x32xf32>
    %c0_36 = arith.constant 0 : index
    %c8 = arith.constant 8 : index
    %58 = vector.load %arg33[%c0_36, %c8] : memref<32x96xbf16, #tpu.memory_space<vmem>>, vector<32x8xbf16>
    %59 = vector.shape_cast %58 : vector<32x8xbf16> to vector<4x8x8xbf16>
    %c0_37 = arith.constant 0 : index
    %c40 = arith.constant 40 : index
    %60 = vector.load %arg33[%c0_37, %c40] : memref<32x96xbf16, #tpu.memory_space<vmem>>, vector<32x8xbf16>
    %61 = vector.shape_cast %60 : vector<32x8xbf16> to vector<4x8x8xbf16>
    %c0_38 = arith.constant 0 : index
    %c72 = arith.constant 72 : index
    %62 = vector.load %arg33[%c0_38, %c72] : memref<32x96xbf16, #tpu.memory_space<vmem>>, vector<32x8xbf16>
    %63 = vector.shape_cast %62 : vector<32x8xbf16> to vector<4x8x8xbf16>
    "tpu.trace_start"() <{level = 10 : i32, message = "bqd,bkd->bqk"}> : () -> ()
    %cst_39 = arith.constant dense<0.000000e+00> : vector<4x8x8xf32>
    %64 = tpu.matmul %59, %61, %cst_39 {dimension_numbers = #tpu.dot_dimension_numbers<[2], [2], [1], [1], [0, 0, 0, 1, 1, 1], [0], [0]>} : vector<4x8x8xbf16>, vector<4x8x8xbf16>, vector<4x8x8xf32> -> vector<4x8x8xf32>
    "tpu.trace_stop"() : () -> ()
    %cst_40 = arith.constant 0.353553385 : f32
    %65 = vector.broadcast %cst_40 : f32 to vector<4x8x8xf32>
    %66 = arith.mulf %64, %65 : vector<4x8x8xf32>
    %67 = vector.broadcast %14 : vector<1x1x8xf32> to vector<4x8x8xf32>
    %68 = arith.addf %66, %67 : vector<4x8x8xf32>
    %cst_41 = arith.constant dense<0xFF800000> : vector<4x8xf32>
    %69 = vector.multi_reduction <maximumf>, %68, %cst_41 [2] : vector<4x8x8xf32> to vector<4x8xf32>
    %70 = vector.shape_cast %69 : vector<4x8xf32> to vector<4x8x1xf32>
    %71 = vector.broadcast %70 : vector<4x8x1xf32> to vector<4x8x8xf32>
    %72 = arith.subf %68, %71 : vector<4x8x8xf32>
    %73 = math.exp %72 : vector<4x8x8xf32>
    %cst_42 = arith.constant dense<0.000000e+00> : vector<4x8xf32>
    %74 = vector.multi_reduction <add>, %73, %cst_42 [2] : vector<4x8x8xf32> to vector<4x8xf32>
    %75 = vector.shape_cast %74 : vector<4x8xf32> to vector<4x8x1xf32>
    %76 = tpu.reciprocal %75 {approx = true} : vector<4x8x1xf32> -> vector<4x8x1xf32>
    %77 = vector.broadcast %76 : vector<4x8x1xf32> to vector<4x8x8xf32>
    %78 = arith.mulf %73, %77 : vector<4x8x8xf32>
    %79 = arith.truncf %78 : vector<4x8x8xf32> to vector<4x8x8xbf16>
    "tpu.trace_start"() <{level = 10 : i32, message = "bqk,bkd->bqd"}> : () -> ()
    %cst_43 = arith.constant dense<0.000000e+00> : vector<4x8x8xf32>
    %80 = tpu.matmul %79, %63, %cst_43 {dimension_numbers = #tpu.dot_dimension_numbers<[2], [1], [1], [2], [0, 0, 0, 1, 1, 2], [0], [0]>} : vector<4x8x8xbf16>, vector<4x8x8xbf16>, vector<4x8x8xf32> -> vector<4x8x8xf32>
    "tpu.trace_stop"() : () -> ()
    %81 = vector.shape_cast %80 : vector<4x8x8xf32> to vector<32x8xf32>
    %82 = arith.truncf %81 : vector<32x8xf32> to vector<32x8xbf16>
    %83 = vector.extract_strided_slice %26 {offsets = [8, 0], sizes = [8, 32], strides = [1, 1]} : vector<32x32xbf16> to vector<8x32xbf16>
    %cst_44 = arith.constant dense<0.000000e+00> : vector<32x32xf32>
    %84 = tpu.matmul %82, %83, %cst_44 {dimension_numbers = #tpu.dot_dimension_numbers<[1], [0], [0], [1], [0, 0, 1, 1], [], []>} : vector<32x8xbf16>, vector<8x32xbf16>, vector<32x32xf32> -> vector<32x32xf32>
    %85 = arith.addf %57, %84 : vector<32x32xf32>
    %c0_45 = arith.constant 0 : index
    %c16 = arith.constant 16 : index
    %86 = vector.load %arg33[%c0_45, %c16] : memref<32x96xbf16, #tpu.memory_space<vmem>>, vector<32x8xbf16>
    %87 = vector.shape_cast %86 : vector<32x8xbf16> to vector<4x8x8xbf16>
    %c0_46 = arith.constant 0 : index
    %c48 = arith.constant 48 : index
    %88 = vector.load %arg33[%c0_46, %c48] : memref<32x96xbf16, #tpu.memory_space<vmem>>, vector<32x8xbf16>
    %89 = vector.shape_cast %88 : vector<32x8xbf16> to vector<4x8x8xbf16>
    %c0_47 = arith.constant 0 : index
    %c80 = arith.constant 80 : index
    %90 = vector.load %arg33[%c0_47, %c80] : memref<32x96xbf16, #tpu.memory_space<vmem>>, vector<32x8xbf16>
    %91 = vector.shape_cast %90 : vector<32x8xbf16> to vector<4x8x8xbf16>
    "tpu.trace_start"() <{level = 10 : i32, message = "bqd,bkd->bqk"}> : () -> ()
    %cst_48 = arith.constant dense<0.000000e+00> : vector<4x8x8xf32>
    %92 = tpu.matmul %87, %89, %cst_48 {dimension_numbers = #tpu.dot_dimension_numbers<[2], [2], [1], [1], [0, 0, 0, 1, 1, 1], [0], [0]>} : vector<4x8x8xbf16>, vector<4x8x8xbf16>, vector<4x8x8xf32> -> vector<4x8x8xf32>
    "tpu.trace_stop"() : () -> ()
    %cst_49 = arith.constant 0.353553385 : f32
    %93 = vector.broadcast %cst_49 : f32 to vector<4x8x8xf32>
    %94 = arith.mulf %92, %93 : vector<4x8x8xf32>
    %95 = vector.broadcast %14 : vector<1x1x8xf32> to vector<4x8x8xf32>
    %96 = arith.addf %94, %95 : vector<4x8x8xf32>
    %cst_50 = arith.constant dense<0xFF800000> : vector<4x8xf32>
    %97 = vector.multi_reduction <maximumf>, %96, %cst_50 [2] : vector<4x8x8xf32> to vector<4x8xf32>
    %98 = vector.shape_cast %97 : vector<4x8xf32> to vector<4x8x1xf32>
    %99 = vector.broadcast %98 : vector<4x8x1xf32> to vector<4x8x8xf32>
    %100 = arith.subf %96, %99 : vector<4x8x8xf32>
    %101 = math.exp %100 : vector<4x8x8xf32>
    %cst_51 = arith.constant dense<0.000000e+00> : vector<4x8xf32>
    %102 = vector.multi_reduction <add>, %101, %cst_51 [2] : vector<4x8x8xf32> to vector<4x8xf32>
    %103 = vector.shape_cast %102 : vector<4x8xf32> to vector<4x8x1xf32>
    %104 = tpu.reciprocal %103 {approx = true} : vector<4x8x1xf32> -> vector<4x8x1xf32>
    %105 = vector.broadcast %104 : vector<4x8x1xf32> to vector<4x8x8xf32>
    %106 = arith.mulf %101, %105 : vector<4x8x8xf32>
    %107 = arith.truncf %106 : vector<4x8x8xf32> to vector<4x8x8xbf16>
    "tpu.trace_start"() <{level = 10 : i32, message = "bqk,bkd->bqd"}> : () -> ()
    %cst_52 = arith.constant dense<0.000000e+00> : vector<4x8x8xf32>
    %108 = tpu.matmul %107, %91, %cst_52 {dimension_numbers = #tpu.dot_dimension_numbers<[2], [1], [1], [2], [0, 0, 0, 1, 1, 2], [0], [0]>} : vector<4x8x8xbf16>, vector<4x8x8xbf16>, vector<4x8x8xf32> -> vector<4x8x8xf32>
    "tpu.trace_stop"() : () -> ()
    %109 = vector.shape_cast %108 : vector<4x8x8xf32> to vector<32x8xf32>
    %110 = arith.truncf %109 : vector<32x8xf32> to vector<32x8xbf16>
    %111 = vector.extract_strided_slice %26 {offsets = [16, 0], sizes = [8, 32], strides = [1, 1]} : vector<32x32xbf16> to vector<8x32xbf16>
    %cst_53 = arith.constant dense<0.000000e+00> : vector<32x32xf32>
    %112 = tpu.matmul %110, %111, %cst_53 {dimension_numbers = #tpu.dot_dimension_numbers<[1], [0], [0], [1], [0, 0, 1, 1], [], []>} : vector<32x8xbf16>, vector<8x32xbf16>, vector<32x32xf32> -> vector<32x32xf32>
    %113 = arith.addf %85, %112 : vector<32x32xf32>
    %c0_54 = arith.constant 0 : index
    %c24 = arith.constant 24 : index
    %114 = vector.load %arg33[%c0_54, %c24] : memref<32x96xbf16, #tpu.memory_space<vmem>>, vector<32x8xbf16>
    %115 = vector.shape_cast %114 : vector<32x8xbf16> to vector<4x8x8xbf16>
    %c0_55 = arith.constant 0 : index
    %c56 = arith.constant 56 : index
    %116 = vector.load %arg33[%c0_55, %c56] : memref<32x96xbf16, #tpu.memory_space<vmem>>, vector<32x8xbf16>
    %117 = vector.shape_cast %116 : vector<32x8xbf16> to vector<4x8x8xbf16>
    %c0_56 = arith.constant 0 : index
    %c88 = arith.constant 88 : index
    %118 = vector.load %arg33[%c0_56, %c88] : memref<32x96xbf16, #tpu.memory_space<vmem>>, vector<32x8xbf16>
    %119 = vector.shape_cast %118 : vector<32x8xbf16> to vector<4x8x8xbf16>
    "tpu.trace_start"() <{level = 10 : i32, message = "bqd,bkd->bqk"}> : () -> ()
    %cst_57 = arith.constant dense<0.000000e+00> : vector<4x8x8xf32>
    %120 = tpu.matmul %115, %117, %cst_57 {dimension_numbers = #tpu.dot_dimension_numbers<[2], [2], [1], [1], [0, 0, 0, 1, 1, 1], [0], [0]>} : vector<4x8x8xbf16>, vector<4x8x8xbf16>, vector<4x8x8xf32> -> vector<4x8x8xf32>
    "tpu.trace_stop"() : () -> ()
    %cst_58 = arith.constant 0.353553385 : f32
    %121 = vector.broadcast %cst_58 : f32 to vector<4x8x8xf32>
    %122 = arith.mulf %120, %121 : vector<4x8x8xf32>
    %123 = vector.broadcast %14 : vector<1x1x8xf32> to vector<4x8x8xf32>
    %124 = arith.addf %122, %123 : vector<4x8x8xf32>
    %cst_59 = arith.constant dense<0xFF800000> : vector<4x8xf32>
    %125 = vector.multi_reduction <maximumf>, %124, %cst_59 [2] : vector<4x8x8xf32> to vector<4x8xf32>
    %126 = vector.shape_cast %125 : vector<4x8xf32> to vector<4x8x1xf32>
    %127 = vector.broadcast %126 : vector<4x8x1xf32> to vector<4x8x8xf32>
    %128 = arith.subf %124, %127 : vector<4x8x8xf32>
    %129 = math.exp %128 : vector<4x8x8xf32>
    %cst_60 = arith.constant dense<0.000000e+00> : vector<4x8xf32>
    %130 = vector.multi_reduction <add>, %129, %cst_60 [2] : vector<4x8x8xf32> to vector<4x8xf32>
    %131 = vector.shape_cast %130 : vector<4x8xf32> to vector<4x8x1xf32>
    %132 = tpu.reciprocal %131 {approx = true} : vector<4x8x1xf32> -> vector<4x8x1xf32>
    %133 = vector.broadcast %132 : vector<4x8x1xf32> to vector<4x8x8xf32>
    %134 = arith.mulf %129, %133 : vector<4x8x8xf32>
    %135 = arith.truncf %134 : vector<4x8x8xf32> to vector<4x8x8xbf16>
    "tpu.trace_start"() <{level = 10 : i32, message = "bqk,bkd->bqd"}> : () -> ()
    %cst_61 = arith.constant dense<0.000000e+00> : vector<4x8x8xf32>
    %136 = tpu.matmul %135, %119, %cst_61 {dimension_numbers = #tpu.dot_dimension_numbers<[2], [1], [1], [2], [0, 0, 0, 1, 1, 2], [0], [0]>} : vector<4x8x8xbf16>, vector<4x8x8xbf16>, vector<4x8x8xf32> -> vector<4x8x8xf32>
    "tpu.trace_stop"() : () -> ()
    %137 = vector.shape_cast %136 : vector<4x8x8xf32> to vector<32x8xf32>
    %138 = arith.truncf %137 : vector<32x8xf32> to vector<32x8xbf16>
    %139 = vector.extract_strided_slice %26 {offsets = [24, 0], sizes = [8, 32], strides = [1, 1]} : vector<32x32xbf16> to vector<8x32xbf16>
    %cst_62 = arith.constant dense<0.000000e+00> : vector<32x32xf32>
    %140 = tpu.matmul %138, %139, %cst_62 {dimension_numbers = #tpu.dot_dimension_numbers<[1], [0], [0], [1], [0, 0, 1, 1], [], []>} : vector<32x8xbf16>, vector<8x32xbf16>, vector<32x32xf32> -> vector<32x32xf32>
    %141 = arith.addf %113, %140 : vector<32x32xf32>
    %142 = vector.broadcast %28 : vector<1x32xf32> to vector<32x32xf32>
    %143 = arith.addf %141, %142 : vector<32x32xf32>
    %144 = arith.addf %3, %143 : vector<32x32xf32>
    %c0_63 = arith.constant 0 : index
    %c0_64 = arith.constant 0 : index
    %c0_65 = arith.constant 0 : index
    %145 = vector.load %arg19[%c0_63, %c0_64, %c0_65] : memref<1x1x32xf32, #tpu.memory_space<vmem>>, vector<1x1x32xf32>
    %146 = vector.shape_cast %145 : vector<1x1x32xf32> to vector<1x32xf32>
    %c0_66 = arith.constant 0 : index
    %c0_67 = arith.constant 0 : index
    %c0_68 = arith.constant 0 : index
    %147 = vector.load %arg20[%c0_66, %c0_67, %c0_68] : memref<1x1x32xf32, #tpu.memory_space<vmem>>, vector<1x1x32xf32>
    %148 = vector.shape_cast %147 : vector<1x1x32xf32> to vector<1x32xf32>
    %cst_69 = arith.constant dense<0.000000e+00> : vector<32xf32>
    %149 = vector.multi_reduction <add>, %144, %cst_69 [1] : vector<32x32xf32> to vector<32xf32>
    %150 = vector.shape_cast %149 : vector<32xf32> to vector<32x1xf32>
    %cst_70 = arith.constant 3.200000e+01 : f32
    %151 = vector.broadcast %cst_70 : f32 to vector<32x1xf32>
    %152 = arith.divf %150, %151 : vector<32x1xf32>
    %153 = vector.broadcast %152 : vector<32x1xf32> to vector<32x32xf32>
    %154 = arith.subf %144, %153 : vector<32x32xf32>
    %155 = arith.mulf %154, %154 : vector<32x32xf32>
    %cst_71 = arith.constant dense<0.000000e+00> : vector<32xf32>
    %156 = vector.multi_reduction <add>, %155, %cst_71 [1] : vector<32x32xf32> to vector<32xf32>
    %157 = vector.shape_cast %156 : vector<32xf32> to vector<32x1xf32>
    %cst_72 = arith.constant 3.200000e+01 : f32
    %158 = vector.broadcast %cst_72 : f32 to vector<32x1xf32>
    %159 = arith.divf %157, %158 : vector<32x1xf32>
    %cst_73 = arith.constant 9.99999974E-6 : f32
    %160 = vector.broadcast %cst_73 : f32 to vector<32x1xf32>
    %161 = arith.addf %159, %160 : vector<32x1xf32>
    %162 = math.rsqrt %161 : vector<32x1xf32>
    %163 = vector.broadcast %162 : vector<32x1xf32> to vector<32x32xf32>
    %164 = arith.mulf %154, %163 : vector<32x32xf32>
    %165 = vector.broadcast %146 : vector<1x32xf32> to vector<32x32xf32>
    %166 = arith.mulf %164, %165 : vector<32x32xf32>
    %167 = vector.broadcast %148 : vector<1x32xf32> to vector<32x32xf32>
    %168 = arith.addf %166, %167 : vector<32x32xf32>
    %169 = arith.truncf %168 : vector<32x32xf32> to vector<32x32xbf16>
    %c0_74 = arith.constant 0 : index
    %c0_75 = arith.constant 0 : index
    %c0_76 = arith.constant 0 : index
    %170 = vector.load %arg9[%c0_74, %c0_75, %c0_76] : memref<1x32x32xbf16, #tpu.memory_space<vmem>>, vector<1x32x32xbf16>
    %171 = vector.shape_cast %170 : vector<1x32x32xbf16> to vector<32x32xbf16>
    %cst_77 = arith.constant dense<0.000000e+00> : vector<32x32xf32>
    %172 = tpu.matmul %169, %171, %cst_77 {dimension_numbers = #tpu.dot_dimension_numbers<[1], [0], [0], [1], [0, 0, 1, 1], [], []>} : vector<32x32xbf16>, vector<32x32xbf16>, vector<32x32xf32> -> vector<32x32xf32>
    %c0_78 = arith.constant 0 : index
    %c0_79 = arith.constant 0 : index
    %c0_80 = arith.constant 0 : index
    %173 = vector.load %arg10[%c0_78, %c0_79, %c0_80] : memref<1x1x32xf32, #tpu.memory_space<vmem>>, vector<1x1x32xf32>
    %174 = vector.shape_cast %173 : vector<1x1x32xf32> to vector<1x32xf32>
    %175 = vector.broadcast %174 : vector<1x32xf32> to vector<32x32xf32>
    %176 = arith.addf %172, %175 : vector<32x32xf32>
    %177 = arith.truncf %176 : vector<32x32xf32> to vector<32x32xbf16>
    %c0_81 = arith.constant 0 : index
    %c0_82 = arith.constant 0 : index
    %178 = vector.load %arg34[%c0_81, %c0_82] : memref<32x32xbf16, #tpu.memory_space<vmem>>, vector<32x32xbf16>
    tpu.vector_store %arg34[%c0_81, %c0_82], %177 {strides = array<i32>} : memref<32x32xbf16, #tpu.memory_space<vmem>>, vector<32x32xbf16>,
    %c0_83 = arith.constant 0 : index
    %c0_84 = arith.constant 0 : index
    %c0_85 = arith.constant 0 : index
    %179 = vector.load %arg11[%c0_83, %c0_84, %c0_85] : memref<1x32x64xbf16, #tpu.memory_space<vmem>>, vector<1x32x64xbf16>
    %180 = vector.shape_cast %179 : vector<1x32x64xbf16> to vector<32x64xbf16>
    %cst_86 = arith.constant dense<0.000000e+00> : vector<32x64xf32>
    %181 = tpu.matmul %5, %180, %cst_86 {dimension_numbers = #tpu.dot_dimension_numbers<[1], [0], [0], [1], [0, 0, 1, 1], [], []>} : vector<32x32xbf16>, vector<32x64xbf16>, vector<32x64xf32> -> vector<32x64xf32>
    %c0_87 = arith.constant 0 : index
    %c0_88 = arith.constant 0 : index
    %c0_89 = arith.constant 0 : index
    %182 = vector.load %arg12[%c0_87, %c0_88, %c0_89] : memref<1x1x64xf32, #tpu.memory_space<vmem>>, vector<1x1x64xf32>
    %183 = vector.shape_cast %182 : vector<1x1x64xf32> to vector<1x64xf32>
    %184 = vector.broadcast %183 : vector<1x64xf32> to vector<32x64xf32>
    %185 = arith.addf %181, %184 : vector<32x64xf32>
    %186 = arith.truncf %185 : vector<32x64xf32> to vector<32x64xbf16>
    %c0_90 = arith.constant 0 : index
    %c0_91 = arith.constant 0 : index
    %187 = vector.load %arg35[%c0_90, %c0_91] : memref<32x64xbf16, #tpu.memory_space<vmem>>, vector<32x64xbf16>
    tpu.vector_store %arg35[%c0_90, %c0_91], %186 {strides = array<i32>} : memref<32x64xbf16, #tpu.memory_space<vmem>>, vector<32x64xbf16>,
    %c0_92 = arith.constant 0 : index
    %c0_93 = arith.constant 0 : index
    %c0_94 = arith.constant 0 : index
    %188 = vector.load %arg13[%c0_92, %c0_93, %c0_94] : memref<1x32x32xbf16, #tpu.memory_space<vmem>>, vector<1x32x32xbf16>
    %189 = vector.shape_cast %188 : vector<1x32x32xbf16> to vector<32x32xbf16>
    %c0_95 = arith.constant 0 : index
    %c0_96 = arith.constant 0 : index
    %c0_97 = arith.constant 0 : index
    %190 = vector.load %arg14[%c0_95, %c0_96, %c0_97] : memref<1x1x32xf32, #tpu.memory_space<vmem>>, vector<1x1x32xf32>
    %191 = vector.shape_cast %190 : vector<1x1x32xf32> to vector<1x32xf32>
    %cst_98 = arith.constant 0.000000e+00 : f32
    %192 = vector.broadcast %cst_98 : f32 to vector<32x32xf32>
    %c0_99 = arith.constant 0 : index
    %c0_100 = arith.constant 0 : index
    %193 = vector.load %arg34[%c0_99, %c0_100] : memref<32x32xbf16, #tpu.memory_space<vmem>>, vector<32x8xbf16>
    %194 = vector.shape_cast %193 : vector<32x8xbf16> to vector<4x8x8xbf16>
    %c0_101 = arith.constant 0 : index
    %c0_102 = arith.constant 0 : index
    %195 = vector.load %arg35[%c0_101, %c0_102] : memref<32x64xbf16, #tpu.memory_space<vmem>>, vector<32x8xbf16>
    %196 = vector.shape_cast %195 : vector<32x8xbf16> to vector<4x8x8xbf16>
    %c0_103 = arith.constant 0 : index
    %c32_104 = arith.constant 32 : index
    %197 = vector.load %arg35[%c0_103, %c32_104] : memref<32x64xbf16, #tpu.memory_space<vmem>>, vector<32x8xbf16>
    %198 = vector.shape_cast %197 : vector<32x8xbf16> to vector<4x8x8xbf16>
    "tpu.trace_start"() <{level = 10 : i32, message = "bqd,bkd->bqk"}> : () -> ()
    %cst_105 = arith.constant dense<0.000000e+00> : vector<4x8x8xf32>
    %199 = tpu.matmul %194, %196, %cst_105 {dimension_numbers = #tpu.dot_dimension_numbers<[2], [2], [1], [1], [0, 0, 0, 1, 1, 1], [0], [0]>} : vector<4x8x8xbf16>, vector<4x8x8xbf16>, vector<4x8x8xf32> -> vector<4x8x8xf32>
    "tpu.trace_stop"() : () -> ()
    %cst_106 = arith.constant 0.353553385 : f32
    %200 = vector.broadcast %cst_106 : f32 to vector<4x8x8xf32>
    %201 = arith.mulf %199, %200 : vector<4x8x8xf32>
    %202 = vector.broadcast %8 : vector<4x1x8xf32> to vector<4x8x8xf32>
    %203 = arith.addf %201, %202 : vector<4x8x8xf32>
    %cst_107 = arith.constant dense<0xFF800000> : vector<4x8xf32>
    %204 = vector.multi_reduction <maximumf>, %203, %cst_107 [2] : vector<4x8x8xf32> to vector<4x8xf32>
    %205 = vector.shape_cast %204 : vector<4x8xf32> to vector<4x8x1xf32>
    %206 = vector.broadcast %205 : vector<4x8x1xf32> to vector<4x8x8xf32>
    %207 = arith.subf %203, %206 : vector<4x8x8xf32>
    %208 = math.exp %207 : vector<4x8x8xf32>
    %cst_108 = arith.constant dense<0.000000e+00> : vector<4x8xf32>
    %209 = vector.multi_reduction <add>, %208, %cst_108 [2] : vector<4x8x8xf32> to vector<4x8xf32>
    %210 = vector.shape_cast %209 : vector<4x8xf32> to vector<4x8x1xf32>
    %211 = tpu.reciprocal %210 {approx = true} : vector<4x8x1xf32> -> vector<4x8x1xf32>
    %212 = vector.broadcast %211 : vector<4x8x1xf32> to vector<4x8x8xf32>
    %213 = arith.mulf %208, %212 : vector<4x8x8xf32>
    %214 = arith.truncf %213 : vector<4x8x8xf32> to vector<4x8x8xbf16>
    "tpu.trace_start"() <{level = 10 : i32, message = "bqk,bkd->bqd"}> : () -> ()
    %cst_109 = arith.constant dense<0.000000e+00> : vector<4x8x8xf32>
    %215 = tpu.matmul %214, %198, %cst_109 {dimension_numbers = #tpu.dot_dimension_numbers<[2], [1], [1], [2], [0, 0, 0, 1, 1, 2], [0], [0]>} : vector<4x8x8xbf16>, vector<4x8x8xbf16>, vector<4x8x8xf32> -> vector<4x8x8xf32>
    "tpu.trace_stop"() : () -> ()
    %216 = vector.shape_cast %215 : vector<4x8x8xf32> to vector<32x8xf32>
    %217 = arith.truncf %216 : vector<32x8xf32> to vector<32x8xbf16>
    %218 = vector.extract_strided_slice %189 {offsets = [0, 0], sizes = [8, 32], strides = [1, 1]} : vector<32x32xbf16> to vector<8x32xbf16>
    %cst_110 = arith.constant dense<0.000000e+00> : vector<32x32xf32>
    %219 = tpu.matmul %217, %218, %cst_110 {dimension_numbers = #tpu.dot_dimension_numbers<[1], [0], [0], [1], [0, 0, 1, 1], [], []>} : vector<32x8xbf16>, vector<8x32xbf16>, vector<32x32xf32> -> vector<32x32xf32>
    %220 = arith.addf %192, %219 : vector<32x32xf32>
    %c0_111 = arith.constant 0 : index
    %c8_112 = arith.constant 8 : index
    %221 = vector.load %arg34[%c0_111, %c8_112] : memref<32x32xbf16, #tpu.memory_space<vmem>>, vector<32x8xbf16>
    %222 = vector.shape_cast %221 : vector<32x8xbf16> to vector<4x8x8xbf16>
    %c0_113 = arith.constant 0 : index
    %c8_114 = arith.constant 8 : index
    %223 = vector.load %arg35[%c0_113, %c8_114] : memref<32x64xbf16, #tpu.memory_space<vmem>>, vector<32x8xbf16>
    %224 = vector.shape_cast %223 : vector<32x8xbf16> to vector<4x8x8xbf16>
    %c0_115 = arith.constant 0 : index
    %c40_116 = arith.constant 40 : index
    %225 = vector.load %arg35[%c0_115, %c40_116] : memref<32x64xbf16, #tpu.memory_space<vmem>>, vector<32x8xbf16>
    %226 = vector.shape_cast %225 : vector<32x8xbf16> to vector<4x8x8xbf16>
    "tpu.trace_start"() <{level = 10 : i32, message = "bqd,bkd->bqk"}> : () -> ()
    %cst_117 = arith.constant dense<0.000000e+00> : vector<4x8x8xf32>
    %227 = tpu.matmul %222, %224, %cst_117 {dimension_numbers = #tpu.dot_dimension_numbers<[2], [2], [1], [1], [0, 0, 0, 1, 1, 1], [0], [0]>} : vector<4x8x8xbf16>, vector<4x8x8xbf16>, vector<4x8x8xf32> -> vector<4x8x8xf32>
    "tpu.trace_stop"() : () -> ()
    %cst_118 = arith.constant 0.353553385 : f32
    %228 = vector.broadcast %cst_118 : f32 to vector<4x8x8xf32>
    %229 = arith.mulf %227, %228 : vector<4x8x8xf32>
    %230 = vector.broadcast %8 : vector<4x1x8xf32> to vector<4x8x8xf32>
    %231 = arith.addf %229, %230 : vector<4x8x8xf32>
    %cst_119 = arith.constant dense<0xFF800000> : vector<4x8xf32>
    %232 = vector.multi_reduction <maximumf>, %231, %cst_119 [2] : vector<4x8x8xf32> to vector<4x8xf32>
    %233 = vector.shape_cast %232 : vector<4x8xf32> to vector<4x8x1xf32>
    %234 = vector.broadcast %233 : vector<4x8x1xf32> to vector<4x8x8xf32>
    %235 = arith.subf %231, %234 : vector<4x8x8xf32>
    %236 = math.exp %235 : vector<4x8x8xf32>
    %cst_120 = arith.constant dense<0.000000e+00> : vector<4x8xf32>
    %237 = vector.multi_reduction <add>, %236, %cst_120 [2] : vector<4x8x8xf32> to vector<4x8xf32>
    %238 = vector.shape_cast %237 : vector<4x8xf32> to vector<4x8x1xf32>
    %239 = tpu.reciprocal %238 {approx = true} : vector<4x8x1xf32> -> vector<4x8x1xf32>
    %240 = vector.broadcast %239 : vector<4x8x1xf32> to vector<4x8x8xf32>
    %241 = arith.mulf %236, %240 : vector<4x8x8xf32>
    %242 = arith.truncf %241 : vector<4x8x8xf32> to vector<4x8x8xbf16>
    "tpu.trace_start"() <{level = 10 : i32, message = "bqk,bkd->bqd"}> : () -> ()
    %cst_121 = arith.constant dense<0.000000e+00> : vector<4x8x8xf32>
    %243 = tpu.matmul %242, %226, %cst_121 {dimension_numbers = #tpu.dot_dimension_numbers<[2], [1], [1], [2], [0, 0, 0, 1, 1, 2], [0], [0]>} : vector<4x8x8xbf16>, vector<4x8x8xbf16>, vector<4x8x8xf32> -> vector<4x8x8xf32>
    "tpu.trace_stop"() : () -> ()
    %244 = vector.shape_cast %243 : vector<4x8x8xf32> to vector<32x8xf32>
    %245 = arith.truncf %244 : vector<32x8xf32> to vector<32x8xbf16>
    %246 = vector.extract_strided_slice %189 {offsets = [8, 0], sizes = [8, 32], strides = [1, 1]} : vector<32x32xbf16> to vector<8x32xbf16>
    %cst_122 = arith.constant dense<0.000000e+00> : vector<32x32xf32>
    %247 = tpu.matmul %245, %246, %cst_122 {dimension_numbers = #tpu.dot_dimension_numbers<[1], [0], [0], [1], [0, 0, 1, 1], [], []>} : vector<32x8xbf16>, vector<8x32xbf16>, vector<32x32xf32> -> vector<32x32xf32>
    %248 = arith.addf %220, %247 : vector<32x32xf32>
    %c0_123 = arith.constant 0 : index
    %c16_124 = arith.constant 16 : index
    %249 = vector.load %arg34[%c0_123, %c16_124] : memref<32x32xbf16, #tpu.memory_space<vmem>>, vector<32x8xbf16>
    %250 = vector.shape_cast %249 : vector<32x8xbf16> to vector<4x8x8xbf16>
    %c0_125 = arith.constant 0 : index
    %c16_126 = arith.constant 16 : index
    %251 = vector.load %arg35[%c0_125, %c16_126] : memref<32x64xbf16, #tpu.memory_space<vmem>>, vector<32x8xbf16>
    %252 = vector.shape_cast %251 : vector<32x8xbf16> to vector<4x8x8xbf16>
    %c0_127 = arith.constant 0 : index
    %c48_128 = arith.constant 48 : index
    %253 = vector.load %arg35[%c0_127, %c48_128] : memref<32x64xbf16, #tpu.memory_space<vmem>>, vector<32x8xbf16>
    %254 = vector.shape_cast %253 : vector<32x8xbf16> to vector<4x8x8xbf16>
    "tpu.trace_start"() <{level = 10 : i32, message = "bqd,bkd->bqk"}> : () -> ()
    %cst_129 = arith.constant dense<0.000000e+00> : vector<4x8x8xf32>
    %255 = tpu.matmul %250, %252, %cst_129 {dimension_numbers = #tpu.dot_dimension_numbers<[2], [2], [1], [1], [0, 0, 0, 1, 1, 1], [0], [0]>} : vector<4x8x8xbf16>, vector<4x8x8xbf16>, vector<4x8x8xf32> -> vector<4x8x8xf32>
    "tpu.trace_stop"() : () -> ()
    %cst_130 = arith.constant 0.353553385 : f32
    %256 = vector.broadcast %cst_130 : f32 to vector<4x8x8xf32>
    %257 = arith.mulf %255, %256 : vector<4x8x8xf32>
    %258 = vector.broadcast %8 : vector<4x1x8xf32> to vector<4x8x8xf32>
    %259 = arith.addf %257, %258 : vector<4x8x8xf32>
    %cst_131 = arith.constant dense<0xFF800000> : vector<4x8xf32>
    %260 = vector.multi_reduction <maximumf>, %259, %cst_131 [2] : vector<4x8x8xf32> to vector<4x8xf32>
    %261 = vector.shape_cast %260 : vector<4x8xf32> to vector<4x8x1xf32>
    %262 = vector.broadcast %261 : vector<4x8x1xf32> to vector<4x8x8xf32>
    %263 = arith.subf %259, %262 : vector<4x8x8xf32>
    %264 = math.exp %263 : vector<4x8x8xf32>
    %cst_132 = arith.constant dense<0.000000e+00> : vector<4x8xf32>
    %265 = vector.multi_reduction <add>, %264, %cst_132 [2] : vector<4x8x8xf32> to vector<4x8xf32>
    %266 = vector.shape_cast %265 : vector<4x8xf32> to vector<4x8x1xf32>
    %267 = tpu.reciprocal %266 {approx = true} : vector<4x8x1xf32> -> vector<4x8x1xf32>
    %268 = vector.broadcast %267 : vector<4x8x1xf32> to vector<4x8x8xf32>
    %269 = arith.mulf %264, %268 : vector<4x8x8xf32>
    %270 = arith.truncf %269 : vector<4x8x8xf32> to vector<4x8x8xbf16>
    "tpu.trace_start"() <{level = 10 : i32, message = "bqk,bkd->bqd"}> : () -> ()
    %cst_133 = arith.constant dense<0.000000e+00> : vector<4x8x8xf32>
    %271 = tpu.matmul %270, %254, %cst_133 {dimension_numbers = #tpu.dot_dimension_numbers<[2], [1], [1], [2], [0, 0, 0, 1, 1, 2], [0], [0]>} : vector<4x8x8xbf16>, vector<4x8x8xbf16>, vector<4x8x8xf32> -> vector<4x8x8xf32>
    "tpu.trace_stop"() : () -> ()
    %272 = vector.shape_cast %271 : vector<4x8x8xf32> to vector<32x8xf32>
    %273 = arith.truncf %272 : vector<32x8xf32> to vector<32x8xbf16>
    %274 = vector.extract_strided_slice %189 {offsets = [16, 0], sizes = [8, 32], strides = [1, 1]} : vector<32x32xbf16> to vector<8x32xbf16>
    %cst_134 = arith.constant dense<0.000000e+00> : vector<32x32xf32>
    %275 = tpu.matmul %273, %274, %cst_134 {dimension_numbers = #tpu.dot_dimension_numbers<[1], [0], [0], [1], [0, 0, 1, 1], [], []>} : vector<32x8xbf16>, vector<8x32xbf16>, vector<32x32xf32> -> vector<32x32xf32>
    %276 = arith.addf %248, %275 : vector<32x32xf32>
    %c0_135 = arith.constant 0 : index
    %c24_136 = arith.constant 24 : index
    %277 = vector.load %arg34[%c0_135, %c24_136] : memref<32x32xbf16, #tpu.memory_space<vmem>>, vector<32x8xbf16>
    %278 = vector.shape_cast %277 : vector<32x8xbf16> to vector<4x8x8xbf16>
    %c0_137 = arith.constant 0 : index
    %c24_138 = arith.constant 24 : index
    %279 = vector.load %arg35[%c0_137, %c24_138] : memref<32x64xbf16, #tpu.memory_space<vmem>>, vector<32x8xbf16>
    %280 = vector.shape_cast %279 : vector<32x8xbf16> to vector<4x8x8xbf16>
    %c0_139 = arith.constant 0 : index
    %c56_140 = arith.constant 56 : index
    %281 = vector.load %arg35[%c0_139, %c56_140] : memref<32x64xbf16, #tpu.memory_space<vmem>>, vector<32x8xbf16>
    %282 = vector.shape_cast %281 : vector<32x8xbf16> to vector<4x8x8xbf16>
    "tpu.trace_start"() <{level = 10 : i32, message = "bqd,bkd->bqk"}> : () -> ()
    %cst_141 = arith.constant dense<0.000000e+00> : vector<4x8x8xf32>
    %283 = tpu.matmul %278, %280, %cst_141 {dimension_numbers = #tpu.dot_dimension_numbers<[2], [2], [1], [1], [0, 0, 0, 1, 1, 1], [0], [0]>} : vector<4x8x8xbf16>, vector<4x8x8xbf16>, vector<4x8x8xf32> -> vector<4x8x8xf32>
    "tpu.trace_stop"() : () -> ()
    %cst_142 = arith.constant 0.353553385 : f32
    %284 = vector.broadcast %cst_142 : f32 to vector<4x8x8xf32>
    %285 = arith.mulf %283, %284 : vector<4x8x8xf32>
    %286 = vector.broadcast %8 : vector<4x1x8xf32> to vector<4x8x8xf32>
    %287 = arith.addf %285, %286 : vector<4x8x8xf32>
    %cst_143 = arith.constant dense<0xFF800000> : vector<4x8xf32>
    %288 = vector.multi_reduction <maximumf>, %287, %cst_143 [2] : vector<4x8x8xf32> to vector<4x8xf32>
    %289 = vector.shape_cast %288 : vector<4x8xf32> to vector<4x8x1xf32>
    %290 = vector.broadcast %289 : vector<4x8x1xf32> to vector<4x8x8xf32>
    %291 = arith.subf %287, %290 : vector<4x8x8xf32>
    %292 = math.exp %291 : vector<4x8x8xf32>
    %cst_144 = arith.constant dense<0.000000e+00> : vector<4x8xf32>
    %293 = vector.multi_reduction <add>, %292, %cst_144 [2] : vector<4x8x8xf32> to vector<4x8xf32>
    %294 = vector.shape_cast %293 : vector<4x8xf32> to vector<4x8x1xf32>
    %295 = tpu.reciprocal %294 {approx = true} : vector<4x8x1xf32> -> vector<4x8x1xf32>
    %296 = vector.broadcast %295 : vector<4x8x1xf32> to vector<4x8x8xf32>
    %297 = arith.mulf %292, %296 : vector<4x8x8xf32>
    %298 = arith.truncf %297 : vector<4x8x8xf32> to vector<4x8x8xbf16>
    "tpu.trace_start"() <{level = 10 : i32, message = "bqk,bkd->bqd"}> : () -> ()
    %cst_145 = arith.constant dense<0.000000e+00> : vector<4x8x8xf32>
    %299 = tpu.matmul %298, %282, %cst_145 {dimension_numbers = #tpu.dot_dimension_numbers<[2], [1], [1], [2], [0, 0, 0, 1, 1, 2], [0], [0]>} : vector<4x8x8xbf16>, vector<4x8x8xbf16>, vector<4x8x8xf32> -> vector<4x8x8xf32>
    "tpu.trace_stop"() : () -> ()
    %300 = vector.shape_cast %299 : vector<4x8x8xf32> to vector<32x8xf32>
    %301 = arith.truncf %300 : vector<32x8xf32> to vector<32x8xbf16>
    %302 = vector.extract_strided_slice %189 {offsets = [24, 0], sizes = [8, 32], strides = [1, 1]} : vector<32x32xbf16> to vector<8x32xbf16>
    %cst_146 = arith.constant dense<0.000000e+00> : vector<32x32xf32>
    %303 = tpu.matmul %301, %302, %cst_146 {dimension_numbers = #tpu.dot_dimension_numbers<[1], [0], [0], [1], [0, 0, 1, 1], [], []>} : vector<32x8xbf16>, vector<8x32xbf16>, vector<32x32xf32> -> vector<32x32xf32>
    %304 = arith.addf %276, %303 : vector<32x32xf32>
    %305 = vector.broadcast %191 : vector<1x32xf32> to vector<32x32xf32>
    %306 = arith.addf %304, %305 : vector<32x32xf32>
    %307 = arith.addf %168, %306 : vector<32x32xf32>
    %c0_147 = arith.constant 0 : index
    %c0_148 = arith.constant 0 : index
    %c0_149 = arith.constant 0 : index
    %308 = vector.load %arg21[%c0_147, %c0_148, %c0_149] : memref<1x1x32xf32, #tpu.memory_space<vmem>>, vector<1x1x32xf32>
    %309 = vector.shape_cast %308 : vector<1x1x32xf32> to vector<1x32xf32>
    %c0_150 = arith.constant 0 : index
    %c0_151 = arith.constant 0 : index
    %c0_152 = arith.constant 0 : index
    %310 = vector.load %arg22[%c0_150, %c0_151, %c0_152] : memref<1x1x32xf32, #tpu.memory_space<vmem>>, vector<1x1x32xf32>
    %311 = vector.shape_cast %310 : vector<1x1x32xf32> to vector<1x32xf32>
    %cst_153 = arith.constant dense<0.000000e+00> : vector<32xf32>
    %312 = vector.multi_reduction <add>, %307, %cst_153 [1] : vector<32x32xf32> to vector<32xf32>
    %313 = vector.shape_cast %312 : vector<32xf32> to vector<32x1xf32>
    %cst_154 = arith.constant 3.200000e+01 : f32
    %314 = vector.broadcast %cst_154 : f32 to vector<32x1xf32>
    %315 = arith.divf %313, %314 : vector<32x1xf32>
    %316 = vector.broadcast %315 : vector<32x1xf32> to vector<32x32xf32>
    %317 = arith.subf %307, %316 : vector<32x32xf32>
    %318 = arith.mulf %317, %317 : vector<32x32xf32>
    %cst_155 = arith.constant dense<0.000000e+00> : vector<32xf32>
    %319 = vector.multi_reduction <add>, %318, %cst_155 [1] : vector<32x32xf32> to vector<32xf32>
    %320 = vector.shape_cast %319 : vector<32xf32> to vector<32x1xf32>
    %cst_156 = arith.constant 3.200000e+01 : f32
    %321 = vector.broadcast %cst_156 : f32 to vector<32x1xf32>
    %322 = arith.divf %320, %321 : vector<32x1xf32>
    %cst_157 = arith.constant 9.99999974E-6 : f32
    %323 = vector.broadcast %cst_157 : f32 to vector<32x1xf32>
    %324 = arith.addf %322, %323 : vector<32x1xf32>
    %325 = math.rsqrt %324 : vector<32x1xf32>
    %326 = vector.broadcast %325 : vector<32x1xf32> to vector<32x32xf32>
    %327 = arith.mulf %317, %326 : vector<32x32xf32>
    %328 = vector.broadcast %309 : vector<1x32xf32> to vector<32x32xf32>
    %329 = arith.mulf %327, %328 : vector<32x32xf32>
    %330 = vector.broadcast %311 : vector<1x32xf32> to vector<32x32xf32>
    %331 = arith.addf %329, %330 : vector<32x32xf32>
    %332 = arith.truncf %331 : vector<32x32xf32> to vector<32x32xbf16>
    %c0_158 = arith.constant 0 : index
    %c0_159 = arith.constant 0 : index
    %c0_160 = arith.constant 0 : index
    %333 = vector.load %arg15[%c0_158, %c0_159, %c0_160] : memref<1x32x64xbf16, #tpu.memory_space<vmem>>, vector<1x32x64xbf16>
    %334 = vector.shape_cast %333 : vector<1x32x64xbf16> to vector<32x64xbf16>
    %cst_161 = arith.constant dense<0.000000e+00> : vector<32x64xf32>
    %335 = tpu.matmul %332, %334, %cst_161 {dimension_numbers = #tpu.dot_dimension_numbers<[1], [0], [0], [1], [0, 0, 1, 1], [], []>} : vector<32x32xbf16>, vector<32x64xbf16>, vector<32x64xf32> -> vector<32x64xf32>
    %c0_162 = arith.constant 0 : index
    %c0_163 = arith.constant 0 : index
    %c0_164 = arith.constant 0 : index
    %336 = vector.load %arg16[%c0_162, %c0_163, %c0_164] : memref<1x1x64xf32, #tpu.memory_space<vmem>>, vector<1x1x64xf32>
    %337 = vector.shape_cast %336 : vector<1x1x64xf32> to vector<1x64xf32>
    %338 = vector.broadcast %337 : vector<1x64xf32> to vector<32x64xf32>
    %339 = arith.addf %335, %338 : vector<32x64xf32>
    %cst_165 = arith.constant 0.000000e+00 : f32
    %340 = vector.broadcast %cst_165 : f32 to vector<32x64xf32>
    %341 = arith.maximumf %339, %340 : vector<32x64xf32>
    %342 = arith.truncf %341 : vector<32x64xf32> to vector<32x64xbf16>
    %c0_166 = arith.constant 0 : index
    %c0_167 = arith.constant 0 : index
    %c0_168 = arith.constant 0 : index
    %343 = vector.load %arg17[%c0_166, %c0_167, %c0_168] : memref<1x64x32xbf16, #tpu.memory_space<vmem>>, vector<1x64x32xbf16>
    %344 = vector.shape_cast %343 : vector<1x64x32xbf16> to vector<64x32xbf16>
    %cst_169 = arith.constant dense<0.000000e+00> : vector<32x32xf32>
    %345 = tpu.matmul %342, %344, %cst_169 {dimension_numbers = #tpu.dot_dimension_numbers<[1], [0], [0], [1], [0, 0, 1, 1], [], []>} : vector<32x64xbf16>, vector<64x32xbf16>, vector<32x32xf32> -> vector<32x32xf32>
    %c0_170 = arith.constant 0 : index
    %c0_171 = arith.constant 0 : index
    %c0_172 = arith.constant 0 : index
    %346 = vector.load %arg18[%c0_170, %c0_171, %c0_172] : memref<1x1x32xf32, #tpu.memory_space<vmem>>, vector<1x1x32xf32>
    %347 = vector.shape_cast %346 : vector<1x1x32xf32> to vector<1x32xf32>
    %348 = vector.broadcast %347 : vector<1x32xf32> to vector<32x32xf32>
    %349 = arith.addf %345, %348 : vector<32x32xf32>
    %350 = arith.addf %331, %349 : vector<32x32xf32>
    %c0_173 = arith.constant 0 : index
    %c0_174 = arith.constant 0 : index
    %c0_175 = arith.constant 0 : index
    %351 = vector.load %arg23[%c0_173, %c0_174, %c0_175] : memref<1x1x32xf32, #tpu.memory_space<vmem>>, vector<1x1x32xf32>
    %352 = vector.shape_cast %351 : vector<1x1x32xf32> to vector<1x32xf32>
    %c0_176 = arith.constant 0 : index
    %c0_177 = arith.constant 0 : index
    %c0_178 = arith.constant 0 : index
    %353 = vector.load %arg24[%c0_176, %c0_177, %c0_178] : memref<1x1x32xf32, #tpu.memory_space<vmem>>, vector<1x1x32xf32>
    %354 = vector.shape_cast %353 : vector<1x1x32xf32> to vector<1x32xf32>
    %cst_179 = arith.constant dense<0.000000e+00> : vector<32xf32>
    %355 = vector.multi_reduction <add>, %350, %cst_179 [1] : vector<32x32xf32> to vector<32xf32>
    %356 = vector.shape_cast %355 : vector<32xf32> to vector<32x1xf32>
    %cst_180 = arith.constant 3.200000e+01 : f32
    %357 = vector.broadcast %cst_180 : f32 to vector<32x1xf32>
    %358 = arith.divf %356, %357 : vector<32x1xf32>
    %359 = vector.broadcast %358 : vector<32x1xf32> to vector<32x32xf32>
    %360 = arith.subf %350, %359 : vector<32x32xf32>
    %361 = arith.mulf %360, %360 : vector<32x32xf32>
    %cst_181 = arith.constant dense<0.000000e+00> : vector<32xf32>
    %362 = vector.multi_reduction <add>, %361, %cst_181 [1] : vector<32x32xf32> to vector<32xf32>
    %363 = vector.shape_cast %362 : vector<32xf32> to vector<32x1xf32>
    %cst_182 = arith.constant 3.200000e+01 : f32
    %364 = vector.broadcast %cst_182 : f32 to vector<32x1xf32>
    %365 = arith.divf %363, %364 : vector<32x1xf32>
    %cst_183 = arith.constant 9.99999974E-6 : f32
    %366 = vector.broadcast %cst_183 : f32 to vector<32x1xf32>
    %367 = arith.addf %365, %366 : vector<32x1xf32>
    %368 = math.rsqrt %367 : vector<32x1xf32>
    %369 = vector.broadcast %368 : vector<32x1xf32> to vector<32x32xf32>
    %370 = arith.mulf %360, %369 : vector<32x32xf32>
    %371 = vector.broadcast %352 : vector<1x32xf32> to vector<32x32xf32>
    %372 = arith.mulf %370, %371 : vector<32x32xf32>
    %373 = vector.broadcast %354 : vector<1x32xf32> to vector<32x32xf32>
    %374 = arith.addf %372, %373 : vector<32x32xf32>
    %c0_184 = arith.constant 0 : index
    %c0_185 = arith.constant 0 : index
    %375 = vector.load %arg32[%c0_184, %c0_185] : memref<32x32xf32, #tpu.memory_space<vmem>>, vector<32x32xf32>
    tpu.vector_store %arg32[%c0_184, %c0_185], %374 {strides = array<i32>} : memref<32x32xf32, #tpu.memory_space<vmem>>, vector<32x32xf32>,
    %c1_i32 = arith.constant 1 : i32
    %376 = arith.cmpi eq, %arg1, %c1_i32 : i32
    %377 = arith.extui %376 : i1 to i32
    %c0_i32_186 = arith.constant 0 : i32
    %378 = arith.cmpi ne, %377, %c0_i32_186 : i32
    scf.if %378 {
      %c0_187 = arith.constant 0 : index
      %c0_188 = arith.constant 0 : index
      %379 = vector.load %arg25[%c0_187, %c0_188] : memref<1x32xf32, #tpu.memory_space<vmem>>, vector<1x32xf32>
      %c0_189 = arith.constant 0 : index
      %c0_190 = arith.constant 0 : index
      %380 = vector.load %arg26[%c0_189, %c0_190] : memref<1x32xf32, #tpu.memory_space<vmem>>, vector<1x32xf32>
      %cst_191 = arith.constant dense<0.000000e+00> : vector<32xf32>
      %381 = vector.multi_reduction <add>, %374, %cst_191 [1] : vector<32x32xf32> to vector<32xf32>
      %382 = vector.shape_cast %381 : vector<32xf32> to vector<32x1xf32>
      %cst_192 = arith.constant 3.200000e+01 : f32
      %383 = vector.broadcast %cst_192 : f32 to vector<32x1xf32>
      %384 = arith.divf %382, %383 : vector<32x1xf32>
      %385 = vector.broadcast %384 : vector<32x1xf32> to vector<32x32xf32>
      %386 = arith.subf %374, %385 : vector<32x32xf32>
      %387 = arith.mulf %386, %386 : vector<32x32xf32>
      %cst_193 = arith.constant dense<0.000000e+00> : vector<32xf32>
      %388 = vector.multi_reduction <add>, %387, %cst_193 [1] : vector<32x32xf32> to vector<32xf32>
      %389 = vector.shape_cast %388 : vector<32xf32> to vector<32x1xf32>
      %cst_194 = arith.constant 3.200000e+01 : f32
      %390 = vector.broadcast %cst_194 : f32 to vector<32x1xf32>
      %391 = arith.divf %389, %390 : vector<32x1xf32>
      %cst_195 = arith.constant 9.99999974E-6 : f32
      %392 = vector.broadcast %cst_195 : f32 to vector<32x1xf32>
      %393 = arith.addf %391, %392 : vector<32x1xf32>
      %394 = math.rsqrt %393 : vector<32x1xf32>
      %395 = vector.broadcast %394 : vector<32x1xf32> to vector<32x32xf32>
      %396 = arith.mulf %386, %395 : vector<32x32xf32>
      %397 = vector.broadcast %379 : vector<1x32xf32> to vector<32x32xf32>
      %398 = arith.mulf %396, %397 : vector<32x32xf32>
      %399 = vector.broadcast %380 : vector<1x32xf32> to vector<32x32xf32>
      %400 = arith.addf %398, %399 : vector<32x32xf32>
      %401 = arith.truncf %400 : vector<32x32xf32> to vector<32x32xbf16>
      %c0_196 = arith.constant 0 : index
      %c0_197 = arith.constant 0 : index
      %402 = vector.load %arg27[%c0_196, %c0_197] : memref<32x32xbf16, #tpu.memory_space<vmem>>, vector<32x32xbf16>
      %cst_198 = arith.constant dense<0.000000e+00> : vector<32x32xf32>
      %403 = tpu.matmul %401, %402, %cst_198 {dimension_numbers = #tpu.dot_dimension_numbers<[1], [0], [0], [1], [0, 0, 1, 1], [], []>} : vector<32x32xbf16>, vector<32x32xbf16>, vector<32x32xf32> -> vector<32x32xf32>
      %c0_199 = arith.constant 0 : index
      %c0_200 = arith.constant 0 : index
      %404 = vector.load %arg28[%c0_199, %c0_200] : memref<1x32xf32, #tpu.memory_space<vmem>>, vector<1x32xf32>
      %405 = vector.broadcast %404 : vector<1x32xf32> to vector<32x32xf32>
      %406 = arith.addf %403, %405 : vector<32x32xf32>
      %cst_201 = arith.constant 0.000000e+00 : f32
      %407 = vector.broadcast %cst_201 : f32 to vector<32x32xf32>
      %408 = arith.cmpf oge, %406, %407 : vector<32x32xf32>
      %cst_202 = arith.constant 1.000000e-01 : f32
      %409 = vector.broadcast %cst_202 : f32 to vector<32x32xf32>
      %410 = arith.mulf %409, %406 : vector<32x32xf32>
      %411 = arith.select %408, %406, %410 : vector<32x32xi1>, vector<32x32xf32>
      %412 = vector.shape_cast %411 : vector<32x32xf32> to vector<4x8x32xf32>
      %c0_203 = arith.constant 0 : index
      %c0_204 = arith.constant 0 : index
      %413 = vector.load %arg29[%c0_203, %c0_204] : memref<1x32xbf16, #tpu.memory_space<vmem>>, vector<1x32xbf16>
      %414 = arith.extf %413 : vector<1x32xbf16> to vector<1x32xf32>
      %415 = vector.shape_cast %414 : vector<1x32xf32> to vector<1x1x32xf32>
      %416 = vector.broadcast %415 : vector<1x1x32xf32> to vector<4x8x32xf32>
      %417 = arith.mulf %412, %416 : vector<4x8x32xf32>
      %cst_205 = arith.constant dense<0.000000e+00> : vector<4x8xf32>
      %418 = vector.multi_reduction <add>, %417, %cst_205 [2] : vector<4x8x32xf32> to vector<4x8xf32>
      %c0_206 = arith.constant 0 : index
      %c0_207 = arith.constant 0 : index
      %419 = vector.load %arg30[%c0_206, %c0_207] : memref<1x1xf32, #tpu.memory_space<vmem>>, vector<1x1xf32>
      %420 = vector.broadcast %419 : vector<1x1xf32> to vector<4x8xf32>
      %421 = arith.addf %418, %420 : vector<4x8xf32>
      %cst_208 = arith.constant 0.000000e+00 : f32
      %422 = vector.broadcast %cst_208 : f32 to vector<4x8xf32>
      %423 = arith.subf %422, %421 : vector<4x8xf32>
      %424 = math.exp %423 : vector<4x8xf32>
      %cst_209 = arith.constant 1.000000e+00 : f32
      %425 = vector.broadcast %cst_209 : f32 to vector<4x8xf32>
      %426 = arith.addf %425, %424 : vector<4x8xf32>
      %427 = tpu.reciprocal %426 {approx = true} : vector<4x8xf32> -> vector<4x8xf32>
      %428 = vector.shape_cast %427 : vector<4x8xf32> to vector<4x1x8xf32>
      %c0_210 = arith.constant 0 : index
      %c0_211 = arith.constant 0 : index
      %c0_212 = arith.constant 0 : index
      %429 = vector.load %arg31[%c0_210, %c0_211, %c0_212] : memref<4x1x8xf32, #tpu.memory_space<vmem>>, vector<4x1x8xf32>
      tpu.vector_store %arg31[%c0_210, %c0_211, %c0_212], %428 {strides = array<i32>} : memref<4x1x8xf32, #tpu.memory_space<vmem>>, vector<4x1x8xf32>,
    } else {
    }
    return
  }
  func.func @transform_0(%arg0: i32, %arg1: i32) -> (i32, i32) {
    %c0_i32 = arith.constant 0 : i32
    %c0_i32_0 = arith.constant 0 : i32
    %c0_i32_1 = arith.constant 0 : i32
    return %c0_i32, %c0_i32_0 : i32, i32
  }
  func.func @transform_1(%arg0: i32, %arg1: i32) -> (i32, i32, i32) {
    %c0_i32 = arith.constant 0 : i32
    %c0_i32_0 = arith.constant 0 : i32
    %c0_i32_1 = arith.constant 0 : i32
    return %arg0, %c0_i32, %c0_i32_0 : i32, i32, i32
  }
  func.func @transform_2(%arg0: i32, %arg1: i32) -> (i32, i32, i32) {
    %c0_i32 = arith.constant 0 : i32
    %c0_i32_0 = arith.constant 0 : i32
    %c0_i32_1 = arith.constant 0 : i32
    return %arg0, %c0_i32, %c0_i32_0 : i32, i32, i32
  }
  func.func @transform_3(%arg0: i32, %arg1: i32) -> (i32, i32, i32) {
    %c0_i32 = arith.constant 0 : i32
    %c0_i32_0 = arith.constant 0 : i32
    %c0_i32_1 = arith.constant 0 : i32
    return %arg1, %c0_i32, %c0_i32_0 : i32, i32, i32
  }
  func.func @transform_4(%arg0: i32, %arg1: i32) -> (i32, i32, i32) {
    %c0_i32 = arith.constant 0 : i32
    %c0_i32_0 = arith.constant 0 : i32
    %c0_i32_1 = arith.constant 0 : i32
    return %arg1, %c0_i32, %c0_i32_0 : i32, i32, i32
  }
  func.func @transform_5(%arg0: i32, %arg1: i32) -> (i32, i32, i32) {
    %c0_i32 = arith.constant 0 : i32
    %c0_i32_0 = arith.constant 0 : i32
    %c0_i32_1 = arith.constant 0 : i32
    return %arg1, %c0_i32, %c0_i32_0 : i32, i32, i32
  }
  func.func @transform_6(%arg0: i32, %arg1: i32) -> (i32, i32, i32) {
    %c0_i32 = arith.constant 0 : i32
    %c0_i32_0 = arith.constant 0 : i32
    %c0_i32_1 = arith.constant 0 : i32
    return %arg1, %c0_i32, %c0_i32_0 : i32, i32, i32
  }
  func.func @transform_7(%arg0: i32, %arg1: i32) -> (i32, i32, i32) {
    %c0_i32 = arith.constant 0 : i32
    %c0_i32_0 = arith.constant 0 : i32
    %c0_i32_1 = arith.constant 0 : i32
    return %arg1, %c0_i32, %c0_i32_0 : i32, i32, i32
  }
  func.func @transform_8(%arg0: i32, %arg1: i32) -> (i32, i32, i32) {
    %c0_i32 = arith.constant 0 : i32
    %c0_i32_0 = arith.constant 0 : i32
    %c0_i32_1 = arith.constant 0 : i32
    return %arg1, %c0_i32, %c0_i32_0 : i32, i32, i32
  }
  func.func @transform_9(%arg0: i32, %arg1: i32) -> (i32, i32, i32) {
    %c0_i32 = arith.constant 0 : i32
    %c0_i32_0 = arith.constant 0 : i32
    %c0_i32_1 = arith.constant 0 : i32
    return %arg1, %c0_i32, %c0_i32_0 : i32, i32, i32
  }
  func.func @transform_10(%arg0: i32, %arg1: i32) -> (i32, i32, i32) {
    %c0_i32 = arith.constant 0 : i32
    %c0_i32_0 = arith.constant 0 : i32
    %c0_i32_1 = arith.constant 0 : i32
    return %arg1, %c0_i32, %c0_i32_0 : i32, i32, i32
  }
  func.func @transform_11(%arg0: i32, %arg1: i32) -> (i32, i32, i32) {
    %c0_i32 = arith.constant 0 : i32
    %c0_i32_0 = arith.constant 0 : i32
    %c0_i32_1 = arith.constant 0 : i32
    return %arg1, %c0_i32, %c0_i32_0 : i32, i32, i32
  }
  func.func @transform_12(%arg0: i32, %arg1: i32) -> (i32, i32, i32) {
    %c0_i32 = arith.constant 0 : i32
    %c0_i32_0 = arith.constant 0 : i32
    %c0_i32_1 = arith.constant 0 : i32
    return %arg1, %c0_i32, %c0_i32_0 : i32, i32, i32
  }
  func.func @transform_13(%arg0: i32, %arg1: i32) -> (i32, i32, i32) {
    %c0_i32 = arith.constant 0 : i32
    %c0_i32_0 = arith.constant 0 : i32
    %c0_i32_1 = arith.constant 0 : i32
    return %arg1, %c0_i32, %c0_i32_0 : i32, i32, i32
  }
  func.func @transform_14(%arg0: i32, %arg1: i32) -> (i32, i32, i32) {
    %c0_i32 = arith.constant 0 : i32
    %c0_i32_0 = arith.constant 0 : i32
    %c0_i32_1 = arith.constant 0 : i32
    return %arg1, %c0_i32, %c0_i32_0 : i32, i32, i32
  }
  func.func @transform_15(%arg0: i32, %arg1: i32) -> (i32, i32, i32) {
    %c0_i32 = arith.constant 0 : i32
    %c0_i32_0 = arith.constant 0 : i32
    %c0_i32_1 = arith.constant 0 : i32
    return %arg1, %c0_i32, %c0_i32_0 : i32, i32, i32
  }
  func.func @transform_16(%arg0: i32, %arg1: i32) -> (i32, i32, i32) {
    %c0_i32 = arith.constant 0 : i32
    %c0_i32_0 = arith.constant 0 : i32
    %c0_i32_1 = arith.constant 0 : i32
    return %arg1, %c0_i32, %c0_i32_0 : i32, i32, i32
  }
  func.func @transform_17(%arg0: i32, %arg1: i32) -> (i32, i32, i32) {
    %c0_i32 = arith.constant 0 : i32
    %c0_i32_0 = arith.constant 0 : i32
    %c0_i32_1 = arith.constant 0 : i32
    return %arg1, %c0_i32, %c0_i32_0 : i32, i32, i32
  }
  func.func @transform_18(%arg0: i32, %arg1: i32) -> (i32, i32, i32) {
    %c0_i32 = arith.constant 0 : i32
    %c0_i32_0 = arith.constant 0 : i32
    %c0_i32_1 = arith.constant 0 : i32
    return %arg1, %c0_i32, %c0_i32_0 : i32, i32, i32
  }
  func.func @transform_19(%arg0: i32, %arg1: i32) -> (i32, i32, i32) {
    %c0_i32 = arith.constant 0 : i32
    %c0_i32_0 = arith.constant 0 : i32
    %c0_i32_1 = arith.constant 0 : i32
    return %arg1, %c0_i32, %c0_i32_0 : i32, i32, i32
  }
  func.func @transform_20(%arg0: i32, %arg1: i32) -> (i32, i32, i32) {
    %c0_i32 = arith.constant 0 : i32
    %c0_i32_0 = arith.constant 0 : i32
    %c0_i32_1 = arith.constant 0 : i32
    return %arg1, %c0_i32, %c0_i32_0 : i32, i32, i32
  }
  func.func @transform_21(%arg0: i32, %arg1: i32) -> (i32, i32, i32) {
    %c0_i32 = arith.constant 0 : i32
    %c0_i32_0 = arith.constant 0 : i32
    %c0_i32_1 = arith.constant 0 : i32
    return %arg1, %c0_i32, %c0_i32_0 : i32, i32, i32
  }
  func.func @transform_22(%arg0: i32, %arg1: i32) -> (i32, i32, i32) {
    %c0_i32 = arith.constant 0 : i32
    %c0_i32_0 = arith.constant 0 : i32
    %c0_i32_1 = arith.constant 0 : i32
    return %arg1, %c0_i32, %c0_i32_0 : i32, i32, i32
  }
  func.func @transform_23(%arg0: i32, %arg1: i32) -> (i32, i32) {
    %c0_i32 = arith.constant 0 : i32
    %c0_i32_0 = arith.constant 0 : i32
    %c0_i32_1 = arith.constant 0 : i32
    return %c0_i32, %c0_i32_0 : i32, i32
  }
  func.func @transform_24(%arg0: i32, %arg1: i32) -> (i32, i32) {
    %c0_i32 = arith.constant 0 : i32
    %c0_i32_0 = arith.constant 0 : i32
    %c0_i32_1 = arith.constant 0 : i32
    return %c0_i32, %c0_i32_0 : i32, i32
  }
  func.func @transform_25(%arg0: i32, %arg1: i32) -> (i32, i32) {
    %c0_i32 = arith.constant 0 : i32
    %c0_i32_0 = arith.constant 0 : i32
    %c0_i32_1 = arith.constant 0 : i32
    return %c0_i32, %c0_i32_0 : i32, i32
  }
  func.func @transform_26(%arg0: i32, %arg1: i32) -> (i32, i32) {
    %c0_i32 = arith.constant 0 : i32
    %c0_i32_0 = arith.constant 0 : i32
    %c0_i32_1 = arith.constant 0 : i32
    return %c0_i32, %c0_i32_0 : i32, i32
  }
  func.func @transform_27(%arg0: i32, %arg1: i32) -> (i32, i32) {
    %c0_i32 = arith.constant 0 : i32
    %c0_i32_0 = arith.constant 0 : i32
    %c0_i32_1 = arith.constant 0 : i32
    return %c0_i32, %c0_i32_0 : i32, i32
  }
  func.func @transform_28(%arg0: i32, %arg1: i32) -> (i32, i32) {
    %c0_i32 = arith.constant 0 : i32
    %c0_i32_0 = arith.constant 0 : i32
    %c0_i32_1 = arith.constant 0 : i32
    return %c0_i32, %c0_i32_0 : i32, i32
  }
  func.func @transform_29(%arg0: i32, %arg1: i32) -> (i32, i32, i32) {
    %c0_i32 = arith.constant 0 : i32
    %c0_i32_0 = arith.constant 0 : i32
    %c0_i32_1 = arith.constant 0 : i32
    return %arg0, %c0_i32, %c0_i32_0 : i32, i32, i32
  }
}

</mosaic_0001>

<llo_original>
// kernel: tpu_custom_call.1
$region0: #{tpu_custom_call.1}
  #allocation0 [shape = 'u32[]', space=smem, size = 0x4, offset = 0x4, fixed_abs, tag = 'smem constant byte address 0x4 - core index']
  #allocation1 [shape = 'u32[144,128]{1,0:T(1,128)}', space=vmem, size = 0x12000, scoped, tag = 'internal scratch']
  #allocation2 [shape = 'f32[32,32]{1,0:T(8,128)}', space=vmem, size = 0x4000, scoped, tag = 'scratch operand']
  #allocation3 [shape = 'bf16[32,96]{1,0:T(16,128)(2,1)}', space=vmem, size = 0x2000, scoped, tag = 'scratch operand']
  #allocation4 [shape = 'bf16[32,32]{1,0:T(16,128)(2,1)}', space=vmem, size = 0x2000, scoped, tag = 'scratch operand']
  #allocation5 [shape = 'bf16[32,64]{1,0:T(16,128)(2,1)}', space=vmem, size = 0x2000, scoped, tag = 'scratch operand']
  #allocation6 [shape = 'f32[1,1]{1,0:T(1,128)S(1)}', space=vmem, size = 0x200, scoped, tag = 'scoped memory for tpu_custom_call.1']
  %s0 = inlined_call_operand.smem [shape: u32[30], index: -1, kind: input, shape index: {}]
  %s1 = sld [smem:[%s0]]
  %s2 = scalar_lea.smem %s0, 1
  %s3 = sld [smem:[%s2]]
  %s4 = scalar_lea.smem %s0, 2
  %s5 = sld [smem:[%s4]]
  %s6 = scalar_lea.smem %s0, 3
  %s7 = sld [smem:[%s6]]
  %s8 = scalar_lea.smem %s0, 4
  %s9 = sld [smem:[%s8]]
  %s10 = scalar_lea.smem %s0, 5
  %s11 = sld [smem:[%s10]]
  %s12 = scalar_lea.smem %s0, 6
  %s13 = sld [smem:[%s12]]
  %s14 = scalar_lea.smem %s0, 7
  %s15 = sld [smem:[%s14]]
  %s16 = scalar_lea.smem %s0, 8
  %s17 = sld [smem:[%s16]]
  %s18 = scalar_lea.smem %s0, 9
  %s19 = sld [smem:[%s18]]
  %s20 = scalar_lea.smem %s0, 10
  %s21 = sld [smem:[%s20]]
  %s22 = scalar_lea.smem %s0, 11
  %s23 = sld [smem:[%s22]]
  %s24 = scalar_lea.smem %s0, 12
  %s25 = sld [smem:[%s24]]
  %s26 = scalar_lea.smem %s0, 13
  %s27 = sld [smem:[%s26]]
  %s28 = scalar_lea.smem %s0, 14
  %s29 = sld [smem:[%s28]]
  %s30 = scalar_lea.smem %s0, 15
  %s31 = sld [smem:[%s30]]
  %s32 = scalar_lea.smem %s0, 16
  %s33 = sld [smem:[%s32]]
  %s34 = scalar_lea.smem %s0, 17
  %s35 = sld [smem:[%s34]]
  %s36 = scalar_lea.smem %s0, 18
  %s37 = sld [smem:[%s36]]
  %s38 = scalar_lea.smem %s0, 19
  %s39 = sld [smem:[%s38]]
  %s40 = scalar_lea.smem %s0, 20
  %s41 = sld [smem:[%s40]]
  %s42 = scalar_lea.smem %s0, 21
  %s43 = sld [smem:[%s42]]
  %s44 = scalar_lea.smem %s0, 22
  %s45 = sld [smem:[%s44]]
  %s46 = scalar_lea.smem %s0, 23
  %s47 = sld [smem:[%s46]]
  %s48 = scalar_lea.smem %s0, 24
  %s49 = sld [smem:[%s48]]
  %s50 = scalar_lea.smem %s0, 25
  %s51 = sld [smem:[%s50]]
  %s52 = scalar_lea.smem %s0, 26
  %s53 = sld [smem:[%s52]]
  %s54 = scalar_lea.smem %s0, 27
  %s55 = sld [smem:[%s54]]
  %s56 = scalar_lea.smem %s0, 28
  %s57 = sld [smem:[%s56]]
  %s58 = scalar_lea.smem %s0, 29
  %s59 = sld [smem:[%s58]]
  %s60 = sld [smem:[#allocation0]]
  $region181: #{tpu_custom_call.1} parent=0
    _
  %s62 = ssub.s32 1, %s60
  %s63 = scalar_select 0, %s62, %s60
  %v64 = vstv %s57
  %65 = vst [vmem:[#allocation6] sm:$0x1] %v64
  $region1: #{tpu_custom_call.1} parent=0
    #allocation7 [shape = 'u8[4096]{0}', space=vmem, size = 0x1000, scoped, tag = 'input window, operand 0, single buffered']
    #allocation8 [shape = 's32[2]{0}', space=sflag, size = 0x8, scoped, tag = 'scoped memory for tpu_custom_call.1']
    #allocation9 [shape = 's32[2]{0}', space=sflag, size = 0x8, scoped, tag = 'scoped memory for tpu_custom_call.1']
    #allocation10 [shape = 'u8[8192]{0}', space=vmem, size = 0x2000, scoped, tag = 'input window, operand 1, single buffered']
    #allocation11 [shape = 's32[1]{0}', space=sflag, size = 0x4, scoped, tag = 'scoped memory for tpu_custom_call.1']
    #allocation12 [shape = 'u8[2048]{0}', space=vmem, size = 0x800, scoped, tag = 'input window, operand 2, single buffered']
    #allocation13 [shape = 'u8[16384]{0}', space=vmem, size = 0x4000, scoped, tag = 'input window, operand 9']
    #allocation14 [shape = 's32[2]{0}', space=sflag, size = 0x8, scoped, tag = 'scoped memory for tpu_custom_call.1']
    #allocation15 [shape = 'u8[16384]{0}', space=vmem, size = 0x4000, scoped, tag = 'input window, operand 11']
    #allocation16 [shape = 'u8[16384]{0}', space=vmem, size = 0x4000, scoped, tag = 'input window, operand 13']
    #allocation17 [shape = 's32[2]{0}', space=sflag, size = 0x8, scoped, tag = 'scoped memory for tpu_custom_call.1']
    #allocation18 [shape = 'u8[2048]{0}', space=vmem, size = 0x800, scoped, tag = 'output window, operand 0, single buffered']
    %66 = vsyncpa [#allocation8], 0
    %67 = vsyncpa [#allocation11], 0
    %68 = vsyncpa [#allocation14], 0
    %s69 = scalar_lea.sflag [#allocation14], 1
    %70 = vsyncpa %s69, 0
    %71 = vsyncpa [#allocation17], 0
    %s72 = scalar_lea.sflag [#allocation17], 1
    %73 = vsyncpa %s72, 0
    %74 = vsyncpa [#allocation9], 0
    loop: start=0, step=1, limit=4
    $region2: #{tpu_custom_call.1} parent=1 // loop_pre_header
      _
    $region3: #{tpu_custom_call.1} parent=1 // loop_header
      %s76 = sphi 0, %s80
      %p77 = scmp.ge.s32.totalorder %s76, 4
      %s83 = sphi 0, %s95
      %s84 = sphi 0, %s91
      %s85 = sphi 0, %s83
      %s86 = sphi 0, %s84
      %s87 = sphi 0, %s85
      %s88 = sphi 0, %s86
      %s96 = sphi 0, %s96
      %s98 = sphi 0, %s96
      %s99 = sphi 0, %s98
      %s113 = sphi 0, %s99
      %s119 = sphi 0, %s121
      %s122 = sphi 0, %s119
      %s123 = sphi 0, %s122
      %s139 = sphi 0, %s123
      %s145 = sphi 0, %s147
      %s148 = sphi 0, %s145
      %s149 = sphi 0, %s148
      %s165 = sphi 0, %s149
      %s171 = sphi 0, %s173
      %s174 = sphi 0, %s171
      %s175 = sphi 0, %s174
      %s191 = sphi 0, %s175
      %s197 = sphi 0, %s199
      %s200 = sphi 0, %s197
      %s201 = sphi 0, %s200
      %s217 = sphi 0, %s201
      %s223 = sphi 0, %s225
      %s226 = sphi 0, %s223
      %s227 = sphi 0, %s226
      %s243 = sphi 0, %s227
      %s249 = sphi 0, %s251
      %s252 = sphi 0, %s249
      %s253 = sphi 0, %s252
      %s269 = sphi 0, %s253
      %s275 = sphi 0, %s277
      %s278 = sphi 0, %s275
      %s279 = sphi 0, %s278
      %s295 = sphi 0, %s279
      %s301 = sphi 0, %s303
      %s304 = sphi 0, %s301
      %s305 = sphi 0, %s304
      %s321 = sphi 0, %s305
      %s327 = sphi 0, %s329
      %s330 = sphi 0, %s327
      %s331 = sphi 0, %s330
      %s347 = sphi 0, %s331
      %s353 = sphi 0, %s355
      %s356 = sphi 0, %s353
      %s357 = sphi 0, %s356
      %s373 = sphi 0, %s357
      %s379 = sphi 0, %s381
      %s382 = sphi 0, %s379
      %s383 = sphi 0, %s382
      %s399 = sphi 0, %s383
      %s405 = sphi 0, %s407
      %s408 = sphi 0, %s405
      %s409 = sphi 0, %s408
      %s425 = sphi 0, %s409
      %s431 = sphi 0, %s433
      %s434 = sphi 0, %s431
      %s435 = sphi 0, %s434
      %s451 = sphi 0, %s435
      %s457 = sphi 0, %s459
      %s460 = sphi 0, %s457
      %s461 = sphi 0, %s460
      %s477 = sphi 0, %s461
      %s483 = sphi 0, %s485
      %s486 = sphi 0, %s483
      %s487 = sphi 0, %s486
      %s503 = sphi 0, %s487
      %s509 = sphi 0, %s511
      %s512 = sphi 0, %s509
      %s513 = sphi 0, %s512
      %s529 = sphi 0, %s513
      %s535 = sphi 0, %s537
      %s538 = sphi 0, %s535
      %s539 = sphi 0, %s538
      %s555 = sphi 0, %s539
      %s561 = sphi 0, %s563
      %s564 = sphi 0, %s561
      %s565 = sphi 0, %s564
      %s581 = sphi 0, %s565
      %s587 = sphi 0, %s589
      %s590 = sphi 0, %s587
      %s591 = sphi 0, %s590
      %s607 = sphi 0, %s591
      %s613 = sphi 0, %s615
      %s616 = sphi 0, %s613
      %s617 = sphi 0, %s616
      %s633 = sphi 0, %s617
      %s639 = sphi 0, %s641
      %s642 = sphi 0, %s639
      %s643 = sphi 0, %s642
      %s659 = sphi 0, %s643
      %s665 = sphi 0, %s667
      %s668 = sphi 0, %s665
      %s669 = sphi 0, %s668
      %s685 = sphi 0, %s669
      %s689 = sphi 0, %s689
      %s691 = sphi 0, %s689
      %s692 = sphi 0, %s691
      %s706 = sphi 0, %s692
      %s710 = sphi 0, %s710
      %s712 = sphi 0, %s710
      %s713 = sphi 0, %s712
      %s727 = sphi 0, %s713
      %s731 = sphi 0, %s731
      %s733 = sphi 0, %s731
      %s734 = sphi 0, %s733
      %s748 = sphi 0, %s734
      %s752 = sphi 0, %s752
      %s754 = sphi 0, %s752
      %s755 = sphi 0, %s754
      %s769 = sphi 0, %s755
      %s773 = sphi 0, %s773
      %s775 = sphi 0, %s773
      %s776 = sphi 0, %s775
      %s790 = sphi 0, %s776
      %s794 = sphi 0, %s794
      %s796 = sphi 0, %s794
      %s797 = sphi 0, %s796
      %s811 = sphi 0, %s797
      %s817 = sphi 0, %s819
      %s820 = sphi 0, %s817
      %s821 = sphi 0, %s820
      %s837 = sphi 0, %s821
    $region4: #{tpu_custom_call.1} parent=1 // loop_header_branch
      %79 = sbr.rel (%p77) target = $region8
    $region5: #{tpu_custom_call.1} parent=1 // loop_body
      %s81 = ssub.s32 %s76, 1
      %s82 = ssub.s32 %s76, 2
      %s89 = sadd.s32 1, %s84
      %p90 = scmp.ge.s32.totalorder %s89, 2
      %s91 = scalar_select %p90, 0, %s89
      %s92 = sadd.s32 1, %s83
      %s93 = scalar_select %p90, %s92, %s83
      %p94 = scmp.ge.s32.totalorder %s93, 1
      %s95 = scalar_select %p94, 0, %s93
      %s97 = sadd.s32 %s96, 1
      %p100 = scmp.eq.s32.totalorder %s76, 1
      %p101 = scmp.ne.s32.totalorder %s96, %s98
      %p102 = scmp.eq.s32.totalorder %s76, 0
      %p103 = por %p101, %p102
      %p104 = scmp.ne.s32.totalorder %s96, %s98
      %p105 = scmp.eq.s32.totalorder %s81, 1
      %p106 = por %p104, %p105
      %p107 = scmp.ne.s32.totalorder %s98, %s99
      %p108 = scmp.eq.s32.totalorder %s81, 0
      %p109 = por %p107, %p108
      %p110 = scmp.ne.s32.totalorder %s98, %s99
      %p111 = scmp.eq.s32.totalorder %s82, 1
      %p112 = por %p110, %p111
      %p114 = scmp.ne.s32.totalorder %s99, %s113
      %p115 = scmp.eq.s32.totalorder %s82, 0
      %p116 = por %p114, %p115
      %s117 = ssub.s32 %s83, %s95
      %p118 = scmp.eq.s32.totalorder %s117, 0
      %s120 = sadd.s32 %s119, 1
      %s121 = scalar_select %p118, %s119, %s120
      %p124 = pneg %p118
      %p125 = scmp.eq.s32.totalorder %s76, 1
      %p126 = por %p124, %p125
      %p127 = scmp.ne.s32.totalorder %s119, %s122
      %p128 = scmp.eq.s32.totalorder %s76, 0
      %p129 = por %p127, %p128
      %p130 = scmp.ne.s32.totalorder %s119, %s122
      %p131 = scmp.eq.s32.totalorder %s81, 1
      %p132 = por %p130, %p131
      %p133 = scmp.ne.s32.totalorder %s122, %s123
      %p134 = scmp.eq.s32.totalorder %s81, 0
      %p135 = por %p133, %p134
      %p136 = scmp.ne.s32.totalorder %s122, %s123
      %p137 = scmp.eq.s32.totalorder %s82, 1
      %p138 = por %p136, %p137
      %p140 = scmp.ne.s32.totalorder %s123, %s139
      %p141 = scmp.eq.s32.totalorder %s82, 0
      %p142 = por %p140, %p141
      %s143 = ssub.s32 %s83, %s95
      %p144 = scmp.eq.s32.totalorder %s143, 0
      %s146 = sadd.s32 %s145, 1
      %s147 = scalar_select %p144, %s145, %s146
      %p150 = pneg %p144
      %p151 = scmp.eq.s32.totalorder %s76, 1
      %p152 = por %p150, %p151
      %p153 = scmp.ne.s32.totalorder %s145, %s148
      %p154 = scmp.eq.s32.totalorder %s76, 0
      %p155 = por %p153, %p154
      %p156 = scmp.ne.s32.totalorder %s145, %s148
      %p157 = scmp.eq.s32.totalorder %s81, 1
      %p158 = por %p156, %p157
      %p159 = scmp.ne.s32.totalorder %s148, %s149
      %p160 = scmp.eq.s32.totalorder %s81, 0
      %p161 = por %p159, %p160
      %p162 = scmp.ne.s32.totalorder %s148, %s149
      %p163 = scmp.eq.s32.totalorder %s82, 1
      %p164 = por %p162, %p163
      %p166 = scmp.ne.s32.totalorder %s149, %s165
      %p167 = scmp.eq.s32.totalorder %s82, 0
      %p168 = por %p166, %p167
      %s169 = ssub.s32 %s84, %s91
      %p170 = scmp.eq.s32.totalorder %s169, 0
      %s172 = sadd.s32 %s171, 1
      %s173 = scalar_select %p170, %s171, %s172
      %p176 = pneg %p170
      %p177 = scmp.eq.s32.totalorder %s76, 1
      %p178 = por %p176, %p177
      %p179 = scmp.ne.s32.totalorder %s171, %s174
      %p180 = scmp.eq.s32.totalorder %s76, 0
      %p181 = por %p179, %p180
      %p182 = scmp.ne.s32.totalorder %s171, %s174
      %p183 = scmp.eq.s32.totalorder %s81, 1
      %p184 = por %p182, %p183
      %p185 = scmp.ne.s32.totalorder %s174, %s175
      %p186 = scmp.eq.s32.totalorder %s81, 0
      %p187 = por %p185, %p186
      %p188 = scmp.ne.s32.totalorder %s174, %s175
      %p189 = scmp.eq.s32.totalorder %s82, 1
      %p190 = por %p188, %p189
      %p192 = scmp.ne.s32.totalorder %s175, %s191
      %p193 = scmp.eq.s32.totalorder %s82, 0
      %p194 = por %p192, %p193
      %s195 = ssub.s32 %s84, %s91
      %p196 = scmp.eq.s32.totalorder %s195, 0
      %s198 = sadd.s32 %s197, 1
      %s199 = scalar_select %p196, %s197, %s198
      %p202 = pneg %p196
      %p203 = scmp.eq.s32.totalorder %s76, 1
      %p204 = por %p202, %p203
      %p205 = scmp.ne.s32.totalorder %s197, %s200
      %p206 = scmp.eq.s32.totalorder %s76, 0
      %p207 = por %p205, %p206
      %p208 = scmp.ne.s32.totalorder %s197, %s200
      %p209 = scmp.eq.s32.totalorder %s81, 1
      %p210 = por %p208, %p209
      %p211 = scmp.ne.s32.totalorder %s200, %s201
      %p212 = scmp.eq.s32.totalorder %s81, 0
      %p213 = por %p211, %p212
      %p214 = scmp.ne.s32.totalorder %s200, %s201
      %p215 = scmp.eq.s32.totalorder %s82, 1
      %p216 = por %p214, %p215
      %p218 = scmp.ne.s32.totalorder %s201, %s217
      %p219 = scmp.eq.s32.totalorder %s82, 0
      %p220 = por %p218, %p219
      %s221 = ssub.s32 %s84, %s91
      %p222 = scmp.eq.s32.totalorder %s221, 0
      %s224 = sadd.s32 %s223, 1
      %s225 = scalar_select %p222, %s223, %s224
      %p228 = pneg %p222
      %p229 = scmp.eq.s32.totalorder %s76, 1
      %p230 = por %p228, %p229
      %p231 = scmp.ne.s32.totalorder %s223, %s226
      %p232 = scmp.eq.s32.totalorder %s76, 0
      %p233 = por %p231, %p232
      %p234 = scmp.ne.s32.totalorder %s223, %s226
      %p235 = scmp.eq.s32.totalorder %s81, 1
      %p236 = por %p234, %p235
      %p237 = scmp.ne.s32.totalorder %s226, %s227
      %p238 = scmp.eq.s32.totalorder %s81, 0
      %p239 = por %p237, %p238
      %p240 = scmp.ne.s32.totalorder %s226, %s227
      %p241 = scmp.eq.s32.totalorder %s82, 1
      %p242 = por %p240, %p241
      %p244 = scmp.ne.s32.totalorder %s227, %s243
      %p245 = scmp.eq.s32.totalorder %s82, 0
      %p246 = por %p244, %p245
      %s247 = ssub.s32 %s84, %s91
      %p248 = scmp.eq.s32.totalorder %s247, 0
      %s250 = sadd.s32 %s249, 1
      %s251 = scalar_select %p248, %s249, %s250
      %p254 = pneg %p248
      %p255 = scmp.eq.s32.totalorder %s76, 1
      %p256 = por %p254, %p255
      %p257 = scmp.ne.s32.totalorder %s249, %s252
      %p258 = scmp.eq.s32.totalorder %s76, 0
      %p259 = por %p257, %p258
      %p260 = scmp.ne.s32.totalorder %s249, %s252
      %p261 = scmp.eq.s32.totalorder %s81, 1
      %p262 = por %p260, %p261
      %p263 = scmp.ne.s32.totalorder %s252, %s253
      %p264 = scmp.eq.s32.totalorder %s81, 0
      %p265 = por %p263, %p264
      %p266 = scmp.ne.s32.totalorder %s252, %s253
      %p267 = scmp.eq.s32.totalorder %s82, 1
      %p268 = por %p266, %p267
      %p270 = scmp.ne.s32.totalorder %s253, %s269
      %p271 = scmp.eq.s32.totalorder %s82, 0
      %p272 = por %p270, %p271
      %s273 = ssub.s32 %s84, %s91
      %p274 = scmp.eq.s32.totalorder %s273, 0
      %s276 = sadd.s32 %s275, 1
      %s277 = scalar_select %p274, %s275, %s276
      %p280 = pneg %p274
      %p281 = scmp.eq.s32.totalorder %s76, 1
      %p282 = por %p280, %p281
      %p283 = scmp.ne.s32.totalorder %s275, %s278
      %p284 = scmp.eq.s32.totalorder %s76, 0
      %p285 = por %p283, %p284
      %p286 = scmp.ne.s32.totalorder %s275, %s278
      %p287 = scmp.eq.s32.totalorder %s81, 1
      %p288 = por %p286, %p287
      %p289 = scmp.ne.s32.totalorder %s278, %s279
      %p290 = scmp.eq.s32.totalorder %s81, 0
      %p291 = por %p289, %p290
      %p292 = scmp.ne.s32.totalorder %s278, %s279
      %p293 = scmp.eq.s32.totalorder %s82, 1
      %p294 = por %p292, %p293
      %p296 = scmp.ne.s32.totalorder %s279, %s295
      %p297 = scmp.eq.s32.totalorder %s82, 0
      %p298 = por %p296, %p297
      %s299 = ssub.s32 %s84, %s91
      %p300 = scmp.eq.s32.totalorder %s299, 0
      %s302 = sadd.s32 %s301, 1
      %s303 = scalar_select %p300, %s301, %s302
      %p306 = pneg %p300
      %p307 = scmp.eq.s32.totalorder %s76, 1
      %p308 = por %p306, %p307
      %p309 = scmp.ne.s32.totalorder %s301, %s304
      %p310 = scmp.eq.s32.totalorder %s76, 0
      %p311 = por %p309, %p310
      %p312 = scmp.ne.s32.totalorder %s301, %s304
      %p313 = scmp.eq.s32.totalorder %s81, 1
      %p314 = por %p312, %p313
      %p315 = scmp.ne.s32.totalorder %s304, %s305
      %p316 = scmp.eq.s32.totalorder %s81, 0
      %p317 = por %p315, %p316
      %p318 = scmp.ne.s32.totalorder %s304, %s305
      %p319 = scmp.eq.s32.totalorder %s82, 1
      %p320 = por %p318, %p319
      %p322 = scmp.ne.s32.totalorder %s305, %s321
      %p323 = scmp.eq.s32.totalorder %s82, 0
      %p324 = por %p322, %p323
      %s325 = ssub.s32 %s84, %s91
      %p326 = scmp.eq.s32.totalorder %s325, 0
      %s328 = sadd.s32 %s327, 1
      %s329 = scalar_select %p326, %s327, %s328
      %p332 = pneg %p326
      %p333 = scmp.eq.s32.totalorder %s76, 1
      %p334 = por %p332, %p333
      %p335 = scmp.ne.s32.totalorder %s327, %s330
      %p336 = scmp.eq.s32.totalorder %s76, 0
      %p337 = por %p335, %p336
      %p338 = scmp.ne.s32.totalorder %s327, %s330
      %p339 = scmp.eq.s32.totalorder %s81, 1
      %p340 = por %p338, %p339
      %p341 = scmp.ne.s32.totalorder %s330, %s331
      %p342 = scmp.eq.s32.totalorder %s81, 0
      %p343 = por %p341, %p342
      %p344 = scmp.ne.s32.totalorder %s330, %s331
      %p345 = scmp.eq.s32.totalorder %s82, 1
      %p346 = por %p344, %p345
      %p348 = scmp.ne.s32.totalorder %s331, %s347
      %p349 = scmp.eq.s32.totalorder %s82, 0
      %p350 = por %p348, %p349
      %s351 = ssub.s32 %s84, %s91
      %p352 = scmp.eq.s32.totalorder %s351, 0
      %s354 = sadd.s32 %s353, 1
      %s355 = scalar_select %p352, %s353, %s354
      %p358 = pneg %p352
      %p359 = scmp.eq.s32.totalorder %s76, 1
      %p360 = por %p358, %p359
      %p361 = scmp.ne.s32.totalorder %s353, %s356
      %p362 = scmp.eq.s32.totalorder %s76, 0
      %p363 = por %p361, %p362
      %p364 = scmp.ne.s32.totalorder %s353, %s356
      %p365 = scmp.eq.s32.totalorder %s81, 1
      %p366 = por %p364, %p365
      %p367 = scmp.ne.s32.totalorder %s356, %s357
      %p368 = scmp.eq.s32.totalorder %s81, 0
      %p369 = por %p367, %p368
      %p370 = scmp.ne.s32.totalorder %s356, %s357
      %p371 = scmp.eq.s32.totalorder %s82, 1
      %p372 = por %p370, %p371
      %p374 = scmp.ne.s32.totalorder %s357, %s373
      %p375 = scmp.eq.s32.totalorder %s82, 0
      %p376 = por %p374, %p375
      %s377 = ssub.s32 %s84, %s91
      %p378 = scmp.eq.s32.totalorder %s377, 0
      %s380 = sadd.s32 %s379, 1
      %s381 = scalar_select %p378, %s379, %s380
      %p384 = pneg %p378
      %p385 = scmp.eq.s32.totalorder %s76, 1
      %p386 = por %p384, %p385
      %p387 = scmp.ne.s32.totalorder %s379, %s382
      %p388 = scmp.eq.s32.totalorder %s76, 0
      %p389 = por %p387, %p388
      %p390 = scmp.ne.s32.totalorder %s379, %s382
      %p391 = scmp.eq.s32.totalorder %s81, 1
      %p392 = por %p390, %p391
      %p393 = scmp.ne.s32.totalorder %s382, %s383
      %p394 = scmp.eq.s32.totalorder %s81, 0
      %p395 = por %p393, %p394
      %p396 = scmp.ne.s32.totalorder %s382, %s383
      %p397 = scmp.eq.s32.totalorder %s82, 1
      %p398 = por %p396, %p397
      %p400 = scmp.ne.s32.totalorder %s383, %s399
      %p401 = scmp.eq.s32.totalorder %s82, 0
      %p402 = por %p400, %p401
      %s403 = ssub.s32 %s84, %s91
      %p404 = scmp.eq.s32.totalorder %s403, 0
      %s406 = sadd.s32 %s405, 1
      %s407 = scalar_select %p404, %s405, %s406
      %p410 = pneg %p404
      %p411 = scmp.eq.s32.totalorder %s76, 1
      %p412 = por %p410, %p411
      %p413 = scmp.ne.s32.totalorder %s405, %s408
      %p414 = scmp.eq.s32.totalorder %s76, 0
      %p415 = por %p413, %p414
      %p416 = scmp.ne.s32.totalorder %s405, %s408
      %p417 = scmp.eq.s32.totalorder %s81, 1
      %p418 = por %p416, %p417
      %p419 = scmp.ne.s32.totalorder %s408, %s409
      %p420 = scmp.eq.s32.totalorder %s81, 0
      %p421 = por %p419, %p420
      %p422 = scmp.ne.s32.totalorder %s408, %s409
      %p423 = scmp.eq.s32.totalorder %s82, 1
      %p424 = por %p422, %p423
      %p426 = scmp.ne.s32.totalorder %s409, %s425
      %p427 = scmp.eq.s32.totalorder %s82, 0
      %p428 = por %p426, %p427
      %s429 = ssub.s32 %s84, %s91
      %p430 = scmp.eq.s32.totalorder %s429, 0
      %s432 = sadd.s32 %s431, 1
      %s433 = scalar_select %p430, %s431, %s432
      %p436 = pneg %p430
      %p437 = scmp.eq.s32.totalorder %s76, 1
      %p438 = por %p436, %p437
      %p439 = scmp.ne.s32.totalorder %s431, %s434
      %p440 = scmp.eq.s32.totalorder %s76, 0
      %p441 = por %p439, %p440
      %p442 = scmp.ne.s32.totalorder %s431, %s434
      %p443 = scmp.eq.s32.totalorder %s81, 1
      %p444 = por %p442, %p443
      %p445 = scmp.ne.s32.totalorder %s434, %s435
      %p446 = scmp.eq.s32.totalorder %s81, 0
      %p447 = por %p445, %p446
      %p448 = scmp.ne.s32.totalorder %s434, %s435
      %p449 = scmp.eq.s32.totalorder %s82, 1
      %p450 = por %p448, %p449
      %p452 = scmp.ne.s32.totalorder %s435, %s451
      %p453 = scmp.eq.s32.totalorder %s82, 0
      %p454 = por %p452, %p453
      %s455 = ssub.s32 %s84, %s91
      %p456 = scmp.eq.s32.totalorder %s455, 0
      %s458 = sadd.s32 %s457, 1
      %s459 = scalar_select %p456, %s457, %s458
      %p462 = pneg %p456
      %p463 = scmp.eq.s32.totalorder %s76, 1
      %p464 = por %p462, %p463
      %p465 = scmp.ne.s32.totalorder %s457, %s460
      %p466 = scmp.eq.s32.totalorder %s76, 0
      %p467 = por %p465, %p466
      %p468 = scmp.ne.s32.totalorder %s457, %s460
      %p469 = scmp.eq.s32.totalorder %s81, 1
      %p470 = por %p468, %p469
      %p471 = scmp.ne.s32.totalorder %s460, %s461
      %p472 = scmp.eq.s32.totalorder %s81, 0
      %p473 = por %p471, %p472
      %p474 = scmp.ne.s32.totalorder %s460, %s461
      %p475 = scmp.eq.s32.totalorder %s82, 1
      %p476 = por %p474, %p475
      %p478 = scmp.ne.s32.totalorder %s461, %s477
      %p479 = scmp.eq.s32.totalorder %s82, 0
      %p480 = por %p478, %p479
      %s481 = ssub.s32 %s84, %s91
      %p482 = scmp.eq.s32.totalorder %s481, 0
      %s484 = sadd.s32 %s483, 1
      %s485 = scalar_select %p482, %s483, %s484
      %p488 = pneg %p482
      %p489 = scmp.eq.s32.totalorder %s76, 1
      %p490 = por %p488, %p489
      %p491 = scmp.ne.s32.totalorder %s483, %s486
      %p492 = scmp.eq.s32.totalorder %s76, 0
      %p493 = por %p491, %p492
      %p494 = scmp.ne.s32.totalorder %s483, %s486
      %p495 = scmp.eq.s32.totalorder %s81, 1
      %p496 = por %p494, %p495
      %p497 = scmp.ne.s32.totalorder %s486, %s487
      %p498 = scmp.eq.s32.totalorder %s81, 0
      %p499 = por %p497, %p498
      %p500 = scmp.ne.s32.totalorder %s486, %s487
      %p501 = scmp.eq.s32.totalorder %s82, 1
      %p502 = por %p500, %p501
      %p504 = scmp.ne.s32.totalorder %s487, %s503
      %p505 = scmp.eq.s32.totalorder %s82, 0
      %p506 = por %p504, %p505
      %s507 = ssub.s32 %s84, %s91
      %p508 = scmp.eq.s32.totalorder %s507, 0
      %s510 = sadd.s32 %s509, 1
      %s511 = scalar_select %p508, %s509, %s510
      %p514 = pneg %p508
      %p515 = scmp.eq.s32.totalorder %s76, 1
      %p516 = por %p514, %p515
      %p517 = scmp.ne.s32.totalorder %s509, %s512
      %p518 = scmp.eq.s32.totalorder %s76, 0
      %p519 = por %p517, %p518
      %p520 = scmp.ne.s32.totalorder %s509, %s512
      %p521 = scmp.eq.s32.totalorder %s81, 1
      %p522 = por %p520, %p521
      %p523 = scmp.ne.s32.totalorder %s512, %s513
      %p524 = scmp.eq.s32.totalorder %s81, 0
      %p525 = por %p523, %p524
      %p526 = scmp.ne.s32.totalorder %s512, %s513
      %p527 = scmp.eq.s32.totalorder %s82, 1
      %p528 = por %p526, %p527
      %p530 = scmp.ne.s32.totalorder %s513, %s529
      %p531 = scmp.eq.s32.totalorder %s82, 0
      %p532 = por %p530, %p531
      %s533 = ssub.s32 %s84, %s91
      %p534 = scmp.eq.s32.totalorder %s533, 0
      %s536 = sadd.s32 %s535, 1
      %s537 = scalar_select %p534, %s535, %s536
      %p540 = pneg %p534
      %p541 = scmp.eq.s32.totalorder %s76, 1
      %p542 = por %p540, %p541
      %p543 = scmp.ne.s32.totalorder %s535, %s538
      %p544 = scmp.eq.s32.totalorder %s76, 0
      %p545 = por %p543, %p544
      %p546 = scmp.ne.s32.totalorder %s535, %s538
      %p547 = scmp.eq.s32.totalorder %s81, 1
      %p548 = por %p546, %p547
      %p549 = scmp.ne.s32.totalorder %s538, %s539
      %p550 = scmp.eq.s32.totalorder %s81, 0
      %p551 = por %p549, %p550
      %p552 = scmp.ne.s32.totalorder %s538, %s539
      %p553 = scmp.eq.s32.totalorder %s82, 1
      %p554 = por %p552, %p553
      %p556 = scmp.ne.s32.totalorder %s539, %s555
      %p557 = scmp.eq.s32.totalorder %s82, 0
      %p558 = por %p556, %p557
      %s559 = ssub.s32 %s84, %s91
      %p560 = scmp.eq.s32.totalorder %s559, 0
      %s562 = sadd.s32 %s561, 1
      %s563 = scalar_select %p560, %s561, %s562
      %p566 = pneg %p560
      %p567 = scmp.eq.s32.totalorder %s76, 1
      %p568 = por %p566, %p567
      %p569 = scmp.ne.s32.totalorder %s561, %s564
      %p570 = scmp.eq.s32.totalorder %s76, 0
      %p571 = por %p569, %p570
      %p572 = scmp.ne.s32.totalorder %s561, %s564
      %p573 = scmp.eq.s32.totalorder %s81, 1
      %p574 = por %p572, %p573
      %p575 = scmp.ne.s32.totalorder %s564, %s565
      %p576 = scmp.eq.s32.totalorder %s81, 0
      %p577 = por %p575, %p576
      %p578 = scmp.ne.s32.totalorder %s564, %s565
      %p579 = scmp.eq.s32.totalorder %s82, 1
      %p580 = por %p578, %p579
      %p582 = scmp.ne.s32.totalorder %s565, %s581
      %p583 = scmp.eq.s32.totalorder %s82, 0
      %p584 = por %p582, %p583
      %s585 = ssub.s32 %s84, %s91
      %p586 = scmp.eq.s32.totalorder %s585, 0
      %s588 = sadd.s32 %s587, 1
      %s589 = scalar_select %p586, %s587, %s588
      %p592 = pneg %p586
      %p593 = scmp.eq.s32.totalorder %s76, 1
      %p594 = por %p592, %p593
      %p595 = scmp.ne.s32.totalorder %s587, %s590
      %p596 = scmp.eq.s32.totalorder %s76, 0
      %p597 = por %p595, %p596
      %p598 = scmp.ne.s32.totalorder %s587, %s590
      %p599 = scmp.eq.s32.totalorder %s81, 1
      %p600 = por %p598, %p599
      %p601 = scmp.ne.s32.totalorder %s590, %s591
      %p602 = scmp.eq.s32.totalorder %s81, 0
      %p603 = por %p601, %p602
      %p604 = scmp.ne.s32.totalorder %s590, %s591
      %p605 = scmp.eq.s32.totalorder %s82, 1
      %p606 = por %p604, %p605
      %p608 = scmp.ne.s32.totalorder %s591, %s607
      %p609 = scmp.eq.s32.totalorder %s82, 0
      %p610 = por %p608, %p609
      %s611 = ssub.s32 %s84, %s91
      %p612 = scmp.eq.s32.totalorder %s611, 0
      %s614 = sadd.s32 %s613, 1
      %s615 = scalar_select %p612, %s613, %s614
      %p618 = pneg %p612
      %p619 = scmp.eq.s32.totalorder %s76, 1
      %p620 = por %p618, %p619
      %p621 = scmp.ne.s32.totalorder %s613, %s616
      %p622 = scmp.eq.s32.totalorder %s76, 0
      %p623 = por %p621, %p622
      %p624 = scmp.ne.s32.totalorder %s613, %s616
      %p625 = scmp.eq.s32.totalorder %s81, 1
      %p626 = por %p624, %p625
      %p627 = scmp.ne.s32.totalorder %s616, %s617
      %p628 = scmp.eq.s32.totalorder %s81, 0
      %p629 = por %p627, %p628
      %p630 = scmp.ne.s32.totalorder %s616, %s617
      %p631 = scmp.eq.s32.totalorder %s82, 1
      %p632 = por %p630, %p631
      %p634 = scmp.ne.s32.totalorder %s617, %s633
      %p635 = scmp.eq.s32.totalorder %s82, 0
      %p636 = por %p634, %p635
      %s637 = ssub.s32 %s84, %s91
      %p638 = scmp.eq.s32.totalorder %s637, 0
      %s640 = sadd.s32 %s639, 1
      %s641 = scalar_select %p638, %s639, %s640
      %p644 = pneg %p638
      %p645 = scmp.eq.s32.totalorder %s76, 1
      %p646 = por %p644, %p645
      %p647 = scmp.ne.s32.totalorder %s639, %s642
      %p648 = scmp.eq.s32.totalorder %s76, 0
      %p649 = por %p647, %p648
      %p650 = scmp.ne.s32.totalorder %s639, %s642
      %p651 = scmp.eq.s32.totalorder %s81, 1
      %p652 = por %p650, %p651
      %p653 = scmp.ne.s32.totalorder %s642, %s643
      %p654 = scmp.eq.s32.totalorder %s81, 0
      %p655 = por %p653, %p654
      %p656 = scmp.ne.s32.totalorder %s642, %s643
      %p657 = scmp.eq.s32.totalorder %s82, 1
      %p658 = por %p656, %p657
      %p660 = scmp.ne.s32.totalorder %s643, %s659
      %p661 = scmp.eq.s32.totalorder %s82, 0
      %p662 = por %p660, %p661
      %s663 = ssub.s32 %s84, %s91
      %p664 = scmp.eq.s32.totalorder %s663, 0
      %s666 = sadd.s32 %s665, 1
      %s667 = scalar_select %p664, %s665, %s666
      %p670 = pneg %p664
      %p671 = scmp.eq.s32.totalorder %s76, 1
      %p672 = por %p670, %p671
      %p673 = scmp.ne.s32.totalorder %s665, %s668
      %p674 = scmp.eq.s32.totalorder %s76, 0
      %p675 = por %p673, %p674
      %p676 = scmp.ne.s32.totalorder %s665, %s668
      %p677 = scmp.eq.s32.totalorder %s81, 1
      %p678 = por %p676, %p677
      %p679 = scmp.ne.s32.totalorder %s668, %s669
      %p680 = scmp.eq.s32.totalorder %s81, 0
      %p681 = por %p679, %p680
      %p682 = scmp.ne.s32.totalorder %s668, %s669
      %p683 = scmp.eq.s32.totalorder %s82, 1
      %p684 = por %p682, %p683
      %p686 = scmp.ne.s32.totalorder %s669, %s685
      %p687 = scmp.eq.s32.totalorder %s82, 0
      %p688 = por %p686, %p687
      %s690 = sadd.s32 %s689, 1
      %p693 = scmp.eq.s32.totalorder %s76, 1
      %p694 = scmp.ne.s32.totalorder %s689, %s691
      %p695 = scmp.eq.s32.totalorder %s76, 0
      %p696 = por %p694, %p695
      %p697 = scmp.ne.s32.totalorder %s689, %s691
      %p698 = scmp.eq.s32.totalorder %s81, 1
      %p699 = por %p697, %p698
      %p700 = scmp.ne.s32.totalorder %s691, %s692
      %p701 = scmp.eq.s32.totalorder %s81, 0
      %p702 = por %p700, %p701
      %p703 = scmp.ne.s32.totalorder %s691, %s692
      %p704 = scmp.eq.s32.totalorder %s82, 1
      %p705 = por %p703, %p704
      %p707 = scmp.ne.s32.totalorder %s692, %s706
      %p708 = scmp.eq.s32.totalorder %s82, 0
      %p709 = por %p707, %p708
      %s711 = sadd.s32 %s710, 1
      %p714 = scmp.eq.s32.totalorder %s76, 1
      %p715 = scmp.ne.s32.totalorder %s710, %s712
      %p716 = scmp.eq.s32.totalorder %s76, 0
      %p717 = por %p715, %p716
      %p718 = scmp.ne.s32.totalorder %s710, %s712
      %p719 = scmp.eq.s32.totalorder %s81, 1
      %p720 = por %p718, %p719
      %p721 = scmp.ne.s32.totalorder %s712, %s713
      %p722 = scmp.eq.s32.totalorder %s81, 0
      %p723 = por %p721, %p722
      %p724 = scmp.ne.s32.totalorder %s712, %s713
      %p725 = scmp.eq.s32.totalorder %s82, 1
      %p726 = por %p724, %p725
      %p728 = scmp.ne.s32.totalorder %s713, %s727
      %p729 = scmp.eq.s32.totalorder %s82, 0
      %p730 = por %p728, %p729
      %s732 = sadd.s32 %s731, 1
      %p735 = scmp.eq.s32.totalorder %s76, 1
      %p736 = scmp.ne.s32.totalorder %s731, %s733
      %p737 = scmp.eq.s32.totalorder %s76, 0
      %p738 = por %p736, %p737
      %p739 = scmp.ne.s32.totalorder %s731, %s733
      %p740 = scmp.eq.s32.totalorder %s81, 1
      %p741 = por %p739, %p740
      %p742 = scmp.ne.s32.totalorder %s733, %s734
      %p743 = scmp.eq.s32.totalorder %s81, 0
      %p744 = por %p742, %p743
      %p745 = scmp.ne.s32.totalorder %s733, %s734
      %p746 = scmp.eq.s32.totalorder %s82, 1
      %p747 = por %p745, %p746
      %p749 = scmp.ne.s32.totalorder %s734, %s748
      %p750 = scmp.eq.s32.totalorder %s82, 0
      %p751 = por %p749, %p750
      %s753 = sadd.s32 %s752, 1
      %p756 = scmp.eq.s32.totalorder %s76, 1
      %p757 = scmp.ne.s32.totalorder %s752, %s754
      %p758 = scmp.eq.s32.totalorder %s76, 0
      %p759 = por %p757, %p758
      %p760 = scmp.ne.s32.totalorder %s752, %s754
      %p761 = scmp.eq.s32.totalorder %s81, 1
      %p762 = por %p760, %p761
      %p763 = scmp.ne.s32.totalorder %s754, %s755
      %p764 = scmp.eq.s32.totalorder %s81, 0
      %p765 = por %p763, %p764
      %p766 = scmp.ne.s32.totalorder %s754, %s755
      %p767 = scmp.eq.s32.totalorder %s82, 1
      %p768 = por %p766, %p767
      %p770 = scmp.ne.s32.totalorder %s755, %s769
      %p771 = scmp.eq.s32.totalorder %s82, 0
      %p772 = por %p770, %p771
      %s774 = sadd.s32 %s773, 1
      %p777 = scmp.eq.s32.totalorder %s76, 1
      %p778 = scmp.ne.s32.totalorder %s773, %s775
      %p779 = scmp.eq.s32.totalorder %s76, 0
      %p780 = por %p778, %p779
      %p781 = scmp.ne.s32.totalorder %s773, %s775
      %p782 = scmp.eq.s32.totalorder %s81, 1
      %p783 = por %p781, %p782
      %p784 = scmp.ne.s32.totalorder %s775, %s776
      %p785 = scmp.eq.s32.totalorder %s81, 0
      %p786 = por %p784, %p785
      %p787 = scmp.ne.s32.totalorder %s775, %s776
      %p788 = scmp.eq.s32.totalorder %s82, 1
      %p789 = por %p787, %p788
      %p791 = scmp.ne.s32.totalorder %s776, %s790
      %p792 = scmp.eq.s32.totalorder %s82, 0
      %p793 = por %p791, %p792
      %s795 = sadd.s32 %s794, 1
      %p798 = scmp.eq.s32.totalorder %s76, 1
      %p799 = scmp.ne.s32.totalorder %s794, %s796
      %p800 = scmp.eq.s32.totalorder %s76, 0
      %p801 = por %p799, %p800
      %p802 = scmp.ne.s32.totalorder %s794, %s796
      %p803 = scmp.eq.s32.totalorder %s81, 1
      %p804 = por %p802, %p803
      %p805 = scmp.ne.s32.totalorder %s796, %s797
      %p806 = scmp.eq.s32.totalorder %s81, 0
      %p807 = por %p805, %p806
      %p808 = scmp.ne.s32.totalorder %s796, %s797
      %p809 = scmp.eq.s32.totalorder %s82, 1
      %p810 = por %p808, %p809
      %p812 = scmp.ne.s32.totalorder %s797, %s811
      %p813 = scmp.eq.s32.totalorder %s82, 0
      %p814 = por %p812, %p813
      %s815 = ssub.s32 %s83, %s95
      %p816 = scmp.eq.s32.totalorder %s815, 0
      %s818 = sadd.s32 %s817, 1
      %s819 = scalar_select %p816, %s817, %s818
      %p822 = pneg %p816
      %p823 = scmp.eq.s32.totalorder %s76, 1
      %p824 = por %p822, %p823
      %p825 = scmp.ne.s32.totalorder %s817, %s820
      %p826 = scmp.eq.s32.totalorder %s76, 0
      %p827 = por %p825, %p826
      %p828 = scmp.ne.s32.totalorder %s817, %s820
      %p829 = scmp.eq.s32.totalorder %s81, 1
      %p830 = por %p828, %p829
      %p831 = scmp.ne.s32.totalorder %s820, %s821
      %p832 = scmp.eq.s32.totalorder %s81, 0
      %p833 = por %p831, %p832
      %p834 = scmp.ne.s32.totalorder %s820, %s821
      %p835 = scmp.eq.s32.totalorder %s82, 1
      %p836 = por %p834, %p835
      %p838 = scmp.ne.s32.totalorder %s821, %s837
      %p839 = scmp.eq.s32.totalorder %s82, 0
      %p840 = por %p838, %p839
      %p841 = scmp.le.s32.totalorder 1, %s76
      %p842 = scmp.lt.s32.totalorder %s76, 3
      %p843 = pnand %p841, %p842
      %p844 = pneg %p843
      // Predicated region
      $region9: #{tpu_custom_call.1} parent=5 // pred_check
        _
      $region10: #{tpu_custom_call.1} parent=5 // pred_check_branch
        %846 = sbr.rel (%p843) target = $region12
      $region11: #{tpu_custom_call.1} parent=5 // pred_region
        %s847 = ssub.s32 %s76, 1
        // Predicated region
        $region13: #{tpu_custom_call.1} parent=11 // pred_check
          %p848 = pneg %p109
        $region14: #{tpu_custom_call.1} parent=11 // pred_check_branch
          %850 = sbr.rel (%p848) target = $region16
        $region15: #{tpu_custom_call.1} parent=11 // pred_region
          %s852 = ssub.s32 128, 128
          %853 = vsyncadd [#allocation8], %s852
          %s855 = sshll.u32 [#allocation7], 4
          %s856 = int_to_ptr.vmem [resolvable:$true] %s855
          %858 = dma.hbm_to_vmem [thread:$0]  %s1, 128, %s856, [#allocation8]
        $region16: #{tpu_custom_call.1} parent=11 // pred_fallthru
          _
        // Predicated region
        $region17: #{tpu_custom_call.1} parent=11 // pred_check
          %p859 = pneg %p135
        $region18: #{tpu_custom_call.1} parent=11 // pred_check_branch
          %861 = sbr.rel (%p859) target = $region20
        $region19: #{tpu_custom_call.1} parent=11 // pred_region
          %s862 = smul.u32 4, %s85
          %s864 = ssub.s32 256, 256
          %865 = vsyncadd [#allocation11], %s864
          %s866 = smul.addr %s862, 64
          %s867 = scalar_lea.hbm %s3, %s866
          %s868 = sshll.u32 [#allocation10], 4
          %s869 = int_to_ptr.vmem [resolvable:$true] %s868
          %874 = dma.hbm_to_vmem [thread:$0]  %s867, 256, %s869, [#allocation11], 64, 64, 4
        $region20: #{tpu_custom_call.1} parent=11 // pred_fallthru
          _
        // Predicated region
        $region21: #{tpu_custom_call.1} parent=11 // pred_check
          %p875 = pneg %p161
        $region22: #{tpu_custom_call.1} parent=11 // pred_check_branch
          %877 = sbr.rel (%p875) target = $region24
        $region23: #{tpu_custom_call.1} parent=11 // pred_region
          %s878 = smul.u32 4, %s85
          %s880 = ssub.s32 64, 64
          %881 = vsyncadd [#allocation11], %s880
          %s882 = smul.addr %s878, 16
          %s883 = scalar_lea.hbm %s5, %s882
          %s884 = sshll.u32 [#allocation12], 4
          %s885 = int_to_ptr.vmem [resolvable:$true] %s884
          %890 = dma.hbm_to_vmem [thread:$0]  %s883, 64, %s885, [#allocation11], 16, 16, 1
        $region24: #{tpu_custom_call.1} parent=11 // pred_fallthru
          _
        // Predicated region
        $region25: #{tpu_custom_call.1} parent=11 // pred_check
          %p891 = pneg %p702
        $region26: #{tpu_custom_call.1} parent=11 // pred_check_branch
          %893 = sbr.rel (%p891) target = $region28
        $region27: #{tpu_custom_call.1} parent=11 // pred_region
          _
        $region28: #{tpu_custom_call.1} parent=11 // pred_fallthru
          _
        // Predicated region
        $region29: #{tpu_custom_call.1} parent=11 // pred_check
          %p894 = pneg %p723
        $region30: #{tpu_custom_call.1} parent=11 // pred_check_branch
          %896 = sbr.rel (%p894) target = $region32
        $region31: #{tpu_custom_call.1} parent=11 // pred_region
          _
        $region32: #{tpu_custom_call.1} parent=11 // pred_fallthru
          _
        // Predicated region
        $region33: #{tpu_custom_call.1} parent=11 // pred_check
          %p897 = pneg %p744
        $region34: #{tpu_custom_call.1} parent=11 // pred_check_branch
          %899 = sbr.rel (%p897) target = $region36
        $region35: #{tpu_custom_call.1} parent=11 // pred_region
          _
        $region36: #{tpu_custom_call.1} parent=11 // pred_fallthru
          _
        // Predicated region
        $region37: #{tpu_custom_call.1} parent=11 // pred_check
          %p900 = pneg %p765
        $region38: #{tpu_custom_call.1} parent=11 // pred_check_branch
          %902 = sbr.rel (%p900) target = $region40
        $region39: #{tpu_custom_call.1} parent=11 // pred_region
          _
        $region40: #{tpu_custom_call.1} parent=11 // pred_fallthru
          _
        // Predicated region
        $region41: #{tpu_custom_call.1} parent=11 // pred_check
          %p903 = pneg %p786
        $region42: #{tpu_custom_call.1} parent=11 // pred_check_branch
          %905 = sbr.rel (%p903) target = $region44
        $region43: #{tpu_custom_call.1} parent=11 // pred_region
          _
        $region44: #{tpu_custom_call.1} parent=11 // pred_fallthru
          _
        // Predicated region
        $region45: #{tpu_custom_call.1} parent=11 // pred_check
          %p906 = pneg %p807
        $region46: #{tpu_custom_call.1} parent=11 // pred_check_branch
          %908 = sbr.rel (%p906) target = $region48
        $region47: #{tpu_custom_call.1} parent=11 // pred_region
          _
        $region48: #{tpu_custom_call.1} parent=11 // pred_fallthru
          _
      $region12: #{tpu_custom_call.1} parent=5 // pred_fallthru
        _
      %p909 = scmp.lt.s32.totalorder %s76, 2
      // Predicated region
      $region49: #{tpu_custom_call.1} parent=5 // pred_check
        %p910 = pneg %p909
      $region50: #{tpu_custom_call.1} parent=5 // pred_check_branch
        %912 = sbr.rel (%p910) target = $region52
      $region51: #{tpu_custom_call.1} parent=5 // pred_region
        // Predicated region
        $region53: #{tpu_custom_call.1} parent=51 // pred_check
          %p913 = pneg %p181
        $region54: #{tpu_custom_call.1} parent=51 // pred_check_branch
          %915 = sbr.rel (%p913) target = $region56
        $region55: #{tpu_custom_call.1} parent=51 // pred_region
          %p916 = scmp.lt.s32.totalorder %s84, 1
          %s917 = scalar_select %p916, %s84, 1
          %s918 = smul.addr %s917, 4
          %s919 = smul.addr %s918, 4
          %s920 = scalar_lea.vmem %s7, %s919
        $region56: #{tpu_custom_call.1} parent=51 // pred_fallthru
          _
        // Predicated region
        $region57: #{tpu_custom_call.1} parent=51 // pred_check
          %p921 = pneg %p207
        $region58: #{tpu_custom_call.1} parent=51 // pred_check_branch
          %923 = sbr.rel (%p921) target = $region60
        $region59: #{tpu_custom_call.1} parent=51 // pred_region
          %p924 = scmp.lt.s32.totalorder %s84, 1
          %s925 = scalar_select %p924, %s84, 1
          %s926 = scalar_lea.vmem %s9, %s925
        $region60: #{tpu_custom_call.1} parent=51 // pred_fallthru
          _
        // Predicated region
        $region61: #{tpu_custom_call.1} parent=51 // pred_check
          %p927 = pneg %p233
        $region62: #{tpu_custom_call.1} parent=51 // pred_check_branch
          %929 = sbr.rel (%p927) target = $region64
        $region63: #{tpu_custom_call.1} parent=51 // pred_region
          %p930 = scmp.lt.s32.totalorder %s84, 1
          %s931 = scalar_select %p930, %s84, 1
          %s932 = smul.addr %s931, 4
          %s933 = smul.addr %s932, 4
          %s934 = scalar_lea.vmem %s11, %s933
        $region64: #{tpu_custom_call.1} parent=51 // pred_fallthru
          _
        // Predicated region
        $region65: #{tpu_custom_call.1} parent=51 // pred_check
          %p935 = pneg %p259
        $region66: #{tpu_custom_call.1} parent=51 // pred_check_branch
          %937 = sbr.rel (%p935) target = $region68
        $region67: #{tpu_custom_call.1} parent=51 // pred_region
          %p938 = scmp.lt.s32.totalorder %s84, 1
          %s939 = scalar_select %p938, %s84, 1
          %s940 = scalar_lea.vmem %s13, %s939
        $region68: #{tpu_custom_call.1} parent=51 // pred_fallthru
          _
        // Predicated region
        $region69: #{tpu_custom_call.1} parent=51 // pred_check
          %p941 = pneg %p285
        $region70: #{tpu_custom_call.1} parent=51 // pred_check_branch
          %943 = sbr.rel (%p941) target = $region72
        $region71: #{tpu_custom_call.1} parent=51 // pred_region
          %p944 = scmp.lt.s32.totalorder %s84, 1
          %s945 = scalar_select %p944, %s84, 1
          %s946 = smul.addr %s945, 4
          %s947 = smul.addr %s946, 4
          %s948 = scalar_lea.vmem %s15, %s947
        $region72: #{tpu_custom_call.1} parent=51 // pred_fallthru
          _
        // Predicated region
        $region73: #{tpu_custom_call.1} parent=51 // pred_check
          %p949 = pneg %p311
        $region74: #{tpu_custom_call.1} parent=51 // pred_check_branch
          %951 = sbr.rel (%p949) target = $region76
        $region75: #{tpu_custom_call.1} parent=51 // pred_region
          %p952 = scmp.lt.s32.totalorder %s84, 1
          %s953 = scalar_select %p952, %s84, 1
          %s954 = scalar_lea.vmem %s17, %s953
        $region76: #{tpu_custom_call.1} parent=51 // pred_fallthru
          _
        // Predicated region
        $region77: #{tpu_custom_call.1} parent=51 // pred_check
          %p955 = pneg %p337
        $region78: #{tpu_custom_call.1} parent=51 // pred_check_branch
          %957 = sbr.rel (%p955) target = $region80
        $region79: #{tpu_custom_call.1} parent=51 // pred_region
          %s958 = sand.u32 %s76, 1
          %s959 = scalar_lea.sflag [#allocation14], %s958
          %s960 = sand.u32 %s327, 1
          %s961 = smul.addr %s960, 16
          %s962 = scalar_lea.vmem [#allocation13], %s961
          %s964 = ssub.s32 256, 256
          %965 = vsyncadd %s959, %s964
          %s966 = smul.addr %s84, 4
          %s967 = smul.addr %s966, 64
          %s968 = scalar_lea.hbm %s19, %s967
          %s969 = sshll.u32 %s962, 4
          %s970 = int_to_ptr.vmem [resolvable:$true] %s969
          %975 = dma.hbm_to_vmem [thread:$0]  %s968, 256, %s970, %s959, 64, 64, 4
        $region80: #{tpu_custom_call.1} parent=51 // pred_fallthru
          _
        // Predicated region
        $region81: #{tpu_custom_call.1} parent=51 // pred_check
          %p976 = pneg %p363
        $region82: #{tpu_custom_call.1} parent=51 // pred_check_branch
          %978 = sbr.rel (%p976) target = $region84
        $region83: #{tpu_custom_call.1} parent=51 // pred_region
          %p979 = scmp.lt.s32.totalorder %s84, 1
          %s980 = scalar_select %p979, %s84, 1
          %s981 = scalar_lea.vmem %s21, %s980
        $region84: #{tpu_custom_call.1} parent=51 // pred_fallthru
          _
        // Predicated region
        $region85: #{tpu_custom_call.1} parent=51 // pred_check
          %p982 = pneg %p389
        $region86: #{tpu_custom_call.1} parent=51 // pred_check_branch
          %984 = sbr.rel (%p982) target = $region88
        $region87: #{tpu_custom_call.1} parent=51 // pred_region
          %s985 = sand.u32 %s76, 1
          %s986 = scalar_lea.sflag [#allocation14], %s985
          %s987 = sand.u32 %s379, 1
          %s988 = smul.addr %s987, 16
          %s989 = scalar_lea.vmem [#allocation15], %s988
          %s991 = ssub.s32 256, 256
          %992 = vsyncadd %s986, %s991
          %s993 = smul.addr %s84, 4
          %s994 = smul.addr %s993, 64
          %s995 = scalar_lea.hbm %s23, %s994
          %s996 = sshll.u32 %s989, 4
          %s997 = int_to_ptr.vmem [resolvable:$true] %s996
          %1002 = dma.hbm_to_vmem [thread:$0]  %s995, 256, %s997, %s986, 64, 64, 4
        $region88: #{tpu_custom_call.1} parent=51 // pred_fallthru
          _
        // Predicated region
        $region89: #{tpu_custom_call.1} parent=51 // pred_check
          %p1003 = pneg %p415
        $region90: #{tpu_custom_call.1} parent=51 // pred_check_branch
          %1005 = sbr.rel (%p1003) target = $region92
        $region91: #{tpu_custom_call.1} parent=51 // pred_region
          %p1006 = scmp.lt.s32.totalorder %s84, 1
          %s1007 = scalar_select %p1006, %s84, 1
          %s1008 = scalar_lea.vmem %s25, %s1007
        $region92: #{tpu_custom_call.1} parent=51 // pred_fallthru
          _
        // Predicated region
        $region93: #{tpu_custom_call.1} parent=51 // pred_check
          %p1009 = pneg %p441
        $region94: #{tpu_custom_call.1} parent=51 // pred_check_branch
          %1011 = sbr.rel (%p1009) target = $region96
        $region95: #{tpu_custom_call.1} parent=51 // pred_region
          %s1012 = sand.u32 %s431, 1
          %s1013 = scalar_lea.sflag [#allocation17], %s1012
          %s1014 = sand.u32 %s431, 1
          %s1015 = smul.addr %s1014, 16
          %s1016 = scalar_lea.vmem [#allocation16], %s1015
          %s1018 = ssub.s32 256, 256
          %1019 = vsyncadd %s1013, %s1018
          %s1020 = smul.addr %s84, 4
          %s1021 = smul.addr %s1020, 64
          %s1022 = scalar_lea.hbm %s27, %s1021
          %s1023 = sshll.u32 %s1016, 4
          %s1024 = int_to_ptr.vmem [resolvable:$true] %s1023
          %1029 = dma.hbm_to_vmem [thread:$0]  %s1022, 256, %s1024, %s1013, 64, 64, 4
        $region96: #{tpu_custom_call.1} parent=51 // pred_fallthru
          _
        // Predicated region
        $region97: #{tpu_custom_call.1} parent=51 // pred_check
          %p1030 = pneg %p467
        $region98: #{tpu_custom_call.1} parent=51 // pred_check_branch
          %1032 = sbr.rel (%p1030) target = $region100
        $region99: #{tpu_custom_call.1} parent=51 // pred_region
          %p1033 = scmp.lt.s32.totalorder %s84, 1
          %s1034 = scalar_select %p1033, %s84, 1
          %s1035 = scalar_lea.vmem %s29, %s1034
        $region100: #{tpu_custom_call.1} parent=51 // pred_fallthru
          _
        // Predicated region
        $region101: #{tpu_custom_call.1} parent=51 // pred_check
          %p1036 = pneg %p493
        $region102: #{tpu_custom_call.1} parent=51 // pred_check_branch
          %1038 = sbr.rel (%p1036) target = $region104
        $region103: #{tpu_custom_call.1} parent=51 // pred_region
          %p1039 = scmp.lt.s32.totalorder %s84, 1
          %s1040 = scalar_select %p1039, %s84, 1
          %s1041 = smul.addr %s1040, 8
          %s1042 = smul.addr %s1041, 4
          %s1043 = scalar_lea.vmem %s31, %s1042
        $region104: #{tpu_custom_call.1} parent=51 // pred_fallthru
          _
        // Predicated region
        $region105: #{tpu_custom_call.1} parent=51 // pred_check
          %p1044 = pneg %p519
        $region106: #{tpu_custom_call.1} parent=51 // pred_check_branch
          %1046 = sbr.rel (%p1044) target = $region108
        $region107: #{tpu_custom_call.1} parent=51 // pred_region
          %p1047 = scmp.lt.s32.totalorder %s84, 1
          %s1048 = scalar_select %p1047, %s84, 1
          %s1049 = scalar_lea.vmem %s33, %s1048
        $region108: #{tpu_custom_call.1} parent=51 // pred_fallthru
          _
        // Predicated region
        $region109: #{tpu_custom_call.1} parent=51 // pred_check
          %p1050 = pneg %p545
        $region110: #{tpu_custom_call.1} parent=51 // pred_check_branch
          %1052 = sbr.rel (%p1050) target = $region112
        $region111: #{tpu_custom_call.1} parent=51 // pred_region
          %p1053 = scmp.lt.s32.totalorder %s84, 1
          %s1054 = scalar_select %p1053, %s84, 1
          %s1055 = scalar_lea.vmem %s35, %s1054
        $region112: #{tpu_custom_call.1} parent=51 // pred_fallthru
          _
        // Predicated region
        $region113: #{tpu_custom_call.1} parent=51 // pred_check
          %p1056 = pneg %p571
        $region114: #{tpu_custom_call.1} parent=51 // pred_check_branch
          %1058 = sbr.rel (%p1056) target = $region116
        $region115: #{tpu_custom_call.1} parent=51 // pred_region
          %p1059 = scmp.lt.s32.totalorder %s84, 1
          %s1060 = scalar_select %p1059, %s84, 1
          %s1061 = scalar_lea.vmem %s37, %s1060
        $region116: #{tpu_custom_call.1} parent=51 // pred_fallthru
          _
        // Predicated region
        $region117: #{tpu_custom_call.1} parent=51 // pred_check
          %p1062 = pneg %p597
        $region118: #{tpu_custom_call.1} parent=51 // pred_check_branch
          %1064 = sbr.rel (%p1062) target = $region120
        $region119: #{tpu_custom_call.1} parent=51 // pred_region
          %p1065 = scmp.lt.s32.totalorder %s84, 1
          %s1066 = scalar_select %p1065, %s84, 1
          %s1067 = scalar_lea.vmem %s39, %s1066
        $region120: #{tpu_custom_call.1} parent=51 // pred_fallthru
          _
        // Predicated region
        $region121: #{tpu_custom_call.1} parent=51 // pred_check
          %p1068 = pneg %p623
        $region122: #{tpu_custom_call.1} parent=51 // pred_check_branch
          %1070 = sbr.rel (%p1068) target = $region124
        $region123: #{tpu_custom_call.1} parent=51 // pred_region
          %p1071 = scmp.lt.s32.totalorder %s84, 1
          %s1072 = scalar_select %p1071, %s84, 1
          %s1073 = scalar_lea.vmem %s41, %s1072
        $region124: #{tpu_custom_call.1} parent=51 // pred_fallthru
          _
        // Predicated region
        $region125: #{tpu_custom_call.1} parent=51 // pred_check
          %p1074 = pneg %p649
        $region126: #{tpu_custom_call.1} parent=51 // pred_check_branch
          %1076 = sbr.rel (%p1074) target = $region128
        $region127: #{tpu_custom_call.1} parent=51 // pred_region
          %p1077 = scmp.lt.s32.totalorder %s84, 1
          %s1078 = scalar_select %p1077, %s84, 1
          %s1079 = scalar_lea.vmem %s43, %s1078
        $region128: #{tpu_custom_call.1} parent=51 // pred_fallthru
          _
        // Predicated region
        $region129: #{tpu_custom_call.1} parent=51 // pred_check
          %p1080 = pneg %p675
        $region130: #{tpu_custom_call.1} parent=51 // pred_check_branch
          %1082 = sbr.rel (%p1080) target = $region132
        $region131: #{tpu_custom_call.1} parent=51 // pred_region
          %p1083 = scmp.lt.s32.totalorder %s84, 1
          %s1084 = scalar_select %p1083, %s84, 1
          %s1085 = scalar_lea.vmem %s45, %s1084
        $region132: #{tpu_custom_call.1} parent=51 // pred_fallthru
          _
      $region52: #{tpu_custom_call.1} parent=5 // pred_fallthru
        _
      %p1086 = scmp.le.s32.totalorder 1, %s76
      %p1087 = scmp.lt.s32.totalorder %s76, 3
      %p1088 = pnand %p1086, %p1087
      %p1089 = pneg %p1088
      // Predicated region
      $region133: #{tpu_custom_call.1} parent=5 // pred_check
        _
      $region134: #{tpu_custom_call.1} parent=5 // pred_check_branch
        %1091 = sbr.rel (%p1088) target = $region136
      $region135: #{tpu_custom_call.1} parent=5 // pred_region
        %s1092 = ssub.s32 %s76, 1
        // Predicated region
        $region137: #{tpu_custom_call.1} parent=135 // pred_check
          %p1093 = pneg %p109
        $region138: #{tpu_custom_call.1} parent=135 // pred_check_branch
          %1095 = sbr.rel (%p1093) target = $region140
        $region139: #{tpu_custom_call.1} parent=135 // pred_region
          %1096 = dma.done [#allocation8], 128
        $region140: #{tpu_custom_call.1} parent=135 // pred_fallthru
          _
        // Predicated region
        $region141: #{tpu_custom_call.1} parent=135 // pred_check
          %p1097 = pneg %p135
        $region142: #{tpu_custom_call.1} parent=135 // pred_check_branch
          %1099 = sbr.rel (%p1097) target = $region144
        $region143: #{tpu_custom_call.1} parent=135 // pred_region
          %1100 = dma.done [#allocation11], 256
        $region144: #{tpu_custom_call.1} parent=135 // pred_fallthru
          _
        // Predicated region
        $region145: #{tpu_custom_call.1} parent=135 // pred_check
          %p1101 = pneg %p161
        $region146: #{tpu_custom_call.1} parent=135 // pred_check_branch
          %1103 = sbr.rel (%p1101) target = $region148
        $region147: #{tpu_custom_call.1} parent=135 // pred_region
          %1104 = dma.done [#allocation11], 64
        $region148: #{tpu_custom_call.1} parent=135 // pred_fallthru
          _
        %s1105 = sand.u32 %s81, 1
        %s1106 = scalar_lea.sflag [#allocation14], %s1105
        %s1107 = sand.u32 %s330, 1
        %s1108 = smul.addr %s1107, 16
        %s1109 = scalar_lea.vmem [#allocation13], %s1108
        // Predicated region
        $region149: #{tpu_custom_call.1} parent=135 // pred_check
          %p1110 = pneg %p343
        $region150: #{tpu_custom_call.1} parent=135 // pred_check_branch
          %1112 = sbr.rel (%p1110) target = $region152
        $region151: #{tpu_custom_call.1} parent=135 // pred_region
          %1113 = dma.done %s1106, 256
        $region152: #{tpu_custom_call.1} parent=135 // pred_fallthru
          _
        %s1114 = sand.u32 %s81, 1
        %s1115 = scalar_lea.sflag [#allocation14], %s1114
        %s1116 = sand.u32 %s382, 1
        %s1117 = smul.addr %s1116, 16
        %s1118 = scalar_lea.vmem [#allocation15], %s1117
        // Predicated region
        $region153: #{tpu_custom_call.1} parent=135 // pred_check
          %p1119 = pneg %p395
        $region154: #{tpu_custom_call.1} parent=135 // pred_check_branch
          %1121 = sbr.rel (%p1119) target = $region156
        $region155: #{tpu_custom_call.1} parent=135 // pred_region
          %1122 = dma.done %s1115, 256
        $region156: #{tpu_custom_call.1} parent=135 // pred_fallthru
          _
        %s1123 = sand.u32 %s434, 1
        %s1124 = scalar_lea.sflag [#allocation17], %s1123
        %s1125 = sand.u32 %s434, 1
        %s1126 = smul.addr %s1125, 16
        %s1127 = scalar_lea.vmem [#allocation16], %s1126
        // Predicated region
        $region157: #{tpu_custom_call.1} parent=135 // pred_check
          %p1128 = pneg %p447
        $region158: #{tpu_custom_call.1} parent=135 // pred_check_branch
          %1130 = sbr.rel (%p1128) target = $region160
        $region159: #{tpu_custom_call.1} parent=135 // pred_region
          %1131 = dma.done %s1124, 256
        $region160: #{tpu_custom_call.1} parent=135 // pred_fallthru
          _
        %p1132 = pneg %p109
        %p1133 = pneg %p106
        %p1134 = pneg %p135
        %p1135 = pneg %p132
        %p1136 = pneg %p161
        %p1137 = pneg %p158
        %p1138 = scmp.lt.s32.totalorder %s86, 1
        %s1139 = scalar_select %p1138, %s86, 1
        %s1140 = smul.addr %s1139, 4
        %s1141 = smul.addr %s1140, 4
        %s1142 = scalar_lea.vmem %s7, %s1141
        %p1143 = pneg %p187
        %p1144 = pneg %p184
        %p1145 = scmp.lt.s32.totalorder %s86, 1
        %s1146 = scalar_select %p1145, %s86, 1
        %s1147 = scalar_lea.vmem %s9, %s1146
        %p1148 = pneg %p213
        %p1149 = pneg %p210
        %p1150 = scmp.lt.s32.totalorder %s86, 1
        %s1151 = scalar_select %p1150, %s86, 1
        %s1152 = smul.addr %s1151, 4
        %s1153 = smul.addr %s1152, 4
        %s1154 = scalar_lea.vmem %s11, %s1153
        %p1155 = pneg %p239
        %p1156 = pneg %p236
        %p1157 = scmp.lt.s32.totalorder %s86, 1
        %s1158 = scalar_select %p1157, %s86, 1
        %s1159 = scalar_lea.vmem %s13, %s1158
        %p1160 = pneg %p265
        %p1161 = pneg %p262
        %p1162 = scmp.lt.s32.totalorder %s86, 1
        %s1163 = scalar_select %p1162, %s86, 1
        %s1164 = smul.addr %s1163, 4
        %s1165 = smul.addr %s1164, 4
        %s1166 = scalar_lea.vmem %s15, %s1165
        %p1167 = pneg %p291
        %p1168 = pneg %p288
        %p1169 = scmp.lt.s32.totalorder %s86, 1
        %s1170 = scalar_select %p1169, %s86, 1
        %s1171 = scalar_lea.vmem %s17, %s1170
        %p1172 = pneg %p317
        %p1173 = pneg %p314
        %s1174 = sand.u32 %s81, 1
        %s1175 = scalar_lea.sflag [#allocation14], %s1174
        %s1176 = sand.u32 %s330, 1
        %s1177 = smul.addr %s1176, 16
        %s1178 = scalar_lea.vmem [#allocation13], %s1177
        %p1179 = pneg %p343
        %p1180 = pneg %p340
        %p1181 = scmp.lt.s32.totalorder %s86, 1
        %s1182 = scalar_select %p1181, %s86, 1
        %s1183 = scalar_lea.vmem %s21, %s1182
        %p1184 = pneg %p369
        %p1185 = pneg %p366
        %s1186 = sand.u32 %s81, 1
        %s1187 = scalar_lea.sflag [#allocation14], %s1186
        %s1188 = sand.u32 %s382, 1
        %s1189 = smul.addr %s1188, 16
        %s1190 = scalar_lea.vmem [#allocation15], %s1189
        %p1191 = pneg %p395
        %p1192 = pneg %p392
        %p1193 = scmp.lt.s32.totalorder %s86, 1
        %s1194 = scalar_select %p1193, %s86, 1
        %s1195 = scalar_lea.vmem %s25, %s1194
        %p1196 = pneg %p421
        %p1197 = pneg %p418
        %s1198 = sand.u32 %s434, 1
        %s1199 = scalar_lea.sflag [#allocation17], %s1198
        %s1200 = sand.u32 %s434, 1
        %s1201 = smul.addr %s1200, 16
        %s1202 = scalar_lea.vmem [#allocation16], %s1201
        %p1203 = pneg %p447
        %p1204 = pneg %p444
        %p1205 = scmp.lt.s32.totalorder %s86, 1
        %s1206 = scalar_select %p1205, %s86, 1
        %s1207 = scalar_lea.vmem %s29, %s1206
        %p1208 = pneg %p473
        %p1209 = pneg %p470
        %p1210 = scmp.lt.s32.totalorder %s86, 1
        %s1211 = scalar_select %p1210, %s86, 1
        %s1212 = smul.addr %s1211, 8
        %s1213 = smul.addr %s1212, 4
        %s1214 = scalar_lea.vmem %s31, %s1213
        %p1215 = pneg %p499
        %p1216 = pneg %p496
        %p1217 = scmp.lt.s32.totalorder %s86, 1
        %s1218 = scalar_select %p1217, %s86, 1
        %s1219 = scalar_lea.vmem %s33, %s1218
        %p1220 = pneg %p525
        %p1221 = pneg %p522
        %p1222 = scmp.lt.s32.totalorder %s86, 1
        %s1223 = scalar_select %p1222, %s86, 1
        %s1224 = scalar_lea.vmem %s35, %s1223
        %p1225 = pneg %p551
        %p1226 = pneg %p548
        %p1227 = scmp.lt.s32.totalorder %s86, 1
        %s1228 = scalar_select %p1227, %s86, 1
        %s1229 = scalar_lea.vmem %s37, %s1228
        %p1230 = pneg %p577
        %p1231 = pneg %p574
        %p1232 = scmp.lt.s32.totalorder %s86, 1
        %s1233 = scalar_select %p1232, %s86, 1
        %s1234 = scalar_lea.vmem %s39, %s1233
        %p1235 = pneg %p603
        %p1236 = pneg %p600
        %p1237 = scmp.lt.s32.totalorder %s86, 1
        %s1238 = scalar_select %p1237, %s86, 1
        %s1239 = scalar_lea.vmem %s41, %s1238
        %p1240 = pneg %p629
        %p1241 = pneg %p626
        %p1242 = scmp.lt.s32.totalorder %s86, 1
        %s1243 = scalar_select %p1242, %s86, 1
        %s1244 = scalar_lea.vmem %s43, %s1243
        %p1245 = pneg %p655
        %p1246 = pneg %p652
        %p1247 = scmp.lt.s32.totalorder %s86, 1
        %s1248 = scalar_select %p1247, %s86, 1
        %s1249 = scalar_lea.vmem %s45, %s1248
        %p1250 = pneg %p681
        %p1251 = pneg %p678
        %p1252 = pneg %p702
        %p1253 = pneg %p699
        %p1254 = pneg %p723
        %p1255 = pneg %p720
        %p1256 = pneg %p744
        %p1257 = pneg %p741
        %p1258 = pneg %p765
        %p1259 = pneg %p762
        %p1260 = pneg %p786
        %p1261 = pneg %p783
        %p1262 = pneg %p807
        %p1263 = pneg %p804
        %p1264 = pneg %p833
        %p1265 = pneg %p830
        %s1266 = smul.u32 4, %s85
        %s1267 = smul.u32 4, %s85
        %p1268 = scmp.lt.s32.totalorder %s86, 1
        %s1269 = scalar_select %p1268, %s86, 1
        %s1270 = smul.addr %s1269, 4
        %s1271 = smul.addr %s1270, 4
        %s1272 = scalar_lea.vmem %s7, %s1271
        %p1273 = scmp.lt.s32.totalorder %s86, 1
        %s1274 = scalar_select %p1273, %s86, 1
        %s1275 = scalar_lea.vmem %s9, %s1274
        %p1276 = scmp.lt.s32.totalorder %s86, 1
        %s1277 = scalar_select %p1276, %s86, 1
        %s1278 = smul.addr %s1277, 4
        %s1279 = smul.addr %s1278, 4
        %s1280 = scalar_lea.vmem %s11, %s1279
        %p1281 = scmp.lt.s32.totalorder %s86, 1
        %s1282 = scalar_select %p1281, %s86, 1
        %s1283 = scalar_lea.vmem %s13, %s1282
        %p1284 = scmp.lt.s32.totalorder %s86, 1
        %s1285 = scalar_select %p1284, %s86, 1
        %s1286 = smul.addr %s1285, 4
        %s1287 = smul.addr %s1286, 4
        %s1288 = scalar_lea.vmem %s15, %s1287
        %p1289 = scmp.lt.s32.totalorder %s86, 1
        %s1290 = scalar_select %p1289, %s86, 1
        %s1291 = scalar_lea.vmem %s17, %s1290
        %p1292 = scmp.lt.s32.totalorder %s86, 1
        %s1293 = scalar_select %p1292, %s86, 1
        %s1294 = scalar_lea.vmem %s21, %s1293
        %p1295 = scmp.lt.s32.totalorder %s86, 1
        %s1296 = scalar_select %p1295, %s86, 1
        %s1297 = scalar_lea.vmem %s25, %s1296
        %p1298 = scmp.lt.s32.totalorder %s86, 1
        %s1299 = scalar_select %p1298, %s86, 1
        %s1300 = scalar_lea.vmem %s29, %s1299
        %p1301 = scmp.lt.s32.totalorder %s86, 1
        %s1302 = scalar_select %p1301, %s86, 1
        %s1303 = smul.addr %s1302, 8
        %s1304 = smul.addr %s1303, 4
        %s1305 = scalar_lea.vmem %s31, %s1304
        %p1306 = scmp.lt.s32.totalorder %s86, 1
        %s1307 = scalar_select %p1306, %s86, 1
        %s1308 = scalar_lea.vmem %s33, %s1307
        %p1309 = scmp.lt.s32.totalorder %s86, 1
        %s1310 = scalar_select %p1309, %s86, 1
        %s1311 = scalar_lea.vmem %s35, %s1310
        %p1312 = scmp.lt.s32.totalorder %s86, 1
        %s1313 = scalar_select %p1312, %s86, 1
        %s1314 = scalar_lea.vmem %s37, %s1313
        %p1315 = scmp.lt.s32.totalorder %s86, 1
        %s1316 = scalar_select %p1315, %s86, 1
        %s1317 = scalar_lea.vmem %s39, %s1316
        %p1318 = scmp.lt.s32.totalorder %s86, 1
        %s1319 = scalar_select %p1318, %s86, 1
        %s1320 = scalar_lea.vmem %s41, %s1319
        %p1321 = scmp.lt.s32.totalorder %s86, 1
        %s1322 = scalar_select %p1321, %s86, 1
        %s1323 = scalar_lea.vmem %s43, %s1322
        %p1324 = scmp.lt.s32.totalorder %s86, 1
        %s1325 = scalar_select %p1324, %s86, 1
        %s1326 = scalar_lea.vmem %s45, %s1325
        %s1327 = smul.u32 4, %s85
        %p1329 = scmp.eq.s32.totalorder %s86, 0
        // Predicated region
        $region161: #{tpu_custom_call.1} parent=135 // pred_check
          %p1330 = pneg %p1329
        $region162: #{tpu_custom_call.1} parent=135 // pred_check_branch
          %1332 = sbr.rel (%p1330) target = $region164
        $region163: #{tpu_custom_call.1} parent=135 // pred_region
          %v1333 = vld [vmem:[#allocation7] sm:$0xff]
          %vm1334 = vcmask 261120
          %1335 = vst.msk [vmem:[#allocation2] sm:$0xff] %vm1334, %v1333
          %1336 = vst.msk [vmem:[#allocation2 + $0x8] sm:$0xff] %vm1334, %v1333
          %1337 = vst.msk [vmem:[#allocation2 + $0x10] sm:$0xff] %vm1334, %v1333
          %1338 = vst.msk [vmem:[#allocation2 + $0x18] sm:$0xff] %vm1334, %v1333
        $region164: #{tpu_custom_call.1} parent=135 // pred_fallthru
          _
        %v1339 = vld [vmem:[#allocation2] sm:$0xff]
        %v1340 = vld [vmem:[#allocation2 + $0x8] sm:$0xff]
        %v1341 = vld [vmem:[#allocation2 + $0x10] sm:$0xff]
        %v1342 = vld [vmem:[#allocation2 + $0x18] sm:$0xff]
        %v1343 = vld [vmem:[#allocation10] sm:$0xf]
        %v1344 = vld [vmem:[#allocation10 + $0x4] sm:$0xf]
        %v1345 = vld [vmem:[#allocation10 + $0x8] sm:$0xf]
        %v1346 = vld [vmem:[#allocation10 + $0xc] sm:$0xf]
        %v1347 = vld [vmem:[#allocation12] sm:$0x1]
        %v1348 = vld [vmem:[#allocation12 + $0x1] sm:$0x1]
        %v1349 = vld [vmem:[#allocation12 + $0x2] sm:$0x1]
        %v1350 = vld [vmem:[#allocation12 + $0x3] sm:$0x1]
        %v1351 = vmul.f32 %v1347, -1e+30
        %v1352 = vmul.f32 %v1348, -1e+30
        %v1353 = vmul.f32 %v1349, -1e+30
        %v1354 = vmul.f32 %v1350, -1e+30
        %v1355 = vlaneseq
        %v1356 = vand.u32 %v1355, 127
        %vm1357 = vcmp.lt.s32.totalorder %v1356, 6
        %v1358 = vsel %vm1357, 0.0, -1e+30
        %v1359 = vpack.c.bf16 %v1340, %v1339
        %v1360 = vpack.c.bf16 %v1342, %v1341
        %v1361 = vld [vmem:[%s1272] sm:$0xf]
        %v1362 = vld [vmem:[%s1272 + $0x4] sm:$0xf]
        %v1363 = vld [vmem:[%s1272 + $0x8] sm:$0xf]
        %v1364 = vld [vmem:[%s1272 + $0xc] sm:$0xf]
        %v1365 = vld [vmem:[%s1275] sm:$0x1]
        %v1367 = vlaneseq
        %v1368 = vshrl.u32 %v1367, 7
        %v1369 = vsub.s32 0, %v1368
        %v1370 = vrot.slane %v1365, %v1369
        %v1376 = vunpack.c.l.b16 %v1361
        %v1377 = vunpack.c.l.b16 %v1362
        %v1378 = vunpack.c.l.b16 %v1363
        %v1379 = vunpack.c.l.b16 %v1364
        %v1380 = vpack.c.b16 %v1377, %v1376
        %v1381 = vpack.c.b16 %v1379, %v1378
        %vm1384 = vcmask 261120
        %v1386 = vsel %vm1384, %v1359, 0
        %v1389 = vsel %vm1384, %v1360, 0
        %1391 = vmatprep.subr.bf16.mxu0 0
        %1392 = vmatpush1.bf16.msra.mxu0 %v1380
        %1393 = vmatprep.subr.bf16.mxu0 0
        %1394 = vmatpush1.bf16.msra.mxu0 %v1381
        %1395 = vmatprep.subr.bf16.mxu0 0
        %1396 = vmatpush1.bf16.msra.mxu0 0
        %1397 = vmatprep.subr.bf16.mxu0 0
        %1398 = vmatpush1.bf16.msra.mxu0 0
        %1399 = vmatprep.subr.bf16.mxu0 0
        %1400 = vmatpush1.bf16.msra.mxu0 0
        %1401 = vmatprep.subr.bf16.mxu0 0
        %1402 = vmatpush1.bf16.msra.mxu0 0
        %1403 = vmatprep.subr.bf16.mxu0 0
        %1404 = vmatpush1.bf16.msra.mxu0 0
        %1405 = vmatprep.subr.bf16.mxu0 0
        %1406 = vmatpush1.bf16.msra.mxu0 0
        %1407 = vmatprep.subr.bf16.mxu0 0
        %1408 = vmatpush1.bf16.msra.mxu0 0
        %1409 = vmatprep.subr.bf16.mxu0 0
        %1410 = vmatpush1.bf16.msra.mxu0 0
        %1411 = vmatprep.subr.bf16.mxu0 0
        %1412 = vmatpush1.bf16.msra.mxu0 0
        %1413 = vmatprep.subr.bf16.mxu0 0
        %1414 = vmatpush1.bf16.msra.mxu0 0
        %1415 = vmatprep.subr.bf16.mxu0 0
        %1416 = vmatpush1.bf16.msra.mxu0 0
        %1417 = vmatprep.subr.bf16.mxu0 0
        %1418 = vmatpush1.bf16.msra.mxu0 0
        %1419 = vmatprep.subr.bf16.mxu0 0
        %1420 = vmatpush1.bf16.msra.mxu0 0
        %1421 = vmatprep.subr.bf16.mxu0 0
        %1422 = vmatpush1.bf16.msra.mxu0 0
        %1423 = vmatprep.mubr.bf16.mxu0 0
        %1424 = vmatmul.mubr.bf16.gmra.mrb[0].mxu0 %v1386
        %v1425 = vpop.f32.mrb[0].mxu0
        %v1426 = vadd.f32 %v1370, %v1425
        %v1427 = vpop.f32.mrb[0].mxu0
        %v1428 = vpop.f32.mrb[0].mxu0
        %v1429 = vadd.f32 %v1370, %v1428
        %v1430 = vpop.f32.mrb[0].mxu0
        %1431 = vmatprep.mubr.bf16.mxu0 0
        %1432 = vmatmul.mubr.bf16.gmra.mrb[0].mxu0 %v1389
        %v1433 = vpop.f32.mrb[0].mxu0
        %v1434 = vadd.f32 %v1370, %v1433
        %v1435 = vpop.f32.mrb[0].mxu0
        %v1436 = vpop.f32.mrb[0].mxu0
        %v1437 = vadd.f32 %v1370, %v1436
        %v1438 = vpop.f32.mrb[0].mxu0
        %1439 = vdwg.mxu0
        %v1440 = vpack.c.bf16 %v1429, %v1426
        %v1441 = vpack.c.bf16 %v1437, %v1434
        %vm1442 = vcmask 785408
        %1443 = vst.msk [vmem:[#allocation3] sm:$0xff] %vm1442, %v1440
        %1444 = vst.msk [vmem:[#allocation3 + $0x8] sm:$0xff] %vm1442, %v1441
        %v1445 = vld [vmem:[%s1280] sm:$0xf]
        %v1446 = vld [vmem:[%s1280 + $0x4] sm:$0xf]
        %v1447 = vld [vmem:[%s1280 + $0x8] sm:$0xf]
        %v1448 = vld [vmem:[%s1280 + $0xc] sm:$0xf]
        %v1449 = vld [vmem:[%s1283] sm:$0x1]
        %v1450 = vld [vmem:[#allocation3] sm:$0xff]
        %v1451 = vld [vmem:[#allocation3 + $0x8] sm:$0xff]
        %v1454 = vunpack.c.l.b16 %v1450
        %v1455 = vunpack.c.h.b16 %v1450
        %v1456 = vunpack.c.l.b16 %v1451
        %v1457 = vunpack.c.h.b16 %v1451
        %v1458 = vpack.c.b16 %v1454, %v1454
        %v1459 = vpack.c.b16 %v1455, %v1455
        %v1460 = vpack.c.b16 %v1456, %v1456
        %v1461 = vpack.c.b16 %v1457, %v1457
        %1462 = vrot.lane.b32.xlu0 %v1458, 96
        %v1463 = vpop.permute.xlu0 %1462
        %vm1464 = vcmask 64512
        %v1466 = vsel %vm1464, %v1458, 0
        %v1469 = vsel %vm1464, %v1463, 0
        %1471 = vmatprep.subr.bf16.mxu0 0
        %1472 = vmatpush1.bf16.xpose.msra.mxu0 %v1469
        %1473 = vmatprep.subr.bf16.mxu0 0
        %1474 = vmatpush1.bf16.xpose.msra.mxu0 0
        %1475 = vmatprep.subr.bf16.mxu0 0
        %1476 = vmatpush1.bf16.xpose.msra.mxu0 0
        %1477 = vmatprep.subr.bf16.mxu0 0
        %1478 = vmatpush1.bf16.xpose.msra.mxu0 0
        %1479 = vmatprep.subr.bf16.mxu0 0
        %1480 = vmatpush1.bf16.xpose.msra.mxu0 0
        %1481 = vmatprep.subr.bf16.mxu0 0
        %1482 = vmatpush1.bf16.xpose.msra.mxu0 0
        %1483 = vmatprep.subr.bf16.mxu0 0
        %1484 = vmatpush1.bf16.xpose.msra.mxu0 0
        %1485 = vmatprep.subr.bf16.mxu0 0
        %1486 = vmatpush1.bf16.xpose.msra.mxu0 0
        %1487 = vmatprep.subr.bf16.mxu0 0
        %1488 = vmatpush1.bf16.xpose.msra.mxu0 0
        %1489 = vmatprep.subr.bf16.mxu0 0
        %1490 = vmatpush1.bf16.xpose.msra.mxu0 0
        %1491 = vmatprep.subr.bf16.mxu0 0
        %1492 = vmatpush1.bf16.xpose.msra.mxu0 0
        %1493 = vmatprep.subr.bf16.mxu0 0
        %1494 = vmatpush1.bf16.xpose.msra.mxu0 0
        %1495 = vmatprep.subr.bf16.mxu0 0
        %1496 = vmatpush1.bf16.xpose.msra.mxu0 0
        %1497 = vmatprep.subr.bf16.mxu0 0
        %1498 = vmatpush1.bf16.xpose.msra.mxu0 0
        %1499 = vmatprep.subr.bf16.mxu0 0
        %1500 = vmatpush1.bf16.xpose.msra.mxu0 0
        %1501 = vmatprep.subr.bf16.mxu0 0
        %1502 = vmatpush1.bf16.xpose.msra.mxu0 0
        %1503 = vmatprep.mubr.bf16.mxu0 0
        %1504 = vmatmul.mubr.bf16.gmra.mrb[0].mxu0 %v1466
        %v1505 = vpop.f32.mrb[0].mxu0
        %v1506 = vadd.f32 0.0, %v1505
        %v1507 = vpop.f32.mrb[0].mxu0
        %v1508 = vpop.f32.mrb[0].mxu0
        %v1509 = vpop.f32.mrb[0].mxu0
        %1510 = vdwg.mxu0
        %1511 = vrot.lane.b32.xlu0 %v1459, 96
        %v1512 = vpop.permute.xlu0 %1511
        %v1514 = vsel %vm1464, %v1459, 0
        %v1517 = vsel %vm1464, %v1512, 0
        %1519 = vmatprep.subr.bf16.mxu0 0
        %1520 = vmatpush1.bf16.xpose.msra.mxu0 %v1517
        %1521 = vmatprep.subr.bf16.mxu0 0
        %1522 = vmatpush1.bf16.xpose.msra.mxu0 0
        %1523 = vmatprep.subr.bf16.mxu0 0
        %1524 = vmatpush1.bf16.xpose.msra.mxu0 0
        %1525 = vmatprep.subr.bf16.mxu0 0
        %1526 = vmatpush1.bf16.xpose.msra.mxu0 0
        %1527 = vmatprep.subr.bf16.mxu0 0
        %1528 = vmatpush1.bf16.xpose.msra.mxu0 0
        %1529 = vmatprep.subr.bf16.mxu0 0
        %1530 = vmatpush1.bf16.xpose.msra.mxu0 0
        %1531 = vmatprep.subr.bf16.mxu0 0
        %1532 = vmatpush1.bf16.xpose.msra.mxu0 0
        %1533 = vmatprep.subr.bf16.mxu0 0
        %1534 = vmatpush1.bf16.xpose.msra.mxu0 0
        %1535 = vmatprep.subr.bf16.mxu0 0
        %1536 = vmatpush1.bf16.xpose.msra.mxu0 0
        %1537 = vmatprep.subr.bf16.mxu0 0
        %1538 = vmatpush1.bf16.xpose.msra.mxu0 0
        %1539 = vmatprep.subr.bf16.mxu0 0
        %1540 = vmatpush1.bf16.xpose.msra.mxu0 0
        %1541 = vmatprep.subr.bf16.mxu0 0
        %1542 = vmatpush1.bf16.xpose.msra.mxu0 0
        %1543 = vmatprep.subr.bf16.mxu0 0
        %1544 = vmatpush1.bf16.xpose.msra.mxu0 0
        %1545 = vmatprep.subr.bf16.mxu0 0
        %1546 = vmatpush1.bf16.xpose.msra.mxu0 0
        %1547 = vmatprep.subr.bf16.mxu0 0
        %1548 = vmatpush1.bf16.xpose.msra.mxu0 0
        %1549 = vmatprep.subr.bf16.mxu0 0
        %1550 = vmatpush1.bf16.xpose.msra.mxu0 0
        %1551 = vmatprep.mubr.bf16.mxu0 0
        %1552 = vmatmul.mubr.bf16.gmra.mrb[0].mxu0 %v1514
        %v1553 = vpop.f32.mrb[0].mxu0
        %v1554 = vadd.f32 0.0, %v1553
        %v1555 = vpop.f32.mrb[0].mxu0
        %v1556 = vpop.f32.mrb[0].mxu0
        %v1557 = vpop.f32.mrb[0].mxu0
        %1558 = vdwg.mxu0
        %1559 = vrot.lane.b32.xlu0 %v1460, 96
        %v1560 = vpop.permute.xlu0 %1559
        %v1562 = vsel %vm1464, %v1460, 0
        %v1565 = vsel %vm1464, %v1560, 0
        %1567 = vmatprep.subr.bf16.mxu0 0
        %1568 = vmatpush1.bf16.xpose.msra.mxu0 %v1565
        %1569 = vmatprep.subr.bf16.mxu0 0
        %1570 = vmatpush1.bf16.xpose.msra.mxu0 0
        %1571 = vmatprep.subr.bf16.mxu0 0
        %1572 = vmatpush1.bf16.xpose.msra.mxu0 0
        %1573 = vmatprep.subr.bf16.mxu0 0
        %1574 = vmatpush1.bf16.xpose.msra.mxu0 0
        %1575 = vmatprep.subr.bf16.mxu0 0
        %1576 = vmatpush1.bf16.xpose.msra.mxu0 0
        %1577 = vmatprep.subr.bf16.mxu0 0
        %1578 = vmatpush1.bf16.xpose.msra.mxu0 0
        %1579 = vmatprep.subr.bf16.mxu0 0
        %1580 = vmatpush1.bf16.xpose.msra.mxu0 0
        %1581 = vmatprep.subr.bf16.mxu0 0
        %1582 = vmatpush1.bf16.xpose.msra.mxu0 0
        %1583 = vmatprep.subr.bf16.mxu0 0
        %1584 = vmatpush1.bf16.xpose.msra.mxu0 0
        %1585 = vmatprep.subr.bf16.mxu0 0
        %1586 = vmatpush1.bf16.xpose.msra.mxu0 0
        %1587 = vmatprep.subr.bf16.mxu0 0
        %1588 = vmatpush1.bf16.xpose.msra.mxu0 0
        %1589 = vmatprep.subr.bf16.mxu0 0
        %1590 = vmatpush1.bf16.xpose.msra.mxu0 0
        %1591 = vmatprep.subr.bf16.mxu0 0
        %1592 = vmatpush1.bf16.xpose.msra.mxu0 0
        %1593 = vmatprep.subr.bf16.mxu0 0
        %1594 = vmatpush1.bf16.xpose.msra.mxu0 0
        %1595 = vmatprep.subr.bf16.mxu0 0
        %1596 = vmatpush1.bf16.xpose.msra.mxu0 0
        %1597 = vmatprep.subr.bf16.mxu0 0
        %1598 = vmatpush1.bf16.xpose.msra.mxu0 0
        %1599 = vmatprep.mubr.bf16.mxu0 0
        %1600 = vmatmul.mubr.bf16.gmra.mrb[0].mxu0 %v1562
        %v1601 = vpop.f32.mrb[0].mxu0
        %v1602 = vadd.f32 0.0, %v1601
        %v1603 = vpop.f32.mrb[0].mxu0
        %v1604 = vpop.f32.mrb[0].mxu0
        %v1605 = vpop.f32.mrb[0].mxu0
        %1606 = vdwg.mxu0
        %1607 = vrot.lane.b32.xlu0 %v1461, 96
        %v1608 = vpop.permute.xlu0 %1607
        %v1610 = vsel %vm1464, %v1461, 0
        %v1613 = vsel %vm1464, %v1608, 0
        %1615 = vmatprep.subr.bf16.mxu0 0
        %1616 = vmatpush1.bf16.xpose.msra.mxu0 %v1613
        %1617 = vmatprep.subr.bf16.mxu0 0
        %1618 = vmatpush1.bf16.xpose.msra.mxu0 0
        %1619 = vmatprep.subr.bf16.mxu0 0
        %1620 = vmatpush1.bf16.xpose.msra.mxu0 0
        %1621 = vmatprep.subr.bf16.mxu0 0
        %1622 = vmatpush1.bf16.xpose.msra.mxu0 0
        %1623 = vmatprep.subr.bf16.mxu0 0
        %1624 = vmatpush1.bf16.xpose.msra.mxu0 0
        %1625 = vmatprep.subr.bf16.mxu0 0
        %1626 = vmatpush1.bf16.xpose.msra.mxu0 0
        %1627 = vmatprep.subr.bf16.mxu0 0
        %1628 = vmatpush1.bf16.xpose.msra.mxu0 0
        %1629 = vmatprep.subr.bf16.mxu0 0
        %1630 = vmatpush1.bf16.xpose.msra.mxu0 0
        %1631 = vmatprep.subr.bf16.mxu0 0
        %1632 = vmatpush1.bf16.xpose.msra.mxu0 0
        %1633 = vmatprep.subr.bf16.mxu0 0
        %1634 = vmatpush1.bf16.xpose.msra.mxu0 0
        %1635 = vmatprep.subr.bf16.mxu0 0
        %1636 = vmatpush1.bf16.xpose.msra.mxu0 0
        %1637 = vmatprep.subr.bf16.mxu0 0
        %1638 = vmatpush1.bf16.xpose.msra.mxu0 0
        %1639 = vmatprep.subr.bf16.mxu0 0
        %1640 = vmatpush1.bf16.xpose.msra.mxu0 0
        %1641 = vmatprep.subr.bf16.mxu0 0
        %1642 = vmatpush1.bf16.xpose.msra.mxu0 0
        %1643 = vmatprep.subr.bf16.mxu0 0
        %1644 = vmatpush1.bf16.xpose.msra.mxu0 0
        %1645 = vmatprep.subr.bf16.mxu0 0
        %1646 = vmatpush1.bf16.xpose.msra.mxu0 0
        %1647 = vmatprep.mubr.bf16.mxu0 0
        %1648 = vmatmul.mubr.bf16.gmra.mrb[0].mxu0 %v1610
        %v1649 = vpop.f32.mrb[0].mxu0
        %v1650 = vadd.f32 0.0, %v1649
        %v1651 = vpop.f32.mrb[0].mxu0
        %v1652 = vpop.f32.mrb[0].mxu0
        %v1653 = vpop.f32.mrb[0].mxu0
        %1654 = vdwg.mxu0
        %v1655 = vmul.f32 %v1506, 0.35355338
        %v1656 = vmul.f32 %v1554, 0.35355338
        %v1657 = vmul.f32 %v1602, 0.35355338
        %v1658 = vmul.f32 %v1650, 0.35355338
        %v1659 = vadd.f32 %v1655, %v1358
        %v1660 = vadd.f32 %v1656, %v1358
        %v1661 = vadd.f32 %v1657, %v1358
        %v1662 = vadd.f32 %v1658, %v1358
        %v1663 = vsel %vm1464, %v1659, -inf
        %1664 = vmax.xlane.f32.xlu0 %v1663
        %v1665 = vpop.xlane.xlu0 %1664
        %v1666 = vsel %vm1464, %v1660, -inf
        %1667 = vmax.xlane.f32.xlu0 %v1666
        %v1668 = vpop.xlane.xlu0 %1667
        %v1669 = vsel %vm1464, %v1661, -inf
        %1670 = vmax.xlane.f32.xlu0 %v1669
        %v1671 = vpop.xlane.xlu0 %1670
        %v1672 = vsel %vm1464, %v1662, -inf
        %1673 = vmax.xlane.f32.xlu0 %v1672
        %v1674 = vpop.xlane.xlu0 %1673
        %v1675 = vsub.f32 %v1659, %v1665
        %v1676 = vsub.f32 %v1660, %v1668
        %v1677 = vsub.f32 %v1661, %v1671
        %v1678 = vsub.f32 %v1662, %v1674
        %v1679 = vmul.f32 %v1675, 1.442695
        %v1680 = vpow.pop %v1679
        %v1681 = vmul.f32 %v1676, 1.442695
        %v1682 = vpow.pop %v1681
        %v1683 = vmul.f32 %v1677, 1.442695
        %v1684 = vpow.pop %v1683
        %v1685 = vmul.f32 %v1678, 1.442695
        %v1686 = vpow.pop %v1685
        %v1687 = vsel %vm1464, %v1680, 0.0
        %1688 = vadd.xlane.f32.xlu0 %v1687
        %v1689 = vpop.xlane.xlu0 %1688
        %v1690 = vsel %vm1464, %v1682, 0.0
        %1691 = vadd.xlane.f32.xlu0 %v1690
        %v1692 = vpop.xlane.xlu0 %1691
        %v1693 = vsel %vm1464, %v1684, 0.0
        %1694 = vadd.xlane.f32.xlu0 %v1693
        %v1695 = vpop.xlane.xlu0 %1694
        %v1696 = vsel %vm1464, %v1686, 0.0
        %1697 = vadd.xlane.f32.xlu0 %v1696
        %v1698 = vpop.xlane.xlu0 %1697
        %v1699 = vrcp.pop %v1689
        %v1700 = vrcp.pop %v1692
        %v1701 = vrcp.pop %v1695
        %v1702 = vrcp.pop %v1698
        %v1703 = vmul.f32 %v1680, %v1699
        %v1704 = vmul.f32 %v1682, %v1700
        %v1705 = vmul.f32 %v1684, %v1701
        %v1706 = vmul.f32 %v1686, %v1702
        %v1707 = vpack.c.bf16 %v1703, %v1703
        %v1708 = vpack.c.bf16 %v1704, %v1704
        %v1709 = vpack.c.bf16 %v1705, %v1705
        %v1710 = vpack.c.bf16 %v1706, %v1706
        %1711 = vrot.lane.b32.xlu0 %v1458, 64
        %v1712 = vpop.permute.xlu0 %1711
        %v1714 = vsel %vm1464, %v1707, 0
        %vm1716 = vcmask 1043456
        %v1718 = vsel %vm1716, %v1712, 0
        %1720 = vmatprep.subr.bf16.mxu0 0
        %1721 = vmatpush1.bf16.msra.mxu0 %v1718
        %1722 = vmatprep.subr.bf16.mxu0 0
        %1723 = vmatpush1.bf16.msra.mxu0 0
        %1724 = vmatprep.subr.bf16.mxu0 0
        %1725 = vmatpush1.bf16.msra.mxu0 0
        %1726 = vmatprep.subr.bf16.mxu0 0
        %1727 = vmatpush1.bf16.msra.mxu0 0
        %1728 = vmatprep.subr.bf16.mxu0 0
        %1729 = vmatpush1.bf16.msra.mxu0 0
        %1730 = vmatprep.subr.bf16.mxu0 0
        %1731 = vmatpush1.bf16.msra.mxu0 0
        %1732 = vmatprep.subr.bf16.mxu0 0
        %1733 = vmatpush1.bf16.msra.mxu0 0
        %1734 = vmatprep.subr.bf16.mxu0 0
        %1735 = vmatpush1.bf16.msra.mxu0 0
        %1736 = vmatprep.subr.bf16.mxu0 0
        %1737 = vmatpush1.bf16.msra.mxu0 0
        %1738 = vmatprep.subr.bf16.mxu0 0
        %1739 = vmatpush1.bf16.msra.mxu0 0
        %1740 = vmatprep.subr.bf16.mxu0 0
        %1741 = vmatpush1.bf16.msra.mxu0 0
        %1742 = vmatprep.subr.bf16.mxu0 0
        %1743 = vmatpush1.bf16.msra.mxu0 0
        %1744 = vmatprep.subr.bf16.mxu0 0
        %1745 = vmatpush1.bf16.msra.mxu0 0
        %1746 = vmatprep.subr.bf16.mxu0 0
        %1747 = vmatpush1.bf16.msra.mxu0 0
        %1748 = vmatprep.subr.bf16.mxu0 0
        %1749 = vmatpush1.bf16.msra.mxu0 0
        %1750 = vmatprep.subr.bf16.mxu0 0
        %1751 = vmatpush1.bf16.msra.mxu0 0
        %1752 = vmatprep.mubr.bf16.mxu0 0
        %1753 = vmatmul.mubr.bf16.gmra.mrb[0].mxu0 %v1714
        %v1754 = vpop.f32.mrb[0].mxu0
        %v1755 = vadd.f32 0.0, %v1754
        %v1756 = vpop.f32.mrb[0].mxu0
        %v1757 = vpop.f32.mrb[0].mxu0
        %v1758 = vpop.f32.mrb[0].mxu0
        %1759 = vdwg.mxu0
        %1760 = vrot.lane.b32.xlu0 %v1459, 64
        %v1761 = vpop.permute.xlu0 %1760
        %v1763 = vsel %vm1464, %v1708, 0
        %v1766 = vsel %vm1716, %v1761, 0
        %1768 = vmatprep.subr.bf16.mxu0 0
        %1769 = vmatpush1.bf16.msra.mxu0 %v1766
        %1770 = vmatprep.subr.bf16.mxu0 0
        %1771 = vmatpush1.bf16.msra.mxu0 0
        %1772 = vmatprep.subr.bf16.mxu0 0
        %1773 = vmatpush1.bf16.msra.mxu0 0
        %1774 = vmatprep.subr.bf16.mxu0 0
        %1775 = vmatpush1.bf16.msra.mxu0 0
        %1776 = vmatprep.subr.bf16.mxu0 0
        %1777 = vmatpush1.bf16.msra.mxu0 0
        %1778 = vmatprep.subr.bf16.mxu0 0
        %1779 = vmatpush1.bf16.msra.mxu0 0
        %1780 = vmatprep.subr.bf16.mxu0 0
        %1781 = vmatpush1.bf16.msra.mxu0 0
        %1782 = vmatprep.subr.bf16.mxu0 0
        %1783 = vmatpush1.bf16.msra.mxu0 0
        %1784 = vmatprep.subr.bf16.mxu0 0
        %1785 = vmatpush1.bf16.msra.mxu0 0
        %1786 = vmatprep.subr.bf16.mxu0 0
        %1787 = vmatpush1.bf16.msra.mxu0 0
        %1788 = vmatprep.subr.bf16.mxu0 0
        %1789 = vmatpush1.bf16.msra.mxu0 0
        %1790 = vmatprep.subr.bf16.mxu0 0
        %1791 = vmatpush1.bf16.msra.mxu0 0
        %1792 = vmatprep.subr.bf16.mxu0 0
        %1793 = vmatpush1.bf16.msra.mxu0 0
        %1794 = vmatprep.subr.bf16.mxu0 0
        %1795 = vmatpush1.bf16.msra.mxu0 0
        %1796 = vmatprep.subr.bf16.mxu0 0
        %1797 = vmatpush1.bf16.msra.mxu0 0
        %1798 = vmatprep.subr.bf16.mxu0 0
        %1799 = vmatpush1.bf16.msra.mxu0 0
        %1800 = vmatprep.mubr.bf16.mxu0 0
        %1801 = vmatmul.mubr.bf16.gmra.mrb[0].mxu0 %v1763
        %v1802 = vpop.f32.mrb[0].mxu0
        %v1803 = vadd.f32 0.0, %v1802
        %v1804 = vpop.f32.mrb[0].mxu0
        %v1805 = vpop.f32.mrb[0].mxu0
        %v1806 = vpop.f32.mrb[0].mxu0
        %1807 = vdwg.mxu0
        %1808 = vrot.lane.b32.xlu0 %v1460, 64
        %v1809 = vpop.permute.xlu0 %1808
        %v1811 = vsel %vm1464, %v1709, 0
        %v1814 = vsel %vm1716, %v1809, 0
        %1816 = vmatprep.subr.bf16.mxu0 0
        %1817 = vmatpush1.bf16.msra.mxu0 %v1814
        %1818 = vmatprep.subr.bf16.mxu0 0
        %1819 = vmatpush1.bf16.msra.mxu0 0
        %1820 = vmatprep.subr.bf16.mxu0 0
        %1821 = vmatpush1.bf16.msra.mxu0 0
        %1822 = vmatprep.subr.bf16.mxu0 0
        %1823 = vmatpush1.bf16.msra.mxu0 0
        %1824 = vmatprep.subr.bf16.mxu0 0
        %1825 = vmatpush1.bf16.msra.mxu0 0
        %1826 = vmatprep.subr.bf16.mxu0 0
        %1827 = vmatpush1.bf16.msra.mxu0 0
        %1828 = vmatprep.subr.bf16.mxu0 0
        %1829 = vmatpush1.bf16.msra.mxu0 0
        %1830 = vmatprep.subr.bf16.mxu0 0
        %1831 = vmatpush1.bf16.msra.mxu0 0
        %1832 = vmatprep.subr.bf16.mxu0 0
        %1833 = vmatpush1.bf16.msra.mxu0 0
        %1834 = vmatprep.subr.bf16.mxu0 0
        %1835 = vmatpush1.bf16.msra.mxu0 0
        %1836 = vmatprep.subr.bf16.mxu0 0
        %1837 = vmatpush1.bf16.msra.mxu0 0
        %1838 = vmatprep.subr.bf16.mxu0 0
        %1839 = vmatpush1.bf16.msra.mxu0 0
        %1840 = vmatprep.subr.bf16.mxu0 0
        %1841 = vmatpush1.bf16.msra.mxu0 0
        %1842 = vmatprep.subr.bf16.mxu0 0
        %1843 = vmatpush1.bf16.msra.mxu0 0
        %1844 = vmatprep.subr.bf16.mxu0 0
        %1845 = vmatpush1.bf16.msra.mxu0 0
        %1846 = vmatprep.subr.bf16.mxu0 0
        %1847 = vmatpush1.bf16.msra.mxu0 0
        %1848 = vmatprep.mubr.bf16.mxu0 0
        %1849 = vmatmul.mubr.bf16.gmra.mrb[0].mxu0 %v1811
        %v1850 = vpop.f32.mrb[0].mxu0
        %v1851 = vadd.f32 0.0, %v1850
        %v1852 = vpop.f32.mrb[0].mxu0
        %v1853 = vpop.f32.mrb[0].mxu0
        %v1854 = vpop.f32.mrb[0].mxu0
        %1855 = vdwg.mxu0
        %1856 = vrot.lane.b32.xlu0 %v1461, 64
        %v1857 = vpop.permute.xlu0 %1856
        %v1859 = vsel %vm1464, %v1710, 0
        %v1862 = vsel %vm1716, %v1857, 0
        %1864 = vmatprep.subr.bf16.mxu0 0
        %1865 = vmatpush1.bf16.msra.mxu0 %v1862
        %1866 = vmatprep.subr.bf16.mxu0 0
        %1867 = vmatpush1.bf16.msra.mxu0 0
        %1868 = vmatprep.subr.bf16.mxu0 0
        %1869 = vmatpush1.bf16.msra.mxu0 0
        %1870 = vmatprep.subr.bf16.mxu0 0
        %1871 = vmatpush1.bf16.msra.mxu0 0
        %1872 = vmatprep.subr.bf16.mxu0 0
        %1873 = vmatpush1.bf16.msra.mxu0 0
        %1874 = vmatprep.subr.bf16.mxu0 0
        %1875 = vmatpush1.bf16.msra.mxu0 0
        %1876 = vmatprep.subr.bf16.mxu0 0
        %1877 = vmatpush1.bf16.msra.mxu0 0
        %1878 = vmatprep.subr.bf16.mxu0 0
        %1879 = vmatpush1.bf16.msra.mxu0 0
        %1880 = vmatprep.subr.bf16.mxu0 0
        %1881 = vmatpush1.bf16.msra.mxu0 0
        %1882 = vmatprep.subr.bf16.mxu0 0
        %1883 = vmatpush1.bf16.msra.mxu0 0
        %1884 = vmatprep.subr.bf16.mxu0 0
        %1885 = vmatpush1.bf16.msra.mxu0 0
        %1886 = vmatprep.subr.bf16.mxu0 0
        %1887 = vmatpush1.bf16.msra.mxu0 0
        %1888 = vmatprep.subr.bf16.mxu0 0
        %1889 = vmatpush1.bf16.msra.mxu0 0
        %1890 = vmatprep.subr.bf16.mxu0 0
        %1891 = vmatpush1.bf16.msra.mxu0 0
        %1892 = vmatprep.subr.bf16.mxu0 0
        %1893 = vmatpush1.bf16.msra.mxu0 0
        %1894 = vmatprep.subr.bf16.mxu0 0
        %1895 = vmatpush1.bf16.msra.mxu0 0
        %1896 = vmatprep.mubr.bf16.mxu0 0
        %1897 = vmatmul.mubr.bf16.gmra.mrb[0].mxu0 %v1859
        %v1898 = vpop.f32.mrb[0].mxu0
        %v1899 = vadd.f32 0.0, %v1898
        %v1900 = vpop.f32.mrb[0].mxu0
        %v1901 = vpop.f32.mrb[0].mxu0
        %v1902 = vpop.f32.mrb[0].mxu0
        %1903 = vdwg.mxu0
        %v1904 = vpack.c.bf16 %v1803, %v1755
        %v1905 = vpack.c.bf16 %v1899, %v1851
        %v1906 = vld [vmem:[#allocation3] sm:$0xff]
        %v1907 = vld [vmem:[#allocation3 + $0x8] sm:$0xff]
        %v1910 = vunpack.c.l.b16 %v1906
        %v1911 = vunpack.c.h.b16 %v1906
        %v1912 = vunpack.c.l.b16 %v1907
        %v1913 = vunpack.c.h.b16 %v1907
        %v1914 = vpack.c.b16 %v1910, %v1910
        %1915 = vrot.lane.b32.xlu0 %v1914, 120
        %v1916 = vpop.permute.xlu0 %1915
        %1917 = vrot.lane.b32.xlu0 %v1914, 88
        %v1918 = vpop.permute.xlu0 %1917
        %v1920 = vsel %vm1464, %v1916, 0
        %v1923 = vsel %vm1464, %v1918, 0
        %1925 = vmatprep.subr.bf16.mxu0 0
        %1926 = vmatpush1.bf16.xpose.msra.mxu0 %v1923
        %1927 = vmatprep.subr.bf16.mxu0 0
        %1928 = vmatpush1.bf16.xpose.msra.mxu0 0
        %1929 = vmatprep.subr.bf16.mxu0 0
        %1930 = vmatpush1.bf16.xpose.msra.mxu0 0
        %1931 = vmatprep.subr.bf16.mxu0 0
        %1932 = vmatpush1.bf16.xpose.msra.mxu0 0
        %1933 = vmatprep.subr.bf16.mxu0 0
        %1934 = vmatpush1.bf16.xpose.msra.mxu0 0
        %1935 = vmatprep.subr.bf16.mxu0 0
        %1936 = vmatpush1.bf16.xpose.msra.mxu0 0
        %1937 = vmatprep.subr.bf16.mxu0 0
        %1938 = vmatpush1.bf16.xpose.msra.mxu0 0
        %1939 = vmatprep.subr.bf16.mxu0 0
        %1940 = vmatpush1.bf16.xpose.msra.mxu0 0
        %1941 = vmatprep.subr.bf16.mxu0 0
        %1942 = vmatpush1.bf16.xpose.msra.mxu0 0
        %1943 = vmatprep.subr.bf16.mxu0 0
        %1944 = vmatpush1.bf16.xpose.msra.mxu0 0
        %1945 = vmatprep.subr.bf16.mxu0 0
        %1946 = vmatpush1.bf16.xpose.msra.mxu0 0
        %1947 = vmatprep.subr.bf16.mxu0 0
        %1948 = vmatpush1.bf16.xpose.msra.mxu0 0
        %1949 = vmatprep.subr.bf16.mxu0 0
        %1950 = vmatpush1.bf16.xpose.msra.mxu0 0
        %1951 = vmatprep.subr.bf16.mxu0 0
        %1952 = vmatpush1.bf16.xpose.msra.mxu0 0
        %1953 = vmatprep.subr.bf16.mxu0 0
        %1954 = vmatpush1.bf16.xpose.msra.mxu0 0
        %1955 = vmatprep.subr.bf16.mxu0 0
        %1956 = vmatpush1.bf16.xpose.msra.mxu0 0
        %1957 = vmatprep.mubr.bf16.mxu0 0
        %1958 = vmatmul.mubr.bf16.gmra.mrb[0].mxu0 %v1920
        %v1959 = vpop.f32.mrb[0].mxu0
        %v1960 = vadd.f32 0.0, %v1959
        %v1961 = vpop.f32.mrb[0].mxu0
        %v1962 = vpop.f32.mrb[0].mxu0
        %v1963 = vpop.f32.mrb[0].mxu0
        %1964 = vdwg.mxu0
        %v1965 = vpack.c.b16 %v1911, %v1911
        %1966 = vrot.lane.b32.xlu0 %v1965, 120
        %v1967 = vpop.permute.xlu0 %1966
        %1968 = vrot.lane.b32.xlu0 %v1965, 88
        %v1969 = vpop.permute.xlu0 %1968
        %v1971 = vsel %vm1464, %v1967, 0
        %v1974 = vsel %vm1464, %v1969, 0
        %1976 = vmatprep.subr.bf16.mxu0 0
        %1977 = vmatpush1.bf16.xpose.msra.mxu0 %v1974
        %1978 = vmatprep.subr.bf16.mxu0 0
        %1979 = vmatpush1.bf16.xpose.msra.mxu0 0
        %1980 = vmatprep.subr.bf16.mxu0 0
        %1981 = vmatpush1.bf16.xpose.msra.mxu0 0
        %1982 = vmatprep.subr.bf16.mxu0 0
        %1983 = vmatpush1.bf16.xpose.msra.mxu0 0
        %1984 = vmatprep.subr.bf16.mxu0 0
        %1985 = vmatpush1.bf16.xpose.msra.mxu0 0
        %1986 = vmatprep.subr.bf16.mxu0 0
        %1987 = vmatpush1.bf16.xpose.msra.mxu0 0
        %1988 = vmatprep.subr.bf16.mxu0 0
        %1989 = vmatpush1.bf16.xpose.msra.mxu0 0
        %1990 = vmatprep.subr.bf16.mxu0 0
        %1991 = vmatpush1.bf16.xpose.msra.mxu0 0
        %1992 = vmatprep.subr.bf16.mxu0 0
        %1993 = vmatpush1.bf16.xpose.msra.mxu0 0
        %1994 = vmatprep.subr.bf16.mxu0 0
        %1995 = vmatpush1.bf16.xpose.msra.mxu0 0
        %1996 = vmatprep.subr.bf16.mxu0 0
        %1997 = vmatpush1.bf16.xpose.msra.mxu0 0
        %1998 = vmatprep.subr.bf16.mxu0 0
        %1999 = vmatpush1.bf16.xpose.msra.mxu0 0
        %2000 = vmatprep.subr.bf16.mxu0 0
        %2001 = vmatpush1.bf16.xpose.msra.mxu0 0
        %2002 = vmatprep.subr.bf16.mxu0 0
        %2003 = vmatpush1.bf16.xpose.msra.mxu0 0
        %2004 = vmatprep.subr.bf16.mxu0 0
        %2005 = vmatpush1.bf16.xpose.msra.mxu0 0
        %2006 = vmatprep.subr.bf16.mxu0 0
        %2007 = vmatpush1.bf16.xpose.msra.mxu0 0
        %2008 = vmatprep.mubr.bf16.mxu0 0
        %2009 = vmatmul.mubr.bf16.gmra.mrb[0].mxu0 %v1971
        %v2010 = vpop.f32.mrb[0].mxu0
        %v2011 = vadd.f32 0.0, %v2010
        %v2012 = vpop.f32.mrb[0].mxu0
        %v2013 = vpop.f32.mrb[0].mxu0
        %v2014 = vpop.f32.mrb[0].mxu0
        %2015 = vdwg.mxu0
        %v2016 = vpack.c.b16 %v1912, %v1912
        %2017 = vrot.lane.b32.xlu0 %v2016, 120
        %v2018 = vpop.permute.xlu0 %2017
        %2019 = vrot.lane.b32.xlu0 %v2016, 88
        %v2020 = vpop.permute.xlu0 %2019
        %v2022 = vsel %vm1464, %v2018, 0
        %v2025 = vsel %vm1464, %v2020, 0
        %2027 = vmatprep.subr.bf16.mxu0 0
        %2028 = vmatpush1.bf16.xpose.msra.mxu0 %v2025
        %2029 = vmatprep.subr.bf16.mxu0 0
        %2030 = vmatpush1.bf16.xpose.msra.mxu0 0
        %2031 = vmatprep.subr.bf16.mxu0 0
        %2032 = vmatpush1.bf16.xpose.msra.mxu0 0
        %2033 = vmatprep.subr.bf16.mxu0 0
        %2034 = vmatpush1.bf16.xpose.msra.mxu0 0
        %2035 = vmatprep.subr.bf16.mxu0 0
        %2036 = vmatpush1.bf16.xpose.msra.mxu0 0
        %2037 = vmatprep.subr.bf16.mxu0 0
        %2038 = vmatpush1.bf16.xpose.msra.mxu0 0
        %2039 = vmatprep.subr.bf16.mxu0 0
        %2040 = vmatpush1.bf16.xpose.msra.mxu0 0
        %2041 = vmatprep.subr.bf16.mxu0 0
        %2042 = vmatpush1.bf16.xpose.msra.mxu0 0
        %2043 = vmatprep.subr.bf16.mxu0 0
        %2044 = vmatpush1.bf16.xpose.msra.mxu0 0
        %2045 = vmatprep.subr.bf16.mxu0 0
        %2046 = vmatpush1.bf16.xpose.msra.mxu0 0
        %2047 = vmatprep.subr.bf16.mxu0 0
        %2048 = vmatpush1.bf16.xpose.msra.mxu0 0
        %2049 = vmatprep.subr.bf16.mxu0 0
        %2050 = vmatpush1.bf16.xpose.msra.mxu0 0
        %2051 = vmatprep.subr.bf16.mxu0 0
        %2052 = vmatpush1.bf16.xpose.msra.mxu0 0
        %2053 = vmatprep.subr.bf16.mxu0 0
        %2054 = vmatpush1.bf16.xpose.msra.mxu0 0
        %2055 = vmatprep.subr.bf16.mxu0 0
        %2056 = vmatpush1.bf16.xpose.msra.mxu0 0
        %2057 = vmatprep.subr.bf16.mxu0 0
        %2058 = vmatpush1.bf16.xpose.msra.mxu0 0
        %2059 = vmatprep.mubr.bf16.mxu0 0
        %2060 = vmatmul.mubr.bf16.gmra.mrb[0].mxu0 %v2022
        %v2061 = vpop.f32.mrb[0].mxu0
        %v2062 = vadd.f32 0.0, %v2061
        %v2063 = vpop.f32.mrb[0].mxu0
        %v2064 = vpop.f32.mrb[0].mxu0
        %v2065 = vpop.f32.mrb[0].mxu0
        %2066 = vdwg.mxu0
        %v2067 = vpack.c.b16 %v1913, %v1913
        %2068 = vrot.lane.b32.xlu0 %v2067, 120
        %v2069 = vpop.permute.xlu0 %2068
        %2070 = vrot.lane.b32.xlu0 %v2067, 88
        %v2071 = vpop.permute.xlu0 %2070
        %v2073 = vsel %vm1464, %v2069, 0
        %v2076 = vsel %vm1464, %v2071, 0
        %2078 = vmatprep.subr.bf16.mxu0 0
        %2079 = vmatpush1.bf16.xpose.msra.mxu0 %v2076
        %2080 = vmatprep.subr.bf16.mxu0 0
        %2081 = vmatpush1.bf16.xpose.msra.mxu0 0
        %2082 = vmatprep.subr.bf16.mxu0 0
        %2083 = vmatpush1.bf16.xpose.msra.mxu0 0
        %2084 = vmatprep.subr.bf16.mxu0 0
        %2085 = vmatpush1.bf16.xpose.msra.mxu0 0
        %2086 = vmatprep.subr.bf16.mxu0 0
        %2087 = vmatpush1.bf16.xpose.msra.mxu0 0
        %2088 = vmatprep.subr.bf16.mxu0 0
        %2089 = vmatpush1.bf16.xpose.msra.mxu0 0
        %2090 = vmatprep.subr.bf16.mxu0 0
        %2091 = vmatpush1.bf16.xpose.msra.mxu0 0
        %2092 = vmatprep.subr.bf16.mxu0 0
        %2093 = vmatpush1.bf16.xpose.msra.mxu0 0
        %2094 = vmatprep.subr.bf16.mxu0 0
        %2095 = vmatpush1.bf16.xpose.msra.mxu0 0
        %2096 = vmatprep.subr.bf16.mxu0 0
        %2097 = vmatpush1.bf16.xpose.msra.mxu0 0
        %2098 = vmatprep.subr.bf16.mxu0 0
        %2099 = vmatpush1.bf16.xpose.msra.mxu0 0
        %2100 = vmatprep.subr.bf16.mxu0 0
        %2101 = vmatpush1.bf16.xpose.msra.mxu0 0
        %2102 = vmatprep.subr.bf16.mxu0 0
        %2103 = vmatpush1.bf16.xpose.msra.mxu0 0
        %2104 = vmatprep.subr.bf16.mxu0 0
        %2105 = vmatpush1.bf16.xpose.msra.mxu0 0
        %2106 = vmatprep.subr.bf16.mxu0 0
        %2107 = vmatpush1.bf16.xpose.msra.mxu0 0
        %2108 = vmatprep.subr.bf16.mxu0 0
        %2109 = vmatpush1.bf16.xpose.msra.mxu0 0
        %2110 = vmatprep.mubr.bf16.mxu0 0
        %2111 = vmatmul.mubr.bf16.gmra.mrb[0].mxu0 %v2073
        %v2112 = vpop.f32.mrb[0].mxu0
        %v2113 = vadd.f32 0.0, %v2112
        %v2114 = vpop.f32.mrb[0].mxu0
        %v2115 = vpop.f32.mrb[0].mxu0
        %v2116 = vpop.f32.mrb[0].mxu0
        %2117 = vdwg.mxu0
        %v2118 = vmul.f32 %v1960, 0.35355338
        %v2119 = vmul.f32 %v2011, 0.35355338
        %v2120 = vmul.f32 %v2062, 0.35355338
        %v2121 = vmul.f32 %v2113, 0.35355338
        %v2122 = vadd.f32 %v2118, %v1358
        %v2123 = vadd.f32 %v2119, %v1358
        %v2124 = vadd.f32 %v2120, %v1358
        %v2125 = vadd.f32 %v2121, %v1358
        %v2126 = vsel %vm1464, %v2122, -inf
        %2127 = vmax.xlane.f32.xlu0 %v2126
        %v2128 = vpop.xlane.xlu0 %2127
        %v2129 = vsel %vm1464, %v2123, -inf
        %2130 = vmax.xlane.f32.xlu0 %v2129
        %v2131 = vpop.xlane.xlu0 %2130
        %v2132 = vsel %vm1464, %v2124, -inf
        %2133 = vmax.xlane.f32.xlu0 %v2132
        %v2134 = vpop.xlane.xlu0 %2133
        %v2135 = vsel %vm1464, %v2125, -inf
        %2136 = vmax.xlane.f32.xlu0 %v2135
        %v2137 = vpop.xlane.xlu0 %2136
        %v2138 = vsub.f32 %v2122, %v2128
        %v2139 = vsub.f32 %v2123, %v2131
        %v2140 = vsub.f32 %v2124, %v2134
        %v2141 = vsub.f32 %v2125, %v2137
        %v2142 = vmul.f32 %v2138, 1.442695
        %v2143 = vpow.pop %v2142
        %v2144 = vmul.f32 %v2139, 1.442695
        %v2145 = vpow.pop %v2144
        %v2146 = vmul.f32 %v2140, 1.442695
        %v2147 = vpow.pop %v2146
        %v2148 = vmul.f32 %v2141, 1.442695
        %v2149 = vpow.pop %v2148
        %v2150 = vsel %vm1464, %v2143, 0.0
        %2151 = vadd.xlane.f32.xlu0 %v2150
        %v2152 = vpop.xlane.xlu0 %2151
        %v2153 = vsel %vm1464, %v2145, 0.0
        %2154 = vadd.xlane.f32.xlu0 %v2153
        %v2155 = vpop.xlane.xlu0 %2154
        %v2156 = vsel %vm1464, %v2147, 0.0
        %2157 = vadd.xlane.f32.xlu0 %v2156
        %v2158 = vpop.xlane.xlu0 %2157
        %v2159 = vsel %vm1464, %v2149, 0.0
        %2160 = vadd.xlane.f32.xlu0 %v2159
        %v2161 = vpop.xlane.xlu0 %2160
        %v2162 = vrcp.pop %v2152
        %v2163 = vrcp.pop %v2155
        %v2164 = vrcp.pop %v2158
        %v2165 = vrcp.pop %v2161
        %v2166 = vmul.f32 %v2143, %v2162
        %v2167 = vmul.f32 %v2145, %v2163
        %v2168 = vmul.f32 %v2147, %v2164
        %v2169 = vmul.f32 %v2149, %v2165
        %v2170 = vpack.c.bf16 %v2166, %v2166
        %v2171 = vpack.c.bf16 %v2167, %v2167
        %v2172 = vpack.c.bf16 %v2168, %v2168
        %v2173 = vpack.c.bf16 %v2169, %v2169
        %2174 = vrot.lane.b32.xlu0 %v1914, 56
        %v2175 = vpop.permute.xlu0 %2174
        %v2177 = vsel %vm1464, %v2170, 0
        %v2180 = vsel %vm1716, %v2175, 0
        %2182 = vmatprep.subr.bf16.mxu0 0
        %2183 = vmatpush1.bf16.msra.mxu0 %v2180
        %2184 = vmatprep.subr.bf16.mxu0 0
        %2185 = vmatpush1.bf16.msra.mxu0 0
        %2186 = vmatprep.subr.bf16.mxu0 0
        %2187 = vmatpush1.bf16.msra.mxu0 0
        %2188 = vmatprep.subr.bf16.mxu0 0
        %2189 = vmatpush1.bf16.msra.mxu0 0
        %2190 = vmatprep.subr.bf16.mxu0 0
        %2191 = vmatpush1.bf16.msra.mxu0 0
        %2192 = vmatprep.subr.bf16.mxu0 0
        %2193 = vmatpush1.bf16.msra.mxu0 0
        %2194 = vmatprep.subr.bf16.mxu0 0
        %2195 = vmatpush1.bf16.msra.mxu0 0
        %2196 = vmatprep.subr.bf16.mxu0 0
        %2197 = vmatpush1.bf16.msra.mxu0 0
        %2198 = vmatprep.subr.bf16.mxu0 0
        %2199 = vmatpush1.bf16.msra.mxu0 0
        %2200 = vmatprep.subr.bf16.mxu0 0
        %2201 = vmatpush1.bf16.msra.mxu0 0
        %2202 = vmatprep.subr.bf16.mxu0 0
        %2203 = vmatpush1.bf16.msra.mxu0 0
        %2204 = vmatprep.subr.bf16.mxu0 0
        %2205 = vmatpush1.bf16.msra.mxu0 0
        %2206 = vmatprep.subr.bf16.mxu0 0
        %2207 = vmatpush1.bf16.msra.mxu0 0
        %2208 = vmatprep.subr.bf16.mxu0 0
        %2209 = vmatpush1.bf16.msra.mxu0 0
        %2210 = vmatprep.subr.bf16.mxu0 0
        %2211 = vmatpush1.bf16.msra.mxu0 0
        %2212 = vmatprep.subr.bf16.mxu0 0
        %2213 = vmatpush1.bf16.msra.mxu0 0
        %2214 = vmatprep.mubr.bf16.mxu0 0
        %2215 = vmatmul.mubr.bf16.gmra.mrb[0].mxu0 %v2177
        %v2216 = vpop.f32.mrb[0].mxu0
        %v2217 = vadd.f32 0.0, %v2216
        %v2218 = vpop.f32.mrb[0].mxu0
        %v2219 = vpop.f32.mrb[0].mxu0
        %v2220 = vpop.f32.mrb[0].mxu0
        %2221 = vdwg.mxu0
        %2222 = vrot.lane.b32.xlu0 %v1965, 56
        %v2223 = vpop.permute.xlu0 %2222
        %v2225 = vsel %vm1464, %v2171, 0
        %v2228 = vsel %vm1716, %v2223, 0
        %2230 = vmatprep.subr.bf16.mxu0 0
        %2231 = vmatpush1.bf16.msra.mxu0 %v2228
        %2232 = vmatprep.subr.bf16.mxu0 0
        %2233 = vmatpush1.bf16.msra.mxu0 0
        %2234 = vmatprep.subr.bf16.mxu0 0
        %2235 = vmatpush1.bf16.msra.mxu0 0
        %2236 = vmatprep.subr.bf16.mxu0 0
        %2237 = vmatpush1.bf16.msra.mxu0 0
        %2238 = vmatprep.subr.bf16.mxu0 0
        %2239 = vmatpush1.bf16.msra.mxu0 0
        %2240 = vmatprep.subr.bf16.mxu0 0
        %2241 = vmatpush1.bf16.msra.mxu0 0
        %2242 = vmatprep.subr.bf16.mxu0 0
        %2243 = vmatpush1.bf16.msra.mxu0 0
        %2244 = vmatprep.subr.bf16.mxu0 0
        %2245 = vmatpush1.bf16.msra.mxu0 0
        %2246 = vmatprep.subr.bf16.mxu0 0
        %2247 = vmatpush1.bf16.msra.mxu0 0
        %2248 = vmatprep.subr.bf16.mxu0 0
        %2249 = vmatpush1.bf16.msra.mxu0 0
        %2250 = vmatprep.subr.bf16.mxu0 0
        %2251 = vmatpush1.bf16.msra.mxu0 0
        %2252 = vmatprep.subr.bf16.mxu0 0
        %2253 = vmatpush1.bf16.msra.mxu0 0
        %2254 = vmatprep.subr.bf16.mxu0 0
        %2255 = vmatpush1.bf16.msra.mxu0 0
        %2256 = vmatprep.subr.bf16.mxu0 0
        %2257 = vmatpush1.bf16.msra.mxu0 0
        %2258 = vmatprep.subr.bf16.mxu0 0
        %2259 = vmatpush1.bf16.msra.mxu0 0
        %2260 = vmatprep.subr.bf16.mxu0 0
        %2261 = vmatpush1.bf16.msra.mxu0 0
        %2262 = vmatprep.mubr.bf16.mxu0 0
        %2263 = vmatmul.mubr.bf16.gmra.mrb[0].mxu0 %v2225
        %v2264 = vpop.f32.mrb[0].mxu0
        %v2265 = vadd.f32 0.0, %v2264
        %v2266 = vpop.f32.mrb[0].mxu0
        %v2267 = vpop.f32.mrb[0].mxu0
        %v2268 = vpop.f32.mrb[0].mxu0
        %2269 = vdwg.mxu0
        %2270 = vrot.lane.b32.xlu0 %v2016, 56
        %v2271 = vpop.permute.xlu0 %2270
        %v2273 = vsel %vm1464, %v2172, 0
        %v2276 = vsel %vm1716, %v2271, 0
        %2278 = vmatprep.subr.bf16.mxu0 0
        %2279 = vmatpush1.bf16.msra.mxu0 %v2276
        %2280 = vmatprep.subr.bf16.mxu0 0
        %2281 = vmatpush1.bf16.msra.mxu0 0
        %2282 = vmatprep.subr.bf16.mxu0 0
        %2283 = vmatpush1.bf16.msra.mxu0 0
        %2284 = vmatprep.subr.bf16.mxu0 0
        %2285 = vmatpush1.bf16.msra.mxu0 0
        %2286 = vmatprep.subr.bf16.mxu0 0
        %2287 = vmatpush1.bf16.msra.mxu0 0
        %2288 = vmatprep.subr.bf16.mxu0 0
        %2289 = vmatpush1.bf16.msra.mxu0 0
        %2290 = vmatprep.subr.bf16.mxu0 0
        %2291 = vmatpush1.bf16.msra.mxu0 0
        %2292 = vmatprep.subr.bf16.mxu0 0
        %2293 = vmatpush1.bf16.msra.mxu0 0
        %2294 = vmatprep.subr.bf16.mxu0 0
        %2295 = vmatpush1.bf16.msra.mxu0 0
        %2296 = vmatprep.subr.bf16.mxu0 0
        %2297 = vmatpush1.bf16.msra.mxu0 0
        %2298 = vmatprep.subr.bf16.mxu0 0
        %2299 = vmatpush1.bf16.msra.mxu0 0
        %2300 = vmatprep.subr.bf16.mxu0 0
        %2301 = vmatpush1.bf16.msra.mxu0 0
        %2302 = vmatprep.subr.bf16.mxu0 0
        %2303 = vmatpush1.bf16.msra.mxu0 0
        %2304 = vmatprep.subr.bf16.mxu0 0
        %2305 = vmatpush1.bf16.msra.mxu0 0
        %2306 = vmatprep.subr.bf16.mxu0 0
        %2307 = vmatpush1.bf16.msra.mxu0 0
        %2308 = vmatprep.subr.bf16.mxu0 0
        %2309 = vmatpush1.bf16.msra.mxu0 0
        %2310 = vmatprep.mubr.bf16.mxu0 0
        %2311 = vmatmul.mubr.bf16.gmra.mrb[0].mxu0 %v2273
        %v2312 = vpop.f32.mrb[0].mxu0
        %v2313 = vadd.f32 0.0, %v2312
        %v2314 = vpop.f32.mrb[0].mxu0
        %v2315 = vpop.f32.mrb[0].mxu0
        %v2316 = vpop.f32.mrb[0].mxu0
        %2317 = vdwg.mxu0
        %2318 = vrot.lane.b32.xlu0 %v2067, 56
        %v2319 = vpop.permute.xlu0 %2318
        %v2321 = vsel %vm1464, %v2173, 0
        %v2324 = vsel %vm1716, %v2319, 0
        %2326 = vmatprep.subr.bf16.mxu0 0
        %2327 = vmatpush1.bf16.msra.mxu0 %v2324
        %2328 = vmatprep.subr.bf16.mxu0 0
        %2329 = vmatpush1.bf16.msra.mxu0 0
        %2330 = vmatprep.subr.bf16.mxu0 0
        %2331 = vmatpush1.bf16.msra.mxu0 0
        %2332 = vmatprep.subr.bf16.mxu0 0
        %2333 = vmatpush1.bf16.msra.mxu0 0
        %2334 = vmatprep.subr.bf16.mxu0 0
        %2335 = vmatpush1.bf16.msra.mxu0 0
        %2336 = vmatprep.subr.bf16.mxu0 0
        %2337 = vmatpush1.bf16.msra.mxu0 0
        %2338 = vmatprep.subr.bf16.mxu0 0
        %2339 = vmatpush1.bf16.msra.mxu0 0
        %2340 = vmatprep.subr.bf16.mxu0 0
        %2341 = vmatpush1.bf16.msra.mxu0 0
        %2342 = vmatprep.subr.bf16.mxu0 0
        %2343 = vmatpush1.bf16.msra.mxu0 0
        %2344 = vmatprep.subr.bf16.mxu0 0
        %2345 = vmatpush1.bf16.msra.mxu0 0
        %2346 = vmatprep.subr.bf16.mxu0 0
        %2347 = vmatpush1.bf16.msra.mxu0 0
        %2348 = vmatprep.subr.bf16.mxu0 0
        %2349 = vmatpush1.bf16.msra.mxu0 0
        %2350 = vmatprep.subr.bf16.mxu0 0
        %2351 = vmatpush1.bf16.msra.mxu0 0
        %2352 = vmatprep.subr.bf16.mxu0 0
        %2353 = vmatpush1.bf16.msra.mxu0 0
        %2354 = vmatprep.subr.bf16.mxu0 0
        %2355 = vmatpush1.bf16.msra.mxu0 0
        %2356 = vmatprep.subr.bf16.mxu0 0
        %2357 = vmatpush1.bf16.msra.mxu0 0
        %2358 = vmatprep.mubr.bf16.mxu0 0
        %2359 = vmatmul.mubr.bf16.gmra.mrb[0].mxu0 %v2321
        %v2360 = vpop.f32.mrb[0].mxu0
        %v2361 = vadd.f32 0.0, %v2360
        %v2362 = vpop.f32.mrb[0].mxu0
        %v2363 = vpop.f32.mrb[0].mxu0
        %v2364 = vpop.f32.mrb[0].mxu0
        %2365 = vdwg.mxu0
        %v2366 = vpack.c.bf16 %v2265, %v2217
        %v2367 = vpack.c.bf16 %v2361, %v2313
        %v2369 = vsel %vm1464, %v2366, 0
        %v2372 = vsel %vm1464, %v2367, 0
        %v2375 = vsel %vm1716, %v1446, 0
        %2377 = vmatprep.subr.bf16.mxu0 0
        %2378 = vmatpush1.bf16.msra.mxu0 %v2375
        %2379 = vmatprep.subr.bf16.mxu0 0
        %2380 = vmatpush1.bf16.msra.mxu0 0
        %2381 = vmatprep.subr.bf16.mxu0 0
        %2382 = vmatpush1.bf16.msra.mxu0 0
        %2383 = vmatprep.subr.bf16.mxu0 0
        %2384 = vmatpush1.bf16.msra.mxu0 0
        %2385 = vmatprep.subr.bf16.mxu0 0
        %2386 = vmatpush1.bf16.msra.mxu0 0
        %2387 = vmatprep.subr.bf16.mxu0 0
        %2388 = vmatpush1.bf16.msra.mxu0 0
        %2389 = vmatprep.subr.bf16.mxu0 0
        %2390 = vmatpush1.bf16.msra.mxu0 0
        %2391 = vmatprep.subr.bf16.mxu0 0
        %2392 = vmatpush1.bf16.msra.mxu0 0
        %2393 = vmatprep.subr.bf16.mxu0 0
        %2394 = vmatpush1.bf16.msra.mxu0 0
        %2395 = vmatprep.subr.bf16.mxu0 0
        %2396 = vmatpush1.bf16.msra.mxu0 0
        %2397 = vmatprep.subr.bf16.mxu0 0
        %2398 = vmatpush1.bf16.msra.mxu0 0
        %2399 = vmatprep.subr.bf16.mxu0 0
        %2400 = vmatpush1.bf16.msra.mxu0 0
        %2401 = vmatprep.subr.bf16.mxu0 0
        %2402 = vmatpush1.bf16.msra.mxu0 0
        %2403 = vmatprep.subr.bf16.mxu0 0
        %2404 = vmatpush1.bf16.msra.mxu0 0
        %2405 = vmatprep.subr.bf16.mxu0 0
        %2406 = vmatpush1.bf16.msra.mxu0 0
        %2407 = vmatprep.subr.bf16.mxu0 0
        %2408 = vmatpush1.bf16.msra.mxu0 0
        %2409 = vmatprep.mubr.bf16.mxu0 0
        %2410 = vmatmul.mubr.bf16.gmra.mrb[0].mxu0 %v2369
        %v2411 = vpop.f32.mrb[0].mxu0
        %v2412 = vadd.f32 0.0, %v2411
        %v2413 = vpop.f32.mrb[0].mxu0
        %v2414 = vpop.f32.mrb[0].mxu0
        %v2415 = vadd.f32 0.0, %v2414
        %v2416 = vpop.f32.mrb[0].mxu0
        %2417 = vmatprep.mubr.bf16.mxu0 0
        %2418 = vmatmul.mubr.bf16.gmra.mrb[0].mxu0 %v2372
        %v2419 = vpop.f32.mrb[0].mxu0
        %v2420 = vadd.f32 0.0, %v2419
        %v2421 = vpop.f32.mrb[0].mxu0
        %v2422 = vpop.f32.mrb[0].mxu0
        %v2423 = vadd.f32 0.0, %v2422
        %v2424 = vpop.f32.mrb[0].mxu0
        %2425 = vdwg.mxu0
        %v2427 = vsel %vm1464, %v1904, 0
        %v2430 = vsel %vm1464, %v1905, 0
        %v2433 = vsel %vm1716, %v1445, 0
        %2435 = vmatprep.subr.bf16.mxu0 0
        %2436 = vmatpush1.bf16.msra.mxu0 %v2433
        %2437 = vmatprep.subr.bf16.mxu0 0
        %2438 = vmatpush1.bf16.msra.mxu0 0
        %2439 = vmatprep.subr.bf16.mxu0 0
        %2440 = vmatpush1.bf16.msra.mxu0 0
        %2441 = vmatprep.subr.bf16.mxu0 0
        %2442 = vmatpush1.bf16.msra.mxu0 0
        %2443 = vmatprep.subr.bf16.mxu0 0
        %2444 = vmatpush1.bf16.msra.mxu0 0
        %2445 = vmatprep.subr.bf16.mxu0 0
        %2446 = vmatpush1.bf16.msra.mxu0 0
        %2447 = vmatprep.subr.bf16.mxu0 0
        %2448 = vmatpush1.bf16.msra.mxu0 0
        %2449 = vmatprep.subr.bf16.mxu0 0
        %2450 = vmatpush1.bf16.msra.mxu0 0
        %2451 = vmatprep.subr.bf16.mxu0 0
        %2452 = vmatpush1.bf16.msra.mxu0 0
        %2453 = vmatprep.subr.bf16.mxu0 0
        %2454 = vmatpush1.bf16.msra.mxu0 0
        %2455 = vmatprep.subr.bf16.mxu0 0
        %2456 = vmatpush1.bf16.msra.mxu0 0
        %2457 = vmatprep.subr.bf16.mxu0 0
        %2458 = vmatpush1.bf16.msra.mxu0 0
        %2459 = vmatprep.subr.bf16.mxu0 0
        %2460 = vmatpush1.bf16.msra.mxu0 0
        %2461 = vmatprep.subr.bf16.mxu0 0
        %2462 = vmatpush1.bf16.msra.mxu0 0
        %2463 = vmatprep.subr.bf16.mxu0 0
        %2464 = vmatpush1.bf16.msra.mxu0 0
        %2465 = vmatprep.subr.bf16.mxu0 0
        %2466 = vmatpush1.bf16.msra.mxu0 0
        %2467 = vmatprep.mubr.bf16.mxu0 0
        %2468 = vmatmul.mubr.bf16.gmra.mrb[0].mxu0 %v2427
        %v2469 = vpop.f32.mrb[0].mxu0
        %v2470 = vadd.f32 %v2412, %v2469
        %v2471 = vpop.f32.mrb[0].mxu0
        %v2472 = vpop.f32.mrb[0].mxu0
        %v2473 = vadd.f32 %v2415, %v2472
        %v2474 = vpop.f32.mrb[0].mxu0
        %2475 = vmatprep.mubr.bf16.mxu0 0
        %2476 = vmatmul.mubr.bf16.gmra.mrb[0].mxu0 %v2430
        %v2477 = vpop.f32.mrb[0].mxu0
        %v2478 = vadd.f32 %v2420, %v2477
        %v2479 = vpop.f32.mrb[0].mxu0
        %v2480 = vpop.f32.mrb[0].mxu0
        %v2481 = vadd.f32 %v2423, %v2480
        %v2482 = vpop.f32.mrb[0].mxu0
        %2483 = vdwg.mxu0
        %v2484 = vld [vmem:[#allocation3] sm:$0xff]
        %v2485 = vld [vmem:[#allocation3 + $0x8] sm:$0xff]
        %v2488 = vunpack.c.l.b16 %v2484
        %v2489 = vunpack.c.h.b16 %v2484
        %v2490 = vunpack.c.l.b16 %v2485
        %v2491 = vunpack.c.h.b16 %v2485
        %v2492 = vpack.c.b16 %v2488, %v2488
        %2493 = vrot.lane.b32.xlu0 %v2492, 112
        %v2494 = vpop.permute.xlu0 %2493
        %2495 = vrot.lane.b32.xlu0 %v2492, 80
        %v2496 = vpop.permute.xlu0 %2495
        %v2498 = vsel %vm1464, %v2494, 0
        %v2501 = vsel %vm1464, %v2496, 0
        %2503 = vmatprep.subr.bf16.mxu0 0
        %2504 = vmatpush1.bf16.xpose.msra.mxu0 %v2501
        %2505 = vmatprep.subr.bf16.mxu0 0
        %2506 = vmatpush1.bf16.xpose.msra.mxu0 0
        %2507 = vmatprep.subr.bf16.mxu0 0
        %2508 = vmatpush1.bf16.xpose.msra.mxu0 0
        %2509 = vmatprep.subr.bf16.mxu0 0
        %2510 = vmatpush1.bf16.xpose.msra.mxu0 0
        %2511 = vmatprep.subr.bf16.mxu0 0
        %2512 = vmatpush1.bf16.xpose.msra.mxu0 0
        %2513 = vmatprep.subr.bf16.mxu0 0
        %2514 = vmatpush1.bf16.xpose.msra.mxu0 0
        %2515 = vmatprep.subr.bf16.mxu0 0
        %2516 = vmatpush1.bf16.xpose.msra.mxu0 0
        %2517 = vmatprep.subr.bf16.mxu0 0
        %2518 = vmatpush1.bf16.xpose.msra.mxu0 0
        %2519 = vmatprep.subr.bf16.mxu0 0
        %2520 = vmatpush1.bf16.xpose.msra.mxu0 0
        %2521 = vmatprep.subr.bf16.mxu0 0
        %2522 = vmatpush1.bf16.xpose.msra.mxu0 0
        %2523 = vmatprep.subr.bf16.mxu0 0
        %2524 = vmatpush1.bf16.xpose.msra.mxu0 0
        %2525 = vmatprep.subr.bf16.mxu0 0
        %2526 = vmatpush1.bf16.xpose.msra.mxu0 0
        %2527 = vmatprep.subr.bf16.mxu0 0
        %2528 = vmatpush1.bf16.xpose.msra.mxu0 0
        %2529 = vmatprep.subr.bf16.mxu0 0
        %2530 = vmatpush1.bf16.xpose.msra.mxu0 0
        %2531 = vmatprep.subr.bf16.mxu0 0
        %2532 = vmatpush1.bf16.xpose.msra.mxu0 0
        %2533 = vmatprep.subr.bf16.mxu0 0
        %2534 = vmatpush1.bf16.xpose.msra.mxu0 0
        %2535 = vmatprep.mubr.bf16.mxu0 0
        %2536 = vmatmul.mubr.bf16.gmra.mrb[0].mxu0 %v2498
        %v2537 = vpop.f32.mrb[0].mxu0
        %v2538 = vadd.f32 0.0, %v2537
        %v2539 = vpop.f32.mrb[0].mxu0
        %v2540 = vpop.f32.mrb[0].mxu0
        %v2541 = vpop.f32.mrb[0].mxu0
        %2542 = vdwg.mxu0
        %v2543 = vpack.c.b16 %v2489, %v2489
        %2544 = vrot.lane.b32.xlu0 %v2543, 112
        %v2545 = vpop.permute.xlu0 %2544
        %2546 = vrot.lane.b32.xlu0 %v2543, 80
        %v2547 = vpop.permute.xlu0 %2546
        %v2549 = vsel %vm1464, %v2545, 0
        %v2552 = vsel %vm1464, %v2547, 0
        %2554 = vmatprep.subr.bf16.mxu0 0
        %2555 = vmatpush1.bf16.xpose.msra.mxu0 %v2552
        %2556 = vmatprep.subr.bf16.mxu0 0
        %2557 = vmatpush1.bf16.xpose.msra.mxu0 0
        %2558 = vmatprep.subr.bf16.mxu0 0
        %2559 = vmatpush1.bf16.xpose.msra.mxu0 0
        %2560 = vmatprep.subr.bf16.mxu0 0
        %2561 = vmatpush1.bf16.xpose.msra.mxu0 0
        %2562 = vmatprep.subr.bf16.mxu0 0
        %2563 = vmatpush1.bf16.xpose.msra.mxu0 0
        %2564 = vmatprep.subr.bf16.mxu0 0
        %2565 = vmatpush1.bf16.xpose.msra.mxu0 0
        %2566 = vmatprep.subr.bf16.mxu0 0
        %2567 = vmatpush1.bf16.xpose.msra.mxu0 0
        %2568 = vmatprep.subr.bf16.mxu0 0
        %2569 = vmatpush1.bf16.xpose.msra.mxu0 0
        %2570 = vmatprep.subr.bf16.mxu0 0
        %2571 = vmatpush1.bf16.xpose.msra.mxu0 0
        %2572 = vmatprep.subr.bf16.mxu0 0
        %2573 = vmatpush1.bf16.xpose.msra.mxu0 0
        %2574 = vmatprep.subr.bf16.mxu0 0
        %2575 = vmatpush1.bf16.xpose.msra.mxu0 0
        %2576 = vmatprep.subr.bf16.mxu0 0
        %2577 = vmatpush1.bf16.xpose.msra.mxu0 0
        %2578 = vmatprep.subr.bf16.mxu0 0
        %2579 = vmatpush1.bf16.xpose.msra.mxu0 0
        %2580 = vmatprep.subr.bf16.mxu0 0
        %2581 = vmatpush1.bf16.xpose.msra.mxu0 0
        %2582 = vmatprep.subr.bf16.mxu0 0
        %2583 = vmatpush1.bf16.xpose.msra.mxu0 0
        %2584 = vmatprep.subr.bf16.mxu0 0
        %2585 = vmatpush1.bf16.xpose.msra.mxu0 0
        %2586 = vmatprep.mubr.bf16.mxu0 0
        %2587 = vmatmul.mubr.bf16.gmra.mrb[0].mxu0 %v2549
        %v2588 = vpop.f32.mrb[0].mxu0
        %v2589 = vadd.f32 0.0, %v2588
        %v2590 = vpop.f32.mrb[0].mxu0
        %v2591 = vpop.f32.mrb[0].mxu0
        %v2592 = vpop.f32.mrb[0].mxu0
        %2593 = vdwg.mxu0
        %v2594 = vpack.c.b16 %v2490, %v2490
        %2595 = vrot.lane.b32.xlu0 %v2594, 112
        %v2596 = vpop.permute.xlu0 %2595
        %2597 = vrot.lane.b32.xlu0 %v2594, 80
        %v2598 = vpop.permute.xlu0 %2597
        %v2600 = vsel %vm1464, %v2596, 0
        %v2603 = vsel %vm1464, %v2598, 0
        %2605 = vmatprep.subr.bf16.mxu0 0
        %2606 = vmatpush1.bf16.xpose.msra.mxu0 %v2603
        %2607 = vmatprep.subr.bf16.mxu0 0
        %2608 = vmatpush1.bf16.xpose.msra.mxu0 0
        %2609 = vmatprep.subr.bf16.mxu0 0
        %2610 = vmatpush1.bf16.xpose.msra.mxu0 0
        %2611 = vmatprep.subr.bf16.mxu0 0
        %2612 = vmatpush1.bf16.xpose.msra.mxu0 0
        %2613 = vmatprep.subr.bf16.mxu0 0
        %2614 = vmatpush1.bf16.xpose.msra.mxu0 0
        %2615 = vmatprep.subr.bf16.mxu0 0
        %2616 = vmatpush1.bf16.xpose.msra.mxu0 0
        %2617 = vmatprep.subr.bf16.mxu0 0
        %2618 = vmatpush1.bf16.xpose.msra.mxu0 0
        %2619 = vmatprep.subr.bf16.mxu0 0
        %2620 = vmatpush1.bf16.xpose.msra.mxu0 0
        %2621 = vmatprep.subr.bf16.mxu0 0
        %2622 = vmatpush1.bf16.xpose.msra.mxu0 0
        %2623 = vmatprep.subr.bf16.mxu0 0
        %2624 = vmatpush1.bf16.xpose.msra.mxu0 0
        %2625 = vmatprep.subr.bf16.mxu0 0
        %2626 = vmatpush1.bf16.xpose.msra.mxu0 0
        %2627 = vmatprep.subr.bf16.mxu0 0
        %2628 = vmatpush1.bf16.xpose.msra.mxu0 0
        %2629 = vmatprep.subr.bf16.mxu0 0
        %2630 = vmatpush1.bf16.xpose.msra.mxu0 0
        %2631 = vmatprep.subr.bf16.mxu0 0
        %2632 = vmatpush1.bf16.xpose.msra.mxu0 0
        %2633 = vmatprep.subr.bf16.mxu0 0
        %2634 = vmatpush1.bf16.xpose.msra.mxu0 0
        %2635 = vmatprep.subr.bf16.mxu0 0
        %2636 = vmatpush1.bf16.xpose.msra.mxu0 0
        %2637 = vmatprep.mubr.bf16.mxu0 0
        %2638 = vmatmul.mubr.bf16.gmra.mrb[0].mxu0 %v2600
        %v2639 = vpop.f32.mrb[0].mxu0
        %v2640 = vadd.f32 0.0, %v2639
        %v2641 = vpop.f32.mrb[0].mxu0
        %v2642 = vpop.f32.mrb[0].mxu0
        %v2643 = vpop.f32.mrb[0].mxu0
        %2644 = vdwg.mxu0
        %v2645 = vpack.c.b16 %v2491, %v2491
        %2646 = vrot.lane.b32.xlu0 %v2645, 112
        %v2647 = vpop.permute.xlu0 %2646
        %2648 = vrot.lane.b32.xlu0 %v2645, 80
        %v2649 = vpop.permute.xlu0 %2648
        %v2651 = vsel %vm1464, %v2647, 0
        %v2654 = vsel %vm1464, %v2649, 0
        %2656 = vmatprep.subr.bf16.mxu0 0
        %2657 = vmatpush1.bf16.xpose.msra.mxu0 %v2654
        %2658 = vmatprep.subr.bf16.mxu0 0
        %2659 = vmatpush1.bf16.xpose.msra.mxu0 0
        %2660 = vmatprep.subr.bf16.mxu0 0
        %2661 = vmatpush1.bf16.xpose.msra.mxu0 0
        %2662 = vmatprep.subr.bf16.mxu0 0
        %2663 = vmatpush1.bf16.xpose.msra.mxu0 0
        %2664 = vmatprep.subr.bf16.mxu0 0
        %2665 = vmatpush1.bf16.xpose.msra.mxu0 0
        %2666 = vmatprep.subr.bf16.mxu0 0
        %2667 = vmatpush1.bf16.xpose.msra.mxu0 0
        %2668 = vmatprep.subr.bf16.mxu0 0
        %2669 = vmatpush1.bf16.xpose.msra.mxu0 0
        %2670 = vmatprep.subr.bf16.mxu0 0
        %2671 = vmatpush1.bf16.xpose.msra.mxu0 0
        %2672 = vmatprep.subr.bf16.mxu0 0
        %2673 = vmatpush1.bf16.xpose.msra.mxu0 0
        %2674 = vmatprep.subr.bf16.mxu0 0
        %2675 = vmatpush1.bf16.xpose.msra.mxu0 0
        %2676 = vmatprep.subr.bf16.mxu0 0
        %2677 = vmatpush1.bf16.xpose.msra.mxu0 0
        %2678 = vmatprep.subr.bf16.mxu0 0
        %2679 = vmatpush1.bf16.xpose.msra.mxu0 0
        %2680 = vmatprep.subr.bf16.mxu0 0
        %2681 = vmatpush1.bf16.xpose.msra.mxu0 0
        %2682 = vmatprep.subr.bf16.mxu0 0
        %2683 = vmatpush1.bf16.xpose.msra.mxu0 0
        %2684 = vmatprep.subr.bf16.mxu0 0
        %2685 = vmatpush1.bf16.xpose.msra.mxu0 0
        %2686 = vmatprep.subr.bf16.mxu0 0
        %2687 = vmatpush1.bf16.xpose.msra.mxu0 0
        %2688 = vmatprep.mubr.bf16.mxu0 0
        %2689 = vmatmul.mubr.bf16.gmra.mrb[0].mxu0 %v2651
        %v2690 = vpop.f32.mrb[0].mxu0
        %v2691 = vadd.f32 0.0, %v2690
        %v2692 = vpop.f32.mrb[0].mxu0
        %v2693 = vpop.f32.mrb[0].mxu0
        %v2694 = vpop.f32.mrb[0].mxu0
        %2695 = vdwg.mxu0
        %v2696 = vmul.f32 %v2538, 0.35355338
        %v2697 = vmul.f32 %v2589, 0.35355338
        %v2698 = vmul.f32 %v2640, 0.35355338
        %v2699 = vmul.f32 %v2691, 0.35355338
        %v2700 = vadd.f32 %v2696, %v1358
        %v2701 = vadd.f32 %v2697, %v1358
        %v2702 = vadd.f32 %v2698, %v1358
        %v2703 = vadd.f32 %v2699, %v1358
        %v2704 = vsel %vm1464, %v2700, -inf
        %2705 = vmax.xlane.f32.xlu0 %v2704
        %v2706 = vpop.xlane.xlu0 %2705
        %v2707 = vsel %vm1464, %v2701, -inf
        %2708 = vmax.xlane.f32.xlu0 %v2707
        %v2709 = vpop.xlane.xlu0 %2708
        %v2710 = vsel %vm1464, %v2702, -inf
        %2711 = vmax.xlane.f32.xlu0 %v2710
        %v2712 = vpop.xlane.xlu0 %2711
        %v2713 = vsel %vm1464, %v2703, -inf
        %2714 = vmax.xlane.f32.xlu0 %v2713
        %v2715 = vpop.xlane.xlu0 %2714
        %v2716 = vsub.f32 %v2700, %v2706
        %v2717 = vsub.f32 %v2701, %v2709
        %v2718 = vsub.f32 %v2702, %v2712
        %v2719 = vsub.f32 %v2703, %v2715
        %v2720 = vmul.f32 %v2716, 1.442695
        %v2721 = vpow.pop %v2720
        %v2722 = vmul.f32 %v2717, 1.442695
        %v2723 = vpow.pop %v2722
        %v2724 = vmul.f32 %v2718, 1.442695
        %v2725 = vpow.pop %v2724
        %v2726 = vmul.f32 %v2719, 1.442695
        %v2727 = vpow.pop %v2726
        %v2728 = vsel %vm1464, %v2721, 0.0
        %2729 = vadd.xlane.f32.xlu0 %v2728
        %v2730 = vpop.xlane.xlu0 %2729
        %v2731 = vsel %vm1464, %v2723, 0.0
        %2732 = vadd.xlane.f32.xlu0 %v2731
        %v2733 = vpop.xlane.xlu0 %2732
        %v2734 = vsel %vm1464, %v2725, 0.0
        %2735 = vadd.xlane.f32.xlu0 %v2734
        %v2736 = vpop.xlane.xlu0 %2735
        %v2737 = vsel %vm1464, %v2727, 0.0
        %2738 = vadd.xlane.f32.xlu0 %v2737
        %v2739 = vpop.xlane.xlu0 %2738
        %v2740 = vrcp.pop %v2730
        %v2741 = vrcp.pop %v2733
        %v2742 = vrcp.pop %v2736
        %v2743 = vrcp.pop %v2739
        %v2744 = vmul.f32 %v2721, %v2740
        %v2745 = vmul.f32 %v2723, %v2741
        %v2746 = vmul.f32 %v2725, %v2742
        %v2747 = vmul.f32 %v2727, %v2743
        %v2748 = vpack.c.bf16 %v2744, %v2744
        %v2749 = vpack.c.bf16 %v2745, %v2745
        %v2750 = vpack.c.bf16 %v2746, %v2746
        %v2751 = vpack.c.bf16 %v2747, %v2747
        %2752 = vrot.lane.b32.xlu0 %v2492, 48
        %v2753 = vpop.permute.xlu0 %2752
        %v2755 = vsel %vm1464, %v2748, 0
        %v2758 = vsel %vm1716, %v2753, 0
        %2760 = vmatprep.subr.bf16.mxu0 0
        %2761 = vmatpush1.bf16.msra.mxu0 %v2758
        %2762 = vmatprep.subr.bf16.mxu0 0
        %2763 = vmatpush1.bf16.msra.mxu0 0
        %2764 = vmatprep.subr.bf16.mxu0 0
        %2765 = vmatpush1.bf16.msra.mxu0 0
        %2766 = vmatprep.subr.bf16.mxu0 0
        %2767 = vmatpush1.bf16.msra.mxu0 0
        %2768 = vmatprep.subr.bf16.mxu0 0
        %2769 = vmatpush1.bf16.msra.mxu0 0
        %2770 = vmatprep.subr.bf16.mxu0 0
        %2771 = vmatpush1.bf16.msra.mxu0 0
        %2772 = vmatprep.subr.bf16.mxu0 0
        %2773 = vmatpush1.bf16.msra.mxu0 0
        %2774 = vmatprep.subr.bf16.mxu0 0
        %2775 = vmatpush1.bf16.msra.mxu0 0
        %2776 = vmatprep.subr.bf16.mxu0 0
        %2777 = vmatpush1.bf16.msra.mxu0 0
        %2778 = vmatprep.subr.bf16.mxu0 0
        %2779 = vmatpush1.bf16.msra.mxu0 0
        %2780 = vmatprep.subr.bf16.mxu0 0
        %2781 = vmatpush1.bf16.msra.mxu0 0
        %2782 = vmatprep.subr.bf16.mxu0 0
        %2783 = vmatpush1.bf16.msra.mxu0 0
        %2784 = vmatprep.subr.bf16.mxu0 0
        %2785 = vmatpush1.bf16.msra.mxu0 0
        %2786 = vmatprep.subr.bf16.mxu0 0
        %2787 = vmatpush1.bf16.msra.mxu0 0
        %2788 = vmatprep.subr.bf16.mxu0 0
        %2789 = vmatpush1.bf16.msra.mxu0 0
        %2790 = vmatprep.subr.bf16.mxu0 0
        %2791 = vmatpush1.bf16.msra.mxu0 0
        %2792 = vmatprep.mubr.bf16.mxu0 0
        %2793 = vmatmul.mubr.bf16.gmra.mrb[0].mxu0 %v2755
        %v2794 = vpop.f32.mrb[0].mxu0
        %v2795 = vadd.f32 0.0, %v2794
        %v2796 = vpop.f32.mrb[0].mxu0
        %v2797 = vpop.f32.mrb[0].mxu0
        %v2798 = vpop.f32.mrb[0].mxu0
        %2799 = vdwg.mxu0
        %2800 = vrot.lane.b32.xlu0 %v2543, 48
        %v2801 = vpop.permute.xlu0 %2800
        %v2803 = vsel %vm1464, %v2749, 0
        %v2806 = vsel %vm1716, %v2801, 0
        %2808 = vmatprep.subr.bf16.mxu0 0
        %2809 = vmatpush1.bf16.msra.mxu0 %v2806
        %2810 = vmatprep.subr.bf16.mxu0 0
        %2811 = vmatpush1.bf16.msra.mxu0 0
        %2812 = vmatprep.subr.bf16.mxu0 0
        %2813 = vmatpush1.bf16.msra.mxu0 0
        %2814 = vmatprep.subr.bf16.mxu0 0
        %2815 = vmatpush1.bf16.msra.mxu0 0
        %2816 = vmatprep.subr.bf16.mxu0 0
        %2817 = vmatpush1.bf16.msra.mxu0 0
        %2818 = vmatprep.subr.bf16.mxu0 0
        %2819 = vmatpush1.bf16.msra.mxu0 0
        %2820 = vmatprep.subr.bf16.mxu0 0
        %2821 = vmatpush1.bf16.msra.mxu0 0
        %2822 = vmatprep.subr.bf16.mxu0 0
        %2823 = vmatpush1.bf16.msra.mxu0 0
        %2824 = vmatprep.subr.bf16.mxu0 0
        %2825 = vmatpush1.bf16.msra.mxu0 0
        %2826 = vmatprep.subr.bf16.mxu0 0
        %2827 = vmatpush1.bf16.msra.mxu0 0
        %2828 = vmatprep.subr.bf16.mxu0 0
        %2829 = vmatpush1.bf16.msra.mxu0 0
        %2830 = vmatprep.subr.bf16.mxu0 0
        %2831 = vmatpush1.bf16.msra.mxu0 0
        %2832 = vmatprep.subr.bf16.mxu0 0
        %2833 = vmatpush1.bf16.msra.mxu0 0
        %2834 = vmatprep.subr.bf16.mxu0 0
        %2835 = vmatpush1.bf16.msra.mxu0 0
        %2836 = vmatprep.subr.bf16.mxu0 0
        %2837 = vmatpush1.bf16.msra.mxu0 0
        %2838 = vmatprep.subr.bf16.mxu0 0
        %2839 = vmatpush1.bf16.msra.mxu0 0
        %2840 = vmatprep.mubr.bf16.mxu0 0
        %2841 = vmatmul.mubr.bf16.gmra.mrb[0].mxu0 %v2803
        %v2842 = vpop.f32.mrb[0].mxu0
        %v2843 = vadd.f32 0.0, %v2842
        %v2844 = vpop.f32.mrb[0].mxu0
        %v2845 = vpop.f32.mrb[0].mxu0
        %v2846 = vpop.f32.mrb[0].mxu0
        %2847 = vdwg.mxu0
        %2848 = vrot.lane.b32.xlu0 %v2594, 48
        %v2849 = vpop.permute.xlu0 %2848
        %v2851 = vsel %vm1464, %v2750, 0
        %v2854 = vsel %vm1716, %v2849, 0
        %2856 = vmatprep.subr.bf16.mxu0 0
        %2857 = vmatpush1.bf16.msra.mxu0 %v2854
        %2858 = vmatprep.subr.bf16.mxu0 0
        %2859 = vmatpush1.bf16.msra.mxu0 0
        %2860 = vmatprep.subr.bf16.mxu0 0
        %2861 = vmatpush1.bf16.msra.mxu0 0
        %2862 = vmatprep.subr.bf16.mxu0 0
        %2863 = vmatpush1.bf16.msra.mxu0 0
        %2864 = vmatprep.subr.bf16.mxu0 0
        %2865 = vmatpush1.bf16.msra.mxu0 0
        %2866 = vmatprep.subr.bf16.mxu0 0
        %2867 = vmatpush1.bf16.msra.mxu0 0
        %2868 = vmatprep.subr.bf16.mxu0 0
        %2869 = vmatpush1.bf16.msra.mxu0 0
        %2870 = vmatprep.subr.bf16.mxu0 0
        %2871 = vmatpush1.bf16.msra.mxu0 0
        %2872 = vmatprep.subr.bf16.mxu0 0
        %2873 = vmatpush1.bf16.msra.mxu0 0
        %2874 = vmatprep.subr.bf16.mxu0 0
        %2875 = vmatpush1.bf16.msra.mxu0 0
        %2876 = vmatprep.subr.bf16.mxu0 0
        %2877 = vmatpush1.bf16.msra.mxu0 0
        %2878 = vmatprep.subr.bf16.mxu0 0
        %2879 = vmatpush1.bf16.msra.mxu0 0
        %2880 = vmatprep.subr.bf16.mxu0 0
        %2881 = vmatpush1.bf16.msra.mxu0 0
        %2882 = vmatprep.subr.bf16.mxu0 0
        %2883 = vmatpush1.bf16.msra.mxu0 0
        %2884 = vmatprep.subr.bf16.mxu0 0
        %2885 = vmatpush1.bf16.msra.mxu0 0
        %2886 = vmatprep.subr.bf16.mxu0 0
        %2887 = vmatpush1.bf16.msra.mxu0 0
        %2888 = vmatprep.mubr.bf16.mxu0 0
        %2889 = vmatmul.mubr.bf16.gmra.mrb[0].mxu0 %v2851
        %v2890 = vpop.f32.mrb[0].mxu0
        %v2891 = vadd.f32 0.0, %v2890
        %v2892 = vpop.f32.mrb[0].mxu0
        %v2893 = vpop.f32.mrb[0].mxu0
        %v2894 = vpop.f32.mrb[0].mxu0
        %2895 = vdwg.mxu0
        %2896 = vrot.lane.b32.xlu0 %v2645, 48
        %v2897 = vpop.permute.xlu0 %2896
        %v2899 = vsel %vm1464, %v2751, 0
        %v2902 = vsel %vm1716, %v2897, 0
        %2904 = vmatprep.subr.bf16.mxu0 0
        %2905 = vmatpush1.bf16.msra.mxu0 %v2902
        %2906 = vmatprep.subr.bf16.mxu0 0
        %2907 = vmatpush1.bf16.msra.mxu0 0
        %2908 = vmatprep.subr.bf16.mxu0 0
        %2909 = vmatpush1.bf16.msra.mxu0 0
        %2910 = vmatprep.subr.bf16.mxu0 0
        %2911 = vmatpush1.bf16.msra.mxu0 0
        %2912 = vmatprep.subr.bf16.mxu0 0
        %2913 = vmatpush1.bf16.msra.mxu0 0
        %2914 = vmatprep.subr.bf16.mxu0 0
        %2915 = vmatpush1.bf16.msra.mxu0 0
        %2916 = vmatprep.subr.bf16.mxu0 0
        %2917 = vmatpush1.bf16.msra.mxu0 0
        %2918 = vmatprep.subr.bf16.mxu0 0
        %2919 = vmatpush1.bf16.msra.mxu0 0
        %2920 = vmatprep.subr.bf16.mxu0 0
        %2921 = vmatpush1.bf16.msra.mxu0 0
        %2922 = vmatprep.subr.bf16.mxu0 0
        %2923 = vmatpush1.bf16.msra.mxu0 0
        %2924 = vmatprep.subr.bf16.mxu0 0
        %2925 = vmatpush1.bf16.msra.mxu0 0
        %2926 = vmatprep.subr.bf16.mxu0 0
        %2927 = vmatpush1.bf16.msra.mxu0 0
        %2928 = vmatprep.subr.bf16.mxu0 0
        %2929 = vmatpush1.bf16.msra.mxu0 0
        %2930 = vmatprep.subr.bf16.mxu0 0
        %2931 = vmatpush1.bf16.msra.mxu0 0
        %2932 = vmatprep.subr.bf16.mxu0 0
        %2933 = vmatpush1.bf16.msra.mxu0 0
        %2934 = vmatprep.subr.bf16.mxu0 0
        %2935 = vmatpush1.bf16.msra.mxu0 0
        %2936 = vmatprep.mubr.bf16.mxu0 0
        %2937 = vmatmul.mubr.bf16.gmra.mrb[0].mxu0 %v2899
        %v2938 = vpop.f32.mrb[0].mxu0
        %v2939 = vadd.f32 0.0, %v2938
        %v2940 = vpop.f32.mrb[0].mxu0
        %v2941 = vpop.f32.mrb[0].mxu0
        %v2942 = vpop.f32.mrb[0].mxu0
        %2943 = vdwg.mxu0
        %v2944 = vpack.c.bf16 %v2843, %v2795
        %v2945 = vpack.c.bf16 %v2939, %v2891
        %v2947 = vsel %vm1464, %v2944, 0
        %v2950 = vsel %vm1464, %v2945, 0
        %v2953 = vsel %vm1716, %v1447, 0
        %2955 = vmatprep.subr.bf16.mxu0 0
        %2956 = vmatpush1.bf16.msra.mxu0 %v2953
        %2957 = vmatprep.subr.bf16.mxu0 0
        %2958 = vmatpush1.bf16.msra.mxu0 0
        %2959 = vmatprep.subr.bf16.mxu0 0
        %2960 = vmatpush1.bf16.msra.mxu0 0
        %2961 = vmatprep.subr.bf16.mxu0 0
        %2962 = vmatpush1.bf16.msra.mxu0 0
        %2963 = vmatprep.subr.bf16.mxu0 0
        %2964 = vmatpush1.bf16.msra.mxu0 0
        %2965 = vmatprep.subr.bf16.mxu0 0
        %2966 = vmatpush1.bf16.msra.mxu0 0
        %2967 = vmatprep.subr.bf16.mxu0 0
        %2968 = vmatpush1.bf16.msra.mxu0 0
        %2969 = vmatprep.subr.bf16.mxu0 0
        %2970 = vmatpush1.bf16.msra.mxu0 0
        %2971 = vmatprep.subr.bf16.mxu0 0
        %2972 = vmatpush1.bf16.msra.mxu0 0
        %2973 = vmatprep.subr.bf16.mxu0 0
        %2974 = vmatpush1.bf16.msra.mxu0 0
        %2975 = vmatprep.subr.bf16.mxu0 0
        %2976 = vmatpush1.bf16.msra.mxu0 0
        %2977 = vmatprep.subr.bf16.mxu0 0
        %2978 = vmatpush1.bf16.msra.mxu0 0
        %2979 = vmatprep.subr.bf16.mxu0 0
        %2980 = vmatpush1.bf16.msra.mxu0 0
        %2981 = vmatprep.subr.bf16.mxu0 0
        %2982 = vmatpush1.bf16.msra.mxu0 0
        %2983 = vmatprep.subr.bf16.mxu0 0
        %2984 = vmatpush1.bf16.msra.mxu0 0
        %2985 = vmatprep.subr.bf16.mxu0 0
        %2986 = vmatpush1.bf16.msra.mxu0 0
        %2987 = vmatprep.mubr.bf16.mxu0 0
        %2988 = vmatmul.mubr.bf16.gmra.mrb[0].mxu0 %v2947
        %v2989 = vpop.f32.mrb[0].mxu0
        %v2990 = vadd.f32 0.0, %v2989
        %v2991 = vpop.f32.mrb[0].mxu0
        %v2992 = vpop.f32.mrb[0].mxu0
        %v2993 = vadd.f32 0.0, %v2992
        %v2994 = vpop.f32.mrb[0].mxu0
        %2995 = vmatprep.mubr.bf16.mxu0 0
        %2996 = vmatmul.mubr.bf16.gmra.mrb[0].mxu0 %v2950
        %v2997 = vpop.f32.mrb[0].mxu0
        %v2998 = vadd.f32 0.0, %v2997
        %v2999 = vpop.f32.mrb[0].mxu0
        %v3000 = vpop.f32.mrb[0].mxu0
        %v3001 = vadd.f32 0.0, %v3000
        %v3002 = vpop.f32.mrb[0].mxu0
        %3003 = vdwg.mxu0
        %v3004 = vadd.f32 %v2470, %v2990
        %v3005 = vadd.f32 %v2473, %v2993
        %v3006 = vadd.f32 %v2478, %v2998
        %v3007 = vadd.f32 %v2481, %v3001
        %v3008 = vld [vmem:[#allocation3] sm:$0xff]
        %v3009 = vld [vmem:[#allocation3 + $0x8] sm:$0xff]
        %v3012 = vunpack.c.l.b16 %v3008
        %v3013 = vunpack.c.h.b16 %v3008
        %v3014 = vunpack.c.l.b16 %v3009
        %v3015 = vunpack.c.h.b16 %v3009
        %v3016 = vpack.c.b16 %v3012, %v3012
        %3017 = vrot.lane.b32.xlu0 %v3016, 104
        %v3018 = vpop.permute.xlu0 %3017
        %3019 = vrot.lane.b32.xlu0 %v3016, 72
        %v3020 = vpop.permute.xlu0 %3019
        %v3022 = vsel %vm1464, %v3018, 0
        %v3025 = vsel %vm1464, %v3020, 0
        %3027 = vmatprep.subr.bf16.mxu0 0
        %3028 = vmatpush1.bf16.xpose.msra.mxu0 %v3025
        %3029 = vmatprep.subr.bf16.mxu0 0
        %3030 = vmatpush1.bf16.xpose.msra.mxu0 0
        %3031 = vmatprep.subr.bf16.mxu0 0
        %3032 = vmatpush1.bf16.xpose.msra.mxu0 0
        %3033 = vmatprep.subr.bf16.mxu0 0
        %3034 = vmatpush1.bf16.xpose.msra.mxu0 0
        %3035 = vmatprep.subr.bf16.mxu0 0
        %3036 = vmatpush1.bf16.xpose.msra.mxu0 0
        %3037 = vmatprep.subr.bf16.mxu0 0
        %3038 = vmatpush1.bf16.xpose.msra.mxu0 0
        %3039 = vmatprep.subr.bf16.mxu0 0
        %3040 = vmatpush1.bf16.xpose.msra.mxu0 0
        %3041 = vmatprep.subr.bf16.mxu0 0
        %3042 = vmatpush1.bf16.xpose.msra.mxu0 0
        %3043 = vmatprep.subr.bf16.mxu0 0
        %3044 = vmatpush1.bf16.xpose.msra.mxu0 0
        %3045 = vmatprep.subr.bf16.mxu0 0
        %3046 = vmatpush1.bf16.xpose.msra.mxu0 0
        %3047 = vmatprep.subr.bf16.mxu0 0
        %3048 = vmatpush1.bf16.xpose.msra.mxu0 0
        %3049 = vmatprep.subr.bf16.mxu0 0
        %3050 = vmatpush1.bf16.xpose.msra.mxu0 0
        %3051 = vmatprep.subr.bf16.mxu0 0
        %3052 = vmatpush1.bf16.xpose.msra.mxu0 0
        %3053 = vmatprep.subr.bf16.mxu0 0
        %3054 = vmatpush1.bf16.xpose.msra.mxu0 0
        %3055 = vmatprep.subr.bf16.mxu0 0
        %3056 = vmatpush1.bf16.xpose.msra.mxu0 0
        %3057 = vmatprep.subr.bf16.mxu0 0
        %3058 = vmatpush1.bf16.xpose.msra.mxu0 0
        %3059 = vmatprep.mubr.bf16.mxu0 0
        %3060 = vmatmul.mubr.bf16.gmra.mrb[0].mxu0 %v3022
        %v3061 = vpop.f32.mrb[0].mxu0
        %v3062 = vadd.f32 0.0, %v3061
        %v3063 = vpop.f32.mrb[0].mxu0
        %v3064 = vpop.f32.mrb[0].mxu0
        %v3065 = vpop.f32.mrb[0].mxu0
        %3066 = vdwg.mxu0
        %v3067 = vpack.c.b16 %v3013, %v3013
        %3068 = vrot.lane.b32.xlu0 %v3067, 104
        %v3069 = vpop.permute.xlu0 %3068
        %3070 = vrot.lane.b32.xlu0 %v3067, 72
        %v3071 = vpop.permute.xlu0 %3070
        %v3073 = vsel %vm1464, %v3069, 0
        %v3076 = vsel %vm1464, %v3071, 0
        %3078 = vmatprep.subr.bf16.mxu0 0
        %3079 = vmatpush1.bf16.xpose.msra.mxu0 %v3076
        %3080 = vmatprep.subr.bf16.mxu0 0
        %3081 = vmatpush1.bf16.xpose.msra.mxu0 0
        %3082 = vmatprep.subr.bf16.mxu0 0
        %3083 = vmatpush1.bf16.xpose.msra.mxu0 0
        %3084 = vmatprep.subr.bf16.mxu0 0
        %3085 = vmatpush1.bf16.xpose.msra.mxu0 0
        %3086 = vmatprep.subr.bf16.mxu0 0
        %3087 = vmatpush1.bf16.xpose.msra.mxu0 0
        %3088 = vmatprep.subr.bf16.mxu0 0
        %3089 = vmatpush1.bf16.xpose.msra.mxu0 0
        %3090 = vmatprep.subr.bf16.mxu0 0
        %3091 = vmatpush1.bf16.xpose.msra.mxu0 0
        %3092 = vmatprep.subr.bf16.mxu0 0
        %3093 = vmatpush1.bf16.xpose.msra.mxu0 0
        %3094 = vmatprep.subr.bf16.mxu0 0
        %3095 = vmatpush1.bf16.xpose.msra.mxu0 0
        %3096 = vmatprep.subr.bf16.mxu0 0
        %3097 = vmatpush1.bf16.xpose.msra.mxu0 0
        %3098 = vmatprep.subr.bf16.mxu0 0
        %3099 = vmatpush1.bf16.xpose.msra.mxu0 0
        %3100 = vmatprep.subr.bf16.mxu0 0
        %3101 = vmatpush1.bf16.xpose.msra.mxu0 0
        %3102 = vmatprep.subr.bf16.mxu0 0
        %3103 = vmatpush1.bf16.xpose.msra.mxu0 0
        %3104 = vmatprep.subr.bf16.mxu0 0
        %3105 = vmatpush1.bf16.xpose.msra.mxu0 0
        %3106 = vmatprep.subr.bf16.mxu0 0
        %3107 = vmatpush1.bf16.xpose.msra.mxu0 0
        %3108 = vmatprep.subr.bf16.mxu0 0
        %3109 = vmatpush1.bf16.xpose.msra.mxu0 0
        %3110 = vmatprep.mubr.bf16.mxu0 0
        %3111 = vmatmul.mubr.bf16.gmra.mrb[0].mxu0 %v3073
        %v3112 = vpop.f32.mrb[0].mxu0
        %v3113 = vadd.f32 0.0, %v3112
        %v3114 = vpop.f32.mrb[0].mxu0
        %v3115 = vpop.f32.mrb[0].mxu0
        %v3116 = vpop.f32.mrb[0].mxu0
        %3117 = vdwg.mxu0
        %v3118 = vpack.c.b16 %v3014, %v3014
        %3119 = vrot.lane.b32.xlu0 %v3118, 104
        %v3120 = vpop.permute.xlu0 %3119
        %3121 = vrot.lane.b32.xlu0 %v3118, 72
        %v3122 = vpop.permute.xlu0 %3121
        %v3124 = vsel %vm1464, %v3120, 0
        %v3127 = vsel %vm1464, %v3122, 0
        %3129 = vmatprep.subr.bf16.mxu0 0
        %3130 = vmatpush1.bf16.xpose.msra.mxu0 %v3127
        %3131 = vmatprep.subr.bf16.mxu0 0
        %3132 = vmatpush1.bf16.xpose.msra.mxu0 0
        %3133 = vmatprep.subr.bf16.mxu0 0
        %3134 = vmatpush1.bf16.xpose.msra.mxu0 0
        %3135 = vmatprep.subr.bf16.mxu0 0
        %3136 = vmatpush1.bf16.xpose.msra.mxu0 0
        %3137 = vmatprep.subr.bf16.mxu0 0
        %3138 = vmatpush1.bf16.xpose.msra.mxu0 0
        %3139 = vmatprep.subr.bf16.mxu0 0
        %3140 = vmatpush1.bf16.xpose.msra.mxu0 0
        %3141 = vmatprep.subr.bf16.mxu0 0
        %3142 = vmatpush1.bf16.xpose.msra.mxu0 0
        %3143 = vmatprep.subr.bf16.mxu0 0
        %3144 = vmatpush1.bf16.xpose.msra.mxu0 0
        %3145 = vmatprep.subr.bf16.mxu0 0
        %3146 = vmatpush1.bf16.xpose.msra.mxu0 0
        %3147 = vmatprep.subr.bf16.mxu0 0
        %3148 = vmatpush1.bf16.xpose.msra.mxu0 0
        %3149 = vmatprep.subr.bf16.mxu0 0
        %3150 = vmatpush1.bf16.xpose.msra.mxu0 0
        %3151 = vmatprep.subr.bf16.mxu0 0
        %3152 = vmatpush1.bf16.xpose.msra.mxu0 0
        %3153 = vmatprep.subr.bf16.mxu0 0
        %3154 = vmatpush1.bf16.xpose.msra.mxu0 0
        %3155 = vmatprep.subr.bf16.mxu0 0
        %3156 = vmatpush1.bf16.xpose.msra.mxu0 0
        %3157 = vmatprep.subr.bf16.mxu0 0
        %3158 = vmatpush1.bf16.xpose.msra.mxu0 0
        %3159 = vmatprep.subr.bf16.mxu0 0
        %3160 = vmatpush1.bf16.xpose.msra.mxu0 0
        %3161 = vmatprep.mubr.bf16.mxu0 0
        %3162 = vmatmul.mubr.bf16.gmra.mrb[0].mxu0 %v3124
        %v3163 = vpop.f32.mrb[0].mxu0
        %v3164 = vadd.f32 0.0, %v3163
        %v3165 = vpop.f32.mrb[0].mxu0
        %v3166 = vpop.f32.mrb[0].mxu0
        %v3167 = vpop.f32.mrb[0].mxu0
        %3168 = vdwg.mxu0
        %v3169 = vpack.c.b16 %v3015, %v3015
        %3170 = vrot.lane.b32.xlu0 %v3169, 104
        %v3171 = vpop.permute.xlu0 %3170
        %3172 = vrot.lane.b32.xlu0 %v3169, 72
        %v3173 = vpop.permute.xlu0 %3172
        %v3175 = vsel %vm1464, %v3171, 0
        %v3178 = vsel %vm1464, %v3173, 0
        %3180 = vmatprep.subr.bf16.mxu0 0
        %3181 = vmatpush1.bf16.xpose.msra.mxu0 %v3178
        %3182 = vmatprep.subr.bf16.mxu0 0
        %3183 = vmatpush1.bf16.xpose.msra.mxu0 0
        %3184 = vmatprep.subr.bf16.mxu0 0
        %3185 = vmatpush1.bf16.xpose.msra.mxu0 0
        %3186 = vmatprep.subr.bf16.mxu0 0
        %3187 = vmatpush1.bf16.xpose.msra.mxu0 0
        %3188 = vmatprep.subr.bf16.mxu0 0
        %3189 = vmatpush1.bf16.xpose.msra.mxu0 0
        %3190 = vmatprep.subr.bf16.mxu0 0
        %3191 = vmatpush1.bf16.xpose.msra.mxu0 0
        %3192 = vmatprep.subr.bf16.mxu0 0
        %3193 = vmatpush1.bf16.xpose.msra.mxu0 0
        %3194 = vmatprep.subr.bf16.mxu0 0
        %3195 = vmatpush1.bf16.xpose.msra.mxu0 0
        %3196 = vmatprep.subr.bf16.mxu0 0
        %3197 = vmatpush1.bf16.xpose.msra.mxu0 0
        %3198 = vmatprep.subr.bf16.mxu0 0
        %3199 = vmatpush1.bf16.xpose.msra.mxu0 0
        %3200 = vmatprep.subr.bf16.mxu0 0
        %3201 = vmatpush1.bf16.xpose.msra.mxu0 0
        %3202 = vmatprep.subr.bf16.mxu0 0
        %3203 = vmatpush1.bf16.xpose.msra.mxu0 0
        %3204 = vmatprep.subr.bf16.mxu0 0
        %3205 = vmatpush1.bf16.xpose.msra.mxu0 0
        %3206 = vmatprep.subr.bf16.mxu0 0
        %3207 = vmatpush1.bf16.xpose.msra.mxu0 0
        %3208 = vmatprep.subr.bf16.mxu0 0
        %3209 = vmatpush1.bf16.xpose.msra.mxu0 0
        %3210 = vmatprep.subr.bf16.mxu0 0
        %3211 = vmatpush1.bf16.xpose.msra.mxu0 0
        %3212 = vmatprep.mubr.bf16.mxu0 0
        %3213 = vmatmul.mubr.bf16.gmra.mrb[0].mxu0 %v3175
        %v3214 = vpop.f32.mrb[0].mxu0
        %v3215 = vadd.f32 0.0, %v3214
        %v3216 = vpop.f32.mrb[0].mxu0
        %v3217 = vpop.f32.mrb[0].mxu0
        %v3218 = vpop.f32.mrb[0].mxu0
        %3219 = vdwg.mxu0
        %v3220 = vmul.f32 %v3062, 0.35355338
        %v3221 = vmul.f32 %v3113, 0.35355338
        %v3222 = vmul.f32 %v3164, 0.35355338
        %v3223 = vmul.f32 %v3215, 0.35355338
        %v3224 = vadd.f32 %v3220, %v1358
        %v3225 = vadd.f32 %v3221, %v1358
        %v3226 = vadd.f32 %v3222, %v1358
        %v3227 = vadd.f32 %v3223, %v1358
        %v3228 = vsel %vm1464, %v3224, -inf
        %3229 = vmax.xlane.f32.xlu0 %v3228
        %v3230 = vpop.xlane.xlu0 %3229
        %v3231 = vsel %vm1464, %v3225, -inf
        %3232 = vmax.xlane.f32.xlu0 %v3231
        %v3233 = vpop.xlane.xlu0 %3232
        %v3234 = vsel %vm1464, %v3226, -inf
        %3235 = vmax.xlane.f32.xlu0 %v3234
        %v3236 = vpop.xlane.xlu0 %3235
        %v3237 = vsel %vm1464, %v3227, -inf
        %3238 = vmax.xlane.f32.xlu0 %v3237
        %v3239 = vpop.xlane.xlu0 %3238
        %v3240 = vsub.f32 %v3224, %v3230
        %v3241 = vsub.f32 %v3225, %v3233
        %v3242 = vsub.f32 %v3226, %v3236
        %v3243 = vsub.f32 %v3227, %v3239
        %v3244 = vmul.f32 %v3240, 1.442695
        %v3245 = vpow.pop %v3244
        %v3246 = vmul.f32 %v3241, 1.442695
        %v3247 = vpow.pop %v3246
        %v3248 = vmul.f32 %v3242, 1.442695
        %v3249 = vpow.pop %v3248
        %v3250 = vmul.f32 %v3243, 1.442695
        %v3251 = vpow.pop %v3250
        %v3252 = vsel %vm1464, %v3245, 0.0
        %3253 = vadd.xlane.f32.xlu0 %v3252
        %v3254 = vpop.xlane.xlu0 %3253
        %v3255 = vsel %vm1464, %v3247, 0.0
        %3256 = vadd.xlane.f32.xlu0 %v3255
        %v3257 = vpop.xlane.xlu0 %3256
        %v3258 = vsel %vm1464, %v3249, 0.0
        %3259 = vadd.xlane.f32.xlu0 %v3258
        %v3260 = vpop.xlane.xlu0 %3259
        %v3261 = vsel %vm1464, %v3251, 0.0
        %3262 = vadd.xlane.f32.xlu0 %v3261
        %v3263 = vpop.xlane.xlu0 %3262
        %v3264 = vrcp.pop %v3254
        %v3265 = vrcp.pop %v3257
        %v3266 = vrcp.pop %v3260
        %v3267 = vrcp.pop %v3263
        %v3268 = vmul.f32 %v3245, %v3264
        %v3269 = vmul.f32 %v3247, %v3265
        %v3270 = vmul.f32 %v3249, %v3266
        %v3271 = vmul.f32 %v3251, %v3267
        %v3272 = vpack.c.bf16 %v3268, %v3268
        %v3273 = vpack.c.bf16 %v3269, %v3269
        %v3274 = vpack.c.bf16 %v3270, %v3270
        %v3275 = vpack.c.bf16 %v3271, %v3271
        %3276 = vrot.lane.b32.xlu0 %v3016, 40
        %v3277 = vpop.permute.xlu0 %3276
        %v3279 = vsel %vm1464, %v3272, 0
        %v3282 = vsel %vm1716, %v3277, 0
        %3284 = vmatprep.subr.bf16.mxu0 0
        %3285 = vmatpush1.bf16.msra.mxu0 %v3282
        %3286 = vmatprep.subr.bf16.mxu0 0
        %3287 = vmatpush1.bf16.msra.mxu0 0
        %3288 = vmatprep.subr.bf16.mxu0 0
        %3289 = vmatpush1.bf16.msra.mxu0 0
        %3290 = vmatprep.subr.bf16.mxu0 0
        %3291 = vmatpush1.bf16.msra.mxu0 0
        %3292 = vmatprep.subr.bf16.mxu0 0
        %3293 = vmatpush1.bf16.msra.mxu0 0
        %3294 = vmatprep.subr.bf16.mxu0 0
        %3295 = vmatpush1.bf16.msra.mxu0 0
        %3296 = vmatprep.subr.bf16.mxu0 0
        %3297 = vmatpush1.bf16.msra.mxu0 0
        %3298 = vmatprep.subr.bf16.mxu0 0
        %3299 = vmatpush1.bf16.msra.mxu0 0
        %3300 = vmatprep.subr.bf16.mxu0 0
        %3301 = vmatpush1.bf16.msra.mxu0 0
        %3302 = vmatprep.subr.bf16.mxu0 0
        %3303 = vmatpush1.bf16.msra.mxu0 0
        %3304 = vmatprep.subr.bf16.mxu0 0
        %3305 = vmatpush1.bf16.msra.mxu0 0
        %3306 = vmatprep.subr.bf16.mxu0 0
        %3307 = vmatpush1.bf16.msra.mxu0 0
        %3308 = vmatprep.subr.bf16.mxu0 0
        %3309 = vmatpush1.bf16.msra.mxu0 0
        %3310 = vmatprep.subr.bf16.mxu0 0
        %3311 = vmatpush1.bf16.msra.mxu0 0
        %3312 = vmatprep.subr.bf16.mxu0 0
        %3313 = vmatpush1.bf16.msra.mxu0 0
        %3314 = vmatprep.subr.bf16.mxu0 0
        %3315 = vmatpush1.bf16.msra.mxu0 0
        %3316 = vmatprep.mubr.bf16.mxu0 0
        %3317 = vmatmul.mubr.bf16.gmra.mrb[0].mxu0 %v3279
        %v3318 = vpop.f32.mrb[0].mxu0
        %v3319 = vadd.f32 0.0, %v3318
        %v3320 = vpop.f32.mrb[0].mxu0
        %v3321 = vpop.f32.mrb[0].mxu0
        %v3322 = vpop.f32.mrb[0].mxu0
        %3323 = vdwg.mxu0
        %3324 = vrot.lane.b32.xlu0 %v3067, 40
        %v3325 = vpop.permute.xlu0 %3324
        %v3327 = vsel %vm1464, %v3273, 0
        %v3330 = vsel %vm1716, %v3325, 0
        %3332 = vmatprep.subr.bf16.mxu0 0
        %3333 = vmatpush1.bf16.msra.mxu0 %v3330
        %3334 = vmatprep.subr.bf16.mxu0 0
        %3335 = vmatpush1.bf16.msra.mxu0 0
        %3336 = vmatprep.subr.bf16.mxu0 0
        %3337 = vmatpush1.bf16.msra.mxu0 0
        %3338 = vmatprep.subr.bf16.mxu0 0
        %3339 = vmatpush1.bf16.msra.mxu0 0
        %3340 = vmatprep.subr.bf16.mxu0 0
        %3341 = vmatpush1.bf16.msra.mxu0 0
        %3342 = vmatprep.subr.bf16.mxu0 0
        %3343 = vmatpush1.bf16.msra.mxu0 0
        %3344 = vmatprep.subr.bf16.mxu0 0
        %3345 = vmatpush1.bf16.msra.mxu0 0
        %3346 = vmatprep.subr.bf16.mxu0 0
        %3347 = vmatpush1.bf16.msra.mxu0 0
        %3348 = vmatprep.subr.bf16.mxu0 0
        %3349 = vmatpush1.bf16.msra.mxu0 0
        %3350 = vmatprep.subr.bf16.mxu0 0
        %3351 = vmatpush1.bf16.msra.mxu0 0
        %3352 = vmatprep.subr.bf16.mxu0 0
        %3353 = vmatpush1.bf16.msra.mxu0 0
        %3354 = vmatprep.subr.bf16.mxu0 0
        %3355 = vmatpush1.bf16.msra.mxu0 0
        %3356 = vmatprep.subr.bf16.mxu0 0
        %3357 = vmatpush1.bf16.msra.mxu0 0
        %3358 = vmatprep.subr.bf16.mxu0 0
        %3359 = vmatpush1.bf16.msra.mxu0 0
        %3360 = vmatprep.subr.bf16.mxu0 0
        %3361 = vmatpush1.bf16.msra.mxu0 0
        %3362 = vmatprep.subr.bf16.mxu0 0
        %3363 = vmatpush1.bf16.msra.mxu0 0
        %3364 = vmatprep.mubr.bf16.mxu0 0
        %3365 = vmatmul.mubr.bf16.gmra.mrb[0].mxu0 %v3327
        %v3366 = vpop.f32.mrb[0].mxu0
        %v3367 = vadd.f32 0.0, %v3366
        %v3368 = vpop.f32.mrb[0].mxu0
        %v3369 = vpop.f32.mrb[0].mxu0
        %v3370 = vpop.f32.mrb[0].mxu0
        %3371 = vdwg.mxu0
        %3372 = vrot.lane.b32.xlu0 %v3118, 40
        %v3373 = vpop.permute.xlu0 %3372
        %v3375 = vsel %vm1464, %v3274, 0
        %v3378 = vsel %vm1716, %v3373, 0
        %3380 = vmatprep.subr.bf16.mxu0 0
        %3381 = vmatpush1.bf16.msra.mxu0 %v3378
        %3382 = vmatprep.subr.bf16.mxu0 0
        %3383 = vmatpush1.bf16.msra.mxu0 0
        %3384 = vmatprep.subr.bf16.mxu0 0
        %3385 = vmatpush1.bf16.msra.mxu0 0
        %3386 = vmatprep.subr.bf16.mxu0 0
        %3387 = vmatpush1.bf16.msra.mxu0 0
        %3388 = vmatprep.subr.bf16.mxu0 0
        %3389 = vmatpush1.bf16.msra.mxu0 0
        %3390 = vmatprep.subr.bf16.mxu0 0
        %3391 = vmatpush1.bf16.msra.mxu0 0
        %3392 = vmatprep.subr.bf16.mxu0 0
        %3393 = vmatpush1.bf16.msra.mxu0 0
        %3394 = vmatprep.subr.bf16.mxu0 0
        %3395 = vmatpush1.bf16.msra.mxu0 0
        %3396 = vmatprep.subr.bf16.mxu0 0
        %3397 = vmatpush1.bf16.msra.mxu0 0
        %3398 = vmatprep.subr.bf16.mxu0 0
        %3399 = vmatpush1.bf16.msra.mxu0 0
        %3400 = vmatprep.subr.bf16.mxu0 0
        %3401 = vmatpush1.bf16.msra.mxu0 0
        %3402 = vmatprep.subr.bf16.mxu0 0
        %3403 = vmatpush1.bf16.msra.mxu0 0
        %3404 = vmatprep.subr.bf16.mxu0 0
        %3405 = vmatpush1.bf16.msra.mxu0 0
        %3406 = vmatprep.subr.bf16.mxu0 0
        %3407 = vmatpush1.bf16.msra.mxu0 0
        %3408 = vmatprep.subr.bf16.mxu0 0
        %3409 = vmatpush1.bf16.msra.mxu0 0
        %3410 = vmatprep.subr.bf16.mxu0 0
        %3411 = vmatpush1.bf16.msra.mxu0 0
        %3412 = vmatprep.mubr.bf16.mxu0 0
        %3413 = vmatmul.mubr.bf16.gmra.mrb[0].mxu0 %v3375
        %v3414 = vpop.f32.mrb[0].mxu0
        %v3415 = vadd.f32 0.0, %v3414
        %v3416 = vpop.f32.mrb[0].mxu0
        %v3417 = vpop.f32.mrb[0].mxu0
        %v3418 = vpop.f32.mrb[0].mxu0
        %3419 = vdwg.mxu0
        %3420 = vrot.lane.b32.xlu0 %v3169, 40
        %v3421 = vpop.permute.xlu0 %3420
        %v3423 = vsel %vm1464, %v3275, 0
        %v3426 = vsel %vm1716, %v3421, 0
        %3428 = vmatprep.subr.bf16.mxu0 0
        %3429 = vmatpush1.bf16.msra.mxu0 %v3426
        %3430 = vmatprep.subr.bf16.mxu0 0
        %3431 = vmatpush1.bf16.msra.mxu0 0
        %3432 = vmatprep.subr.bf16.mxu0 0
        %3433 = vmatpush1.bf16.msra.mxu0 0
        %3434 = vmatprep.subr.bf16.mxu0 0
        %3435 = vmatpush1.bf16.msra.mxu0 0
        %3436 = vmatprep.subr.bf16.mxu0 0
        %3437 = vmatpush1.bf16.msra.mxu0 0
        %3438 = vmatprep.subr.bf16.mxu0 0
        %3439 = vmatpush1.bf16.msra.mxu0 0
        %3440 = vmatprep.subr.bf16.mxu0 0
        %3441 = vmatpush1.bf16.msra.mxu0 0
        %3442 = vmatprep.subr.bf16.mxu0 0
        %3443 = vmatpush1.bf16.msra.mxu0 0
        %3444 = vmatprep.subr.bf16.mxu0 0
        %3445 = vmatpush1.bf16.msra.mxu0 0
        %3446 = vmatprep.subr.bf16.mxu0 0
        %3447 = vmatpush1.bf16.msra.mxu0 0
        %3448 = vmatprep.subr.bf16.mxu0 0
        %3449 = vmatpush1.bf16.msra.mxu0 0
        %3450 = vmatprep.subr.bf16.mxu0 0
        %3451 = vmatpush1.bf16.msra.mxu0 0
        %3452 = vmatprep.subr.bf16.mxu0 0
        %3453 = vmatpush1.bf16.msra.mxu0 0
        %3454 = vmatprep.subr.bf16.mxu0 0
        %3455 = vmatpush1.bf16.msra.mxu0 0
        %3456 = vmatprep.subr.bf16.mxu0 0
        %3457 = vmatpush1.bf16.msra.mxu0 0
        %3458 = vmatprep.subr.bf16.mxu0 0
        %3459 = vmatpush1.bf16.msra.mxu0 0
        %3460 = vmatprep.mubr.bf16.mxu0 0
        %3461 = vmatmul.mubr.bf16.gmra.mrb[0].mxu0 %v3423
        %v3462 = vpop.f32.mrb[0].mxu0
        %v3463 = vadd.f32 0.0, %v3462
        %v3464 = vpop.f32.mrb[0].mxu0
        %v3465 = vpop.f32.mrb[0].mxu0
        %v3466 = vpop.f32.mrb[0].mxu0
        %3467 = vdwg.mxu0
        %v3468 = vpack.c.bf16 %v3367, %v3319
        %v3469 = vpack.c.bf16 %v3463, %v3415
        %v3471 = vsel %vm1464, %v3468, 0
        %v3474 = vsel %vm1464, %v3469, 0
        %v3477 = vsel %vm1716, %v1448, 0
        %3479 = vmatprep.subr.bf16.mxu0 0
        %3480 = vmatpush1.bf16.msra.mxu0 %v3477
        %3481 = vmatprep.subr.bf16.mxu0 0
        %3482 = vmatpush1.bf16.msra.mxu0 0
        %3483 = vmatprep.subr.bf16.mxu0 0
        %3484 = vmatpush1.bf16.msra.mxu0 0
        %3485 = vmatprep.subr.bf16.mxu0 0
        %3486 = vmatpush1.bf16.msra.mxu0 0
        %3487 = vmatprep.subr.bf16.mxu0 0
        %3488 = vmatpush1.bf16.msra.mxu0 0
        %3489 = vmatprep.subr.bf16.mxu0 0
        %3490 = vmatpush1.bf16.msra.mxu0 0
        %3491 = vmatprep.subr.bf16.mxu0 0
        %3492 = vmatpush1.bf16.msra.mxu0 0
        %3493 = vmatprep.subr.bf16.mxu0 0
        %3494 = vmatpush1.bf16.msra.mxu0 0
        %3495 = vmatprep.subr.bf16.mxu0 0
        %3496 = vmatpush1.bf16.msra.mxu0 0
        %3497 = vmatprep.subr.bf16.mxu0 0
        %3498 = vmatpush1.bf16.msra.mxu0 0
        %3499 = vmatprep.subr.bf16.mxu0 0
        %3500 = vmatpush1.bf16.msra.mxu0 0
        %3501 = vmatprep.subr.bf16.mxu0 0
        %3502 = vmatpush1.bf16.msra.mxu0 0
        %3503 = vmatprep.subr.bf16.mxu0 0
        %3504 = vmatpush1.bf16.msra.mxu0 0
        %3505 = vmatprep.subr.bf16.mxu0 0
        %3506 = vmatpush1.bf16.msra.mxu0 0
        %3507 = vmatprep.subr.bf16.mxu0 0
        %3508 = vmatpush1.bf16.msra.mxu0 0
        %3509 = vmatprep.subr.bf16.mxu0 0
        %3510 = vmatpush1.bf16.msra.mxu0 0
        %3511 = vmatprep.mubr.bf16.mxu0 0
        %3512 = vmatmul.mubr.bf16.gmra.mrb[0].mxu0 %v3471
        %v3513 = vpop.f32.mrb[0].mxu0
        %v3514 = vadd.f32 0.0, %v3513
        %v3515 = vpop.f32.mrb[0].mxu0
        %v3516 = vpop.f32.mrb[0].mxu0
        %v3517 = vadd.f32 0.0, %v3516
        %v3518 = vpop.f32.mrb[0].mxu0
        %3519 = vmatprep.mubr.bf16.mxu0 0
        %3520 = vmatmul.mubr.bf16.gmra.mrb[0].mxu0 %v3474
        %v3521 = vpop.f32.mrb[0].mxu0
        %v3522 = vadd.f32 0.0, %v3521
        %v3523 = vpop.f32.mrb[0].mxu0
        %v3524 = vpop.f32.mrb[0].mxu0
        %v3525 = vadd.f32 0.0, %v3524
        %v3526 = vpop.f32.mrb[0].mxu0
        %3527 = vdwg.mxu0
        %v3528 = vadd.f32 %v3004, %v3514
        %v3529 = vadd.f32 %v3005, %v3517
        %v3530 = vadd.f32 %v3006, %v3522
        %v3531 = vadd.f32 %v3007, %v3525
        %v3533 = vlaneseq
        %v3534 = vshrl.u32 %v3533, 7
        %v3535 = vsub.s32 0, %v3534
        %v3536 = vrot.slane %v1449, %v3535
        %v3538 = vadd.f32 %v3528, %v3536
        %v3539 = vadd.f32 %v3529, %v3536
        %v3540 = vadd.f32 %v3530, %v3536
        %v3541 = vadd.f32 %v3531, %v3536
        %v3542 = vadd.f32 %v1339, %v3538
        %v3543 = vadd.f32 %v1340, %v3539
        %v3544 = vadd.f32 %v1341, %v3540
        %v3545 = vadd.f32 %v1342, %v3541
        %v3546 = vld [vmem:[%s1311] sm:$0x1]
        %v3547 = vld [vmem:[%s1314] sm:$0x1]
        %v3548 = vsel %vm1384, %v3542, 0.0
        %3549 = vadd.xlane.f32.xlu0 %v3548
        %v3550 = vpop.xlane.xlu0 %3549
        %v3551 = vsel %vm1384, %v3543, 0.0
        %3552 = vadd.xlane.f32.xlu0 %v3551
        %v3553 = vpop.xlane.xlu0 %3552
        %v3554 = vsel %vm1384, %v3544, 0.0
        %3555 = vadd.xlane.f32.xlu0 %v3554
        %v3556 = vpop.xlane.xlu0 %3555
        %v3557 = vsel %vm1384, %v3545, 0.0
        %3558 = vadd.xlane.f32.xlu0 %v3557
        %v3559 = vpop.xlane.xlu0 %3558
        %v3560 = vrcp.pop 32.0
        %v3561 = vmul.f32 %v3550, %v3560
        %v3562 = vmul.f32 %v3553, %v3560
        %v3563 = vmul.f32 %v3556, %v3560
        %v3564 = vmul.f32 %v3559, %v3560
        %v3565 = vsub.f32 %v3542, %v3561
        %v3566 = vsub.f32 %v3543, %v3562
        %v3567 = vsub.f32 %v3544, %v3563
        %v3568 = vsub.f32 %v3545, %v3564
        %v3569 = vmul.f32 %v3565, %v3565
        %v3570 = vmul.f32 %v3566, %v3566
        %v3571 = vmul.f32 %v3567, %v3567
        %v3572 = vmul.f32 %v3568, %v3568
        %v3573 = vsel %vm1384, %v3569, 0.0
        %3574 = vadd.xlane.f32.xlu0 %v3573
        %v3575 = vpop.xlane.xlu0 %3574
        %v3576 = vsel %vm1384, %v3570, 0.0
        %3577 = vadd.xlane.f32.xlu0 %v3576
        %v3578 = vpop.xlane.xlu0 %3577
        %v3579 = vsel %vm1384, %v3571, 0.0
        %3580 = vadd.xlane.f32.xlu0 %v3579
        %v3581 = vpop.xlane.xlu0 %3580
        %v3582 = vsel %vm1384, %v3572, 0.0
        %3583 = vadd.xlane.f32.xlu0 %v3582
        %v3584 = vpop.xlane.xlu0 %3583
        %v3585 = vmul.f32 %v3575, %v3560
        %v3586 = vmul.f32 %v3578, %v3560
        %v3587 = vmul.f32 %v3581, %v3560
        %v3588 = vmul.f32 %v3584, %v3560
        %v3589 = vadd.f32 %v3585, 1e-05
        %v3590 = vadd.f32 %v3586, 1e-05
        %v3591 = vadd.f32 %v3587, 1e-05
        %v3592 = vadd.f32 %v3588, 1e-05
        %v3593 = vrsqrt.pop %v3589
        %v3594 = vrsqrt.pop %v3590
        %v3595 = vrsqrt.pop %v3591
        %v3596 = vrsqrt.pop %v3592
        %v3597 = vmul.f32 %v3565, %v3593
        %v3598 = vmul.f32 %v3566, %v3594
        %v3599 = vmul.f32 %v3567, %v3595
        %v3600 = vmul.f32 %v3568, %v3596
        %v3602 = vlaneseq
        %v3603 = vshrl.u32 %v3602, 7
        %v3604 = vsub.s32 0, %v3603
        %v3605 = vrot.slane %v3546, %v3604
        %v3607 = vmul.f32 %v3597, %v3605
        %v3608 = vmul.f32 %v3598, %v3605
        %v3609 = vmul.f32 %v3599, %v3605
        %v3610 = vmul.f32 %v3600, %v3605
        %v3612 = vlaneseq
        %v3613 = vshrl.u32 %v3612, 7
        %v3614 = vsub.s32 0, %v3613
        %v3615 = vrot.slane %v3547, %v3614
        %v3617 = vadd.f32 %v3607, %v3615
        %v3618 = vadd.f32 %v3608, %v3615
        %v3619 = vadd.f32 %v3609, %v3615
        %v3620 = vadd.f32 %v3610, %v3615
        %v3621 = vpack.c.bf16 %v3618, %v3617
        %v3622 = vpack.c.bf16 %v3620, %v3619
        %v3623 = vld [vmem:[%s1288] sm:$0xf]
        %v3624 = vld [vmem:[%s1288 + $0x4] sm:$0xf]
        %v3625 = vld [vmem:[%s1288 + $0x8] sm:$0xf]
        %v3626 = vld [vmem:[%s1288 + $0xc] sm:$0xf]
        %v3627 = vld [vmem:[%s1291] sm:$0x1]
        %v3629 = vlaneseq
        %v3630 = vshrl.u32 %v3629, 7
        %v3631 = vsub.s32 0, %v3630
        %v3632 = vrot.slane %v3627, %v3631
        %v3638 = vunpack.c.l.b16 %v3623
        %v3639 = vunpack.c.l.b16 %v3624
        %v3640 = vunpack.c.l.b16 %v3625
        %v3641 = vunpack.c.l.b16 %v3626
        %v3642 = vpack.c.b16 %v3639, %v3638
        %v3643 = vpack.c.b16 %v3641, %v3640
        %v3647 = vsel %vm1384, %v3621, 0
        %v3650 = vsel %vm1384, %v3622, 0
        %3652 = vmatprep.subr.bf16.mxu0 0
        %3653 = vmatpush1.bf16.msra.mxu0 %v3642
        %3654 = vmatprep.subr.bf16.mxu0 0
        %3655 = vmatpush1.bf16.msra.mxu0 %v3643
        %3656 = vmatprep.subr.bf16.mxu0 0
        %3657 = vmatpush1.bf16.msra.mxu0 0
        %3658 = vmatprep.subr.bf16.mxu0 0
        %3659 = vmatpush1.bf16.msra.mxu0 0
        %3660 = vmatprep.subr.bf16.mxu0 0
        %3661 = vmatpush1.bf16.msra.mxu0 0
        %3662 = vmatprep.subr.bf16.mxu0 0
        %3663 = vmatpush1.bf16.msra.mxu0 0
        %3664 = vmatprep.subr.bf16.mxu0 0
        %3665 = vmatpush1.bf16.msra.mxu0 0
        %3666 = vmatprep.subr.bf16.mxu0 0
        %3667 = vmatpush1.bf16.msra.mxu0 0
        %3668 = vmatprep.subr.bf16.mxu0 0
        %3669 = vmatpush1.bf16.msra.mxu0 0
        %3670 = vmatprep.subr.bf16.mxu0 0
        %3671 = vmatpush1.bf16.msra.mxu0 0
        %3672 = vmatprep.subr.bf16.mxu0 0
        %3673 = vmatpush1.bf16.msra.mxu0 0
        %3674 = vmatprep.subr.bf16.mxu0 0
        %3675 = vmatpush1.bf16.msra.mxu0 0
        %3676 = vmatprep.subr.bf16.mxu0 0
        %3677 = vmatpush1.bf16.msra.mxu0 0
        %3678 = vmatprep.subr.bf16.mxu0 0
        %3679 = vmatpush1.bf16.msra.mxu0 0
        %3680 = vmatprep.subr.bf16.mxu0 0
        %3681 = vmatpush1.bf16.msra.mxu0 0
        %3682 = vmatprep.subr.bf16.mxu0 0
        %3683 = vmatpush1.bf16.msra.mxu0 0
        %3684 = vmatprep.mubr.bf16.mxu0 0
        %3685 = vmatmul.mubr.bf16.gmra.mrb[0].mxu0 %v3647
        %v3686 = vpop.f32.mrb[0].mxu0
        %v3687 = vadd.f32 %v3632, %v3686
        %v3688 = vpop.f32.mrb[0].mxu0
        %v3689 = vpop.f32.mrb[0].mxu0
        %v3690 = vadd.f32 %v3632, %v3689
        %v3691 = vpop.f32.mrb[0].mxu0
        %3692 = vmatprep.mubr.bf16.mxu0 0
        %3693 = vmatmul.mubr.bf16.gmra.mrb[0].mxu0 %v3650
        %v3694 = vpop.f32.mrb[0].mxu0
        %v3695 = vadd.f32 %v3632, %v3694
        %v3696 = vpop.f32.mrb[0].mxu0
        %v3697 = vpop.f32.mrb[0].mxu0
        %v3698 = vadd.f32 %v3632, %v3697
        %v3699 = vpop.f32.mrb[0].mxu0
        %3700 = vdwg.mxu0
        %v3701 = vpack.c.bf16 %v3690, %v3687
        %v3702 = vpack.c.bf16 %v3698, %v3695
        %3703 = vst.msk [vmem:[#allocation4] sm:$0xff] %vm1384, %v3701
        %3704 = vst.msk [vmem:[#allocation4 + $0x8] sm:$0xff] %vm1384, %v3702
        %v3705 = vld [vmem:[%s1109] sm:$0xf]
        %v3706 = vld [vmem:[%s1109 + $0x4] sm:$0xf]
        %v3707 = vld [vmem:[%s1109 + $0x8] sm:$0xf]
        %v3708 = vld [vmem:[%s1109 + $0xc] sm:$0xf]
        %v3709 = vld [vmem:[%s1294] sm:$0x1]
        %v3711 = vlaneseq
        %v3712 = vshrl.u32 %v3711, 7
        %v3713 = vsub.s32 0, %v3712
        %v3714 = vrot.slane %v3709, %v3713
        %v3720 = vunpack.c.l.b16 %v1343
        %v3721 = vunpack.c.l.b16 %v1344
        %v3722 = vunpack.c.l.b16 %v1345
        %v3723 = vunpack.c.l.b16 %v1346
        %v3724 = vpack.c.b16 %v3721, %v3720
        %v3725 = vpack.c.b16 %v3723, %v3722
        %v3730 = vunpack.c.l.b16 %v3705
        %v3731 = vunpack.c.l.b16 %v3706
        %v3732 = vunpack.c.l.b16 %v3707
        %v3733 = vunpack.c.l.b16 %v3708
        %v3734 = vpack.c.b16 %v3731, %v3730
        %v3735 = vpack.c.b16 %v3733, %v3732
        %v3739 = vsel %vm1384, %v3724, 0
        %v3742 = vsel %vm1384, %v3725, 0
        %3744 = vmatprep.subr.bf16.mxu0 0
        %3745 = vmatpush1.bf16.msra.mxu0 %v3734
        %3746 = vmatprep.subr.bf16.mxu0 0
        %3747 = vmatpush1.bf16.msra.mxu0 %v3735
        %3748 = vmatprep.subr.bf16.mxu0 0
        %3749 = vmatpush1.bf16.msra.mxu0 0
        %3750 = vmatprep.subr.bf16.mxu0 0
        %3751 = vmatpush1.bf16.msra.mxu0 0
        %3752 = vmatprep.subr.bf16.mxu0 0
        %3753 = vmatpush1.bf16.msra.mxu0 0
        %3754 = vmatprep.subr.bf16.mxu0 0
        %3755 = vmatpush1.bf16.msra.mxu0 0
        %3756 = vmatprep.subr.bf16.mxu0 0
        %3757 = vmatpush1.bf16.msra.mxu0 0
        %3758 = vmatprep.subr.bf16.mxu0 0
        %3759 = vmatpush1.bf16.msra.mxu0 0
        %3760 = vmatprep.subr.bf16.mxu0 0
        %3761 = vmatpush1.bf16.msra.mxu0 0
        %3762 = vmatprep.subr.bf16.mxu0 0
        %3763 = vmatpush1.bf16.msra.mxu0 0
        %3764 = vmatprep.subr.bf16.mxu0 0
        %3765 = vmatpush1.bf16.msra.mxu0 0
        %3766 = vmatprep.subr.bf16.mxu0 0
        %3767 = vmatpush1.bf16.msra.mxu0 0
        %3768 = vmatprep.subr.bf16.mxu0 0
        %3769 = vmatpush1.bf16.msra.mxu0 0
        %3770 = vmatprep.subr.bf16.mxu0 0
        %3771 = vmatpush1.bf16.msra.mxu0 0
        %3772 = vmatprep.subr.bf16.mxu0 0
        %3773 = vmatpush1.bf16.msra.mxu0 0
        %3774 = vmatprep.subr.bf16.mxu0 0
        %3775 = vmatpush1.bf16.msra.mxu0 0
        %3776 = vmatprep.mubr.bf16.mxu0 0
        %3777 = vmatmul.mubr.bf16.gmra.mrb[0].mxu0 %v3739
        %v3778 = vpop.f32.mrb[0].mxu0
        %v3779 = vadd.f32 %v3714, %v3778
        %v3780 = vpop.f32.mrb[0].mxu0
        %v3781 = vpop.f32.mrb[0].mxu0
        %v3782 = vadd.f32 %v3714, %v3781
        %v3783 = vpop.f32.mrb[0].mxu0
        %3784 = vmatprep.mubr.bf16.mxu0 0
        %3785 = vmatmul.mubr.bf16.gmra.mrb[0].mxu0 %v3742
        %v3786 = vpop.f32.mrb[0].mxu0
        %v3787 = vadd.f32 %v3714, %v3786
        %v3788 = vpop.f32.mrb[0].mxu0
        %v3789 = vpop.f32.mrb[0].mxu0
        %v3790 = vadd.f32 %v3714, %v3789
        %v3791 = vpop.f32.mrb[0].mxu0
        %3792 = vdwg.mxu0
        %v3793 = vpack.c.bf16 %v3782, %v3779
        %v3794 = vpack.c.bf16 %v3790, %v3787
        %vm3795 = vcmask 523264
        %3796 = vst.msk [vmem:[#allocation5] sm:$0xff] %vm3795, %v3793
        %3797 = vst.msk [vmem:[#allocation5 + $0x8] sm:$0xff] %vm3795, %v3794
        %v3798 = vld [vmem:[%s1118] sm:$0xf]
        %v3799 = vld [vmem:[%s1118 + $0x4] sm:$0xf]
        %v3800 = vld [vmem:[%s1118 + $0x8] sm:$0xf]
        %v3801 = vld [vmem:[%s1118 + $0xc] sm:$0xf]
        %v3802 = vld [vmem:[%s1297] sm:$0x1]
        %v3803 = vld [vmem:[#allocation4] sm:$0xff]
        %v3804 = vld [vmem:[#allocation4 + $0x8] sm:$0xff]
        %v3807 = vunpack.c.l.b16 %v3803
        %v3808 = vunpack.c.h.b16 %v3803
        %v3809 = vunpack.c.l.b16 %v3804
        %v3810 = vunpack.c.h.b16 %v3804
        %v3811 = vpack.c.b16 %v3807, %v3807
        %v3812 = vpack.c.b16 %v3808, %v3808
        %v3813 = vpack.c.b16 %v3809, %v3809
        %v3814 = vpack.c.b16 %v3810, %v3810
        %v3815 = vld [vmem:[#allocation5] sm:$0xff]
        %v3816 = vld [vmem:[#allocation5 + $0x8] sm:$0xff]
        %v3819 = vunpack.c.l.b16 %v3815
        %v3820 = vunpack.c.h.b16 %v3815
        %v3821 = vunpack.c.l.b16 %v3816
        %v3822 = vunpack.c.h.b16 %v3816
        %v3823 = vpack.c.b16 %v3819, %v3819
        %v3824 = vpack.c.b16 %v3820, %v3820
        %v3825 = vpack.c.b16 %v3821, %v3821
        %v3826 = vpack.c.b16 %v3822, %v3822
        %v3828 = vsel %vm1464, %v3811, 0
        %v3831 = vsel %vm1464, %v3823, 0
        %3833 = vmatprep.subr.bf16.mxu0 0
        %3834 = vmatpush1.bf16.xpose.msra.mxu0 %v3831
        %3835 = vmatprep.subr.bf16.mxu0 0
        %3836 = vmatpush1.bf16.xpose.msra.mxu0 0
        %3837 = vmatprep.subr.bf16.mxu0 0
        %3838 = vmatpush1.bf16.xpose.msra.mxu0 0
        %3839 = vmatprep.subr.bf16.mxu0 0
        %3840 = vmatpush1.bf16.xpose.msra.mxu0 0
        %3841 = vmatprep.subr.bf16.mxu0 0
        %3842 = vmatpush1.bf16.xpose.msra.mxu0 0
        %3843 = vmatprep.subr.bf16.mxu0 0
        %3844 = vmatpush1.bf16.xpose.msra.mxu0 0
        %3845 = vmatprep.subr.bf16.mxu0 0
        %3846 = vmatpush1.bf16.xpose.msra.mxu0 0
        %3847 = vmatprep.subr.bf16.mxu0 0
        %3848 = vmatpush1.bf16.xpose.msra.mxu0 0
        %3849 = vmatprep.subr.bf16.mxu0 0
        %3850 = vmatpush1.bf16.xpose.msra.mxu0 0
        %3851 = vmatprep.subr.bf16.mxu0 0
        %3852 = vmatpush1.bf16.xpose.msra.mxu0 0
        %3853 = vmatprep.subr.bf16.mxu0 0
        %3854 = vmatpush1.bf16.xpose.msra.mxu0 0
        %3855 = vmatprep.subr.bf16.mxu0 0
        %3856 = vmatpush1.bf16.xpose.msra.mxu0 0
        %3857 = vmatprep.subr.bf16.mxu0 0
        %3858 = vmatpush1.bf16.xpose.msra.mxu0 0
        %3859 = vmatprep.subr.bf16.mxu0 0
        %3860 = vmatpush1.bf16.xpose.msra.mxu0 0
        %3861 = vmatprep.subr.bf16.mxu0 0
        %3862 = vmatpush1.bf16.xpose.msra.mxu0 0
        %3863 = vmatprep.subr.bf16.mxu0 0
        %3864 = vmatpush1.bf16.xpose.msra.mxu0 0
        %3865 = vmatprep.mubr.bf16.mxu0 0
        %3866 = vmatmul.mubr.bf16.gmra.mrb[0].mxu0 %v3828
        %v3867 = vpop.f32.mrb[0].mxu0
        %v3868 = vadd.f32 0.0, %v3867
        %v3869 = vpop.f32.mrb[0].mxu0
        %v3870 = vpop.f32.mrb[0].mxu0
        %v3871 = vpop.f32.mrb[0].mxu0
        %3872 = vdwg.mxu0
        %v3874 = vsel %vm1464, %v3812, 0
        %v3877 = vsel %vm1464, %v3824, 0
        %3879 = vmatprep.subr.bf16.mxu0 0
        %3880 = vmatpush1.bf16.xpose.msra.mxu0 %v3877
        %3881 = vmatprep.subr.bf16.mxu0 0
        %3882 = vmatpush1.bf16.xpose.msra.mxu0 0
        %3883 = vmatprep.subr.bf16.mxu0 0
        %3884 = vmatpush1.bf16.xpose.msra.mxu0 0
        %3885 = vmatprep.subr.bf16.mxu0 0
        %3886 = vmatpush1.bf16.xpose.msra.mxu0 0
        %3887 = vmatprep.subr.bf16.mxu0 0
        %3888 = vmatpush1.bf16.xpose.msra.mxu0 0
        %3889 = vmatprep.subr.bf16.mxu0 0
        %3890 = vmatpush1.bf16.xpose.msra.mxu0 0
        %3891 = vmatprep.subr.bf16.mxu0 0
        %3892 = vmatpush1.bf16.xpose.msra.mxu0 0
        %3893 = vmatprep.subr.bf16.mxu0 0
        %3894 = vmatpush1.bf16.xpose.msra.mxu0 0
        %3895 = vmatprep.subr.bf16.mxu0 0
        %3896 = vmatpush1.bf16.xpose.msra.mxu0 0
        %3897 = vmatprep.subr.bf16.mxu0 0
        %3898 = vmatpush1.bf16.xpose.msra.mxu0 0
        %3899 = vmatprep.subr.bf16.mxu0 0
        %3900 = vmatpush1.bf16.xpose.msra.mxu0 0
        %3901 = vmatprep.subr.bf16.mxu0 0
        %3902 = vmatpush1.bf16.xpose.msra.mxu0 0
        %3903 = vmatprep.subr.bf16.mxu0 0
        %3904 = vmatpush1.bf16.xpose.msra.mxu0 0
        %3905 = vmatprep.subr.bf16.mxu0 0
        %3906 = vmatpush1.bf16.xpose.msra.mxu0 0
        %3907 = vmatprep.subr.bf16.mxu0 0
        %3908 = vmatpush1.bf16.xpose.msra.mxu0 0
        %3909 = vmatprep.subr.bf16.mxu0 0
        %3910 = vmatpush1.bf16.xpose.msra.mxu0 0
        %3911 = vmatprep.mubr.bf16.mxu0 0
        %3912 = vmatmul.mubr.bf16.gmra.mrb[0].mxu0 %v3874
        %v3913 = vpop.f32.mrb[0].mxu0
        %v3914 = vadd.f32 0.0, %v3913
        %v3915 = vpop.f32.mrb[0].mxu0
        %v3916 = vpop.f32.mrb[0].mxu0
        %v3917 = vpop.f32.mrb[0].mxu0
        %3918 = vdwg.mxu0
        %v3920 = vsel %vm1464, %v3813, 0
        %v3923 = vsel %vm1464, %v3825, 0
        %3925 = vmatprep.subr.bf16.mxu0 0
        %3926 = vmatpush1.bf16.xpose.msra.mxu0 %v3923
        %3927 = vmatprep.subr.bf16.mxu0 0
        %3928 = vmatpush1.bf16.xpose.msra.mxu0 0
        %3929 = vmatprep.subr.bf16.mxu0 0
        %3930 = vmatpush1.bf16.xpose.msra.mxu0 0
        %3931 = vmatprep.subr.bf16.mxu0 0
        %3932 = vmatpush1.bf16.xpose.msra.mxu0 0
        %3933 = vmatprep.subr.bf16.mxu0 0
        %3934 = vmatpush1.bf16.xpose.msra.mxu0 0
        %3935 = vmatprep.subr.bf16.mxu0 0
        %3936 = vmatpush1.bf16.xpose.msra.mxu0 0
        %3937 = vmatprep.subr.bf16.mxu0 0
        %3938 = vmatpush1.bf16.xpose.msra.mxu0 0
        %3939 = vmatprep.subr.bf16.mxu0 0
        %3940 = vmatpush1.bf16.xpose.msra.mxu0 0
        %3941 = vmatprep.subr.bf16.mxu0 0
        %3942 = vmatpush1.bf16.xpose.msra.mxu0 0
        %3943 = vmatprep.subr.bf16.mxu0 0
        %3944 = vmatpush1.bf16.xpose.msra.mxu0 0
        %3945 = vmatprep.subr.bf16.mxu0 0
        %3946 = vmatpush1.bf16.xpose.msra.mxu0 0
        %3947 = vmatprep.subr.bf16.mxu0 0
        %3948 = vmatpush1.bf16.xpose.msra.mxu0 0
        %3949 = vmatprep.subr.bf16.mxu0 0
        %3950 = vmatpush1.bf16.xpose.msra.mxu0 0
        %3951 = vmatprep.subr.bf16.mxu0 0
        %3952 = vmatpush1.bf16.xpose.msra.mxu0 0
        %3953 = vmatprep.subr.bf16.mxu0 0
        %3954 = vmatpush1.bf16.xpose.msra.mxu0 0
        %3955 = vmatprep.subr.bf16.mxu0 0
        %3956 = vmatpush1.bf16.xpose.msra.mxu0 0
        %3957 = vmatprep.mubr.bf16.mxu0 0
        %3958 = vmatmul.mubr.bf16.gmra.mrb[0].mxu0 %v3920
        %v3959 = vpop.f32.mrb[0].mxu0
        %v3960 = vadd.f32 0.0, %v3959
        %v3961 = vpop.f32.mrb[0].mxu0
        %v3962 = vpop.f32.mrb[0].mxu0
        %v3963 = vpop.f32.mrb[0].mxu0
        %3964 = vdwg.mxu0
        %v3966 = vsel %vm1464, %v3814, 0
        %v3969 = vsel %vm1464, %v3826, 0
        %3971 = vmatprep.subr.bf16.mxu0 0
        %3972 = vmatpush1.bf16.xpose.msra.mxu0 %v3969
        %3973 = vmatprep.subr.bf16.mxu0 0
        %3974 = vmatpush1.bf16.xpose.msra.mxu0 0
        %3975 = vmatprep.subr.bf16.mxu0 0
        %3976 = vmatpush1.bf16.xpose.msra.mxu0 0
        %3977 = vmatprep.subr.bf16.mxu0 0
        %3978 = vmatpush1.bf16.xpose.msra.mxu0 0
        %3979 = vmatprep.subr.bf16.mxu0 0
        %3980 = vmatpush1.bf16.xpose.msra.mxu0 0
        %3981 = vmatprep.subr.bf16.mxu0 0
        %3982 = vmatpush1.bf16.xpose.msra.mxu0 0
        %3983 = vmatprep.subr.bf16.mxu0 0
        %3984 = vmatpush1.bf16.xpose.msra.mxu0 0
        %3985 = vmatprep.subr.bf16.mxu0 0
        %3986 = vmatpush1.bf16.xpose.msra.mxu0 0
        %3987 = vmatprep.subr.bf16.mxu0 0
        %3988 = vmatpush1.bf16.xpose.msra.mxu0 0
        %3989 = vmatprep.subr.bf16.mxu0 0
        %3990 = vmatpush1.bf16.xpose.msra.mxu0 0
        %3991 = vmatprep.subr.bf16.mxu0 0
        %3992 = vmatpush1.bf16.xpose.msra.mxu0 0
        %3993 = vmatprep.subr.bf16.mxu0 0
        %3994 = vmatpush1.bf16.xpose.msra.mxu0 0
        %3995 = vmatprep.subr.bf16.mxu0 0
        %3996 = vmatpush1.bf16.xpose.msra.mxu0 0
        %3997 = vmatprep.subr.bf16.mxu0 0
        %3998 = vmatpush1.bf16.xpose.msra.mxu0 0
        %3999 = vmatprep.subr.bf16.mxu0 0
        %4000 = vmatpush1.bf16.xpose.msra.mxu0 0
        %4001 = vmatprep.subr.bf16.mxu0 0
        %4002 = vmatpush1.bf16.xpose.msra.mxu0 0
        %4003 = vmatprep.mubr.bf16.mxu0 0
        %4004 = vmatmul.mubr.bf16.gmra.mrb[0].mxu0 %v3966
        %v4005 = vpop.f32.mrb[0].mxu0
        %v4006 = vadd.f32 0.0, %v4005
        %v4007 = vpop.f32.mrb[0].mxu0
        %v4008 = vpop.f32.mrb[0].mxu0
        %v4009 = vpop.f32.mrb[0].mxu0
        %4010 = vdwg.mxu0
        %v4011 = vmul.f32 %v3868, 0.35355338
        %v4012 = vmul.f32 %v3914, 0.35355338
        %v4013 = vmul.f32 %v3960, 0.35355338
        %v4014 = vmul.f32 %v4006, 0.35355338
        %v4019 = vlaneseq
        %v4020 = vshrl.u32 %v4019, 7
        %v4021 = vsub.s32 0, %v4020
        %v4022 = vrot.slane %v1351, %v4021
        %v4023 = vlaneseq
        %v4024 = vshrl.u32 %v4023, 7
        %v4025 = vsub.s32 0, %v4024
        %v4026 = vrot.slane %v1352, %v4025
        %v4027 = vlaneseq
        %v4028 = vshrl.u32 %v4027, 7
        %v4029 = vsub.s32 0, %v4028
        %v4030 = vrot.slane %v1353, %v4029
        %v4031 = vlaneseq
        %v4032 = vshrl.u32 %v4031, 7
        %v4033 = vsub.s32 0, %v4032
        %v4034 = vrot.slane %v1354, %v4033
        %v4039 = vadd.f32 %v4011, %v4022
        %v4040 = vadd.f32 %v4012, %v4026
        %v4041 = vadd.f32 %v4013, %v4030
        %v4042 = vadd.f32 %v4014, %v4034
        %v4043 = vsel %vm1464, %v4039, -inf
        %4044 = vmax.xlane.f32.xlu0 %v4043
        %v4045 = vpop.xlane.xlu0 %4044
        %v4046 = vsel %vm1464, %v4040, -inf
        %4047 = vmax.xlane.f32.xlu0 %v4046
        %v4048 = vpop.xlane.xlu0 %4047
        %v4049 = vsel %vm1464, %v4041, -inf
        %4050 = vmax.xlane.f32.xlu0 %v4049
        %v4051 = vpop.xlane.xlu0 %4050
        %v4052 = vsel %vm1464, %v4042, -inf
        %4053 = vmax.xlane.f32.xlu0 %v4052
        %v4054 = vpop.xlane.xlu0 %4053
        %v4055 = vsub.f32 %v4039, %v4045
        %v4056 = vsub.f32 %v4040, %v4048
        %v4057 = vsub.f32 %v4041, %v4051
        %v4058 = vsub.f32 %v4042, %v4054
        %v4059 = vmul.f32 %v4055, 1.442695
        %v4060 = vpow.pop %v4059
        %v4061 = vmul.f32 %v4056, 1.442695
        %v4062 = vpow.pop %v4061
        %v4063 = vmul.f32 %v4057, 1.442695
        %v4064 = vpow.pop %v4063
        %v4065 = vmul.f32 %v4058, 1.442695
        %v4066 = vpow.pop %v4065
        %v4067 = vsel %vm1464, %v4060, 0.0
        %4068 = vadd.xlane.f32.xlu0 %v4067
        %v4069 = vpop.xlane.xlu0 %4068
        %v4070 = vsel %vm1464, %v4062, 0.0
        %4071 = vadd.xlane.f32.xlu0 %v4070
        %v4072 = vpop.xlane.xlu0 %4071
        %v4073 = vsel %vm1464, %v4064, 0.0
        %4074 = vadd.xlane.f32.xlu0 %v4073
        %v4075 = vpop.xlane.xlu0 %4074
        %v4076 = vsel %vm1464, %v4066, 0.0
        %4077 = vadd.xlane.f32.xlu0 %v4076
        %v4078 = vpop.xlane.xlu0 %4077
        %v4079 = vrcp.pop %v4069
        %v4080 = vrcp.pop %v4072
        %v4081 = vrcp.pop %v4075
        %v4082 = vrcp.pop %v4078
        %v4083 = vmul.f32 %v4060, %v4079
        %v4084 = vmul.f32 %v4062, %v4080
        %v4085 = vmul.f32 %v4064, %v4081
        %v4086 = vmul.f32 %v4066, %v4082
        %v4087 = vpack.c.bf16 %v4083, %v4083
        %v4088 = vpack.c.bf16 %v4084, %v4084
        %v4089 = vpack.c.bf16 %v4085, %v4085
        %v4090 = vpack.c.bf16 %v4086, %v4086
        %4091 = vrot.lane.b32.xlu0 %v3823, 96
        %v4092 = vpop.permute.xlu0 %4091
        %v4094 = vsel %vm1464, %v4087, 0
        %v4097 = vsel %vm1716, %v4092, 0
        %4099 = vmatprep.subr.bf16.mxu0 0
        %4100 = vmatpush1.bf16.msra.mxu0 %v4097
        %4101 = vmatprep.subr.bf16.mxu0 0
        %4102 = vmatpush1.bf16.msra.mxu0 0
        %4103 = vmatprep.subr.bf16.mxu0 0
        %4104 = vmatpush1.bf16.msra.mxu0 0
        %4105 = vmatprep.subr.bf16.mxu0 0
        %4106 = vmatpush1.bf16.msra.mxu0 0
        %4107 = vmatprep.subr.bf16.mxu0 0
        %4108 = vmatpush1.bf16.msra.mxu0 0
        %4109 = vmatprep.subr.bf16.mxu0 0
        %4110 = vmatpush1.bf16.msra.mxu0 0
        %4111 = vmatprep.subr.bf16.mxu0 0
        %4112 = vmatpush1.bf16.msra.mxu0 0
        %4113 = vmatprep.subr.bf16.mxu0 0
        %4114 = vmatpush1.bf16.msra.mxu0 0
        %4115 = vmatprep.subr.bf16.mxu0 0
        %4116 = vmatpush1.bf16.msra.mxu0 0
        %4117 = vmatprep.subr.bf16.mxu0 0
        %4118 = vmatpush1.bf16.msra.mxu0 0
        %4119 = vmatprep.subr.bf16.mxu0 0
        %4120 = vmatpush1.bf16.msra.mxu0 0
        %4121 = vmatprep.subr.bf16.mxu0 0
        %4122 = vmatpush1.bf16.msra.mxu0 0
        %4123 = vmatprep.subr.bf16.mxu0 0
        %4124 = vmatpush1.bf16.msra.mxu0 0
        %4125 = vmatprep.subr.bf16.mxu0 0
        %4126 = vmatpush1.bf16.msra.mxu0 0
        %4127 = vmatprep.subr.bf16.mxu0 0
        %4128 = vmatpush1.bf16.msra.mxu0 0
        %4129 = vmatprep.subr.bf16.mxu0 0
        %4130 = vmatpush1.bf16.msra.mxu0 0
        %4131 = vmatprep.mubr.bf16.mxu0 0
        %4132 = vmatmul.mubr.bf16.gmra.mrb[0].mxu0 %v4094
        %v4133 = vpop.f32.mrb[0].mxu0
        %v4134 = vadd.f32 0.0, %v4133
        %v4135 = vpop.f32.mrb[0].mxu0
        %v4136 = vpop.f32.mrb[0].mxu0
        %v4137 = vpop.f32.mrb[0].mxu0
        %4138 = vdwg.mxu0
        %4139 = vrot.lane.b32.xlu0 %v3824, 96
        %v4140 = vpop.permute.xlu0 %4139
        %v4142 = vsel %vm1464, %v4088, 0
        %v4145 = vsel %vm1716, %v4140, 0
        %4147 = vmatprep.subr.bf16.mxu0 0
        %4148 = vmatpush1.bf16.msra.mxu0 %v4145
        %4149 = vmatprep.subr.bf16.mxu0 0
        %4150 = vmatpush1.bf16.msra.mxu0 0
        %4151 = vmatprep.subr.bf16.mxu0 0
        %4152 = vmatpush1.bf16.msra.mxu0 0
        %4153 = vmatprep.subr.bf16.mxu0 0
        %4154 = vmatpush1.bf16.msra.mxu0 0
        %4155 = vmatprep.subr.bf16.mxu0 0
        %4156 = vmatpush1.bf16.msra.mxu0 0
        %4157 = vmatprep.subr.bf16.mxu0 0
        %4158 = vmatpush1.bf16.msra.mxu0 0
        %4159 = vmatprep.subr.bf16.mxu0 0
        %4160 = vmatpush1.bf16.msra.mxu0 0
        %4161 = vmatprep.subr.bf16.mxu0 0
        %4162 = vmatpush1.bf16.msra.mxu0 0
        %4163 = vmatprep.subr.bf16.mxu0 0
        %4164 = vmatpush1.bf16.msra.mxu0 0
        %4165 = vmatprep.subr.bf16.mxu0 0
        %4166 = vmatpush1.bf16.msra.mxu0 0
        %4167 = vmatprep.subr.bf16.mxu0 0
        %4168 = vmatpush1.bf16.msra.mxu0 0
        %4169 = vmatprep.subr.bf16.mxu0 0
        %4170 = vmatpush1.bf16.msra.mxu0 0
        %4171 = vmatprep.subr.bf16.mxu0 0
        %4172 = vmatpush1.bf16.msra.mxu0 0
        %4173 = vmatprep.subr.bf16.mxu0 0
        %4174 = vmatpush1.bf16.msra.mxu0 0
        %4175 = vmatprep.subr.bf16.mxu0 0
        %4176 = vmatpush1.bf16.msra.mxu0 0
        %4177 = vmatprep.subr.bf16.mxu0 0
        %4178 = vmatpush1.bf16.msra.mxu0 0
        %4179 = vmatprep.mubr.bf16.mxu0 0
        %4180 = vmatmul.mubr.bf16.gmra.mrb[0].mxu0 %v4142
        %v4181 = vpop.f32.mrb[0].mxu0
        %v4182 = vadd.f32 0.0, %v4181
        %v4183 = vpop.f32.mrb[0].mxu0
        %v4184 = vpop.f32.mrb[0].mxu0
        %v4185 = vpop.f32.mrb[0].mxu0
        %4186 = vdwg.mxu0
        %4187 = vrot.lane.b32.xlu0 %v3825, 96
        %v4188 = vpop.permute.xlu0 %4187
        %v4190 = vsel %vm1464, %v4089, 0
        %v4193 = vsel %vm1716, %v4188, 0
        %4195 = vmatprep.subr.bf16.mxu0 0
        %4196 = vmatpush1.bf16.msra.mxu0 %v4193
        %4197 = vmatprep.subr.bf16.mxu0 0
        %4198 = vmatpush1.bf16.msra.mxu0 0
        %4199 = vmatprep.subr.bf16.mxu0 0
        %4200 = vmatpush1.bf16.msra.mxu0 0
        %4201 = vmatprep.subr.bf16.mxu0 0
        %4202 = vmatpush1.bf16.msra.mxu0 0
        %4203 = vmatprep.subr.bf16.mxu0 0
        %4204 = vmatpush1.bf16.msra.mxu0 0
        %4205 = vmatprep.subr.bf16.mxu0 0
        %4206 = vmatpush1.bf16.msra.mxu0 0
        %4207 = vmatprep.subr.bf16.mxu0 0
        %4208 = vmatpush1.bf16.msra.mxu0 0
        %4209 = vmatprep.subr.bf16.mxu0 0
        %4210 = vmatpush1.bf16.msra.mxu0 0
        %4211 = vmatprep.subr.bf16.mxu0 0
        %4212 = vmatpush1.bf16.msra.mxu0 0
        %4213 = vmatprep.subr.bf16.mxu0 0
        %4214 = vmatpush1.bf16.msra.mxu0 0
        %4215 = vmatprep.subr.bf16.mxu0 0
        %4216 = vmatpush1.bf16.msra.mxu0 0
        %4217 = vmatprep.subr.bf16.mxu0 0
        %4218 = vmatpush1.bf16.msra.mxu0 0
        %4219 = vmatprep.subr.bf16.mxu0 0
        %4220 = vmatpush1.bf16.msra.mxu0 0
        %4221 = vmatprep.subr.bf16.mxu0 0
        %4222 = vmatpush1.bf16.msra.mxu0 0
        %4223 = vmatprep.subr.bf16.mxu0 0
        %4224 = vmatpush1.bf16.msra.mxu0 0
        %4225 = vmatprep.subr.bf16.mxu0 0
        %4226 = vmatpush1.bf16.msra.mxu0 0
        %4227 = vmatprep.mubr.bf16.mxu0 0
        %4228 = vmatmul.mubr.bf16.gmra.mrb[0].mxu0 %v4190
        %v4229 = vpop.f32.mrb[0].mxu0
        %v4230 = vadd.f32 0.0, %v4229
        %v4231 = vpop.f32.mrb[0].mxu0
        %v4232 = vpop.f32.mrb[0].mxu0
        %v4233 = vpop.f32.mrb[0].mxu0
        %4234 = vdwg.mxu0
        %4235 = vrot.lane.b32.xlu0 %v3826, 96
        %v4236 = vpop.permute.xlu0 %4235
        %v4238 = vsel %vm1464, %v4090, 0
        %v4241 = vsel %vm1716, %v4236, 0
        %4243 = vmatprep.subr.bf16.mxu0 0
        %4244 = vmatpush1.bf16.msra.mxu0 %v4241
        %4245 = vmatprep.subr.bf16.mxu0 0
        %4246 = vmatpush1.bf16.msra.mxu0 0
        %4247 = vmatprep.subr.bf16.mxu0 0
        %4248 = vmatpush1.bf16.msra.mxu0 0
        %4249 = vmatprep.subr.bf16.mxu0 0
        %4250 = vmatpush1.bf16.msra.mxu0 0
        %4251 = vmatprep.subr.bf16.mxu0 0
        %4252 = vmatpush1.bf16.msra.mxu0 0
        %4253 = vmatprep.subr.bf16.mxu0 0
        %4254 = vmatpush1.bf16.msra.mxu0 0
        %4255 = vmatprep.subr.bf16.mxu0 0
        %4256 = vmatpush1.bf16.msra.mxu0 0
        %4257 = vmatprep.subr.bf16.mxu0 0
        %4258 = vmatpush1.bf16.msra.mxu0 0
        %4259 = vmatprep.subr.bf16.mxu0 0
        %4260 = vmatpush1.bf16.msra.mxu0 0
        %4261 = vmatprep.subr.bf16.mxu0 0
        %4262 = vmatpush1.bf16.msra.mxu0 0
        %4263 = vmatprep.subr.bf16.mxu0 0
        %4264 = vmatpush1.bf16.msra.mxu0 0
        %4265 = vmatprep.subr.bf16.mxu0 0
        %4266 = vmatpush1.bf16.msra.mxu0 0
        %4267 = vmatprep.subr.bf16.mxu0 0
        %4268 = vmatpush1.bf16.msra.mxu0 0
        %4269 = vmatprep.subr.bf16.mxu0 0
        %4270 = vmatpush1.bf16.msra.mxu0 0
        %4271 = vmatprep.subr.bf16.mxu0 0
        %4272 = vmatpush1.bf16.msra.mxu0 0
        %4273 = vmatprep.subr.bf16.mxu0 0
        %4274 = vmatpush1.bf16.msra.mxu0 0
        %4275 = vmatprep.mubr.bf16.mxu0 0
        %4276 = vmatmul.mubr.bf16.gmra.mrb[0].mxu0 %v4238
        %v4277 = vpop.f32.mrb[0].mxu0
        %v4278 = vadd.f32 0.0, %v4277
        %v4279 = vpop.f32.mrb[0].mxu0
        %v4280 = vpop.f32.mrb[0].mxu0
        %v4281 = vpop.f32.mrb[0].mxu0
        %4282 = vdwg.mxu0
        %v4283 = vpack.c.bf16 %v4182, %v4134
        %v4284 = vpack.c.bf16 %v4278, %v4230
        %v4285 = vld [vmem:[#allocation4] sm:$0xff]
        %v4286 = vld [vmem:[#allocation4 + $0x8] sm:$0xff]
        %v4289 = vunpack.c.l.b16 %v4285
        %v4290 = vunpack.c.h.b16 %v4285
        %v4291 = vunpack.c.l.b16 %v4286
        %v4292 = vunpack.c.h.b16 %v4286
        %v4293 = vld [vmem:[#allocation5] sm:$0xff]
        %v4294 = vld [vmem:[#allocation5 + $0x8] sm:$0xff]
        %v4297 = vunpack.c.l.b16 %v4293
        %v4298 = vunpack.c.h.b16 %v4293
        %v4299 = vunpack.c.l.b16 %v4294
        %v4300 = vunpack.c.h.b16 %v4294
        %v4301 = vpack.c.b16 %v4289, %v4289
        %4302 = vrot.lane.b32.xlu0 %v4301, 120
        %v4303 = vpop.permute.xlu0 %4302
        %v4304 = vpack.c.b16 %v4297, %v4297
        %4305 = vrot.lane.b32.xlu0 %v4304, 120
        %v4306 = vpop.permute.xlu0 %4305
        %v4308 = vsel %vm1464, %v4303, 0
        %v4311 = vsel %vm1464, %v4306, 0
        %4313 = vmatprep.subr.bf16.mxu0 0
        %4314 = vmatpush1.bf16.xpose.msra.mxu0 %v4311
        %4315 = vmatprep.subr.bf16.mxu0 0
        %4316 = vmatpush1.bf16.xpose.msra.mxu0 0
        %4317 = vmatprep.subr.bf16.mxu0 0
        %4318 = vmatpush1.bf16.xpose.msra.mxu0 0
        %4319 = vmatprep.subr.bf16.mxu0 0
        %4320 = vmatpush1.bf16.xpose.msra.mxu0 0
        %4321 = vmatprep.subr.bf16.mxu0 0
        %4322 = vmatpush1.bf16.xpose.msra.mxu0 0
        %4323 = vmatprep.subr.bf16.mxu0 0
        %4324 = vmatpush1.bf16.xpose.msra.mxu0 0
        %4325 = vmatprep.subr.bf16.mxu0 0
        %4326 = vmatpush1.bf16.xpose.msra.mxu0 0
        %4327 = vmatprep.subr.bf16.mxu0 0
        %4328 = vmatpush1.bf16.xpose.msra.mxu0 0
        %4329 = vmatprep.subr.bf16.mxu0 0
        %4330 = vmatpush1.bf16.xpose.msra.mxu0 0
        %4331 = vmatprep.subr.bf16.mxu0 0
        %4332 = vmatpush1.bf16.xpose.msra.mxu0 0
        %4333 = vmatprep.subr.bf16.mxu0 0
        %4334 = vmatpush1.bf16.xpose.msra.mxu0 0
        %4335 = vmatprep.subr.bf16.mxu0 0
        %4336 = vmatpush1.bf16.xpose.msra.mxu0 0
        %4337 = vmatprep.subr.bf16.mxu0 0
        %4338 = vmatpush1.bf16.xpose.msra.mxu0 0
        %4339 = vmatprep.subr.bf16.mxu0 0
        %4340 = vmatpush1.bf16.xpose.msra.mxu0 0
        %4341 = vmatprep.subr.bf16.mxu0 0
        %4342 = vmatpush1.bf16.xpose.msra.mxu0 0
        %4343 = vmatprep.subr.bf16.mxu0 0
        %4344 = vmatpush1.bf16.xpose.msra.mxu0 0
        %4345 = vmatprep.mubr.bf16.mxu0 0
        %4346 = vmatmul.mubr.bf16.gmra.mrb[0].mxu0 %v4308
        %v4347 = vpop.f32.mrb[0].mxu0
        %v4348 = vadd.f32 0.0, %v4347
        %v4349 = vpop.f32.mrb[0].mxu0
        %v4350 = vpop.f32.mrb[0].mxu0
        %v4351 = vpop.f32.mrb[0].mxu0
        %4352 = vdwg.mxu0
        %v4353 = vpack.c.b16 %v4290, %v4290
        %4354 = vrot.lane.b32.xlu0 %v4353, 120
        %v4355 = vpop.permute.xlu0 %4354
        %v4356 = vpack.c.b16 %v4298, %v4298
        %4357 = vrot.lane.b32.xlu0 %v4356, 120
        %v4358 = vpop.permute.xlu0 %4357
        %v4360 = vsel %vm1464, %v4355, 0
        %v4363 = vsel %vm1464, %v4358, 0
        %4365 = vmatprep.subr.bf16.mxu0 0
        %4366 = vmatpush1.bf16.xpose.msra.mxu0 %v4363
        %4367 = vmatprep.subr.bf16.mxu0 0
        %4368 = vmatpush1.bf16.xpose.msra.mxu0 0
        %4369 = vmatprep.subr.bf16.mxu0 0
        %4370 = vmatpush1.bf16.xpose.msra.mxu0 0
        %4371 = vmatprep.subr.bf16.mxu0 0
        %4372 = vmatpush1.bf16.xpose.msra.mxu0 0
        %4373 = vmatprep.subr.bf16.mxu0 0
        %4374 = vmatpush1.bf16.xpose.msra.mxu0 0
        %4375 = vmatprep.subr.bf16.mxu0 0
        %4376 = vmatpush1.bf16.xpose.msra.mxu0 0
        %4377 = vmatprep.subr.bf16.mxu0 0
        %4378 = vmatpush1.bf16.xpose.msra.mxu0 0
        %4379 = vmatprep.subr.bf16.mxu0 0
        %4380 = vmatpush1.bf16.xpose.msra.mxu0 0
        %4381 = vmatprep.subr.bf16.mxu0 0
        %4382 = vmatpush1.bf16.xpose.msra.mxu0 0
        %4383 = vmatprep.subr.bf16.mxu0 0
        %4384 = vmatpush1.bf16.xpose.msra.mxu0 0
        %4385 = vmatprep.subr.bf16.mxu0 0
        %4386 = vmatpush1.bf16.xpose.msra.mxu0 0
        %4387 = vmatprep.subr.bf16.mxu0 0
        %4388 = vmatpush1.bf16.xpose.msra.mxu0 0
        %4389 = vmatprep.subr.bf16.mxu0 0
        %4390 = vmatpush1.bf16.xpose.msra.mxu0 0
        %4391 = vmatprep.subr.bf16.mxu0 0
        %4392 = vmatpush1.bf16.xpose.msra.mxu0 0
        %4393 = vmatprep.subr.bf16.mxu0 0
        %4394 = vmatpush1.bf16.xpose.msra.mxu0 0
        %4395 = vmatprep.subr.bf16.mxu0 0
        %4396 = vmatpush1.bf16.xpose.msra.mxu0 0
        %4397 = vmatprep.mubr.bf16.mxu0 0
        %4398 = vmatmul.mubr.bf16.gmra.mrb[0].mxu0 %v4360
        %v4399 = vpop.f32.mrb[0].mxu0
        %v4400 = vadd.f32 0.0, %v4399
        %v4401 = vpop.f32.mrb[0].mxu0
        %v4402 = vpop.f32.mrb[0].mxu0
        %v4403 = vpop.f32.mrb[0].mxu0
        %4404 = vdwg.mxu0
        %v4405 = vpack.c.b16 %v4291, %v4291
        %4406 = vrot.lane.b32.xlu0 %v4405, 120
        %v4407 = vpop.permute.xlu0 %4406
        %v4408 = vpack.c.b16 %v4299, %v4299
        %4409 = vrot.lane.b32.xlu0 %v4408, 120
        %v4410 = vpop.permute.xlu0 %4409
        %v4412 = vsel %vm1464, %v4407, 0
        %v4415 = vsel %vm1464, %v4410, 0
        %4417 = vmatprep.subr.bf16.mxu0 0
        %4418 = vmatpush1.bf16.xpose.msra.mxu0 %v4415
        %4419 = vmatprep.subr.bf16.mxu0 0
        %4420 = vmatpush1.bf16.xpose.msra.mxu0 0
        %4421 = vmatprep.subr.bf16.mxu0 0
        %4422 = vmatpush1.bf16.xpose.msra.mxu0 0
        %4423 = vmatprep.subr.bf16.mxu0 0
        %4424 = vmatpush1.bf16.xpose.msra.mxu0 0
        %4425 = vmatprep.subr.bf16.mxu0 0
        %4426 = vmatpush1.bf16.xpose.msra.mxu0 0
        %4427 = vmatprep.subr.bf16.mxu0 0
        %4428 = vmatpush1.bf16.xpose.msra.mxu0 0
        %4429 = vmatprep.subr.bf16.mxu0 0
        %4430 = vmatpush1.bf16.xpose.msra.mxu0 0
        %4431 = vmatprep.subr.bf16.mxu0 0
        %4432 = vmatpush1.bf16.xpose.msra.mxu0 0
        %4433 = vmatprep.subr.bf16.mxu0 0
        %4434 = vmatpush1.bf16.xpose.msra.mxu0 0
        %4435 = vmatprep.subr.bf16.mxu0 0
        %4436 = vmatpush1.bf16.xpose.msra.mxu0 0
        %4437 = vmatprep.subr.bf16.mxu0 0
        %4438 = vmatpush1.bf16.xpose.msra.mxu0 0
        %4439 = vmatprep.subr.bf16.mxu0 0
        %4440 = vmatpush1.bf16.xpose.msra.mxu0 0
        %4441 = vmatprep.subr.bf16.mxu0 0
        %4442 = vmatpush1.bf16.xpose.msra.mxu0 0
        %4443 = vmatprep.subr.bf16.mxu0 0
        %4444 = vmatpush1.bf16.xpose.msra.mxu0 0
        %4445 = vmatprep.subr.bf16.mxu0 0
        %4446 = vmatpush1.bf16.xpose.msra.mxu0 0
        %4447 = vmatprep.subr.bf16.mxu0 0
        %4448 = vmatpush1.bf16.xpose.msra.mxu0 0
        %4449 = vmatprep.mubr.bf16.mxu0 0
        %4450 = vmatmul.mubr.bf16.gmra.mrb[0].mxu0 %v4412
        %v4451 = vpop.f32.mrb[0].mxu0
        %v4452 = vadd.f32 0.0, %v4451
        %v4453 = vpop.f32.mrb[0].mxu0
        %v4454 = vpop.f32.mrb[0].mxu0
        %v4455 = vpop.f32.mrb[0].mxu0
        %4456 = vdwg.mxu0
        %v4457 = vpack.c.b16 %v4292, %v4292
        %4458 = vrot.lane.b32.xlu0 %v4457, 120
        %v4459 = vpop.permute.xlu0 %4458
        %v4460 = vpack.c.b16 %v4300, %v4300
        %4461 = vrot.lane.b32.xlu0 %v4460, 120
        %v4462 = vpop.permute.xlu0 %4461
        %v4464 = vsel %vm1464, %v4459, 0
        %v4467 = vsel %vm1464, %v4462, 0
        %4469 = vmatprep.subr.bf16.mxu0 0
        %4470 = vmatpush1.bf16.xpose.msra.mxu0 %v4467
        %4471 = vmatprep.subr.bf16.mxu0 0
        %4472 = vmatpush1.bf16.xpose.msra.mxu0 0
        %4473 = vmatprep.subr.bf16.mxu0 0
        %4474 = vmatpush1.bf16.xpose.msra.mxu0 0
        %4475 = vmatprep.subr.bf16.mxu0 0
        %4476 = vmatpush1.bf16.xpose.msra.mxu0 0
        %4477 = vmatprep.subr.bf16.mxu0 0
        %4478 = vmatpush1.bf16.xpose.msra.mxu0 0
        %4479 = vmatprep.subr.bf16.mxu0 0
        %4480 = vmatpush1.bf16.xpose.msra.mxu0 0
        %4481 = vmatprep.subr.bf16.mxu0 0
        %4482 = vmatpush1.bf16.xpose.msra.mxu0 0
        %4483 = vmatprep.subr.bf16.mxu0 0
        %4484 = vmatpush1.bf16.xpose.msra.mxu0 0
        %4485 = vmatprep.subr.bf16.mxu0 0
        %4486 = vmatpush1.bf16.xpose.msra.mxu0 0
        %4487 = vmatprep.subr.bf16.mxu0 0
        %4488 = vmatpush1.bf16.xpose.msra.mxu0 0
        %4489 = vmatprep.subr.bf16.mxu0 0
        %4490 = vmatpush1.bf16.xpose.msra.mxu0 0
        %4491 = vmatprep.subr.bf16.mxu0 0
        %4492 = vmatpush1.bf16.xpose.msra.mxu0 0
        %4493 = vmatprep.subr.bf16.mxu0 0
        %4494 = vmatpush1.bf16.xpose.msra.mxu0 0
        %4495 = vmatprep.subr.bf16.mxu0 0
        %4496 = vmatpush1.bf16.xpose.msra.mxu0 0
        %4497 = vmatprep.subr.bf16.mxu0 0
        %4498 = vmatpush1.bf16.xpose.msra.mxu0 0
        %4499 = vmatprep.subr.bf16.mxu0 0
        %4500 = vmatpush1.bf16.xpose.msra.mxu0 0
        %4501 = vmatprep.mubr.bf16.mxu0 0
        %4502 = vmatmul.mubr.bf16.gmra.mrb[0].mxu0 %v4464
        %v4503 = vpop.f32.mrb[0].mxu0
        %v4504 = vadd.f32 0.0, %v4503
        %v4505 = vpop.f32.mrb[0].mxu0
        %v4506 = vpop.f32.mrb[0].mxu0
        %v4507 = vpop.f32.mrb[0].mxu0
        %4508 = vdwg.mxu0
        %v4509 = vmul.f32 %v4348, 0.35355338
        %v4510 = vmul.f32 %v4400, 0.35355338
        %v4511 = vmul.f32 %v4452, 0.35355338
        %v4512 = vmul.f32 %v4504, 0.35355338
        %v4513 = vadd.f32 %v4509, %v4022
        %v4514 = vadd.f32 %v4510, %v4026
        %v4515 = vadd.f32 %v4511, %v4030
        %v4516 = vadd.f32 %v4512, %v4034
        %v4517 = vsel %vm1464, %v4513, -inf
        %4518 = vmax.xlane.f32.xlu0 %v4517
        %v4519 = vpop.xlane.xlu0 %4518
        %v4520 = vsel %vm1464, %v4514, -inf
        %4521 = vmax.xlane.f32.xlu0 %v4520
        %v4522 = vpop.xlane.xlu0 %4521
        %v4523 = vsel %vm1464, %v4515, -inf
        %4524 = vmax.xlane.f32.xlu0 %v4523
        %v4525 = vpop.xlane.xlu0 %4524
        %v4526 = vsel %vm1464, %v4516, -inf
        %4527 = vmax.xlane.f32.xlu0 %v4526
        %v4528 = vpop.xlane.xlu0 %4527
        %v4529 = vsub.f32 %v4513, %v4519
        %v4530 = vsub.f32 %v4514, %v4522
        %v4531 = vsub.f32 %v4515, %v4525
        %v4532 = vsub.f32 %v4516, %v4528
        %v4533 = vmul.f32 %v4529, 1.442695
        %v4534 = vpow.pop %v4533
        %v4535 = vmul.f32 %v4530, 1.442695
        %v4536 = vpow.pop %v4535
        %v4537 = vmul.f32 %v4531, 1.442695
        %v4538 = vpow.pop %v4537
        %v4539 = vmul.f32 %v4532, 1.442695
        %v4540 = vpow.pop %v4539
        %v4541 = vsel %vm1464, %v4534, 0.0
        %4542 = vadd.xlane.f32.xlu0 %v4541
        %v4543 = vpop.xlane.xlu0 %4542
        %v4544 = vsel %vm1464, %v4536, 0.0
        %4545 = vadd.xlane.f32.xlu0 %v4544
        %v4546 = vpop.xlane.xlu0 %4545
        %v4547 = vsel %vm1464, %v4538, 0.0
        %4548 = vadd.xlane.f32.xlu0 %v4547
        %v4549 = vpop.xlane.xlu0 %4548
        %v4550 = vsel %vm1464, %v4540, 0.0
        %4551 = vadd.xlane.f32.xlu0 %v4550
        %v4552 = vpop.xlane.xlu0 %4551
        %v4553 = vrcp.pop %v4543
        %v4554 = vrcp.pop %v4546
        %v4555 = vrcp.pop %v4549
        %v4556 = vrcp.pop %v4552
        %v4557 = vmul.f32 %v4534, %v4553
        %v4558 = vmul.f32 %v4536, %v4554
        %v4559 = vmul.f32 %v4538, %v4555
        %v4560 = vmul.f32 %v4540, %v4556
        %v4561 = vpack.c.bf16 %v4557, %v4557
        %v4562 = vpack.c.bf16 %v4558, %v4558
        %v4563 = vpack.c.bf16 %v4559, %v4559
        %v4564 = vpack.c.bf16 %v4560, %v4560
        %4565 = vrot.lane.b32.xlu0 %v4304, 88
        %v4566 = vpop.permute.xlu0 %4565
        %v4568 = vsel %vm1464, %v4561, 0
        %v4571 = vsel %vm1716, %v4566, 0
        %4573 = vmatprep.subr.bf16.mxu0 0
        %4574 = vmatpush1.bf16.msra.mxu0 %v4571
        %4575 = vmatprep.subr.bf16.mxu0 0
        %4576 = vmatpush1.bf16.msra.mxu0 0
        %4577 = vmatprep.subr.bf16.mxu0 0
        %4578 = vmatpush1.bf16.msra.mxu0 0
        %4579 = vmatprep.subr.bf16.mxu0 0
        %4580 = vmatpush1.bf16.msra.mxu0 0
        %4581 = vmatprep.subr.bf16.mxu0 0
        %4582 = vmatpush1.bf16.msra.mxu0 0
        %4583 = vmatprep.subr.bf16.mxu0 0
        %4584 = vmatpush1.bf16.msra.mxu0 0
        %4585 = vmatprep.subr.bf16.mxu0 0
        %4586 = vmatpush1.bf16.msra.mxu0 0
        %4587 = vmatprep.subr.bf16.mxu0 0
        %4588 = vmatpush1.bf16.msra.mxu0 0
        %4589 = vmatprep.subr.bf16.mxu0 0
        %4590 = vmatpush1.bf16.msra.mxu0 0
        %4591 = vmatprep.subr.bf16.mxu0 0
        %4592 = vmatpush1.bf16.msra.mxu0 0
        %4593 = vmatprep.subr.bf16.mxu0 0
        %4594 = vmatpush1.bf16.msra.mxu0 0
        %4595 = vmatprep.subr.bf16.mxu0 0
        %4596 = vmatpush1.bf16.msra.mxu0 0
        %4597 = vmatprep.subr.bf16.mxu0 0
        %4598 = vmatpush1.bf16.msra.mxu0 0
        %4599 = vmatprep.subr.bf16.mxu0 0
        %4600 = vmatpush1.bf16.msra.mxu0 0
        %4601 = vmatprep.subr.bf16.mxu0 0
        %4602 = vmatpush1.bf16.msra.mxu0 0
        %4603 = vmatprep.subr.bf16.mxu0 0
        %4604 = vmatpush1.bf16.msra.mxu0 0
        %4605 = vmatprep.mubr.bf16.mxu0 0
        %4606 = vmatmul.mubr.bf16.gmra.mrb[0].mxu0 %v4568
        %v4607 = vpop.f32.mrb[0].mxu0
        %v4608 = vadd.f32 0.0, %v4607
        %v4609 = vpop.f32.mrb[0].mxu0
        %v4610 = vpop.f32.mrb[0].mxu0
        %v4611 = vpop.f32.mrb[0].mxu0
        %4612 = vdwg.mxu0
        %4613 = vrot.lane.b32.xlu0 %v4356, 88
        %v4614 = vpop.permute.xlu0 %4613
        %v4616 = vsel %vm1464, %v4562, 0
        %v4619 = vsel %vm1716, %v4614, 0
        %4621 = vmatprep.subr.bf16.mxu0 0
        %4622 = vmatpush1.bf16.msra.mxu0 %v4619
        %4623 = vmatprep.subr.bf16.mxu0 0
        %4624 = vmatpush1.bf16.msra.mxu0 0
        %4625 = vmatprep.subr.bf16.mxu0 0
        %4626 = vmatpush1.bf16.msra.mxu0 0
        %4627 = vmatprep.subr.bf16.mxu0 0
        %4628 = vmatpush1.bf16.msra.mxu0 0
        %4629 = vmatprep.subr.bf16.mxu0 0
        %4630 = vmatpush1.bf16.msra.mxu0 0
        %4631 = vmatprep.subr.bf16.mxu0 0
        %4632 = vmatpush1.bf16.msra.mxu0 0
        %4633 = vmatprep.subr.bf16.mxu0 0
        %4634 = vmatpush1.bf16.msra.mxu0 0
        %4635 = vmatprep.subr.bf16.mxu0 0
        %4636 = vmatpush1.bf16.msra.mxu0 0
        %4637 = vmatprep.subr.bf16.mxu0 0
        %4638 = vmatpush1.bf16.msra.mxu0 0
        %4639 = vmatprep.subr.bf16.mxu0 0
        %4640 = vmatpush1.bf16.msra.mxu0 0
        %4641 = vmatprep.subr.bf16.mxu0 0
        %4642 = vmatpush1.bf16.msra.mxu0 0
        %4643 = vmatprep.subr.bf16.mxu0 0
        %4644 = vmatpush1.bf16.msra.mxu0 0
        %4645 = vmatprep.subr.bf16.mxu0 0
        %4646 = vmatpush1.bf16.msra.mxu0 0
        %4647 = vmatprep.subr.bf16.mxu0 0
        %4648 = vmatpush1.bf16.msra.mxu0 0
        %4649 = vmatprep.subr.bf16.mxu0 0
        %4650 = vmatpush1.bf16.msra.mxu0 0
        %4651 = vmatprep.subr.bf16.mxu0 0
        %4652 = vmatpush1.bf16.msra.mxu0 0
        %4653 = vmatprep.mubr.bf16.mxu0 0
        %4654 = vmatmul.mubr.bf16.gmra.mrb[0].mxu0 %v4616
        %v4655 = vpop.f32.mrb[0].mxu0
        %v4656 = vadd.f32 0.0, %v4655
        %v4657 = vpop.f32.mrb[0].mxu0
        %v4658 = vpop.f32.mrb[0].mxu0
        %v4659 = vpop.f32.mrb[0].mxu0
        %4660 = vdwg.mxu0
        %4661 = vrot.lane.b32.xlu0 %v4408, 88
        %v4662 = vpop.permute.xlu0 %4661
        %v4664 = vsel %vm1464, %v4563, 0
        %v4667 = vsel %vm1716, %v4662, 0
        %4669 = vmatprep.subr.bf16.mxu0 0
        %4670 = vmatpush1.bf16.msra.mxu0 %v4667
        %4671 = vmatprep.subr.bf16.mxu0 0
        %4672 = vmatpush1.bf16.msra.mxu0 0
        %4673 = vmatprep.subr.bf16.mxu0 0
        %4674 = vmatpush1.bf16.msra.mxu0 0
        %4675 = vmatprep.subr.bf16.mxu0 0
        %4676 = vmatpush1.bf16.msra.mxu0 0
        %4677 = vmatprep.subr.bf16.mxu0 0
        %4678 = vmatpush1.bf16.msra.mxu0 0
        %4679 = vmatprep.subr.bf16.mxu0 0
        %4680 = vmatpush1.bf16.msra.mxu0 0
        %4681 = vmatprep.subr.bf16.mxu0 0
        %4682 = vmatpush1.bf16.msra.mxu0 0
        %4683 = vmatprep.subr.bf16.mxu0 0
        %4684 = vmatpush1.bf16.msra.mxu0 0
        %4685 = vmatprep.subr.bf16.mxu0 0
        %4686 = vmatpush1.bf16.msra.mxu0 0
        %4687 = vmatprep.subr.bf16.mxu0 0
        %4688 = vmatpush1.bf16.msra.mxu0 0
        %4689 = vmatprep.subr.bf16.mxu0 0
        %4690 = vmatpush1.bf16.msra.mxu0 0
        %4691 = vmatprep.subr.bf16.mxu0 0
        %4692 = vmatpush1.bf16.msra.mxu0 0
        %4693 = vmatprep.subr.bf16.mxu0 0
        %4694 = vmatpush1.bf16.msra.mxu0 0
        %4695 = vmatprep.subr.bf16.mxu0 0
        %4696 = vmatpush1.bf16.msra.mxu0 0
        %4697 = vmatprep.subr.bf16.mxu0 0
        %4698 = vmatpush1.bf16.msra.mxu0 0
        %4699 = vmatprep.subr.bf16.mxu0 0
        %4700 = vmatpush1.bf16.msra.mxu0 0
        %4701 = vmatprep.mubr.bf16.mxu0 0
        %4702 = vmatmul.mubr.bf16.gmra.mrb[0].mxu0 %v4664
        %v4703 = vpop.f32.mrb[0].mxu0
        %v4704 = vadd.f32 0.0, %v4703
        %v4705 = vpop.f32.mrb[0].mxu0
        %v4706 = vpop.f32.mrb[0].mxu0
        %v4707 = vpop.f32.mrb[0].mxu0
        %4708 = vdwg.mxu0
        %4709 = vrot.lane.b32.xlu0 %v4460, 88
        %v4710 = vpop.permute.xlu0 %4709
        %v4712 = vsel %vm1464, %v4564, 0
        %v4715 = vsel %vm1716, %v4710, 0
        %4717 = vmatprep.subr.bf16.mxu0 0
        %4718 = vmatpush1.bf16.msra.mxu0 %v4715
        %4719 = vmatprep.subr.bf16.mxu0 0
        %4720 = vmatpush1.bf16.msra.mxu0 0
        %4721 = vmatprep.subr.bf16.mxu0 0
        %4722 = vmatpush1.bf16.msra.mxu0 0
        %4723 = vmatprep.subr.bf16.mxu0 0
        %4724 = vmatpush1.bf16.msra.mxu0 0
        %4725 = vmatprep.subr.bf16.mxu0 0
        %4726 = vmatpush1.bf16.msra.mxu0 0
        %4727 = vmatprep.subr.bf16.mxu0 0
        %4728 = vmatpush1.bf16.msra.mxu0 0
        %4729 = vmatprep.subr.bf16.mxu0 0
        %4730 = vmatpush1.bf16.msra.mxu0 0
        %4731 = vmatprep.subr.bf16.mxu0 0
        %4732 = vmatpush1.bf16.msra.mxu0 0
        %4733 = vmatprep.subr.bf16.mxu0 0
        %4734 = vmatpush1.bf16.msra.mxu0 0
        %4735 = vmatprep.subr.bf16.mxu0 0
        %4736 = vmatpush1.bf16.msra.mxu0 0
        %4737 = vmatprep.subr.bf16.mxu0 0
        %4738 = vmatpush1.bf16.msra.mxu0 0
        %4739 = vmatprep.subr.bf16.mxu0 0
        %4740 = vmatpush1.bf16.msra.mxu0 0
        %4741 = vmatprep.subr.bf16.mxu0 0
        %4742 = vmatpush1.bf16.msra.mxu0 0
        %4743 = vmatprep.subr.bf16.mxu0 0
        %4744 = vmatpush1.bf16.msra.mxu0 0
        %4745 = vmatprep.subr.bf16.mxu0 0
        %4746 = vmatpush1.bf16.msra.mxu0 0
        %4747 = vmatprep.subr.bf16.mxu0 0
        %4748 = vmatpush1.bf16.msra.mxu0 0
        %4749 = vmatprep.mubr.bf16.mxu0 0
        %4750 = vmatmul.mubr.bf16.gmra.mrb[0].mxu0 %v4712
        %v4751 = vpop.f32.mrb[0].mxu0
        %v4752 = vadd.f32 0.0, %v4751
        %v4753 = vpop.f32.mrb[0].mxu0
        %v4754 = vpop.f32.mrb[0].mxu0
        %v4755 = vpop.f32.mrb[0].mxu0
        %4756 = vdwg.mxu0
        %v4757 = vpack.c.bf16 %v4656, %v4608
        %v4758 = vpack.c.bf16 %v4752, %v4704
        %v4760 = vsel %vm1464, %v4757, 0
        %v4763 = vsel %vm1464, %v4758, 0
        %v4766 = vsel %vm1716, %v3799, 0
        %4768 = vmatprep.subr.bf16.mxu0 0
        %4769 = vmatpush1.bf16.msra.mxu0 %v4766
        %4770 = vmatprep.subr.bf16.mxu0 0
        %4771 = vmatpush1.bf16.msra.mxu0 0
        %4772 = vmatprep.subr.bf16.mxu0 0
        %4773 = vmatpush1.bf16.msra.mxu0 0
        %4774 = vmatprep.subr.bf16.mxu0 0
        %4775 = vmatpush1.bf16.msra.mxu0 0
        %4776 = vmatprep.subr.bf16.mxu0 0
        %4777 = vmatpush1.bf16.msra.mxu0 0
        %4778 = vmatprep.subr.bf16.mxu0 0
        %4779 = vmatpush1.bf16.msra.mxu0 0
        %4780 = vmatprep.subr.bf16.mxu0 0
        %4781 = vmatpush1.bf16.msra.mxu0 0
        %4782 = vmatprep.subr.bf16.mxu0 0
        %4783 = vmatpush1.bf16.msra.mxu0 0
        %4784 = vmatprep.subr.bf16.mxu0 0
        %4785 = vmatpush1.bf16.msra.mxu0 0
        %4786 = vmatprep.subr.bf16.mxu0 0
        %4787 = vmatpush1.bf16.msra.mxu0 0
        %4788 = vmatprep.subr.bf16.mxu0 0
        %4789 = vmatpush1.bf16.msra.mxu0 0
        %4790 = vmatprep.subr.bf16.mxu0 0
        %4791 = vmatpush1.bf16.msra.mxu0 0
        %4792 = vmatprep.subr.bf16.mxu0 0
        %4793 = vmatpush1.bf16.msra.mxu0 0
        %4794 = vmatprep.subr.bf16.mxu0 0
        %4795 = vmatpush1.bf16.msra.mxu0 0
        %4796 = vmatprep.subr.bf16.mxu0 0
        %4797 = vmatpush1.bf16.msra.mxu0 0
        %4798 = vmatprep.subr.bf16.mxu0 0
        %4799 = vmatpush1.bf16.msra.mxu0 0
        %4800 = vmatprep.mubr.bf16.mxu0 0
        %4801 = vmatmul.mubr.bf16.gmra.mrb[0].mxu0 %v4760
        %v4802 = vpop.f32.mrb[0].mxu0
        %v4803 = vadd.f32 0.0, %v4802
        %v4804 = vpop.f32.mrb[0].mxu0
        %v4805 = vpop.f32.mrb[0].mxu0
        %v4806 = vadd.f32 0.0, %v4805
        %v4807 = vpop.f32.mrb[0].mxu0
        %4808 = vmatprep.mubr.bf16.mxu0 0
        %4809 = vmatmul.mubr.bf16.gmra.mrb[0].mxu0 %v4763
        %v4810 = vpop.f32.mrb[0].mxu0
        %v4811 = vadd.f32 0.0, %v4810
        %v4812 = vpop.f32.mrb[0].mxu0
        %v4813 = vpop.f32.mrb[0].mxu0
        %v4814 = vadd.f32 0.0, %v4813
        %v4815 = vpop.f32.mrb[0].mxu0
        %4816 = vdwg.mxu0
        %v4818 = vsel %vm1464, %v4283, 0
        %v4821 = vsel %vm1464, %v4284, 0
        %v4824 = vsel %vm1716, %v3798, 0
        %4826 = vmatprep.subr.bf16.mxu0 0
        %4827 = vmatpush1.bf16.msra.mxu0 %v4824
        %4828 = vmatprep.subr.bf16.mxu0 0
        %4829 = vmatpush1.bf16.msra.mxu0 0
        %4830 = vmatprep.subr.bf16.mxu0 0
        %4831 = vmatpush1.bf16.msra.mxu0 0
        %4832 = vmatprep.subr.bf16.mxu0 0
        %4833 = vmatpush1.bf16.msra.mxu0 0
        %4834 = vmatprep.subr.bf16.mxu0 0
        %4835 = vmatpush1.bf16.msra.mxu0 0
        %4836 = vmatprep.subr.bf16.mxu0 0
        %4837 = vmatpush1.bf16.msra.mxu0 0
        %4838 = vmatprep.subr.bf16.mxu0 0
        %4839 = vmatpush1.bf16.msra.mxu0 0
        %4840 = vmatprep.subr.bf16.mxu0 0
        %4841 = vmatpush1.bf16.msra.mxu0 0
        %4842 = vmatprep.subr.bf16.mxu0 0
        %4843 = vmatpush1.bf16.msra.mxu0 0
        %4844 = vmatprep.subr.bf16.mxu0 0
        %4845 = vmatpush1.bf16.msra.mxu0 0
        %4846 = vmatprep.subr.bf16.mxu0 0
        %4847 = vmatpush1.bf16.msra.mxu0 0
        %4848 = vmatprep.subr.bf16.mxu0 0
        %4849 = vmatpush1.bf16.msra.mxu0 0
        %4850 = vmatprep.subr.bf16.mxu0 0
        %4851 = vmatpush1.bf16.msra.mxu0 0
        %4852 = vmatprep.subr.bf16.mxu0 0
        %4853 = vmatpush1.bf16.msra.mxu0 0
        %4854 = vmatprep.subr.bf16.mxu0 0
        %4855 = vmatpush1.bf16.msra.mxu0 0
        %4856 = vmatprep.subr.bf16.mxu0 0
        %4857 = vmatpush1.bf16.msra.mxu0 0
        %4858 = vmatprep.mubr.bf16.mxu0 0
        %4859 = vmatmul.mubr.bf16.gmra.mrb[0].mxu0 %v4818
        %v4860 = vpop.f32.mrb[0].mxu0
        %v4861 = vadd.f32 %v4803, %v4860
        %v4862 = vpop.f32.mrb[0].mxu0
        %v4863 = vpop.f32.mrb[0].mxu0
        %v4864 = vadd.f32 %v4806, %v4863
        %v4865 = vpop.f32.mrb[0].mxu0
        %4866 = vmatprep.mubr.bf16.mxu0 0
        %4867 = vmatmul.mubr.bf16.gmra.mrb[0].mxu0 %v4821
        %v4868 = vpop.f32.mrb[0].mxu0
        %v4869 = vadd.f32 %v4811, %v4868
        %v4870 = vpop.f32.mrb[0].mxu0
        %v4871 = vpop.f32.mrb[0].mxu0
        %v4872 = vadd.f32 %v4814, %v4871
        %v4873 = vpop.f32.mrb[0].mxu0
        %4874 = vdwg.mxu0
        %v4875 = vld [vmem:[#allocation4] sm:$0xff]
        %v4876 = vld [vmem:[#allocation4 + $0x8] sm:$0xff]
        %v4879 = vunpack.c.l.b16 %v4875
        %v4880 = vunpack.c.h.b16 %v4875
        %v4881 = vunpack.c.l.b16 %v4876
        %v4882 = vunpack.c.h.b16 %v4876
        %v4883 = vld [vmem:[#allocation5] sm:$0xff]
        %v4884 = vld [vmem:[#allocation5 + $0x8] sm:$0xff]
        %v4887 = vunpack.c.l.b16 %v4883
        %v4888 = vunpack.c.h.b16 %v4883
        %v4889 = vunpack.c.l.b16 %v4884
        %v4890 = vunpack.c.h.b16 %v4884
        %v4891 = vpack.c.b16 %v4879, %v4879
        %4892 = vrot.lane.b32.xlu0 %v4891, 112
        %v4893 = vpop.permute.xlu0 %4892
        %v4894 = vpack.c.b16 %v4887, %v4887
        %4895 = vrot.lane.b32.xlu0 %v4894, 112
        %v4896 = vpop.permute.xlu0 %4895
        %v4898 = vsel %vm1464, %v4893, 0
        %v4901 = vsel %vm1464, %v4896, 0
        %4903 = vmatprep.subr.bf16.mxu0 0
        %4904 = vmatpush1.bf16.xpose.msra.mxu0 %v4901
        %4905 = vmatprep.subr.bf16.mxu0 0
        %4906 = vmatpush1.bf16.xpose.msra.mxu0 0
        %4907 = vmatprep.subr.bf16.mxu0 0
        %4908 = vmatpush1.bf16.xpose.msra.mxu0 0
        %4909 = vmatprep.subr.bf16.mxu0 0
        %4910 = vmatpush1.bf16.xpose.msra.mxu0 0
        %4911 = vmatprep.subr.bf16.mxu0 0
        %4912 = vmatpush1.bf16.xpose.msra.mxu0 0
        %4913 = vmatprep.subr.bf16.mxu0 0
        %4914 = vmatpush1.bf16.xpose.msra.mxu0 0
        %4915 = vmatprep.subr.bf16.mxu0 0
        %4916 = vmatpush1.bf16.xpose.msra.mxu0 0
        %4917 = vmatprep.subr.bf16.mxu0 0
        %4918 = vmatpush1.bf16.xpose.msra.mxu0 0
        %4919 = vmatprep.subr.bf16.mxu0 0
        %4920 = vmatpush1.bf16.xpose.msra.mxu0 0
        %4921 = vmatprep.subr.bf16.mxu0 0
        %4922 = vmatpush1.bf16.xpose.msra.mxu0 0
        %4923 = vmatprep.subr.bf16.mxu0 0
        %4924 = vmatpush1.bf16.xpose.msra.mxu0 0
        %4925 = vmatprep.subr.bf16.mxu0 0
        %4926 = vmatpush1.bf16.xpose.msra.mxu0 0
        %4927 = vmatprep.subr.bf16.mxu0 0
        %4928 = vmatpush1.bf16.xpose.msra.mxu0 0
        %4929 = vmatprep.subr.bf16.mxu0 0
        %4930 = vmatpush1.bf16.xpose.msra.mxu0 0
        %4931 = vmatprep.subr.bf16.mxu0 0
        %4932 = vmatpush1.bf16.xpose.msra.mxu0 0
        %4933 = vmatprep.subr.bf16.mxu0 0
        %4934 = vmatpush1.bf16.xpose.msra.mxu0 0
        %4935 = vmatprep.mubr.bf16.mxu0 0
        %4936 = vmatmul.mubr.bf16.gmra.mrb[0].mxu0 %v4898
        %v4937 = vpop.f32.mrb[0].mxu0
        %v4938 = vadd.f32 0.0, %v4937
        %v4939 = vpop.f32.mrb[0].mxu0
        %v4940 = vpop.f32.mrb[0].mxu0
        %v4941 = vpop.f32.mrb[0].mxu0
        %4942 = vdwg.mxu0
        %v4943 = vpack.c.b16 %v4880, %v4880
        %4944 = vrot.lane.b32.xlu0 %v4943, 112
        %v4945 = vpop.permute.xlu0 %4944
        %v4946 = vpack.c.b16 %v4888, %v4888
        %4947 = vrot.lane.b32.xlu0 %v4946, 112
        %v4948 = vpop.permute.xlu0 %4947
        %v4950 = vsel %vm1464, %v4945, 0
        %v4953 = vsel %vm1464, %v4948, 0
        %4955 = vmatprep.subr.bf16.mxu0 0
        %4956 = vmatpush1.bf16.xpose.msra.mxu0 %v4953
        %4957 = vmatprep.subr.bf16.mxu0 0
        %4958 = vmatpush1.bf16.xpose.msra.mxu0 0
        %4959 = vmatprep.subr.bf16.mxu0 0
        %4960 = vmatpush1.bf16.xpose.msra.mxu0 0
        %4961 = vmatprep.subr.bf16.mxu0 0
        %4962 = vmatpush1.bf16.xpose.msra.mxu0 0
        %4963 = vmatprep.subr.bf16.mxu0 0
        %4964 = vmatpush1.bf16.xpose.msra.mxu0 0
        %4965 = vmatprep.subr.bf16.mxu0 0
        %4966 = vmatpush1.bf16.xpose.msra.mxu0 0
        %4967 = vmatprep.subr.bf16.mxu0 0
        %4968 = vmatpush1.bf16.xpose.msra.mxu0 0
        %4969 = vmatprep.subr.bf16.mxu0 0
        %4970 = vmatpush1.bf16.xpose.msra.mxu0 0
        %4971 = vmatprep.subr.bf16.mxu0 0
        %4972 = vmatpush1.bf16.xpose.msra.mxu0 0
        %4973 = vmatprep.subr.bf16.mxu0 0
        %4974 = vmatpush1.bf16.xpose.msra.mxu0 0
        %4975 = vmatprep.subr.bf16.mxu0 0
        %4976 = vmatpush1.bf16.xpose.msra.mxu0 0
        %4977 = vmatprep.subr.bf16.mxu0 0
        %4978 = vmatpush1.bf16.xpose.msra.mxu0 0
        %4979 = vmatprep.subr.bf16.mxu0 0
        %4980 = vmatpush1.bf16.xpose.msra.mxu0 0
        %4981 = vmatprep.subr.bf16.mxu0 0
        %4982 = vmatpush1.bf16.xpose.msra.mxu0 0
        %4983 = vmatprep.subr.bf16.mxu0 0
        %4984 = vmatpush1.bf16.xpose.msra.mxu0 0
        %4985 = vmatprep.subr.bf16.mxu0 0
        %4986 = vmatpush1.bf16.xpose.msra.mxu0 0
        %4987 = vmatprep.mubr.bf16.mxu0 0
        %4988 = vmatmul.mubr.bf16.gmra.mrb[0].mxu0 %v4950
        %v4989 = vpop.f32.mrb[0].mxu0
        %v4990 = vadd.f32 0.0, %v4989
        %v4991 = vpop.f32.mrb[0].mxu0
        %v4992 = vpop.f32.mrb[0].mxu0
        %v4993 = vpop.f32.mrb[0].mxu0
        %4994 = vdwg.mxu0
        %v4995 = vpack.c.b16 %v4881, %v4881
        %4996 = vrot.lane.b32.xlu0 %v4995, 112
        %v4997 = vpop.permute.xlu0 %4996
        %v4998 = vpack.c.b16 %v4889, %v4889
        %4999 = vrot.lane.b32.xlu0 %v4998, 112
        %v5000 = vpop.permute.xlu0 %4999
        %v5002 = vsel %vm1464, %v4997, 0
        %v5005 = vsel %vm1464, %v5000, 0
        %5007 = vmatprep.subr.bf16.mxu0 0
        %5008 = vmatpush1.bf16.xpose.msra.mxu0 %v5005
        %5009 = vmatprep.subr.bf16.mxu0 0
        %5010 = vmatpush1.bf16.xpose.msra.mxu0 0
        %5011 = vmatprep.subr.bf16.mxu0 0
        %5012 = vmatpush1.bf16.xpose.msra.mxu0 0
        %5013 = vmatprep.subr.bf16.mxu0 0
        %5014 = vmatpush1.bf16.xpose.msra.mxu0 0
        %5015 = vmatprep.subr.bf16.mxu0 0
        %5016 = vmatpush1.bf16.xpose.msra.mxu0 0
        %5017 = vmatprep.subr.bf16.mxu0 0
        %5018 = vmatpush1.bf16.xpose.msra.mxu0 0
        %5019 = vmatprep.subr.bf16.mxu0 0
        %5020 = vmatpush1.bf16.xpose.msra.mxu0 0
        %5021 = vmatprep.subr.bf16.mxu0 0
        %5022 = vmatpush1.bf16.xpose.msra.mxu0 0
        %5023 = vmatprep.subr.bf16.mxu0 0
        %5024 = vmatpush1.bf16.xpose.msra.mxu0 0
        %5025 = vmatprep.subr.bf16.mxu0 0
        %5026 = vmatpush1.bf16.xpose.msra.mxu0 0
        %5027 = vmatprep.subr.bf16.mxu0 0
        %5028 = vmatpush1.bf16.xpose.msra.mxu0 0
        %5029 = vmatprep.subr.bf16.mxu0 0
        %5030 = vmatpush1.bf16.xpose.msra.mxu0 0
        %5031 = vmatprep.subr.bf16.mxu0 0
        %5032 = vmatpush1.bf16.xpose.msra.mxu0 0
        %5033 = vmatprep.subr.bf16.mxu0 0
        %5034 = vmatpush1.bf16.xpose.msra.mxu0 0
        %5035 = vmatprep.subr.bf16.mxu0 0
        %5036 = vmatpush1.bf16.xpose.msra.mxu0 0
        %5037 = vmatprep.subr.bf16.mxu0 0
        %5038 = vmatpush1.bf16.xpose.msra.mxu0 0
        %5039 = vmatprep.mubr.bf16.mxu0 0
        %5040 = vmatmul.mubr.bf16.gmra.mrb[0].mxu0 %v5002
        %v5041 = vpop.f32.mrb[0].mxu0
        %v5042 = vadd.f32 0.0, %v5041
        %v5043 = vpop.f32.mrb[0].mxu0
        %v5044 = vpop.f32.mrb[0].mxu0
        %v5045 = vpop.f32.mrb[0].mxu0
        %5046 = vdwg.mxu0
        %v5047 = vpack.c.b16 %v4882, %v4882
        %5048 = vrot.lane.b32.xlu0 %v5047, 112
        %v5049 = vpop.permute.xlu0 %5048
        %v5050 = vpack.c.b16 %v4890, %v4890
        %5051 = vrot.lane.b32.xlu0 %v5050, 112
        %v5052 = vpop.permute.xlu0 %5051
        %v5054 = vsel %vm1464, %v5049, 0
        %v5057 = vsel %vm1464, %v5052, 0
        %5059 = vmatprep.subr.bf16.mxu0 0
        %5060 = vmatpush1.bf16.xpose.msra.mxu0 %v5057
        %5061 = vmatprep.subr.bf16.mxu0 0
        %5062 = vmatpush1.bf16.xpose.msra.mxu0 0
        %5063 = vmatprep.subr.bf16.mxu0 0
        %5064 = vmatpush1.bf16.xpose.msra.mxu0 0
        %5065 = vmatprep.subr.bf16.mxu0 0
        %5066 = vmatpush1.bf16.xpose.msra.mxu0 0
        %5067 = vmatprep.subr.bf16.mxu0 0
        %5068 = vmatpush1.bf16.xpose.msra.mxu0 0
        %5069 = vmatprep.subr.bf16.mxu0 0
        %5070 = vmatpush1.bf16.xpose.msra.mxu0 0
        %5071 = vmatprep.subr.bf16.mxu0 0
        %5072 = vmatpush1.bf16.xpose.msra.mxu0 0
        %5073 = vmatprep.subr.bf16.mxu0 0
        %5074 = vmatpush1.bf16.xpose.msra.mxu0 0
        %5075 = vmatprep.subr.bf16.mxu0 0
        %5076 = vmatpush1.bf16.xpose.msra.mxu0 0
        %5077 = vmatprep.subr.bf16.mxu0 0
        %5078 = vmatpush1.bf16.xpose.msra.mxu0 0
        %5079 = vmatprep.subr.bf16.mxu0 0
        %5080 = vmatpush1.bf16.xpose.msra.mxu0 0
        %5081 = vmatprep.subr.bf16.mxu0 0
        %5082 = vmatpush1.bf16.xpose.msra.mxu0 0
        %5083 = vmatprep.subr.bf16.mxu0 0
        %5084 = vmatpush1.bf16.xpose.msra.mxu0 0
        %5085 = vmatprep.subr.bf16.mxu0 0
        %5086 = vmatpush1.bf16.xpose.msra.mxu0 0
        %5087 = vmatprep.subr.bf16.mxu0 0
        %5088 = vmatpush1.bf16.xpose.msra.mxu0 0
        %5089 = vmatprep.subr.bf16.mxu0 0
        %5090 = vmatpush1.bf16.xpose.msra.mxu0 0
        %5091 = vmatprep.mubr.bf16.mxu0 0
        %5092 = vmatmul.mubr.bf16.gmra.mrb[0].mxu0 %v5054
        %v5093 = vpop.f32.mrb[0].mxu0
        %v5094 = vadd.f32 0.0, %v5093
        %v5095 = vpop.f32.mrb[0].mxu0
        %v5096 = vpop.f32.mrb[0].mxu0
        %v5097 = vpop.f32.mrb[0].mxu0
        %5098 = vdwg.mxu0
        %v5099 = vmul.f32 %v4938, 0.35355338
        %v5100 = vmul.f32 %v4990, 0.35355338
        %v5101 = vmul.f32 %v5042, 0.35355338
        %v5102 = vmul.f32 %v5094, 0.35355338
        %v5103 = vadd.f32 %v5099, %v4022
        %v5104 = vadd.f32 %v5100, %v4026
        %v5105 = vadd.f32 %v5101, %v4030
        %v5106 = vadd.f32 %v5102, %v4034
        %v5107 = vsel %vm1464, %v5103, -inf
        %5108 = vmax.xlane.f32.xlu0 %v5107
        %v5109 = vpop.xlane.xlu0 %5108
        %v5110 = vsel %vm1464, %v5104, -inf
        %5111 = vmax.xlane.f32.xlu0 %v5110
        %v5112 = vpop.xlane.xlu0 %5111
        %v5113 = vsel %vm1464, %v5105, -inf
        %5114 = vmax.xlane.f32.xlu0 %v5113
        %v5115 = vpop.xlane.xlu0 %5114
        %v5116 = vsel %vm1464, %v5106, -inf
        %5117 = vmax.xlane.f32.xlu0 %v5116
        %v5118 = vpop.xlane.xlu0 %5117
        %v5119 = vsub.f32 %v5103, %v5109
        %v5120 = vsub.f32 %v5104, %v5112
        %v5121 = vsub.f32 %v5105, %v5115
        %v5122 = vsub.f32 %v5106, %v5118
        %v5123 = vmul.f32 %v5119, 1.442695
        %v5124 = vpow.pop %v5123
        %v5125 = vmul.f32 %v5120, 1.442695
        %v5126 = vpow.pop %v5125
        %v5127 = vmul.f32 %v5121, 1.442695
        %v5128 = vpow.pop %v5127
        %v5129 = vmul.f32 %v5122, 1.442695
        %v5130 = vpow.pop %v5129
        %v5131 = vsel %vm1464, %v5124, 0.0
        %5132 = vadd.xlane.f32.xlu0 %v5131
        %v5133 = vpop.xlane.xlu0 %5132
        %v5134 = vsel %vm1464, %v5126, 0.0
        %5135 = vadd.xlane.f32.xlu0 %v5134
        %v5136 = vpop.xlane.xlu0 %5135
        %v5137 = vsel %vm1464, %v5128, 0.0
        %5138 = vadd.xlane.f32.xlu0 %v5137
        %v5139 = vpop.xlane.xlu0 %5138
        %v5140 = vsel %vm1464, %v5130, 0.0
        %5141 = vadd.xlane.f32.xlu0 %v5140
        %v5142 = vpop.xlane.xlu0 %5141
        %v5143 = vrcp.pop %v5133
        %v5144 = vrcp.pop %v5136
        %v5145 = vrcp.pop %v5139
        %v5146 = vrcp.pop %v5142
        %v5147 = vmul.f32 %v5124, %v5143
        %v5148 = vmul.f32 %v5126, %v5144
        %v5149 = vmul.f32 %v5128, %v5145
        %v5150 = vmul.f32 %v5130, %v5146
        %v5151 = vpack.c.bf16 %v5147, %v5147
        %v5152 = vpack.c.bf16 %v5148, %v5148
        %v5153 = vpack.c.bf16 %v5149, %v5149
        %v5154 = vpack.c.bf16 %v5150, %v5150
        %5155 = vrot.lane.b32.xlu0 %v4894, 80
        %v5156 = vpop.permute.xlu0 %5155
        %v5158 = vsel %vm1464, %v5151, 0
        %v5161 = vsel %vm1716, %v5156, 0
        %5163 = vmatprep.subr.bf16.mxu0 0
        %5164 = vmatpush1.bf16.msra.mxu0 %v5161
        %5165 = vmatprep.subr.bf16.mxu0 0
        %5166 = vmatpush1.bf16.msra.mxu0 0
        %5167 = vmatprep.subr.bf16.mxu0 0
        %5168 = vmatpush1.bf16.msra.mxu0 0
        %5169 = vmatprep.subr.bf16.mxu0 0
        %5170 = vmatpush1.bf16.msra.mxu0 0
        %5171 = vmatprep.subr.bf16.mxu0 0
        %5172 = vmatpush1.bf16.msra.mxu0 0
        %5173 = vmatprep.subr.bf16.mxu0 0
        %5174 = vmatpush1.bf16.msra.mxu0 0
        %5175 = vmatprep.subr.bf16.mxu0 0
        %5176 = vmatpush1.bf16.msra.mxu0 0
        %5177 = vmatprep.subr.bf16.mxu0 0
        %5178 = vmatpush1.bf16.msra.mxu0 0
        %5179 = vmatprep.subr.bf16.mxu0 0
        %5180 = vmatpush1.bf16.msra.mxu0 0
        %5181 = vmatprep.subr.bf16.mxu0 0
        %5182 = vmatpush1.bf16.msra.mxu0 0
        %5183 = vmatprep.subr.bf16.mxu0 0
        %5184 = vmatpush1.bf16.msra.mxu0 0
        %5185 = vmatprep.subr.bf16.mxu0 0
        %5186 = vmatpush1.bf16.msra.mxu0 0
        %5187 = vmatprep.subr.bf16.mxu0 0
        %5188 = vmatpush1.bf16.msra.mxu0 0
        %5189 = vmatprep.subr.bf16.mxu0 0
        %5190 = vmatpush1.bf16.msra.mxu0 0
        %5191 = vmatprep.subr.bf16.mxu0 0
        %5192 = vmatpush1.bf16.msra.mxu0 0
        %5193 = vmatprep.subr.bf16.mxu0 0
        %5194 = vmatpush1.bf16.msra.mxu0 0
        %5195 = vmatprep.mubr.bf16.mxu0 0
        %5196 = vmatmul.mubr.bf16.gmra.mrb[0].mxu0 %v5158
        %v5197 = vpop.f32.mrb[0].mxu0
        %v5198 = vadd.f32 0.0, %v5197
        %v5199 = vpop.f32.mrb[0].mxu0
        %v5200 = vpop.f32.mrb[0].mxu0
        %v5201 = vpop.f32.mrb[0].mxu0
        %5202 = vdwg.mxu0
        %5203 = vrot.lane.b32.xlu0 %v4946, 80
        %v5204 = vpop.permute.xlu0 %5203
        %v5206 = vsel %vm1464, %v5152, 0
        %v5209 = vsel %vm1716, %v5204, 0
        %5211 = vmatprep.subr.bf16.mxu0 0
        %5212 = vmatpush1.bf16.msra.mxu0 %v5209
        %5213 = vmatprep.subr.bf16.mxu0 0
        %5214 = vmatpush1.bf16.msra.mxu0 0
        %5215 = vmatprep.subr.bf16.mxu0 0
        %5216 = vmatpush1.bf16.msra.mxu0 0
        %5217 = vmatprep.subr.bf16.mxu0 0
        %5218 = vmatpush1.bf16.msra.mxu0 0
        %5219 = vmatprep.subr.bf16.mxu0 0
        %5220 = vmatpush1.bf16.msra.mxu0 0
        %5221 = vmatprep.subr.bf16.mxu0 0
        %5222 = vmatpush1.bf16.msra.mxu0 0
        %5223 = vmatprep.subr.bf16.mxu0 0
        %5224 = vmatpush1.bf16.msra.mxu0 0
        %5225 = vmatprep.subr.bf16.mxu0 0
        %5226 = vmatpush1.bf16.msra.mxu0 0
        %5227 = vmatprep.subr.bf16.mxu0 0
        %5228 = vmatpush1.bf16.msra.mxu0 0
        %5229 = vmatprep.subr.bf16.mxu0 0
        %5230 = vmatpush1.bf16.msra.mxu0 0
        %5231 = vmatprep.subr.bf16.mxu0 0
        %5232 = vmatpush1.bf16.msra.mxu0 0
        %5233 = vmatprep.subr.bf16.mxu0 0
        %5234 = vmatpush1.bf16.msra.mxu0 0
        %5235 = vmatprep.subr.bf16.mxu0 0
        %5236 = vmatpush1.bf16.msra.mxu0 0
        %5237 = vmatprep.subr.bf16.mxu0 0
        %5238 = vmatpush1.bf16.msra.mxu0 0
        %5239 = vmatprep.subr.bf16.mxu0 0
        %5240 = vmatpush1.bf16.msra.mxu0 0
        %5241 = vmatprep.subr.bf16.mxu0 0
        %5242 = vmatpush1.bf16.msra.mxu0 0
        %5243 = vmatprep.mubr.bf16.mxu0 0
        %5244 = vmatmul.mubr.bf16.gmra.mrb[0].mxu0 %v5206
        %v5245 = vpop.f32.mrb[0].mxu0
        %v5246 = vadd.f32 0.0, %v5245
        %v5247 = vpop.f32.mrb[0].mxu0
        %v5248 = vpop.f32.mrb[0].mxu0
        %v5249 = vpop.f32.mrb[0].mxu0
        %5250 = vdwg.mxu0
        %5251 = vrot.lane.b32.xlu0 %v4998, 80
        %v5252 = vpop.permute.xlu0 %5251
        %v5254 = vsel %vm1464, %v5153, 0
        %v5257 = vsel %vm1716, %v5252, 0
        %5259 = vmatprep.subr.bf16.mxu0 0
        %5260 = vmatpush1.bf16.msra.mxu0 %v5257
        %5261 = vmatprep.subr.bf16.mxu0 0
        %5262 = vmatpush1.bf16.msra.mxu0 0
        %5263 = vmatprep.subr.bf16.mxu0 0
        %5264 = vmatpush1.bf16.msra.mxu0 0
        %5265 = vmatprep.subr.bf16.mxu0 0
        %5266 = vmatpush1.bf16.msra.mxu0 0
        %5267 = vmatprep.subr.bf16.mxu0 0
        %5268 = vmatpush1.bf16.msra.mxu0 0
        %5269 = vmatprep.subr.bf16.mxu0 0
        %5270 = vmatpush1.bf16.msra.mxu0 0
        %5271 = vmatprep.subr.bf16.mxu0 0
        %5272 = vmatpush1.bf16.msra.mxu0 0
        %5273 = vmatprep.subr.bf16.mxu0 0
        %5274 = vmatpush1.bf16.msra.mxu0 0
        %5275 = vmatprep.subr.bf16.mxu0 0
        %5276 = vmatpush1.bf16.msra.mxu0 0
        %5277 = vmatprep.subr.bf16.mxu0 0
        %5278 = vmatpush1.bf16.msra.mxu0 0
        %5279 = vmatprep.subr.bf16.mxu0 0
        %5280 = vmatpush1.bf16.msra.mxu0 0
        %5281 = vmatprep.subr.bf16.mxu0 0
        %5282 = vmatpush1.bf16.msra.mxu0 0
        %5283 = vmatprep.subr.bf16.mxu0 0
        %5284 = vmatpush1.bf16.msra.mxu0 0
        %5285 = vmatprep.subr.bf16.mxu0 0
        %5286 = vmatpush1.bf16.msra.mxu0 0
        %5287 = vmatprep.subr.bf16.mxu0 0
        %5288 = vmatpush1.bf16.msra.mxu0 0
        %5289 = vmatprep.subr.bf16.mxu0 0
        %5290 = vmatpush1.bf16.msra.mxu0 0
        %5291 = vmatprep.mubr.bf16.mxu0 0
        %5292 = vmatmul.mubr.bf16.gmra.mrb[0].mxu0 %v5254
        %v5293 = vpop.f32.mrb[0].mxu0
        %v5294 = vadd.f32 0.0, %v5293
        %v5295 = vpop.f32.mrb[0].mxu0
        %v5296 = vpop.f32.mrb[0].mxu0
        %v5297 = vpop.f32.mrb[0].mxu0
        %5298 = vdwg.mxu0
        %5299 = vrot.lane.b32.xlu0 %v5050, 80
        %v5300 = vpop.permute.xlu0 %5299
        %v5302 = vsel %vm1464, %v5154, 0
        %v5305 = vsel %vm1716, %v5300, 0
        %5307 = vmatprep.subr.bf16.mxu0 0
        %5308 = vmatpush1.bf16.msra.mxu0 %v5305
        %5309 = vmatprep.subr.bf16.mxu0 0
        %5310 = vmatpush1.bf16.msra.mxu0 0
        %5311 = vmatprep.subr.bf16.mxu0 0
        %5312 = vmatpush1.bf16.msra.mxu0 0
        %5313 = vmatprep.subr.bf16.mxu0 0
        %5314 = vmatpush1.bf16.msra.mxu0 0
        %5315 = vmatprep.subr.bf16.mxu0 0
        %5316 = vmatpush1.bf16.msra.mxu0 0
        %5317 = vmatprep.subr.bf16.mxu0 0
        %5318 = vmatpush1.bf16.msra.mxu0 0
        %5319 = vmatprep.subr.bf16.mxu0 0
        %5320 = vmatpush1.bf16.msra.mxu0 0
        %5321 = vmatprep.subr.bf16.mxu0 0
        %5322 = vmatpush1.bf16.msra.mxu0 0
        %5323 = vmatprep.subr.bf16.mxu0 0
        %5324 = vmatpush1.bf16.msra.mxu0 0
        %5325 = vmatprep.subr.bf16.mxu0 0
        %5326 = vmatpush1.bf16.msra.mxu0 0
        %5327 = vmatprep.subr.bf16.mxu0 0
        %5328 = vmatpush1.bf16.msra.mxu0 0
        %5329 = vmatprep.subr.bf16.mxu0 0
        %5330 = vmatpush1.bf16.msra.mxu0 0
        %5331 = vmatprep.subr.bf16.mxu0 0
        %5332 = vmatpush1.bf16.msra.mxu0 0
        %5333 = vmatprep.subr.bf16.mxu0 0
        %5334 = vmatpush1.bf16.msra.mxu0 0
        %5335 = vmatprep.subr.bf16.mxu0 0
        %5336 = vmatpush1.bf16.msra.mxu0 0
        %5337 = vmatprep.subr.bf16.mxu0 0
        %5338 = vmatpush1.bf16.msra.mxu0 0
        %5339 = vmatprep.mubr.bf16.mxu0 0
        %5340 = vmatmul.mubr.bf16.gmra.mrb[0].mxu0 %v5302
        %v5341 = vpop.f32.mrb[0].mxu0
        %v5342 = vadd.f32 0.0, %v5341
        %v5343 = vpop.f32.mrb[0].mxu0
        %v5344 = vpop.f32.mrb[0].mxu0
        %v5345 = vpop.f32.mrb[0].mxu0
        %5346 = vdwg.mxu0
        %v5347 = vpack.c.bf16 %v5246, %v5198
        %v5348 = vpack.c.bf16 %v5342, %v5294
        %v5350 = vsel %vm1464, %v5347, 0
        %v5353 = vsel %vm1464, %v5348, 0
        %v5356 = vsel %vm1716, %v3800, 0
        %5358 = vmatprep.subr.bf16.mxu0 0
        %5359 = vmatpush1.bf16.msra.mxu0 %v5356
        %5360 = vmatprep.subr.bf16.mxu0 0
        %5361 = vmatpush1.bf16.msra.mxu0 0
        %5362 = vmatprep.subr.bf16.mxu0 0
        %5363 = vmatpush1.bf16.msra.mxu0 0
        %5364 = vmatprep.subr.bf16.mxu0 0
        %5365 = vmatpush1.bf16.msra.mxu0 0
        %5366 = vmatprep.subr.bf16.mxu0 0
        %5367 = vmatpush1.bf16.msra.mxu0 0
        %5368 = vmatprep.subr.bf16.mxu0 0
        %5369 = vmatpush1.bf16.msra.mxu0 0
        %5370 = vmatprep.subr.bf16.mxu0 0
        %5371 = vmatpush1.bf16.msra.mxu0 0
        %5372 = vmatprep.subr.bf16.mxu0 0
        %5373 = vmatpush1.bf16.msra.mxu0 0
        %5374 = vmatprep.subr.bf16.mxu0 0
        %5375 = vmatpush1.bf16.msra.mxu0 0
        %5376 = vmatprep.subr.bf16.mxu0 0
        %5377 = vmatpush1.bf16.msra.mxu0 0
        %5378 = vmatprep.subr.bf16.mxu0 0
        %5379 = vmatpush1.bf16.msra.mxu0 0
        %5380 = vmatprep.subr.bf16.mxu0 0
        %5381 = vmatpush1.bf16.msra.mxu0 0
        %5382 = vmatprep.subr.bf16.mxu0 0
        %5383 = vmatpush1.bf16.msra.mxu0 0
        %5384 = vmatprep.subr.bf16.mxu0 0
        %5385 = vmatpush1.bf16.msra.mxu0 0
        %5386 = vmatprep.subr.bf16.mxu0 0
        %5387 = vmatpush1.bf16.msra.mxu0 0
        %5388 = vmatprep.subr.bf16.mxu0 0
        %5389 = vmatpush1.bf16.msra.mxu0 0
        %5390 = vmatprep.mubr.bf16.mxu0 0
        %5391 = vmatmul.mubr.bf16.gmra.mrb[0].mxu0 %v5350
        %v5392 = vpop.f32.mrb[0].mxu0
        %v5393 = vadd.f32 0.0, %v5392
        %v5394 = vpop.f32.mrb[0].mxu0
        %v5395 = vpop.f32.mrb[0].mxu0
        %v5396 = vadd.f32 0.0, %v5395
        %v5397 = vpop.f32.mrb[0].mxu0
        %5398 = vmatprep.mubr.bf16.mxu0 0
        %5399 = vmatmul.mubr.bf16.gmra.mrb[0].mxu0 %v5353
        %v5400 = vpop.f32.mrb[0].mxu0
        %v5401 = vadd.f32 0.0, %v5400
        %v5402 = vpop.f32.mrb[0].mxu0
        %v5403 = vpop.f32.mrb[0].mxu0
        %v5404 = vadd.f32 0.0, %v5403
        %v5405 = vpop.f32.mrb[0].mxu0
        %5406 = vdwg.mxu0
        %v5407 = vadd.f32 %v4861, %v5393
        %v5408 = vadd.f32 %v4864, %v5396
        %v5409 = vadd.f32 %v4869, %v5401
        %v5410 = vadd.f32 %v4872, %v5404
        %v5411 = vld [vmem:[#allocation4] sm:$0xff]
        %v5412 = vld [vmem:[#allocation4 + $0x8] sm:$0xff]
        %v5415 = vunpack.c.l.b16 %v5411
        %v5416 = vunpack.c.h.b16 %v5411
        %v5417 = vunpack.c.l.b16 %v5412
        %v5418 = vunpack.c.h.b16 %v5412
        %v5419 = vld [vmem:[#allocation5] sm:$0xff]
        %v5420 = vld [vmem:[#allocation5 + $0x8] sm:$0xff]
        %v5423 = vunpack.c.l.b16 %v5419
        %v5424 = vunpack.c.h.b16 %v5419
        %v5425 = vunpack.c.l.b16 %v5420
        %v5426 = vunpack.c.h.b16 %v5420
        %v5427 = vpack.c.b16 %v5415, %v5415
        %5428 = vrot.lane.b32.xlu0 %v5427, 104
        %v5429 = vpop.permute.xlu0 %5428
        %v5430 = vpack.c.b16 %v5423, %v5423
        %5431 = vrot.lane.b32.xlu0 %v5430, 104
        %v5432 = vpop.permute.xlu0 %5431
        %v5434 = vsel %vm1464, %v5429, 0
        %v5437 = vsel %vm1464, %v5432, 0
        %5439 = vmatprep.subr.bf16.mxu0 0
        %5440 = vmatpush1.bf16.xpose.msra.mxu0 %v5437
        %5441 = vmatprep.subr.bf16.mxu0 0
        %5442 = vmatpush1.bf16.xpose.msra.mxu0 0
        %5443 = vmatprep.subr.bf16.mxu0 0
        %5444 = vmatpush1.bf16.xpose.msra.mxu0 0
        %5445 = vmatprep.subr.bf16.mxu0 0
        %5446 = vmatpush1.bf16.xpose.msra.mxu0 0
        %5447 = vmatprep.subr.bf16.mxu0 0
        %5448 = vmatpush1.bf16.xpose.msra.mxu0 0
        %5449 = vmatprep.subr.bf16.mxu0 0
        %5450 = vmatpush1.bf16.xpose.msra.mxu0 0
        %5451 = vmatprep.subr.bf16.mxu0 0
        %5452 = vmatpush1.bf16.xpose.msra.mxu0 0
        %5453 = vmatprep.subr.bf16.mxu0 0
        %5454 = vmatpush1.bf16.xpose.msra.mxu0 0
        %5455 = vmatprep.subr.bf16.mxu0 0
        %5456 = vmatpush1.bf16.xpose.msra.mxu0 0
        %5457 = vmatprep.subr.bf16.mxu0 0
        %5458 = vmatpush1.bf16.xpose.msra.mxu0 0
        %5459 = vmatprep.subr.bf16.mxu0 0
        %5460 = vmatpush1.bf16.xpose.msra.mxu0 0
        %5461 = vmatprep.subr.bf16.mxu0 0
        %5462 = vmatpush1.bf16.xpose.msra.mxu0 0
        %5463 = vmatprep.subr.bf16.mxu0 0
        %5464 = vmatpush1.bf16.xpose.msra.mxu0 0
        %5465 = vmatprep.subr.bf16.mxu0 0
        %5466 = vmatpush1.bf16.xpose.msra.mxu0 0
        %5467 = vmatprep.subr.bf16.mxu0 0
        %5468 = vmatpush1.bf16.xpose.msra.mxu0 0
        %5469 = vmatprep.subr.bf16.mxu0 0
        %5470 = vmatpush1.bf16.xpose.msra.mxu0 0
        %5471 = vmatprep.mubr.bf16.mxu0 0
        %5472 = vmatmul.mubr.bf16.gmra.mrb[0].mxu0 %v5434
        %v5473 = vpop.f32.mrb[0].mxu0
        %v5474 = vadd.f32 0.0, %v5473
        %v5475 = vpop.f32.mrb[0].mxu0
        %v5476 = vpop.f32.mrb[0].mxu0
        %v5477 = vpop.f32.mrb[0].mxu0
        %5478 = vdwg.mxu0
        %v5479 = vpack.c.b16 %v5416, %v5416
        %5480 = vrot.lane.b32.xlu0 %v5479, 104
        %v5481 = vpop.permute.xlu0 %5480
        %v5482 = vpack.c.b16 %v5424, %v5424
        %5483 = vrot.lane.b32.xlu0 %v5482, 104
        %v5484 = vpop.permute.xlu0 %5483
        %v5486 = vsel %vm1464, %v5481, 0
        %v5489 = vsel %vm1464, %v5484, 0
        %5491 = vmatprep.subr.bf16.mxu0 0
        %5492 = vmatpush1.bf16.xpose.msra.mxu0 %v5489
        %5493 = vmatprep.subr.bf16.mxu0 0
        %5494 = vmatpush1.bf16.xpose.msra.mxu0 0
        %5495 = vmatprep.subr.bf16.mxu0 0
        %5496 = vmatpush1.bf16.xpose.msra.mxu0 0
        %5497 = vmatprep.subr.bf16.mxu0 0
        %5498 = vmatpush1.bf16.xpose.msra.mxu0 0
        %5499 = vmatprep.subr.bf16.mxu0 0
        %5500 = vmatpush1.bf16.xpose.msra.mxu0 0
        %5501 = vmatprep.subr.bf16.mxu0 0
        %5502 = vmatpush1.bf16.xpose.msra.mxu0 0
        %5503 = vmatprep.subr.bf16.mxu0 0
        %5504 = vmatpush1.bf16.xpose.msra.mxu0 0
        %5505 = vmatprep.subr.bf16.mxu0 0
        %5506 = vmatpush1.bf16.xpose.msra.mxu0 0
        %5507 = vmatprep.subr.bf16.mxu0 0
        %5508 = vmatpush1.bf16.xpose.msra.mxu0 0
        %5509 = vmatprep.subr.bf16.mxu0 0
        %5510 = vmatpush1.bf16.xpose.msra.mxu0 0
        %5511 = vmatprep.subr.bf16.mxu0 0
        %5512 = vmatpush1.bf16.xpose.msra.mxu0 0
        %5513 = vmatprep.subr.bf16.mxu0 0
        %5514 = vmatpush1.bf16.xpose.msra.mxu0 0
        %5515 = vmatprep.subr.bf16.mxu0 0
        %5516 = vmatpush1.bf16.xpose.msra.mxu0 0
        %5517 = vmatprep.subr.bf16.mxu0 0
        %5518 = vmatpush1.bf16.xpose.msra.mxu0 0
        %5519 = vmatprep.subr.bf16.mxu0 0
        %5520 = vmatpush1.bf16.xpose.msra.mxu0 0
        %5521 = vmatprep.subr.bf16.mxu0 0
        %5522 = vmatpush1.bf16.xpose.msra.mxu0 0
        %5523 = vmatprep.mubr.bf16.mxu0 0
        %5524 = vmatmul.mubr.bf16.gmra.mrb[0].mxu0 %v5486
        %v5525 = vpop.f32.mrb[0].mxu0
        %v5526 = vadd.f32 0.0, %v5525
        %v5527 = vpop.f32.mrb[0].mxu0
        %v5528 = vpop.f32.mrb[0].mxu0
        %v5529 = vpop.f32.mrb[0].mxu0
        %5530 = vdwg.mxu0
        %v5531 = vpack.c.b16 %v5417, %v5417
        %5532 = vrot.lane.b32.xlu0 %v5531, 104
        %v5533 = vpop.permute.xlu0 %5532
        %v5534 = vpack.c.b16 %v5425, %v5425
        %5535 = vrot.lane.b32.xlu0 %v5534, 104
        %v5536 = vpop.permute.xlu0 %5535
        %v5538 = vsel %vm1464, %v5533, 0
        %v5541 = vsel %vm1464, %v5536, 0
        %5543 = vmatprep.subr.bf16.mxu0 0
        %5544 = vmatpush1.bf16.xpose.msra.mxu0 %v5541
        %5545 = vmatprep.subr.bf16.mxu0 0
        %5546 = vmatpush1.bf16.xpose.msra.mxu0 0
        %5547 = vmatprep.subr.bf16.mxu0 0
        %5548 = vmatpush1.bf16.xpose.msra.mxu0 0
        %5549 = vmatprep.subr.bf16.mxu0 0
        %5550 = vmatpush1.bf16.xpose.msra.mxu0 0
        %5551 = vmatprep.subr.bf16.mxu0 0
        %5552 = vmatpush1.bf16.xpose.msra.mxu0 0
        %5553 = vmatprep.subr.bf16.mxu0 0
        %5554 = vmatpush1.bf16.xpose.msra.mxu0 0
        %5555 = vmatprep.subr.bf16.mxu0 0
        %5556 = vmatpush1.bf16.xpose.msra.mxu0 0
        %5557 = vmatprep.subr.bf16.mxu0 0
        %5558 = vmatpush1.bf16.xpose.msra.mxu0 0
        %5559 = vmatprep.subr.bf16.mxu0 0
        %5560 = vmatpush1.bf16.xpose.msra.mxu0 0
        %5561 = vmatprep.subr.bf16.mxu0 0
        %5562 = vmatpush1.bf16.xpose.msra.mxu0 0
        %5563 = vmatprep.subr.bf16.mxu0 0
        %5564 = vmatpush1.bf16.xpose.msra.mxu0 0
        %5565 = vmatprep.subr.bf16.mxu0 0
        %5566 = vmatpush1.bf16.xpose.msra.mxu0 0
        %5567 = vmatprep.subr.bf16.mxu0 0
        %5568 = vmatpush1.bf16.xpose.msra.mxu0 0
        %5569 = vmatprep.subr.bf16.mxu0 0
        %5570 = vmatpush1.bf16.xpose.msra.mxu0 0
        %5571 = vmatprep.subr.bf16.mxu0 0
        %5572 = vmatpush1.bf16.xpose.msra.mxu0 0
        %5573 = vmatprep.subr.bf16.mxu0 0
        %5574 = vmatpush1.bf16.xpose.msra.mxu0 0
        %5575 = vmatprep.mubr.bf16.mxu0 0
        %5576 = vmatmul.mubr.bf16.gmra.mrb[0].mxu0 %v5538
        %v5577 = vpop.f32.mrb[0].mxu0
        %v5578 = vadd.f32 0.0, %v5577
        %v5579 = vpop.f32.mrb[0].mxu0
        %v5580 = vpop.f32.mrb[0].mxu0
        %v5581 = vpop.f32.mrb[0].mxu0
        %5582 = vdwg.mxu0
        %v5583 = vpack.c.b16 %v5418, %v5418
        %5584 = vrot.lane.b32.xlu0 %v5583, 104
        %v5585 = vpop.permute.xlu0 %5584
        %v5586 = vpack.c.b16 %v5426, %v5426
        %5587 = vrot.lane.b32.xlu0 %v5586, 104
        %v5588 = vpop.permute.xlu0 %5587
        %v5590 = vsel %vm1464, %v5585, 0
        %v5593 = vsel %vm1464, %v5588, 0
        %5595 = vmatprep.subr.bf16.mxu0 0
        %5596 = vmatpush1.bf16.xpose.msra.mxu0 %v5593
        %5597 = vmatprep.subr.bf16.mxu0 0
        %5598 = vmatpush1.bf16.xpose.msra.mxu0 0
        %5599 = vmatprep.subr.bf16.mxu0 0
        %5600 = vmatpush1.bf16.xpose.msra.mxu0 0
        %5601 = vmatprep.subr.bf16.mxu0 0
        %5602 = vmatpush1.bf16.xpose.msra.mxu0 0
        %5603 = vmatprep.subr.bf16.mxu0 0
        %5604 = vmatpush1.bf16.xpose.msra.mxu0 0
        %5605 = vmatprep.subr.bf16.mxu0 0
        %5606 = vmatpush1.bf16.xpose.msra.mxu0 0
        %5607 = vmatprep.subr.bf16.mxu0 0
        %5608 = vmatpush1.bf16.xpose.msra.mxu0 0
        %5609 = vmatprep.subr.bf16.mxu0 0
        %5610 = vmatpush1.bf16.xpose.msra.mxu0 0
        %5611 = vmatprep.subr.bf16.mxu0 0
        %5612 = vmatpush1.bf16.xpose.msra.mxu0 0
        %5613 = vmatprep.subr.bf16.mxu0 0
        %5614 = vmatpush1.bf16.xpose.msra.mxu0 0
        %5615 = vmatprep.subr.bf16.mxu0 0
        %5616 = vmatpush1.bf16.xpose.msra.mxu0 0
        %5617 = vmatprep.subr.bf16.mxu0 0
        %5618 = vmatpush1.bf16.xpose.msra.mxu0 0
        %5619 = vmatprep.subr.bf16.mxu0 0
        %5620 = vmatpush1.bf16.xpose.msra.mxu0 0
        %5621 = vmatprep.subr.bf16.mxu0 0
        %5622 = vmatpush1.bf16.xpose.msra.mxu0 0
        %5623 = vmatprep.subr.bf16.mxu0 0
        %5624 = vmatpush1.bf16.xpose.msra.mxu0 0
        %5625 = vmatprep.subr.bf16.mxu0 0
        %5626 = vmatpush1.bf16.xpose.msra.mxu0 0
        %5627 = vmatprep.mubr.bf16.mxu0 0
        %5628 = vmatmul.mubr.bf16.gmra.mrb[0].mxu0 %v5590
        %v5629 = vpop.f32.mrb[0].mxu0
        %v5630 = vadd.f32 0.0, %v5629
        %v5631 = vpop.f32.mrb[0].mxu0
        %v5632 = vpop.f32.mrb[0].mxu0
        %v5633 = vpop.f32.mrb[0].mxu0
        %5634 = vdwg.mxu0
        %v5635 = vmul.f32 %v5474, 0.35355338
        %v5636 = vmul.f32 %v5526, 0.35355338
        %v5637 = vmul.f32 %v5578, 0.35355338
        %v5638 = vmul.f32 %v5630, 0.35355338
        %v5639 = vadd.f32 %v5635, %v4022
        %v5640 = vadd.f32 %v5636, %v4026
        %v5641 = vadd.f32 %v5637, %v4030
        %v5642 = vadd.f32 %v5638, %v4034
        %v5643 = vsel %vm1464, %v5639, -inf
        %5644 = vmax.xlane.f32.xlu0 %v5643
        %v5645 = vpop.xlane.xlu0 %5644
        %v5646 = vsel %vm1464, %v5640, -inf
        %5647 = vmax.xlane.f32.xlu0 %v5646
        %v5648 = vpop.xlane.xlu0 %5647
        %v5649 = vsel %vm1464, %v5641, -inf
        %5650 = vmax.xlane.f32.xlu0 %v5649
        %v5651 = vpop.xlane.xlu0 %5650
        %v5652 = vsel %vm1464, %v5642, -inf
        %5653 = vmax.xlane.f32.xlu0 %v5652
        %v5654 = vpop.xlane.xlu0 %5653
        %v5655 = vsub.f32 %v5639, %v5645
        %v5656 = vsub.f32 %v5640, %v5648
        %v5657 = vsub.f32 %v5641, %v5651
        %v5658 = vsub.f32 %v5642, %v5654
        %v5659 = vmul.f32 %v5655, 1.442695
        %v5660 = vpow.pop %v5659
        %v5661 = vmul.f32 %v5656, 1.442695
        %v5662 = vpow.pop %v5661
        %v5663 = vmul.f32 %v5657, 1.442695
        %v5664 = vpow.pop %v5663
        %v5665 = vmul.f32 %v5658, 1.442695
        %v5666 = vpow.pop %v5665
        %v5667 = vsel %vm1464, %v5660, 0.0
        %5668 = vadd.xlane.f32.xlu0 %v5667
        %v5669 = vpop.xlane.xlu0 %5668
        %v5670 = vsel %vm1464, %v5662, 0.0
        %5671 = vadd.xlane.f32.xlu0 %v5670
        %v5672 = vpop.xlane.xlu0 %5671
        %v5673 = vsel %vm1464, %v5664, 0.0
        %5674 = vadd.xlane.f32.xlu0 %v5673
        %v5675 = vpop.xlane.xlu0 %5674
        %v5676 = vsel %vm1464, %v5666, 0.0
        %5677 = vadd.xlane.f32.xlu0 %v5676
        %v5678 = vpop.xlane.xlu0 %5677
        %v5679 = vrcp.pop %v5669
        %v5680 = vrcp.pop %v5672
        %v5681 = vrcp.pop %v5675
        %v5682 = vrcp.pop %v5678
        %v5683 = vmul.f32 %v5660, %v5679
        %v5684 = vmul.f32 %v5662, %v5680
        %v5685 = vmul.f32 %v5664, %v5681
        %v5686 = vmul.f32 %v5666, %v5682
        %v5687 = vpack.c.bf16 %v5683, %v5683
        %v5688 = vpack.c.bf16 %v5684, %v5684
        %v5689 = vpack.c.bf16 %v5685, %v5685
        %v5690 = vpack.c.bf16 %v5686, %v5686
        %5691 = vrot.lane.b32.xlu0 %v5430, 72
        %v5692 = vpop.permute.xlu0 %5691
        %v5694 = vsel %vm1464, %v5687, 0
        %v5697 = vsel %vm1716, %v5692, 0
        %5699 = vmatprep.subr.bf16.mxu0 0
        %5700 = vmatpush1.bf16.msra.mxu0 %v5697
        %5701 = vmatprep.subr.bf16.mxu0 0
        %5702 = vmatpush1.bf16.msra.mxu0 0
        %5703 = vmatprep.subr.bf16.mxu0 0
        %5704 = vmatpush1.bf16.msra.mxu0 0
        %5705 = vmatprep.subr.bf16.mxu0 0
        %5706 = vmatpush1.bf16.msra.mxu0 0
        %5707 = vmatprep.subr.bf16.mxu0 0
        %5708 = vmatpush1.bf16.msra.mxu0 0
        %5709 = vmatprep.subr.bf16.mxu0 0
        %5710 = vmatpush1.bf16.msra.mxu0 0
        %5711 = vmatprep.subr.bf16.mxu0 0
        %5712 = vmatpush1.bf16.msra.mxu0 0
        %5713 = vmatprep.subr.bf16.mxu0 0
        %5714 = vmatpush1.bf16.msra.mxu0 0
        %5715 = vmatprep.subr.bf16.mxu0 0
        %5716 = vmatpush1.bf16.msra.mxu0 0
        %5717 = vmatprep.subr.bf16.mxu0 0
        %5718 = vmatpush1.bf16.msra.mxu0 0
        %5719 = vmatprep.subr.bf16.mxu0 0
        %5720 = vmatpush1.bf16.msra.mxu0 0
        %5721 = vmatprep.subr.bf16.mxu0 0
        %5722 = vmatpush1.bf16.msra.mxu0 0
        %5723 = vmatprep.subr.bf16.mxu0 0
        %5724 = vmatpush1.bf16.msra.mxu0 0
        %5725 = vmatprep.subr.bf16.mxu0 0
        %5726 = vmatpush1.bf16.msra.mxu0 0
        %5727 = vmatprep.subr.bf16.mxu0 0
        %5728 = vmatpush1.bf16.msra.mxu0 0
        %5729 = vmatprep.subr.bf16.mxu0 0
        %5730 = vmatpush1.bf16.msra.mxu0 0
        %5731 = vmatprep.mubr.bf16.mxu0 0
        %5732 = vmatmul.mubr.bf16.gmra.mrb[0].mxu0 %v5694
        %v5733 = vpop.f32.mrb[0].mxu0
        %v5734 = vadd.f32 0.0, %v5733
        %v5735 = vpop.f32.mrb[0].mxu0
        %v5736 = vpop.f32.mrb[0].mxu0
        %v5737 = vpop.f32.mrb[0].mxu0
        %5738 = vdwg.mxu0
        %5739 = vrot.lane.b32.xlu0 %v5482, 72
        %v5740 = vpop.permute.xlu0 %5739
        %v5742 = vsel %vm1464, %v5688, 0
        %v5745 = vsel %vm1716, %v5740, 0
        %5747 = vmatprep.subr.bf16.mxu0 0
        %5748 = vmatpush1.bf16.msra.mxu0 %v5745
        %5749 = vmatprep.subr.bf16.mxu0 0
        %5750 = vmatpush1.bf16.msra.mxu0 0
        %5751 = vmatprep.subr.bf16.mxu0 0
        %5752 = vmatpush1.bf16.msra.mxu0 0
        %5753 = vmatprep.subr.bf16.mxu0 0
        %5754 = vmatpush1.bf16.msra.mxu0 0
        %5755 = vmatprep.subr.bf16.mxu0 0
        %5756 = vmatpush1.bf16.msra.mxu0 0
        %5757 = vmatprep.subr.bf16.mxu0 0
        %5758 = vmatpush1.bf16.msra.mxu0 0
        %5759 = vmatprep.subr.bf16.mxu0 0
        %5760 = vmatpush1.bf16.msra.mxu0 0
        %5761 = vmatprep.subr.bf16.mxu0 0
        %5762 = vmatpush1.bf16.msra.mxu0 0
        %5763 = vmatprep.subr.bf16.mxu0 0
        %5764 = vmatpush1.bf16.msra.mxu0 0
        %5765 = vmatprep.subr.bf16.mxu0 0
        %5766 = vmatpush1.bf16.msra.mxu0 0
        %5767 = vmatprep.subr.bf16.mxu0 0
        %5768 = vmatpush1.bf16.msra.mxu0 0
        %5769 = vmatprep.subr.bf16.mxu0 0
        %5770 = vmatpush1.bf16.msra.mxu0 0
        %5771 = vmatprep.subr.bf16.mxu0 0
        %5772 = vmatpush1.bf16.msra.mxu0 0
        %5773 = vmatprep.subr.bf16.mxu0 0
        %5774 = vmatpush1.bf16.msra.mxu0 0
        %5775 = vmatprep.subr.bf16.mxu0 0
        %5776 = vmatpush1.bf16.msra.mxu0 0
        %5777 = vmatprep.subr.bf16.mxu0 0
        %5778 = vmatpush1.bf16.msra.mxu0 0
        %5779 = vmatprep.mubr.bf16.mxu0 0
        %5780 = vmatmul.mubr.bf16.gmra.mrb[0].mxu0 %v5742
        %v5781 = vpop.f32.mrb[0].mxu0
        %v5782 = vadd.f32 0.0, %v5781
        %v5783 = vpop.f32.mrb[0].mxu0
        %v5784 = vpop.f32.mrb[0].mxu0
        %v5785 = vpop.f32.mrb[0].mxu0
        %5786 = vdwg.mxu0
        %5787 = vrot.lane.b32.xlu0 %v5534, 72
        %v5788 = vpop.permute.xlu0 %5787
        %v5790 = vsel %vm1464, %v5689, 0
        %v5793 = vsel %vm1716, %v5788, 0
        %5795 = vmatprep.subr.bf16.mxu0 0
        %5796 = vmatpush1.bf16.msra.mxu0 %v5793
        %5797 = vmatprep.subr.bf16.mxu0 0
        %5798 = vmatpush1.bf16.msra.mxu0 0
        %5799 = vmatprep.subr.bf16.mxu0 0
        %5800 = vmatpush1.bf16.msra.mxu0 0
        %5801 = vmatprep.subr.bf16.mxu0 0
        %5802 = vmatpush1.bf16.msra.mxu0 0
        %5803 = vmatprep.subr.bf16.mxu0 0
        %5804 = vmatpush1.bf16.msra.mxu0 0
        %5805 = vmatprep.subr.bf16.mxu0 0
        %5806 = vmatpush1.bf16.msra.mxu0 0
        %5807 = vmatprep.subr.bf16.mxu0 0
        %5808 = vmatpush1.bf16.msra.mxu0 0
        %5809 = vmatprep.subr.bf16.mxu0 0
        %5810 = vmatpush1.bf16.msra.mxu0 0
        %5811 = vmatprep.subr.bf16.mxu0 0
        %5812 = vmatpush1.bf16.msra.mxu0 0
        %5813 = vmatprep.subr.bf16.mxu0 0
        %5814 = vmatpush1.bf16.msra.mxu0 0
        %5815 = vmatprep.subr.bf16.mxu0 0
        %5816 = vmatpush1.bf16.msra.mxu0 0
        %5817 = vmatprep.subr.bf16.mxu0 0
        %5818 = vmatpush1.bf16.msra.mxu0 0
        %5819 = vmatprep.subr.bf16.mxu0 0
        %5820 = vmatpush1.bf16.msra.mxu0 0
        %5821 = vmatprep.subr.bf16.mxu0 0
        %5822 = vmatpush1.bf16.msra.mxu0 0
        %5823 = vmatprep.subr.bf16.mxu0 0
        %5824 = vmatpush1.bf16.msra.mxu0 0
        %5825 = vmatprep.subr.bf16.mxu0 0
        %5826 = vmatpush1.bf16.msra.mxu0 0
        %5827 = vmatprep.mubr.bf16.mxu0 0
        %5828 = vmatmul.mubr.bf16.gmra.mrb[0].mxu0 %v5790
        %v5829 = vpop.f32.mrb[0].mxu0
        %v5830 = vadd.f32 0.0, %v5829
        %v5831 = vpop.f32.mrb[0].mxu0
        %v5832 = vpop.f32.mrb[0].mxu0
        %v5833 = vpop.f32.mrb[0].mxu0
        %5834 = vdwg.mxu0
        %5835 = vrot.lane.b32.xlu0 %v5586, 72
        %v5836 = vpop.permute.xlu0 %5835
        %v5838 = vsel %vm1464, %v5690, 0
        %v5841 = vsel %vm1716, %v5836, 0
        %5843 = vmatprep.subr.bf16.mxu0 0
        %5844 = vmatpush1.bf16.msra.mxu0 %v5841
        %5845 = vmatprep.subr.bf16.mxu0 0
        %5846 = vmatpush1.bf16.msra.mxu0 0
        %5847 = vmatprep.subr.bf16.mxu0 0
        %5848 = vmatpush1.bf16.msra.mxu0 0
        %5849 = vmatprep.subr.bf16.mxu0 0
        %5850 = vmatpush1.bf16.msra.mxu0 0
        %5851 = vmatprep.subr.bf16.mxu0 0
        %5852 = vmatpush1.bf16.msra.mxu0 0
        %5853 = vmatprep.subr.bf16.mxu0 0
        %5854 = vmatpush1.bf16.msra.mxu0 0
        %5855 = vmatprep.subr.bf16.mxu0 0
        %5856 = vmatpush1.bf16.msra.mxu0 0
        %5857 = vmatprep.subr.bf16.mxu0 0
        %5858 = vmatpush1.bf16.msra.mxu0 0
        %5859 = vmatprep.subr.bf16.mxu0 0
        %5860 = vmatpush1.bf16.msra.mxu0 0
        %5861 = vmatprep.subr.bf16.mxu0 0
        %5862 = vmatpush1.bf16.msra.mxu0 0
        %5863 = vmatprep.subr.bf16.mxu0 0
        %5864 = vmatpush1.bf16.msra.mxu0 0
        %5865 = vmatprep.subr.bf16.mxu0 0
        %5866 = vmatpush1.bf16.msra.mxu0 0
        %5867 = vmatprep.subr.bf16.mxu0 0
        %5868 = vmatpush1.bf16.msra.mxu0 0
        %5869 = vmatprep.subr.bf16.mxu0 0
        %5870 = vmatpush1.bf16.msra.mxu0 0
        %5871 = vmatprep.subr.bf16.mxu0 0
        %5872 = vmatpush1.bf16.msra.mxu0 0
        %5873 = vmatprep.subr.bf16.mxu0 0
        %5874 = vmatpush1.bf16.msra.mxu0 0
        %5875 = vmatprep.mubr.bf16.mxu0 0
        %5876 = vmatmul.mubr.bf16.gmra.mrb[0].mxu0 %v5838
        %v5877 = vpop.f32.mrb[0].mxu0
        %v5878 = vadd.f32 0.0, %v5877
        %v5879 = vpop.f32.mrb[0].mxu0
        %v5880 = vpop.f32.mrb[0].mxu0
        %v5881 = vpop.f32.mrb[0].mxu0
        %5882 = vdwg.mxu0
        %v5883 = vpack.c.bf16 %v5782, %v5734
        %v5884 = vpack.c.bf16 %v5878, %v5830
        %v5886 = vsel %vm1464, %v5883, 0
        %v5889 = vsel %vm1464, %v5884, 0
        %v5892 = vsel %vm1716, %v3801, 0
        %5894 = vmatprep.subr.bf16.mxu0 0
        %5895 = vmatpush1.bf16.msra.mxu0 %v5892
        %5896 = vmatprep.subr.bf16.mxu0 0
        %5897 = vmatpush1.bf16.msra.mxu0 0
        %5898 = vmatprep.subr.bf16.mxu0 0
        %5899 = vmatpush1.bf16.msra.mxu0 0
        %5900 = vmatprep.subr.bf16.mxu0 0
        %5901 = vmatpush1.bf16.msra.mxu0 0
        %5902 = vmatprep.subr.bf16.mxu0 0
        %5903 = vmatpush1.bf16.msra.mxu0 0
        %5904 = vmatprep.subr.bf16.mxu0 0
        %5905 = vmatpush1.bf16.msra.mxu0 0
        %5906 = vmatprep.subr.bf16.mxu0 0
        %5907 = vmatpush1.bf16.msra.mxu0 0
        %5908 = vmatprep.subr.bf16.mxu0 0
        %5909 = vmatpush1.bf16.msra.mxu0 0
        %5910 = vmatprep.subr.bf16.mxu0 0
        %5911 = vmatpush1.bf16.msra.mxu0 0
        %5912 = vmatprep.subr.bf16.mxu0 0
        %5913 = vmatpush1.bf16.msra.mxu0 0
        %5914 = vmatprep.subr.bf16.mxu0 0
        %5915 = vmatpush1.bf16.msra.mxu0 0
        %5916 = vmatprep.subr.bf16.mxu0 0
        %5917 = vmatpush1.bf16.msra.mxu0 0
        %5918 = vmatprep.subr.bf16.mxu0 0
        %5919 = vmatpush1.bf16.msra.mxu0 0
        %5920 = vmatprep.subr.bf16.mxu0 0
        %5921 = vmatpush1.bf16.msra.mxu0 0
        %5922 = vmatprep.subr.bf16.mxu0 0
        %5923 = vmatpush1.bf16.msra.mxu0 0
        %5924 = vmatprep.subr.bf16.mxu0 0
        %5925 = vmatpush1.bf16.msra.mxu0 0
        %5926 = vmatprep.mubr.bf16.mxu0 0
        %5927 = vmatmul.mubr.bf16.gmra.mrb[0].mxu0 %v5886
        %v5928 = vpop.f32.mrb[0].mxu0
        %v5929 = vadd.f32 0.0, %v5928
        %v5930 = vpop.f32.mrb[0].mxu0
        %v5931 = vpop.f32.mrb[0].mxu0
        %v5932 = vadd.f32 0.0, %v5931
        %v5933 = vpop.f32.mrb[0].mxu0
        %5934 = vmatprep.mubr.bf16.mxu0 0
        %5935 = vmatmul.mubr.bf16.gmra.mrb[0].mxu0 %v5889
        %v5936 = vpop.f32.mrb[0].mxu0
        %v5937 = vadd.f32 0.0, %v5936
        %v5938 = vpop.f32.mrb[0].mxu0
        %v5939 = vpop.f32.mrb[0].mxu0
        %v5940 = vadd.f32 0.0, %v5939
        %v5941 = vpop.f32.mrb[0].mxu0
        %5942 = vdwg.mxu0
        %v5943 = vadd.f32 %v5407, %v5929
        %v5944 = vadd.f32 %v5408, %v5932
        %v5945 = vadd.f32 %v5409, %v5937
        %v5946 = vadd.f32 %v5410, %v5940
        %v5948 = vlaneseq
        %v5949 = vshrl.u32 %v5948, 7
        %v5950 = vsub.s32 0, %v5949
        %v5951 = vrot.slane %v3802, %v5950
        %v5953 = vadd.f32 %v5943, %v5951
        %v5954 = vadd.f32 %v5944, %v5951
        %v5955 = vadd.f32 %v5945, %v5951
        %v5956 = vadd.f32 %v5946, %v5951
        %v5957 = vadd.f32 %v3617, %v5953
        %v5958 = vadd.f32 %v3618, %v5954
        %v5959 = vadd.f32 %v3619, %v5955
        %v5960 = vadd.f32 %v3620, %v5956
        %v5961 = vld [vmem:[%s1317] sm:$0x1]
        %v5962 = vld [vmem:[%s1320] sm:$0x1]
        %v5963 = vsel %vm1384, %v5957, 0.0
        %5964 = vadd.xlane.f32.xlu0 %v5963
        %v5965 = vpop.xlane.xlu0 %5964
        %v5966 = vsel %vm1384, %v5958, 0.0
        %5967 = vadd.xlane.f32.xlu0 %v5966
        %v5968 = vpop.xlane.xlu0 %5967
        %v5969 = vsel %vm1384, %v5959, 0.0
        %5970 = vadd.xlane.f32.xlu0 %v5969
        %v5971 = vpop.xlane.xlu0 %5970
        %v5972 = vsel %vm1384, %v5960, 0.0
        %5973 = vadd.xlane.f32.xlu0 %v5972
        %v5974 = vpop.xlane.xlu0 %5973
        %v5975 = vmul.f32 %v5965, %v3560
        %v5976 = vmul.f32 %v5968, %v3560
        %v5977 = vmul.f32 %v5971, %v3560
        %v5978 = vmul.f32 %v5974, %v3560
        %v5979 = vsub.f32 %v5957, %v5975
        %v5980 = vsub.f32 %v5958, %v5976
        %v5981 = vsub.f32 %v5959, %v5977
        %v5982 = vsub.f32 %v5960, %v5978
        %v5983 = vmul.f32 %v5979, %v5979
        %v5984 = vmul.f32 %v5980, %v5980
        %v5985 = vmul.f32 %v5981, %v5981
        %v5986 = vmul.f32 %v5982, %v5982
        %v5987 = vsel %vm1384, %v5983, 0.0
        %5988 = vadd.xlane.f32.xlu0 %v5987
        %v5989 = vpop.xlane.xlu0 %5988
        %v5990 = vsel %vm1384, %v5984, 0.0
        %5991 = vadd.xlane.f32.xlu0 %v5990
        %v5992 = vpop.xlane.xlu0 %5991
        %v5993 = vsel %vm1384, %v5985, 0.0
        %5994 = vadd.xlane.f32.xlu0 %v5993
        %v5995 = vpop.xlane.xlu0 %5994
        %v5996 = vsel %vm1384, %v5986, 0.0
        %5997 = vadd.xlane.f32.xlu0 %v5996
        %v5998 = vpop.xlane.xlu0 %5997
        %v5999 = vmul.f32 %v5989, %v3560
        %v6000 = vmul.f32 %v5992, %v3560
        %v6001 = vmul.f32 %v5995, %v3560
        %v6002 = vmul.f32 %v5998, %v3560
        %v6003 = vadd.f32 %v5999, 1e-05
        %v6004 = vadd.f32 %v6000, 1e-05
        %v6005 = vadd.f32 %v6001, 1e-05
        %v6006 = vadd.f32 %v6002, 1e-05
        %v6007 = vrsqrt.pop %v6003
        %v6008 = vrsqrt.pop %v6004
        %v6009 = vrsqrt.pop %v6005
        %v6010 = vrsqrt.pop %v6006
        %v6011 = vmul.f32 %v5979, %v6007
        %v6012 = vmul.f32 %v5980, %v6008
        %v6013 = vmul.f32 %v5981, %v6009
        %v6014 = vmul.f32 %v5982, %v6010
        %v6016 = vlaneseq
        %v6017 = vshrl.u32 %v6016, 7
        %v6018 = vsub.s32 0, %v6017
        %v6019 = vrot.slane %v5961, %v6018
        %v6021 = vmul.f32 %v6011, %v6019
        %v6022 = vmul.f32 %v6012, %v6019
        %v6023 = vmul.f32 %v6013, %v6019
        %v6024 = vmul.f32 %v6014, %v6019
        %v6026 = vlaneseq
        %v6027 = vshrl.u32 %v6026, 7
        %v6028 = vsub.s32 0, %v6027
        %v6029 = vrot.slane %v5962, %v6028
        %v6031 = vadd.f32 %v6021, %v6029
        %v6032 = vadd.f32 %v6022, %v6029
        %v6033 = vadd.f32 %v6023, %v6029
        %v6034 = vadd.f32 %v6024, %v6029
        %v6035 = vpack.c.bf16 %v6032, %v6031
        %v6036 = vpack.c.bf16 %v6034, %v6033
        %v6037 = vld [vmem:[%s1127] sm:$0xf]
        %v6038 = vld [vmem:[%s1127 + $0x4] sm:$0xf]
        %v6039 = vld [vmem:[%s1127 + $0x8] sm:$0xf]
        %v6040 = vld [vmem:[%s1127 + $0xc] sm:$0xf]
        %v6041 = vld [vmem:[%s1300] sm:$0x1]
        %v6043 = vlaneseq
        %v6044 = vshrl.u32 %v6043, 7
        %v6045 = vsub.s32 0, %v6044
        %v6046 = vrot.slane %v6041, %v6045
        %v6052 = vunpack.c.l.b16 %v6037
        %v6053 = vunpack.c.l.b16 %v6038
        %v6054 = vunpack.c.l.b16 %v6039
        %v6055 = vunpack.c.l.b16 %v6040
        %v6056 = vpack.c.b16 %v6053, %v6052
        %v6057 = vpack.c.b16 %v6055, %v6054
        %v6061 = vsel %vm1384, %v6035, 0
        %v6064 = vsel %vm1384, %v6036, 0
        %6066 = vmatprep.subr.bf16.mxu0 0
        %6067 = vmatpush1.bf16.msra.mxu0 %v6056
        %6068 = vmatprep.subr.bf16.mxu0 0
        %6069 = vmatpush1.bf16.msra.mxu0 %v6057
        %6070 = vmatprep.subr.bf16.mxu0 0
        %6071 = vmatpush1.bf16.msra.mxu0 0
        %6072 = vmatprep.subr.bf16.mxu0 0
        %6073 = vmatpush1.bf16.msra.mxu0 0
        %6074 = vmatprep.subr.bf16.mxu0 0
        %6075 = vmatpush1.bf16.msra.mxu0 0
        %6076 = vmatprep.subr.bf16.mxu0 0
        %6077 = vmatpush1.bf16.msra.mxu0 0
        %6078 = vmatprep.subr.bf16.mxu0 0
        %6079 = vmatpush1.bf16.msra.mxu0 0
        %6080 = vmatprep.subr.bf16.mxu0 0
        %6081 = vmatpush1.bf16.msra.mxu0 0
        %6082 = vmatprep.subr.bf16.mxu0 0
        %6083 = vmatpush1.bf16.msra.mxu0 0
        %6084 = vmatprep.subr.bf16.mxu0 0
        %6085 = vmatpush1.bf16.msra.mxu0 0
        %6086 = vmatprep.subr.bf16.mxu0 0
        %6087 = vmatpush1.bf16.msra.mxu0 0
        %6088 = vmatprep.subr.bf16.mxu0 0
        %6089 = vmatpush1.bf16.msra.mxu0 0
        %6090 = vmatprep.subr.bf16.mxu0 0
        %6091 = vmatpush1.bf16.msra.mxu0 0
        %6092 = vmatprep.subr.bf16.mxu0 0
        %6093 = vmatpush1.bf16.msra.mxu0 0
        %6094 = vmatprep.subr.bf16.mxu0 0
        %6095 = vmatpush1.bf16.msra.mxu0 0
        %6096 = vmatprep.subr.bf16.mxu0 0
        %6097 = vmatpush1.bf16.msra.mxu0 0
        %6098 = vmatprep.mubr.bf16.mxu0 0
        %6099 = vmatmul.mubr.bf16.gmra.mrb[0].mxu0 %v6061
        %v6100 = vpop.f32.mrb[0].mxu0
        %v6101 = vadd.f32 %v6046, %v6100
        %v6102 = vpop.f32.mrb[0].mxu0
        %v6103 = vpop.f32.mrb[0].mxu0
        %v6104 = vadd.f32 %v6046, %v6103
        %v6105 = vpop.f32.mrb[0].mxu0
        %6106 = vmatprep.mubr.bf16.mxu0 0
        %6107 = vmatmul.mubr.bf16.gmra.mrb[0].mxu0 %v6064
        %v6108 = vpop.f32.mrb[0].mxu0
        %v6109 = vadd.f32 %v6046, %v6108
        %v6110 = vpop.f32.mrb[0].mxu0
        %v6111 = vpop.f32.mrb[0].mxu0
        %v6112 = vadd.f32 %v6046, %v6111
        %v6113 = vpop.f32.mrb[0].mxu0
        %6114 = vdwg.mxu0
        %v6115 = vmax.f32 %v6101, 0.0
        %v6116 = vmax.f32 %v6104, 0.0
        %v6117 = vmax.f32 %v6109, 0.0
        %v6118 = vmax.f32 %v6112, 0.0
        %v6119 = vpack.c.bf16 %v6116, %v6115
        %v6120 = vpack.c.bf16 %v6118, %v6117
        %v6121 = vld [vmem:[%s1305] sm:$0xf]
        %v6122 = vld [vmem:[%s1305 + $0x4] sm:$0xf]
        %v6123 = vld [vmem:[%s1305 + $0x8] sm:$0xf]
        %v6124 = vld [vmem:[%s1305 + $0xc] sm:$0xf]
        %v6125 = vld [vmem:[%s1305 + $0x10] sm:$0xf]
        %v6126 = vld [vmem:[%s1305 + $0x14] sm:$0xf]
        %v6127 = vld [vmem:[%s1305 + $0x18] sm:$0xf]
        %v6128 = vld [vmem:[%s1305 + $0x1c] sm:$0xf]
        %v6129 = vld [vmem:[%s1308] sm:$0x1]
        %v6131 = vlaneseq
        %v6132 = vshrl.u32 %v6131, 7
        %v6133 = vsub.s32 0, %v6132
        %v6134 = vrot.slane %v6129, %v6133
        %v6144 = vunpack.c.l.b16 %v6121
        %v6145 = vunpack.c.l.b16 %v6122
        %v6146 = vunpack.c.l.b16 %v6123
        %v6147 = vunpack.c.l.b16 %v6124
        %v6148 = vunpack.c.l.b16 %v6125
        %v6149 = vunpack.c.l.b16 %v6126
        %v6150 = vunpack.c.l.b16 %v6127
        %v6151 = vunpack.c.l.b16 %v6128
        %v6152 = vpack.c.b16 %v6145, %v6144
        %v6153 = vpack.c.b16 %v6147, %v6146
        %v6154 = vpack.c.b16 %v6149, %v6148
        %v6155 = vpack.c.b16 %v6151, %v6150
        %v6161 = vsel %vm3795, %v6119, 0
        %v6164 = vsel %vm3795, %v6120, 0
        %6166 = vmatprep.subr.bf16.mxu0 0
        %6167 = vmatpush1.bf16.msra.mxu0 %v6152
        %6168 = vmatprep.subr.bf16.mxu0 0
        %6169 = vmatpush1.bf16.msra.mxu0 %v6153
        %6170 = vmatprep.subr.bf16.mxu0 0
        %6171 = vmatpush1.bf16.msra.mxu0 %v6154
        %6172 = vmatprep.subr.bf16.mxu0 0
        %6173 = vmatpush1.bf16.msra.mxu0 %v6155
        %6174 = vmatprep.subr.bf16.mxu0 0
        %6175 = vmatpush1.bf16.msra.mxu0 0
        %6176 = vmatprep.subr.bf16.mxu0 0
        %6177 = vmatpush1.bf16.msra.mxu0 0
        %6178 = vmatprep.subr.bf16.mxu0 0
        %6179 = vmatpush1.bf16.msra.mxu0 0
        %6180 = vmatprep.subr.bf16.mxu0 0
        %6181 = vmatpush1.bf16.msra.mxu0 0
        %6182 = vmatprep.subr.bf16.mxu0 0
        %6183 = vmatpush1.bf16.msra.mxu0 0
        %6184 = vmatprep.subr.bf16.mxu0 0
        %6185 = vmatpush1.bf16.msra.mxu0 0
        %6186 = vmatprep.subr.bf16.mxu0 0
        %6187 = vmatpush1.bf16.msra.mxu0 0
        %6188 = vmatprep.subr.bf16.mxu0 0
        %6189 = vmatpush1.bf16.msra.mxu0 0
        %6190 = vmatprep.subr.bf16.mxu0 0
        %6191 = vmatpush1.bf16.msra.mxu0 0
        %6192 = vmatprep.subr.bf16.mxu0 0
        %6193 = vmatpush1.bf16.msra.mxu0 0
        %6194 = vmatprep.subr.bf16.mxu0 0
        %6195 = vmatpush1.bf16.msra.mxu0 0
        %6196 = vmatprep.subr.bf16.mxu0 0
        %6197 = vmatpush1.bf16.msra.mxu0 0
        %6198 = vmatprep.mubr.bf16.mxu0 0
        %6199 = vmatmul.mubr.bf16.gmra.mrb[0].mxu0 %v6161
        %v6200 = vpop.f32.mrb[0].mxu0
        %v6201 = vadd.f32 %v6134, %v6200
        %v6202 = vpop.f32.mrb[0].mxu0
        %v6203 = vpop.f32.mrb[0].mxu0
        %v6204 = vadd.f32 %v6134, %v6203
        %v6205 = vpop.f32.mrb[0].mxu0
        %6206 = vmatprep.mubr.bf16.mxu0 0
        %6207 = vmatmul.mubr.bf16.gmra.mrb[0].mxu0 %v6164
        %v6208 = vpop.f32.mrb[0].mxu0
        %v6209 = vadd.f32 %v6134, %v6208
        %v6210 = vpop.f32.mrb[0].mxu0
        %v6211 = vpop.f32.mrb[0].mxu0
        %v6212 = vadd.f32 %v6134, %v6211
        %v6213 = vpop.f32.mrb[0].mxu0
        %6214 = vdwg.mxu0
        %v6215 = vadd.f32 %v6031, %v6201
        %v6216 = vadd.f32 %v6032, %v6204
        %v6217 = vadd.f32 %v6033, %v6209
        %v6218 = vadd.f32 %v6034, %v6212
        %v6219 = vld [vmem:[%s1323] sm:$0x1]
        %v6220 = vld [vmem:[%s1326] sm:$0x1]
        %v6221 = vsel %vm1384, %v6215, 0.0
        %6222 = vadd.xlane.f32.xlu0 %v6221
        %v6223 = vpop.xlane.xlu0 %6222
        %v6224 = vsel %vm1384, %v6216, 0.0
        %6225 = vadd.xlane.f32.xlu0 %v6224
        %v6226 = vpop.xlane.xlu0 %6225
        %v6227 = vsel %vm1384, %v6217, 0.0
        %6228 = vadd.xlane.f32.xlu0 %v6227
        %v6229 = vpop.xlane.xlu0 %6228
        %v6230 = vsel %vm1384, %v6218, 0.0
        %6231 = vadd.xlane.f32.xlu0 %v6230
        %v6232 = vpop.xlane.xlu0 %6231
        %v6233 = vmul.f32 %v6223, %v3560
        %v6234 = vmul.f32 %v6226, %v3560
        %v6235 = vmul.f32 %v6229, %v3560
        %v6236 = vmul.f32 %v6232, %v3560
        %v6237 = vsub.f32 %v6215, %v6233
        %v6238 = vsub.f32 %v6216, %v6234
        %v6239 = vsub.f32 %v6217, %v6235
        %v6240 = vsub.f32 %v6218, %v6236
        %v6241 = vmul.f32 %v6237, %v6237
        %v6242 = vmul.f32 %v6238, %v6238
        %v6243 = vmul.f32 %v6239, %v6239
        %v6244 = vmul.f32 %v6240, %v6240
        %v6245 = vsel %vm1384, %v6241, 0.0
        %6246 = vadd.xlane.f32.xlu0 %v6245
        %v6247 = vpop.xlane.xlu0 %6246
        %v6248 = vsel %vm1384, %v6242, 0.0
        %6249 = vadd.xlane.f32.xlu0 %v6248
        %v6250 = vpop.xlane.xlu0 %6249
        %v6251 = vsel %vm1384, %v6243, 0.0
        %6252 = vadd.xlane.f32.xlu0 %v6251
        %v6253 = vpop.xlane.xlu0 %6252
        %v6254 = vsel %vm1384, %v6244, 0.0
        %6255 = vadd.xlane.f32.xlu0 %v6254
        %v6256 = vpop.xlane.xlu0 %6255
        %v6257 = vmul.f32 %v6247, %v3560
        %v6258 = vmul.f32 %v6250, %v3560
        %v6259 = vmul.f32 %v6253, %v3560
        %v6260 = vmul.f32 %v6256, %v3560
        %v6261 = vadd.f32 %v6257, 1e-05
        %v6262 = vadd.f32 %v6258, 1e-05
        %v6263 = vadd.f32 %v6259, 1e-05
        %v6264 = vadd.f32 %v6260, 1e-05
        %v6265 = vrsqrt.pop %v6261
        %v6266 = vrsqrt.pop %v6262
        %v6267 = vrsqrt.pop %v6263
        %v6268 = vrsqrt.pop %v6264
        %v6269 = vmul.f32 %v6237, %v6265
        %v6270 = vmul.f32 %v6238, %v6266
        %v6271 = vmul.f32 %v6239, %v6267
        %v6272 = vmul.f32 %v6240, %v6268
        %v6274 = vlaneseq
        %v6275 = vshrl.u32 %v6274, 7
        %v6276 = vsub.s32 0, %v6275
        %v6277 = vrot.slane %v6219, %v6276
        %v6279 = vmul.f32 %v6269, %v6277
        %v6280 = vmul.f32 %v6270, %v6277
        %v6281 = vmul.f32 %v6271, %v6277
        %v6282 = vmul.f32 %v6272, %v6277
        %v6284 = vlaneseq
        %v6285 = vshrl.u32 %v6284, 7
        %v6286 = vsub.s32 0, %v6285
        %v6287 = vrot.slane %v6220, %v6286
        %v6289 = vadd.f32 %v6279, %v6287
        %v6290 = vadd.f32 %v6280, %v6287
        %v6291 = vadd.f32 %v6281, %v6287
        %v6292 = vadd.f32 %v6282, %v6287
        %6293 = vst.msk [vmem:[#allocation2] sm:$0xff] %vm1384, %v6289
        %6294 = vst.msk [vmem:[#allocation2 + $0x8] sm:$0xff] %vm1384, %v6290
        %6295 = vst.msk [vmem:[#allocation2 + $0x10] sm:$0xff] %vm1384, %v6291
        %6296 = vst.msk [vmem:[#allocation2 + $0x18] sm:$0xff] %vm1384, %v6292
        %p6297 = scmp.eq.s32.totalorder %s86, 1
        // Predicated region
        $region165: #{tpu_custom_call.1} parent=135 // pred_check
          %p6298 = pneg %p6297
        $region166: #{tpu_custom_call.1} parent=135 // pred_check_branch
          %6300 = sbr.rel (%p6298) target = $region168
        $region167: #{tpu_custom_call.1} parent=135 // pred_region
          %v6301 = vld [vmem:[%s47] sm:$0x1]
          %v6302 = vld [vmem:[%s49] sm:$0x1]
          %v6303 = vsel %vm1384, %v6289, 0.0
          %6304 = vadd.xlane.f32.xlu0 %v6303
          %v6305 = vpop.xlane.xlu0 %6304
          %v6306 = vsel %vm1384, %v6290, 0.0
          %6307 = vadd.xlane.f32.xlu0 %v6306
          %v6308 = vpop.xlane.xlu0 %6307
          %v6309 = vsel %vm1384, %v6291, 0.0
          %6310 = vadd.xlane.f32.xlu0 %v6309
          %v6311 = vpop.xlane.xlu0 %6310
          %v6312 = vsel %vm1384, %v6292, 0.0
          %6313 = vadd.xlane.f32.xlu0 %v6312
          %v6314 = vpop.xlane.xlu0 %6313
          %v6315 = vmul.f32 %v6305, %v3560
          %v6316 = vmul.f32 %v6308, %v3560
          %v6317 = vmul.f32 %v6311, %v3560
          %v6318 = vmul.f32 %v6314, %v3560
          %v6319 = vsub.f32 %v6289, %v6315
          %v6320 = vsub.f32 %v6290, %v6316
          %v6321 = vsub.f32 %v6291, %v6317
          %v6322 = vsub.f32 %v6292, %v6318
          %v6323 = vmul.f32 %v6319, %v6319
          %v6324 = vmul.f32 %v6320, %v6320
          %v6325 = vmul.f32 %v6321, %v6321
          %v6326 = vmul.f32 %v6322, %v6322
          %v6327 = vsel %vm1384, %v6323, 0.0
          %6328 = vadd.xlane.f32.xlu0 %v6327
          %v6329 = vpop.xlane.xlu0 %6328
          %v6330 = vsel %vm1384, %v6324, 0.0
          %6331 = vadd.xlane.f32.xlu0 %v6330
          %v6332 = vpop.xlane.xlu0 %6331
          %v6333 = vsel %vm1384, %v6325, 0.0
          %6334 = vadd.xlane.f32.xlu0 %v6333
          %v6335 = vpop.xlane.xlu0 %6334
          %v6336 = vsel %vm1384, %v6326, 0.0
          %6337 = vadd.xlane.f32.xlu0 %v6336
          %v6338 = vpop.xlane.xlu0 %6337
          %v6339 = vmul.f32 %v6329, %v3560
          %v6340 = vmul.f32 %v6332, %v3560
          %v6341 = vmul.f32 %v6335, %v3560
          %v6342 = vmul.f32 %v6338, %v3560
          %v6343 = vadd.f32 %v6339, 1e-05
          %v6344 = vadd.f32 %v6340, 1e-05
          %v6345 = vadd.f32 %v6341, 1e-05
          %v6346 = vadd.f32 %v6342, 1e-05
          %v6347 = vrsqrt.pop %v6343
          %v6348 = vrsqrt.pop %v6344
          %v6349 = vrsqrt.pop %v6345
          %v6350 = vrsqrt.pop %v6346
          %v6351 = vmul.f32 %v6319, %v6347
          %v6352 = vmul.f32 %v6320, %v6348
          %v6353 = vmul.f32 %v6321, %v6349
          %v6354 = vmul.f32 %v6322, %v6350
          %v6356 = vlaneseq
          %v6357 = vshrl.u32 %v6356, 7
          %v6358 = vsub.s32 0, %v6357
          %v6359 = vrot.slane %v6301, %v6358
          %v6361 = vmul.f32 %v6351, %v6359
          %v6362 = vmul.f32 %v6352, %v6359
          %v6363 = vmul.f32 %v6353, %v6359
          %v6364 = vmul.f32 %v6354, %v6359
          %v6366 = vlaneseq
          %v6367 = vshrl.u32 %v6366, 7
          %v6368 = vsub.s32 0, %v6367
          %v6369 = vrot.slane %v6302, %v6368
          %v6371 = vadd.f32 %v6361, %v6369
          %v6372 = vadd.f32 %v6362, %v6369
          %v6373 = vadd.f32 %v6363, %v6369
          %v6374 = vadd.f32 %v6364, %v6369
          %v6375 = vpack.c.bf16 %v6372, %v6371
          %v6376 = vpack.c.bf16 %v6374, %v6373
          %v6377 = vld [vmem:[%s51] sm:$0xf]
          %v6378 = vld [vmem:[%s51 + $0x4] sm:$0xf]
          %v6379 = vld [vmem:[%s51 + $0x8] sm:$0xf]
          %v6380 = vld [vmem:[%s51 + $0xc] sm:$0xf]
          %v6381 = vld [vmem:[%s53] sm:$0x1]
          %v6383 = vlaneseq
          %v6384 = vshrl.u32 %v6383, 7
          %v6385 = vsub.s32 0, %v6384
          %v6386 = vrot.slane %v6381, %v6385
          %v6392 = vunpack.c.l.b16 %v6377
          %v6393 = vunpack.c.l.b16 %v6378
          %v6394 = vunpack.c.l.b16 %v6379
          %v6395 = vunpack.c.l.b16 %v6380
          %v6396 = vpack.c.b16 %v6393, %v6392
          %v6397 = vpack.c.b16 %v6395, %v6394
          %v6401 = vsel %vm1384, %v6375, 0
          %v6404 = vsel %vm1384, %v6376, 0
          %6406 = vmatprep.subr.bf16.mxu0 0
          %6407 = vmatpush1.bf16.msra.mxu0 %v6396
          %6408 = vmatprep.subr.bf16.mxu0 0
          %6409 = vmatpush1.bf16.msra.mxu0 %v6397
          %6410 = vmatprep.subr.bf16.mxu0 0
          %6411 = vmatpush1.bf16.msra.mxu0 0
          %6412 = vmatprep.subr.bf16.mxu0 0
          %6413 = vmatpush1.bf16.msra.mxu0 0
          %6414 = vmatprep.subr.bf16.mxu0 0
          %6415 = vmatpush1.bf16.msra.mxu0 0
          %6416 = vmatprep.subr.bf16.mxu0 0
          %6417 = vmatpush1.bf16.msra.mxu0 0
          %6418 = vmatprep.subr.bf16.mxu0 0
          %6419 = vmatpush1.bf16.msra.mxu0 0
          %6420 = vmatprep.subr.bf16.mxu0 0
          %6421 = vmatpush1.bf16.msra.mxu0 0
          %6422 = vmatprep.subr.bf16.mxu0 0
          %6423 = vmatpush1.bf16.msra.mxu0 0
          %6424 = vmatprep.subr.bf16.mxu0 0
          %6425 = vmatpush1.bf16.msra.mxu0 0
          %6426 = vmatprep.subr.bf16.mxu0 0
          %6427 = vmatpush1.bf16.msra.mxu0 0
          %6428 = vmatprep.subr.bf16.mxu0 0
          %6429 = vmatpush1.bf16.msra.mxu0 0
          %6430 = vmatprep.subr.bf16.mxu0 0
          %6431 = vmatpush1.bf16.msra.mxu0 0
          %6432 = vmatprep.subr.bf16.mxu0 0
          %6433 = vmatpush1.bf16.msra.mxu0 0
          %6434 = vmatprep.subr.bf16.mxu0 0
          %6435 = vmatpush1.bf16.msra.mxu0 0
          %6436 = vmatprep.subr.bf16.mxu0 0
          %6437 = vmatpush1.bf16.msra.mxu0 0
          %6438 = vmatprep.mubr.bf16.mxu0 0
          %6439 = vmatmul.mubr.bf16.gmra.mrb[0].mxu0 %v6401
          %v6440 = vpop.f32.mrb[0].mxu0
          %v6441 = vadd.f32 %v6386, %v6440
          %v6442 = vpop.f32.mrb[0].mxu0
          %v6443 = vpop.f32.mrb[0].mxu0
          %v6444 = vadd.f32 %v6386, %v6443
          %v6445 = vpop.f32.mrb[0].mxu0
          %6446 = vmatprep.mubr.bf16.mxu0 0
          %6447 = vmatmul.mubr.bf16.gmra.mrb[0].mxu0 %v6404
          %v6448 = vpop.f32.mrb[0].mxu0
          %v6449 = vadd.f32 %v6386, %v6448
          %v6450 = vpop.f32.mrb[0].mxu0
          %v6451 = vpop.f32.mrb[0].mxu0
          %v6452 = vadd.f32 %v6386, %v6451
          %v6453 = vpop.f32.mrb[0].mxu0
          %6454 = vdwg.mxu0
          %vm6455 = vcmp.ge.f32.partialorder %v6441, 0.0
          %vm6456 = vcmp.ge.f32.partialorder %v6444, 0.0
          %vm6457 = vcmp.ge.f32.partialorder %v6449, 0.0
          %vm6458 = vcmp.ge.f32.partialorder %v6452, 0.0
          %v6459 = vmul.f32 %v6441, 0.1
          %v6460 = vmul.f32 %v6444, 0.1
          %v6461 = vmul.f32 %v6449, 0.1
          %v6462 = vmul.f32 %v6452, 0.1
          %v6463 = vsel %vm6455, %v6441, %v6459
          %v6464 = vsel %vm6456, %v6444, %v6460
          %v6465 = vsel %vm6457, %v6449, %v6461
          %v6466 = vsel %vm6458, %v6452, %v6462
          %v6467 = vld [vmem:[%s55] sm:$0x1]
          %v6468 = vunpack.c.l.bf16 %v6467
          %v6469 = vlaneseq
          %v6470 = vshrl.u32 %v6469, 7
          %v6471 = vsub.s32 0, %v6470
          %v6472 = vrot.slane %v6468, %v6471
          %v6473 = vmul.f32 %v6463, %v6472
          %v6474 = vmul.f32 %v6464, %v6472
          %v6475 = vmul.f32 %v6465, %v6472
          %v6476 = vmul.f32 %v6466, %v6472
          %v6477 = vsel %vm1384, %v6473, 0.0
          %6478 = vadd.xlane.f32.xlu0 %v6477
          %v6479 = vpop.xlane.xlu0 %6478
          %v6480 = vsel %vm1384, %v6474, 0.0
          %6481 = vadd.xlane.f32.xlu0 %v6480
          %v6482 = vpop.xlane.xlu0 %6481
          %v6483 = vsel %vm1384, %v6475, 0.0
          %6484 = vadd.xlane.f32.xlu0 %v6483
          %v6485 = vpop.xlane.xlu0 %6484
          %v6486 = vsel %vm1384, %v6476, 0.0
          %6487 = vadd.xlane.f32.xlu0 %v6486
          %v6488 = vpop.xlane.xlu0 %6487
          %v6489 = vld [vmem:[#allocation6] sm:$0x1]
          %v6491 = vlaneseq
          %v6492 = vshrl.u32 %v6491, 7
          %v6493 = vsub.s32 0, %v6492
          %v6494 = vrot.slane %v6489, %v6493
          %6495 = vset.pattern.permute.xlu0 0
          %6496 = vperm.xlu0 %6495, %v6494
          %v6497 = vpop.permute.xlu0 %6496
          %v6499 = vadd.f32 %v6479, %v6497
          %v6500 = vadd.f32 %v6482, %v6497
          %v6501 = vadd.f32 %v6485, %v6497
          %v6502 = vadd.f32 %v6488, %v6497
          %v6503 = vsub.f32 0.0, %v6499
          %v6504 = vsub.f32 0.0, %v6500
          %v6505 = vsub.f32 0.0, %v6501
          %v6506 = vsub.f32 0.0, %v6502
          %v6507 = vmul.f32 %v6503, 1.442695
          %v6508 = vpow.pop %v6507
          %v6509 = vmul.f32 %v6504, 1.442695
          %v6510 = vpow.pop %v6509
          %v6511 = vmul.f32 %v6505, 1.442695
          %v6512 = vpow.pop %v6511
          %v6513 = vmul.f32 %v6506, 1.442695
          %v6514 = vpow.pop %v6513
          %v6515 = vadd.f32 %v6508, 1.0
          %v6516 = vadd.f32 %v6510, 1.0
          %v6517 = vadd.f32 %v6512, 1.0
          %v6518 = vadd.f32 %v6514, 1.0
          %v6519 = vrcp.pop %v6515
          %v6520 = vrcp.pop %v6516
          %v6521 = vrcp.pop %v6517
          %v6522 = vrcp.pop %v6518
          %v6527 = vlaneseq
          %v6528 = vshrl.u32 %v6527, 7
          %v6529 = vsub.s32 %v1356, %v6528
          %v6530 = vrot.slane %v6519, %v6529
          %v6531 = vlaneseq
          %v6532 = vshrl.u32 %v6531, 7
          %v6533 = vsub.s32 %v1356, %v6532
          %v6534 = vrot.slane %v6520, %v6533
          %v6535 = vlaneseq
          %v6536 = vshrl.u32 %v6535, 7
          %v6537 = vsub.s32 %v1356, %v6536
          %v6538 = vrot.slane %v6521, %v6537
          %v6539 = vlaneseq
          %v6540 = vshrl.u32 %v6539, 7
          %v6541 = vsub.s32 %v1356, %v6540
          %v6542 = vrot.slane %v6522, %v6541
          %vm6547 = vcmask 57344
          %6548 = vst.msk [vmem:[#allocation18] sm:$0x1] %vm6547, %v6530
          %6549 = vst.msk [vmem:[#allocation18 + $0x1] sm:$0x1] %vm6547, %v6534
          %6550 = vst.msk [vmem:[#allocation18 + $0x2] sm:$0x1] %vm6547, %v6538
          %6551 = vst.msk [vmem:[#allocation18 + $0x3] sm:$0x1] %vm6547, %v6542
        $region168: #{tpu_custom_call.1} parent=135 // pred_fallthru
          _
        // Predicated region
        $region169: #{tpu_custom_call.1} parent=135 // pred_check
          %p6552 = pneg %p830
        $region170: #{tpu_custom_call.1} parent=135 // pred_check_branch
          %6554 = sbr.rel (%p6552) target = $region172
        $region171: #{tpu_custom_call.1} parent=135 // pred_region
          %s6555 = smul.u32 4, %s85
          %s6557 = ssub.s32 64, 64
          %6558 = vsyncadd [#allocation9], %s6557
          %s6559 = smul.addr %s6555, 16
          %s6560 = scalar_lea.hbm %s59, %s6559
          %s6561 = sshll.u32 [#allocation18], 4
          %s6562 = int_to_ptr.vmem [resolvable:$true] %s6561
          %6567 = dma.vmem_to_hbm [thread:$0]  %s6562, 64, %s6560, [#allocation9], 16, 16, 1
        $region172: #{tpu_custom_call.1} parent=135 // pred_fallthru
          _
        // Predicated region
        $region173: #{tpu_custom_call.1} parent=135 // pred_check
          %p6568 = pneg %p830
        $region174: #{tpu_custom_call.1} parent=135 // pred_check_branch
          %6570 = sbr.rel (%p6568) target = $region176
        $region175: #{tpu_custom_call.1} parent=135 // pred_region
          %6571 = dma.done [#allocation9], 64
        $region176: #{tpu_custom_call.1} parent=135 // pred_fallthru
          _
      $region136: #{tpu_custom_call.1} parent=5 // pred_fallthru
        _
      %p6572 = scmp.le.s32.totalorder 2, %s76
      // Predicated region
      $region177: #{tpu_custom_call.1} parent=5 // pred_check
        %p6573 = pneg %p6572
      $region178: #{tpu_custom_call.1} parent=5 // pred_check_branch
        %6575 = sbr.rel (%p6573) target = $region180
      $region179: #{tpu_custom_call.1} parent=5 // pred_region
        %s6576 = ssub.s32 %s76, 2
      $region180: #{tpu_custom_call.1} parent=5 // pred_fallthru
        _
    $region6: #{tpu_custom_call.1} parent=1 // loop_footer
      %s80 = sadd.s32 1, %s76
    $region7: #{tpu_custom_call.1} parent=1 // loop_footer_branch
      %75 = sbr.rel target = $region3
    $region8: #{tpu_custom_call.1} parent=1 // loop_exit
      _
    %6577 = vsyncpa [#allocation8], 1
    %s6578 = scalar_lea.sflag [#allocation8], 1
    %6579 = vsyncpa %s6578, 1
    %6580 = vsyncpa [#allocation11], 1
    %6581 = vsyncpa [#allocation14], 1
    %s6582 = scalar_lea.sflag [#allocation14], 1
    %6583 = vsyncpa %s6582, 1
    %6584 = vsyncpa [#allocation17], 1
    %s6585 = scalar_lea.sflag [#allocation17], 1
    %6586 = vsyncpa %s6585, 1
    %6587 = vsyncpa [#allocation9], 1
    %s6588 = scalar_lea.sflag [#allocation9], 1
    %6589 = vsyncpa %s6588, 1

</llo_original>
